<compile_context>
chip_gen: v6e
topology: v6e:2x2x1
jax: 0.10.0
libtpu: 0.0.40
codegen_flags: <defaults>
</compile_context>

<pallas_src>
import jax
import jax.numpy as jnp
from jax.experimental import pallas as pl
from jax.experimental.pallas import tpu as pltpu

D_IN, H1, H2, H3, D_OUT = 2640, 1024, 256, 64, 1


def _round_up(n, m):
    return ((n + m - 1) // m) * m


def mlp_kernel(x_ref, w1_ref, b1_ref, w2_ref, b2_ref,
               w3_ref, b3_ref, w4_ref, b4_ref, o_ref):
    # x arrives f32; cast to bf16 on the VPU right at the MXU feed (keeps
    # wrapper HBM traffic at 4 B/elem, MXU still runs bf16 operands).
    x = x_ref[...].astype(jnp.bfloat16)
    h = jnp.dot(x, w1_ref[...], preferred_element_type=jnp.float32) + b1_ref[...]
    h = jnp.maximum(h, 0.0)
    h = jnp.dot(h.astype(jnp.bfloat16), w2_ref[...],
                preferred_element_type=jnp.float32) + b2_ref[...]
    h = jnp.maximum(h, 0.0)
    h = jnp.dot(h.astype(jnp.bfloat16), w3_ref[...],
                preferred_element_type=jnp.float32) + b3_ref[...]
    h = jnp.maximum(h, 0.0)
    # Layer 4 (64 -> 1): VPU broadcast-mul + XLU lane reduce (no N=1 MXU pass).
    y = jnp.sum(h * w4_ref[...], axis=-1, keepdims=True) + b4_ref[...]
    o_ref[...] = y.astype(o_ref.dtype)


def prepare_params(params):
    """One-time layout prep: big matmul weights -> bf16 (kernel is weight-HBM
    bound at small B), biases f32, tiny (64,1) head kept f32 as a (1,64)
    broadcast row for the VPU path.  No K padding — W1 stays (2640, 1024)."""
    (w1, b1), (w2, b2), (w3, b3), (w4, b4) = params
    return (
        w1.astype(jnp.bfloat16), b1.astype(jnp.float32),
        w2.astype(jnp.bfloat16), b2.astype(jnp.float32),
        w3.astype(jnp.bfloat16), b3.astype(jnp.float32),
        w4.reshape(1, H3).astype(jnp.float32), b4.astype(jnp.float32),
    )


def _choose_batch_tile(B, tm_max):
    """Balanced tiles: (a) bound zero-row padding instead of rounding B up to
    a fixed tile (no B=300 -> 512 blowup), (b) give the grid >= 2 steps
    whenever B allows so both v7x TensorCores get batch tiles, (c) round to
    16 rows since bf16 packs 16 sublanes per vreg."""
    n_tiles = pl.cdiv(B, tm_max)
    if B >= 32:
        n_tiles = max(n_tiles, 2)
    return _round_up(pl.cdiv(B, n_tiles), 16)


def mlp_forward(x, prepared, *, tm_max=512):
    """x: (B, 2640) f32.  prepared: output of prepare_params."""
    B = x.shape[0]
    w1, b1, w2, b2, w3, b3, w4, b4 = prepared

    tm = _choose_batch_tile(B, tm_max)
    B_pad = _round_up(B, tm)
    if B_pad != B:
        # Tail-only zero pad (no dtype cast, no feature-dim pad); the aligned-B
        # case takes zero extra passes over x.
        x = jnp.pad(x, ((0, B_pad - B), (0, 0)))

    def resident(shape):
        # Grid-invariant weights/biases: single-buffer so VMEM isn't spent on a
        # second copy of W1.
        return pl.BlockSpec(shape, lambda i: (0, 0), pipeline_mode=pl.Buffered(1))

    flops = 2 * B_pad * (D_IN * H1 + H1 * H2 + H2 * H3 + H3 * D_OUT)
    bytes_accessed = int(
        B_pad * D_IN * 4 + B_pad * D_OUT * 4
        + (w1.size + w2.size + w3.size) * 2
        + (b1.size + b2.size + b3.size + w4.size + b4.size) * 4)

    out = pl.pallas_call(
        mlp_kernel,
        out_shape=jax.ShapeDtypeStruct((B_pad, D_OUT), jnp.float32),
        grid_spec=pltpu.PrefetchScalarGridSpec(
            num_scalar_prefetch=0,
            grid=(B_pad // tm,),
            in_specs=[
                pl.BlockSpec((tm, D_IN), lambda i: (i, 0)),
                resident((D_IN, H1)), resident((1, H1)),
                resident((H1, H2)),   resident((1, H2)),
                resident((H2, H3)),   resident((1, H3)),
                resident((1, H3)),    resident((1, D_OUT)),
            ],
            out_specs=pl.BlockSpec((tm, D_OUT), lambda i: (i, 0)),
        ),
        compiler_params=pltpu.CompilerParams(
            dimension_semantics=("parallel",),
            vmem_limit_bytes=48 * 1024 * 1024,
        ),
        cost_estimate=pl.CostEstimate(
            flops=int(flops), transcendentals=0, bytes_accessed=bytes_accessed),
    )(x, w1, b1, w2, b2, w3, b3, w4, b4)

    return out[:B] if B_pad != B else out


def init_params(key):
    """Deterministic init mimicking nn.Linear's U(-1/sqrt(fan_in), 1/sqrt(fan_in))."""
    dims = [(D_IN, H1), (H1, H2), (H2, H3), (H3, D_OUT)]
    params = []
    for fan_in, fan_out in dims:
        key, kw, kb = jax.random.split(key, 3)
        bound = 1.0 / jnp.sqrt(fan_in)
        w = jax.random.uniform(kw, (fan_in, fan_out), jnp.float32, -bound, bound)
        b = jax.random.uniform(kb, (1, fan_out), jnp.float32, -bound, bound)
        params.append((w, b))
    return params


def reference_forward(x, params):
    """Pure-JAX reference mirroring the kernel's numerics (bf16 MXU operands
    for the three big layers, f32 accumulation, f32 head)."""
    (w1, b1), (w2, b2), (w3, b3), (w4, b4) = params
    h = jnp.dot(x.astype(jnp.bfloat16), w1.astype(jnp.bfloat16),
                preferred_element_type=jnp.float32) + b1
    h = jnp.maximum(h, 0.0)
    h = jnp.dot(h.astype(jnp.bfloat16), w2.astype(jnp.bfloat16),
                preferred_element_type=jnp.float32) + b2
    h = jnp.maximum(h, 0.0)
    h = jnp.dot(h.astype(jnp.bfloat16), w3.astype(jnp.bfloat16),
                preferred_element_type=jnp.float32) + b3
    h = jnp.maximum(h, 0.0)
    return jnp.dot(h, w4) + b4


if __name__ == "__main__":
    key = jax.random.PRNGKey(0)
    key, kx1, kx2 = jax.random.split(key, 3)
    params = init_params(key)
    prepared = prepare_params(params)

    # Small batch (not a multiple of 16): single-tile + tail-pad path.
    B1 = 6
    x1 = jax.random.normal(kx1, (B1, D_IN), jnp.float32)
    out1 = jax.block_until_ready(mlp_forward(x1, prepared))
    ref1 = reference_forward(x1, params)
    assert out1.shape == (B1, D_OUT)
    assert jnp.allclose(out1, ref1, atol=2e-3, rtol=2e-3)

    # Slightly larger batch: exercises the >=2-tile (megacore) grid path.
    B2 = 40
    x2 = jax.random.normal(kx2, (B2, D_IN), jnp.float32)
    out2 = jax.block_until_ready(mlp_forward(x2, prepared))
    ref2 = reference_forward(x2, params)
    assert out2.shape == (B2, D_OUT)
    assert jnp.allclose(out2, ref2, atol=2e-3, rtol=2e-3)

    print("KERNEL_OK")
</pallas_src>

<mosaic_0001>
module attributes {stable_mosaic.version = 11 : i64} {
  func.func @mlp_kernel(%arg0: i32, %arg1: memref<16x2640xf32, #tpu.memory_space<vmem>>, %arg2: memref<2640x1024xbf16, #tpu.memory_space<vmem>>, %arg3: memref<1x1024xf32, #tpu.memory_space<vmem>>, %arg4: memref<1024x256xbf16, #tpu.memory_space<vmem>>, %arg5: memref<1x256xf32, #tpu.memory_space<vmem>>, %arg6: memref<256x64xbf16, #tpu.memory_space<vmem>>, %arg7: memref<1x64xf32, #tpu.memory_space<vmem>>, %arg8: memref<1x64xf32, #tpu.memory_space<vmem>>, %arg9: memref<1x1xf32, #tpu.memory_space<vmem>>, %arg10: memref<16x1xf32, #tpu.memory_space<vmem>>) attributes {dimension_semantics = [#tpu.dimension_semantics<parallel>], iteration_bounds = array<i64: 1>, scalar_prefetch = 0 : i64, scratch_operands = 0 : i64, tpu.core_type = #tpu.core_type<tc>, window_params = [{transform_indices = @transform_0, window_bounds = array<i64: 16, 2640>}, {pipeline_mode = #tpu.pipeline_mode<synchronous>, transform_indices = @transform_1, window_bounds = array<i64: 2640, 1024>}, {pipeline_mode = #tpu.pipeline_mode<synchronous>, transform_indices = @transform_2, window_bounds = array<i64: 1, 1024>}, {pipeline_mode = #tpu.pipeline_mode<synchronous>, transform_indices = @transform_3, window_bounds = array<i64: 1024, 256>}, {pipeline_mode = #tpu.pipeline_mode<synchronous>, transform_indices = @transform_4, window_bounds = array<i64: 1, 256>}, {pipeline_mode = #tpu.pipeline_mode<synchronous>, transform_indices = @transform_5, window_bounds = array<i64: 256, 64>}, {pipeline_mode = #tpu.pipeline_mode<synchronous>, transform_indices = @transform_6, window_bounds = array<i64: 1, 64>}, {pipeline_mode = #tpu.pipeline_mode<synchronous>, transform_indices = @transform_7, window_bounds = array<i64: 1, 64>}, {pipeline_mode = #tpu.pipeline_mode<synchronous>, transform_indices = @transform_8, window_bounds = array<i64: 1, 1>}, {transform_indices = @transform_9, window_bounds = array<i64: 16, 1>}]} {
    %c0 = arith.constant 0 : index
    %c0_0 = arith.constant 0 : index
    %0 = vector.load %arg1[%c0, %c0_0] : memref<16x2640xf32, #tpu.memory_space<vmem>>, vector<16x2640xf32>
    %1 = arith.truncf %0 : vector<16x2640xf32> to vector<16x2640xbf16>
    %c0_1 = arith.constant 0 : index
    %c0_2 = arith.constant 0 : index
    %2 = vector.load %arg2[%c0_1, %c0_2] : memref<2640x1024xbf16, #tpu.memory_space<vmem>>, vector<2640x1024xbf16>
    %cst = arith.constant dense<0.000000e+00> : vector<16x1024xf32>
    %3 = tpu.matmul %1, %2, %cst {dimension_numbers = #tpu.dot_dimension_numbers<[1], [0], [0], [1], [0, 0, 1, 1], [], []>} : vector<16x2640xbf16>, vector<2640x1024xbf16>, vector<16x1024xf32> -> vector<16x1024xf32>
    %c0_3 = arith.constant 0 : index
    %c0_4 = arith.constant 0 : index
    %4 = vector.load %arg3[%c0_3, %c0_4] : memref<1x1024xf32, #tpu.memory_space<vmem>>, vector<1x1024xf32>
    %5 = vector.broadcast %4 : vector<1x1024xf32> to vector<16x1024xf32>
    %6 = arith.addf %3, %5 : vector<16x1024xf32>
    %cst_5 = arith.constant 0.000000e+00 : f32
    %7 = vector.broadcast %cst_5 : f32 to vector<16x1024xf32>
    %8 = arith.maximumf %6, %7 : vector<16x1024xf32>
    %9 = arith.truncf %8 : vector<16x1024xf32> to vector<16x1024xbf16>
    %c0_6 = arith.constant 0 : index
    %c0_7 = arith.constant 0 : index
    %10 = vector.load %arg4[%c0_6, %c0_7] : memref<1024x256xbf16, #tpu.memory_space<vmem>>, vector<1024x256xbf16>
    %cst_8 = arith.constant dense<0.000000e+00> : vector<16x256xf32>
    %11 = tpu.matmul %9, %10, %cst_8 {dimension_numbers = #tpu.dot_dimension_numbers<[1], [0], [0], [1], [0, 0, 1, 1], [], []>} : vector<16x1024xbf16>, vector<1024x256xbf16>, vector<16x256xf32> -> vector<16x256xf32>
    %c0_9 = arith.constant 0 : index
    %c0_10 = arith.constant 0 : index
    %12 = vector.load %arg5[%c0_9, %c0_10] : memref<1x256xf32, #tpu.memory_space<vmem>>, vector<1x256xf32>
    %13 = vector.broadcast %12 : vector<1x256xf32> to vector<16x256xf32>
    %14 = arith.addf %11, %13 : vector<16x256xf32>
    %cst_11 = arith.constant 0.000000e+00 : f32
    %15 = vector.broadcast %cst_11 : f32 to vector<16x256xf32>
    %16 = arith.maximumf %14, %15 : vector<16x256xf32>
    %17 = arith.truncf %16 : vector<16x256xf32> to vector<16x256xbf16>
    %c0_12 = arith.constant 0 : index
    %c0_13 = arith.constant 0 : index
    %18 = vector.load %arg6[%c0_12, %c0_13] : memref<256x64xbf16, #tpu.memory_space<vmem>>, vector<256x64xbf16>
    %cst_14 = arith.constant dense<0.000000e+00> : vector<16x64xf32>
    %19 = tpu.matmul %17, %18, %cst_14 {dimension_numbers = #tpu.dot_dimension_numbers<[1], [0], [0], [1], [0, 0, 1, 1], [], []>} : vector<16x256xbf16>, vector<256x64xbf16>, vector<16x64xf32> -> vector<16x64xf32>
    %c0_15 = arith.constant 0 : index
    %c0_16 = arith.constant 0 : index
    %20 = vector.load %arg7[%c0_15, %c0_16] : memref<1x64xf32, #tpu.memory_space<vmem>>, vector<1x64xf32>
    %21 = vector.broadcast %20 : vector<1x64xf32> to vector<16x64xf32>
    %22 = arith.addf %19, %21 : vector<16x64xf32>
    %cst_17 = arith.constant 0.000000e+00 : f32
    %23 = vector.broadcast %cst_17 : f32 to vector<16x64xf32>
    %24 = arith.maximumf %22, %23 : vector<16x64xf32>
    %c0_18 = arith.constant 0 : index
    %c0_19 = arith.constant 0 : index
    %25 = vector.load %arg8[%c0_18, %c0_19] : memref<1x64xf32, #tpu.memory_space<vmem>>, vector<1x64xf32>
    %26 = vector.broadcast %25 : vector<1x64xf32> to vector<16x64xf32>
    %27 = arith.mulf %24, %26 : vector<16x64xf32>
    %cst_20 = arith.constant dense<0.000000e+00> : vector<16xf32>
    %28 = vector.multi_reduction <add>, %27, %cst_20 [1] : vector<16x64xf32> to vector<16xf32>
    %29 = vector.shape_cast %28 : vector<16xf32> to vector<16x1xf32>
    %c0_21 = arith.constant 0 : index
    %c0_22 = arith.constant 0 : index
    %30 = vector.load %arg9[%c0_21, %c0_22] : memref<1x1xf32, #tpu.memory_space<vmem>>, vector<1x1xf32>
    %31 = vector.broadcast %30 : vector<1x1xf32> to vector<16x1xf32>
    %32 = arith.addf %29, %31 : vector<16x1xf32>
    %c0_23 = arith.constant 0 : index
    %c0_24 = arith.constant 0 : index
    %33 = vector.load %arg10[%c0_23, %c0_24] : memref<16x1xf32, #tpu.memory_space<vmem>>, vector<16x1xf32>
    tpu.vector_store %arg10[%c0_23, %c0_24], %32 {strides = array<i32>} : memref<16x1xf32, #tpu.memory_space<vmem>>, vector<16x1xf32>,
    return
  }
  func.func @transform_0(%arg0: i32) -> (i32, i32) {
    %c0_i32 = arith.constant 0 : i32
    %c0_i32_0 = arith.constant 0 : i32
    return %arg0, %c0_i32 : i32, i32
  }
  func.func @transform_1(%arg0: i32) -> (i32, i32) {
    %c0_i32 = arith.constant 0 : i32
    %c0_i32_0 = arith.constant 0 : i32
    %c0_i32_1 = arith.constant 0 : i32
    return %c0_i32, %c0_i32_0 : i32, i32
  }
  func.func @transform_2(%arg0: i32) -> (i32, i32) {
    %c0_i32 = arith.constant 0 : i32
    %c0_i32_0 = arith.constant 0 : i32
    %c0_i32_1 = arith.constant 0 : i32
    return %c0_i32, %c0_i32_0 : i32, i32
  }
  func.func @transform_3(%arg0: i32) -> (i32, i32) {
    %c0_i32 = arith.constant 0 : i32
    %c0_i32_0 = arith.constant 0 : i32
    %c0_i32_1 = arith.constant 0 : i32
    return %c0_i32, %c0_i32_0 : i32, i32
  }
  func.func @transform_4(%arg0: i32) -> (i32, i32) {
    %c0_i32 = arith.constant 0 : i32
    %c0_i32_0 = arith.constant 0 : i32
    %c0_i32_1 = arith.constant 0 : i32
    return %c0_i32, %c0_i32_0 : i32, i32
  }
  func.func @transform_5(%arg0: i32) -> (i32, i32) {
    %c0_i32 = arith.constant 0 : i32
    %c0_i32_0 = arith.constant 0 : i32
    %c0_i32_1 = arith.constant 0 : i32
    return %c0_i32, %c0_i32_0 : i32, i32
  }
  func.func @transform_6(%arg0: i32) -> (i32, i32) {
    %c0_i32 = arith.constant 0 : i32
    %c0_i32_0 = arith.constant 0 : i32
    %c0_i32_1 = arith.constant 0 : i32
    return %c0_i32, %c0_i32_0 : i32, i32
  }
  func.func @transform_7(%arg0: i32) -> (i32, i32) {
    %c0_i32 = arith.constant 0 : i32
    %c0_i32_0 = arith.constant 0 : i32
    %c0_i32_1 = arith.constant 0 : i32
    return %c0_i32, %c0_i32_0 : i32, i32
  }
  func.func @transform_8(%arg0: i32) -> (i32, i32) {
    %c0_i32 = arith.constant 0 : i32
    %c0_i32_0 = arith.constant 0 : i32
    %c0_i32_1 = arith.constant 0 : i32
    return %c0_i32, %c0_i32_0 : i32, i32
  }
  func.func @transform_9(%arg0: i32) -> (i32, i32) {
    %c0_i32 = arith.constant 0 : i32
    %c0_i32_0 = arith.constant 0 : i32
    return %arg0, %c0_i32 : i32, i32
  }
}

</mosaic_0001>

<llo_original>
// kernel: tpu_custom_call.1
$region0: #{tpu_custom_call.1}
  #allocation0 [shape = 'u32[]', space=smem, size = 0x4, offset = 0x4, fixed_abs, tag = 'smem constant byte address 0x4 - core index']
  #allocation1 [shape = 'u32[144,128]{1,0:T(1,128)}', space=vmem, size = 0x12000, scoped, tag = 'internal scratch']
  #allocation2 [shape = 'f32[1,1]{1,0:T(1,128)S(1)}', space=vmem, size = 0x200, scoped, tag = 'scoped memory for tpu_custom_call.1']
  %s0 = inlined_call_operand.hbm [shape: f32[16,2640], index: 0, kind: input, shape index: {}]
  %s1 = inlined_call_operand.hbm [shape: bf16[2640,1024], index: 1, kind: input, shape index: {}]
  %s2 = inlined_call_operand.hbm [shape: f32[1,1024], index: 2, kind: input, shape index: {}]
  %s3 = inlined_call_operand.hbm [shape: bf16[1024,256], index: 3, kind: input, shape index: {}]
  %s4 = inlined_call_operand.hbm [shape: f32[1,256], index: 4, kind: input, shape index: {}]
  %s5 = inlined_call_operand.vmem [shape: bf16[256,64], index: 5, kind: input, shape index: {}]
  %s6 = inlined_call_operand.hbm [shape: f32[1,64], index: 6, kind: input, shape index: {}]
  %s7 = inlined_call_operand.hbm [shape: f32[1,64], index: 7, kind: input, shape index: {}]
  %s8 = inlined_call_operand.<no memory space> [shape: f32[1,1], index: 8, kind: input, shape index: {}]
  %s9 = inlined_call_operand.vmem [shape: f32[16,1], index: 9, kind: output, shape index: {}]
  %s10 = sld [smem:[#allocation0]]
  $region74: #{tpu_custom_call.1} parent=0
    _
  %s12 = ssub.s32 1, %s10
  %s13 = scalar_select 0, %s12, %s10
  %v14 = vstv %s8
  %15 = vst [vmem:[#allocation2] sm:$0x1] %v14
  $region1: #{tpu_custom_call.1} parent=0
    #allocation3 [shape = 'u8[172032]{0}', space=vmem, size = 0x2a000, scoped, tag = 'input window, operand 0, single buffered']
    #allocation4 [shape = 's32[1]{0}', space=sflag, size = 0x4, scoped, tag = 'scoped memory for tpu_custom_call.1']
    #allocation5 [shape = 'u8[5406720]{0}', space=vmem, size = 0x528000, scoped, tag = 'input window, operand 1, single buffered']
    #allocation6 [shape = 's32[1]{0}', space=sflag, size = 0x4, scoped, tag = 'scoped memory for tpu_custom_call.1']
    #allocation7 [shape = 'u8[4096]{0}', space=vmem, size = 0x1000, scoped, tag = 'input window, operand 2, single buffered']
    #allocation8 [shape = 'u8[524288]{0}', space=vmem, size = 0x80000, scoped, tag = 'input window, operand 3, single buffered']
    #allocation9 [shape = 's32[1]{0}', space=sflag, size = 0x4, scoped, tag = 'scoped memory for tpu_custom_call.1']
    #allocation10 [shape = 'u8[1024]{0}', space=vmem, size = 0x400, scoped, tag = 'input window, operand 4, single buffered']
    #allocation11 [shape = 'u8[512]{0}', space=vmem, size = 0x400, scoped, tag = 'input window, operand 6, single buffered']
    #allocation12 [shape = 's32[1]{0}', space=sflag, size = 0x4, scoped, tag = 'scoped memory for tpu_custom_call.1']
    #allocation13 [shape = 'u8[512]{0}', space=vmem, size = 0x400, scoped, tag = 'input window, operand 7, single buffered']
    %16 = vsyncpa [#allocation4], 0
    %17 = vsyncpa [#allocation6], 0
    %18 = vsyncpa [#allocation9], 0
    %19 = vsyncpa [#allocation12], 0
    // Predicated region
    $region2: #{tpu_custom_call.1} parent=1 // pred_check
      _
    $region3: #{tpu_custom_call.1} parent=1 // pred_check_branch
      %21 = sbr.rel (0) target = $region5
    $region4: #{tpu_custom_call.1} parent=1 // pred_region
      %s23 = ssub.s32 5376, 5376
      %24 = vsyncadd [#allocation4], %s23
      %s25 = sshll.u32 [#allocation3], 4
      %s26 = int_to_ptr.vmem [resolvable:$true] %s25
      %31 = dma.hbm_to_vmem [thread:$0]  %s0, 5376, %s26, [#allocation4], 2688, 2688, 168
    $region5: #{tpu_custom_call.1} parent=1 // pred_fallthru
      _
    // Predicated region
    $region6: #{tpu_custom_call.1} parent=1 // pred_check
      _
    $region7: #{tpu_custom_call.1} parent=1 // pred_check_branch
      %33 = sbr.rel (0) target = $region9
    $region8: #{tpu_custom_call.1} parent=1 // pred_region
      %s35 = ssub.s32 168960, 168960
      %36 = vsyncadd [#allocation6], %s35
      %s37 = sshll.u32 [#allocation5], 4
      %s38 = int_to_ptr.vmem [resolvable:$true] %s37
      %43 = dma.hbm_to_vmem [thread:$0]  %s1, 168960, %s38, [#allocation6], 512, 512, 32
    $region9: #{tpu_custom_call.1} parent=1 // pred_fallthru
      _
    // Predicated region
    $region10: #{tpu_custom_call.1} parent=1 // pred_check
      _
    $region11: #{tpu_custom_call.1} parent=1 // pred_check_branch
      %45 = sbr.rel (0) target = $region13
    $region12: #{tpu_custom_call.1} parent=1 // pred_region
      %s47 = ssub.s32 128, 128
      %48 = vsyncadd [#allocation6], %s47
      %s50 = sshll.u32 [#allocation7], 4
      %s51 = int_to_ptr.vmem [resolvable:$true] %s50
      %53 = dma.hbm_to_vmem [thread:$0]  %s2, 128, %s51, [#allocation6]
    $region13: #{tpu_custom_call.1} parent=1 // pred_fallthru
      _
    // Predicated region
    $region14: #{tpu_custom_call.1} parent=1 // pred_check
      _
    $region15: #{tpu_custom_call.1} parent=1 // pred_check_branch
      %55 = sbr.rel (0) target = $region17
    $region16: #{tpu_custom_call.1} parent=1 // pred_region
      %s57 = ssub.s32 16384, 16384
      %58 = vsyncadd [#allocation9], %s57
      %s59 = sshll.u32 [#allocation8], 4
      %s60 = int_to_ptr.vmem [resolvable:$true] %s59
      %65 = dma.hbm_to_vmem [thread:$0]  %s3, 16384, %s60, [#allocation9], 128, 128, 8
    $region17: #{tpu_custom_call.1} parent=1 // pred_fallthru
      _
    // Predicated region
    $region18: #{tpu_custom_call.1} parent=1 // pred_check
      _
    $region19: #{tpu_custom_call.1} parent=1 // pred_check_branch
      %67 = sbr.rel (0) target = $region21
    $region20: #{tpu_custom_call.1} parent=1 // pred_region
      %s69 = ssub.s32 32, 32
      %70 = vsyncadd [#allocation9], %s69
      %s72 = sshll.u32 [#allocation10], 4
      %s73 = int_to_ptr.vmem [resolvable:$true] %s72
      %75 = dma.hbm_to_vmem [thread:$0]  %s4, 32, %s73, [#allocation9]
    $region21: #{tpu_custom_call.1} parent=1 // pred_fallthru
      _
    // Predicated region
    $region22: #{tpu_custom_call.1} parent=1 // pred_check
      _
    $region23: #{tpu_custom_call.1} parent=1 // pred_check_branch
      %77 = sbr.rel (0) target = $region25
    $region24: #{tpu_custom_call.1} parent=1 // pred_region
      _
    $region25: #{tpu_custom_call.1} parent=1 // pred_fallthru
      _
    // Predicated region
    $region26: #{tpu_custom_call.1} parent=1 // pred_check
      _
    $region27: #{tpu_custom_call.1} parent=1 // pred_check_branch
      %79 = sbr.rel (0) target = $region29
    $region28: #{tpu_custom_call.1} parent=1 // pred_region
      %s81 = ssub.s32 16, 16
      %82 = vsyncadd [#allocation12], %s81
      %s84 = sshll.u32 [#allocation11], 4
      %s85 = int_to_ptr.vmem [resolvable:$true] %s84
      %87 = dma.hbm_to_vmem [thread:$0]  %s6, 16, %s85, [#allocation12]
    $region29: #{tpu_custom_call.1} parent=1 // pred_fallthru
      _
    // Predicated region
    $region30: #{tpu_custom_call.1} parent=1 // pred_check
      _
    $region31: #{tpu_custom_call.1} parent=1 // pred_check_branch
      %89 = sbr.rel (0) target = $region33
    $region32: #{tpu_custom_call.1} parent=1 // pred_region
      %s91 = ssub.s32 16, 16
      %92 = vsyncadd [#allocation12], %s91
      %s94 = sshll.u32 [#allocation13], 4
      %s95 = int_to_ptr.vmem [resolvable:$true] %s94
      %97 = dma.hbm_to_vmem [thread:$0]  %s7, 16, %s95, [#allocation12]
    $region33: #{tpu_custom_call.1} parent=1 // pred_fallthru
      _
    // Predicated region
    $region34: #{tpu_custom_call.1} parent=1 // pred_check
      _
    $region35: #{tpu_custom_call.1} parent=1 // pred_check_branch
      %99 = sbr.rel (0) target = $region37
    $region36: #{tpu_custom_call.1} parent=1 // pred_region
      _
    $region37: #{tpu_custom_call.1} parent=1 // pred_fallthru
      _
    // Predicated region
    $region38: #{tpu_custom_call.1} parent=1 // pred_check
      _
    $region39: #{tpu_custom_call.1} parent=1 // pred_check_branch
      %101 = sbr.rel (0) target = $region41
    $region40: #{tpu_custom_call.1} parent=1 // pred_region
      %102 = dma.done [#allocation4], 5376
    $region41: #{tpu_custom_call.1} parent=1 // pred_fallthru
      _
    // Predicated region
    $region42: #{tpu_custom_call.1} parent=1 // pred_check
      _
    $region43: #{tpu_custom_call.1} parent=1 // pred_check_branch
      %104 = sbr.rel (0) target = $region45
    $region44: #{tpu_custom_call.1} parent=1 // pred_region
      %105 = dma.done [#allocation6], 168960
    $region45: #{tpu_custom_call.1} parent=1 // pred_fallthru
      _
    // Predicated region
    $region46: #{tpu_custom_call.1} parent=1 // pred_check
      _
    $region47: #{tpu_custom_call.1} parent=1 // pred_check_branch
      %107 = sbr.rel (0) target = $region49
    $region48: #{tpu_custom_call.1} parent=1 // pred_region
      %108 = dma.done [#allocation6], 128
    $region49: #{tpu_custom_call.1} parent=1 // pred_fallthru
      _
    // Predicated region
    $region50: #{tpu_custom_call.1} parent=1 // pred_check
      _
    $region51: #{tpu_custom_call.1} parent=1 // pred_check_branch
      %110 = sbr.rel (0) target = $region53
    $region52: #{tpu_custom_call.1} parent=1 // pred_region
      %111 = dma.done [#allocation9], 16384
    $region53: #{tpu_custom_call.1} parent=1 // pred_fallthru
      _
    // Predicated region
    $region54: #{tpu_custom_call.1} parent=1 // pred_check
      _
    $region55: #{tpu_custom_call.1} parent=1 // pred_check_branch
      %113 = sbr.rel (0) target = $region57
    $region56: #{tpu_custom_call.1} parent=1 // pred_region
      %114 = dma.done [#allocation9], 32
    $region57: #{tpu_custom_call.1} parent=1 // pred_fallthru
      _
    // Predicated region
    $region58: #{tpu_custom_call.1} parent=1 // pred_check
      _
    $region59: #{tpu_custom_call.1} parent=1 // pred_check_branch
      %116 = sbr.rel (0) target = $region61
    $region60: #{tpu_custom_call.1} parent=1 // pred_region
      %117 = dma.done [#allocation12], 16
    $region61: #{tpu_custom_call.1} parent=1 // pred_fallthru
      _
    // Predicated region
    $region62: #{tpu_custom_call.1} parent=1 // pred_check
      _
    $region63: #{tpu_custom_call.1} parent=1 // pred_check_branch
      %119 = sbr.rel (0) target = $region65
    $region64: #{tpu_custom_call.1} parent=1 // pred_region
      %120 = dma.done [#allocation12], 16
    $region65: #{tpu_custom_call.1} parent=1 // pred_fallthru
      _
    %v122 = vld [vmem:[#allocation3] sm:$0xff]
    %v123 = vld [vmem:[#allocation3 + $0x8] sm:$0xff]
    %v124 = vld [vmem:[#allocation3 + $0x10] sm:$0xff]
    %v125 = vld [vmem:[#allocation3 + $0x18] sm:$0xff]
    %v126 = vld [vmem:[#allocation3 + $0x20] sm:$0xff]
    %v127 = vld [vmem:[#allocation3 + $0x28] sm:$0xff]
    %v128 = vld [vmem:[#allocation3 + $0x30] sm:$0xff]
    %v129 = vld [vmem:[#allocation3 + $0x38] sm:$0xff]
    %v130 = vld [vmem:[#allocation3 + $0x40] sm:$0xff]
    %v131 = vld [vmem:[#allocation3 + $0x48] sm:$0xff]
    %v132 = vld [vmem:[#allocation3 + $0x50] sm:$0xff]
    %v133 = vld [vmem:[#allocation3 + $0x58] sm:$0xff]
    %v134 = vld [vmem:[#allocation3 + $0x60] sm:$0xff]
    %v135 = vld [vmem:[#allocation3 + $0x68] sm:$0xff]
    %v136 = vld [vmem:[#allocation3 + $0x70] sm:$0xff]
    %v137 = vld [vmem:[#allocation3 + $0x78] sm:$0xff]
    %v138 = vld [vmem:[#allocation3 + $0x80] sm:$0xff]
    %v139 = vld [vmem:[#allocation3 + $0x88] sm:$0xff]
    %v140 = vld [vmem:[#allocation3 + $0x90] sm:$0xff]
    %v141 = vld [vmem:[#allocation3 + $0x98] sm:$0xff]
    %v142 = vld [vmem:[#allocation3 + $0xa0] sm:$0xff]
    %v143 = vld [vmem:[#allocation3 + $0xa8] sm:$0xff]
    %v144 = vld [vmem:[#allocation3 + $0xb0] sm:$0xff]
    %v145 = vld [vmem:[#allocation3 + $0xb8] sm:$0xff]
    %v146 = vld [vmem:[#allocation3 + $0xc0] sm:$0xff]
    %v147 = vld [vmem:[#allocation3 + $0xc8] sm:$0xff]
    %v148 = vld [vmem:[#allocation3 + $0xd0] sm:$0xff]
    %v149 = vld [vmem:[#allocation3 + $0xd8] sm:$0xff]
    %v150 = vld [vmem:[#allocation3 + $0xe0] sm:$0xff]
    %v151 = vld [vmem:[#allocation3 + $0xe8] sm:$0xff]
    %v152 = vld [vmem:[#allocation3 + $0xf0] sm:$0xff]
    %v153 = vld [vmem:[#allocation3 + $0xf8] sm:$0xff]
    %v154 = vld [vmem:[#allocation3 + $0x100] sm:$0xff]
    %v155 = vld [vmem:[#allocation3 + $0x108] sm:$0xff]
    %v156 = vld [vmem:[#allocation3 + $0x110] sm:$0xff]
    %v157 = vld [vmem:[#allocation3 + $0x118] sm:$0xff]
    %v158 = vld [vmem:[#allocation3 + $0x120] sm:$0xff]
    %v159 = vld [vmem:[#allocation3 + $0x128] sm:$0xff]
    %v160 = vld [vmem:[#allocation3 + $0x130] sm:$0xff]
    %v161 = vld [vmem:[#allocation3 + $0x138] sm:$0xff]
    %v162 = vld [vmem:[#allocation3 + $0x140] sm:$0xff]
    %v163 = vld [vmem:[#allocation3 + $0x148] sm:$0xff]
    %v164 = vpack.c.bf16 %v143, %v122
    %v165 = vpack.c.bf16 %v144, %v123
    %v166 = vpack.c.bf16 %v145, %v124
    %v167 = vpack.c.bf16 %v146, %v125
    %v168 = vpack.c.bf16 %v147, %v126
    %v169 = vpack.c.bf16 %v148, %v127
    %v170 = vpack.c.bf16 %v149, %v128
    %v171 = vpack.c.bf16 %v150, %v129
    %v172 = vpack.c.bf16 %v151, %v130
    %v173 = vpack.c.bf16 %v152, %v131
    %v174 = vpack.c.bf16 %v153, %v132
    %v175 = vpack.c.bf16 %v154, %v133
    %v176 = vpack.c.bf16 %v155, %v134
    %v177 = vpack.c.bf16 %v156, %v135
    %v178 = vpack.c.bf16 %v157, %v136
    %v179 = vpack.c.bf16 %v158, %v137
    %v180 = vpack.c.bf16 %v159, %v138
    %v181 = vpack.c.bf16 %v160, %v139
    %v182 = vpack.c.bf16 %v161, %v140
    %v183 = vpack.c.bf16 %v162, %v141
    %v184 = vpack.c.bf16 %v163, %v142
    %v185 = vld [vmem:[#allocation5] sm:$0xff]
    %v186 = vld [vmem:[#allocation5 + $0x8] sm:$0xff]
    %v187 = vld [vmem:[#allocation5 + $0x10] sm:$0xff]
    %v188 = vld [vmem:[#allocation5 + $0x18] sm:$0xff]
    %v189 = vld [vmem:[#allocation5 + $0x20] sm:$0xff]
    %v190 = vld [vmem:[#allocation5 + $0x28] sm:$0xff]
    %v191 = vld [vmem:[#allocation5 + $0x30] sm:$0xff]
    %v192 = vld [vmem:[#allocation5 + $0x38] sm:$0xff]
    %v193 = vld [vmem:[#allocation5 + $0x40] sm:$0xff]
    %v194 = vld [vmem:[#allocation5 + $0x48] sm:$0xff]
    %v195 = vld [vmem:[#allocation5 + $0x50] sm:$0xff]
    %v196 = vld [vmem:[#allocation5 + $0x58] sm:$0xff]
    %v197 = vld [vmem:[#allocation5 + $0x60] sm:$0xff]
    %v198 = vld [vmem:[#allocation5 + $0x68] sm:$0xff]
    %v199 = vld [vmem:[#allocation5 + $0x70] sm:$0xff]
    %v200 = vld [vmem:[#allocation5 + $0x78] sm:$0xff]
    %v201 = vld [vmem:[#allocation5 + $0x80] sm:$0xff]
    %v202 = vld [vmem:[#allocation5 + $0x88] sm:$0xff]
    %v203 = vld [vmem:[#allocation5 + $0x90] sm:$0xff]
    %v204 = vld [vmem:[#allocation5 + $0x98] sm:$0xff]
    %v205 = vld [vmem:[#allocation5 + $0xa0] sm:$0xff]
    %v206 = vld [vmem:[#allocation5 + $0xa8] sm:$0xff]
    %v207 = vld [vmem:[#allocation5 + $0xb0] sm:$0xff]
    %v208 = vld [vmem:[#allocation5 + $0xb8] sm:$0xff]
    %v209 = vld [vmem:[#allocation5 + $0xc0] sm:$0xff]
    %v210 = vld [vmem:[#allocation5 + $0xc8] sm:$0xff]
    %v211 = vld [vmem:[#allocation5 + $0xd0] sm:$0xff]
    %v212 = vld [vmem:[#allocation5 + $0xd8] sm:$0xff]
    %v213 = vld [vmem:[#allocation5 + $0xe0] sm:$0xff]
    %v214 = vld [vmem:[#allocation5 + $0xe8] sm:$0xff]
    %v215 = vld [vmem:[#allocation5 + $0xf0] sm:$0xff]
    %v216 = vld [vmem:[#allocation5 + $0xf8] sm:$0xff]
    %v217 = vld [vmem:[#allocation5 + $0x100] sm:$0xff]
    %v218 = vld [vmem:[#allocation5 + $0x108] sm:$0xff]
    %v219 = vld [vmem:[#allocation5 + $0x110] sm:$0xff]
    %v220 = vld [vmem:[#allocation5 + $0x118] sm:$0xff]
    %v221 = vld [vmem:[#allocation5 + $0x120] sm:$0xff]
    %v222 = vld [vmem:[#allocation5 + $0x128] sm:$0xff]
    %v223 = vld [vmem:[#allocation5 + $0x130] sm:$0xff]
    %v224 = vld [vmem:[#allocation5 + $0x138] sm:$0xff]
    %v225 = vld [vmem:[#allocation5 + $0x140] sm:$0xff]
    %v226 = vld [vmem:[#allocation5 + $0x148] sm:$0xff]
    %v227 = vld [vmem:[#allocation5 + $0x150] sm:$0xff]
    %v228 = vld [vmem:[#allocation5 + $0x158] sm:$0xff]
    %v229 = vld [vmem:[#allocation5 + $0x160] sm:$0xff]
    %v230 = vld [vmem:[#allocation5 + $0x168] sm:$0xff]
    %v231 = vld [vmem:[#allocation5 + $0x170] sm:$0xff]
    %v232 = vld [vmem:[#allocation5 + $0x178] sm:$0xff]
    %v233 = vld [vmem:[#allocation5 + $0x180] sm:$0xff]
    %v234 = vld [vmem:[#allocation5 + $0x188] sm:$0xff]
    %v235 = vld [vmem:[#allocation5 + $0x190] sm:$0xff]
    %v236 = vld [vmem:[#allocation5 + $0x198] sm:$0xff]
    %v237 = vld [vmem:[#allocation5 + $0x1a0] sm:$0xff]
    %v238 = vld [vmem:[#allocation5 + $0x1a8] sm:$0xff]
    %v239 = vld [vmem:[#allocation5 + $0x1b0] sm:$0xff]
    %v240 = vld [vmem:[#allocation5 + $0x1b8] sm:$0xff]
    %v241 = vld [vmem:[#allocation5 + $0x1c0] sm:$0xff]
    %v242 = vld [vmem:[#allocation5 + $0x1c8] sm:$0xff]
    %v243 = vld [vmem:[#allocation5 + $0x1d0] sm:$0xff]
    %v244 = vld [vmem:[#allocation5 + $0x1d8] sm:$0xff]
    %v245 = vld [vmem:[#allocation5 + $0x1e0] sm:$0xff]
    %v246 = vld [vmem:[#allocation5 + $0x1e8] sm:$0xff]
    %v247 = vld [vmem:[#allocation5 + $0x1f0] sm:$0xff]
    %v248 = vld [vmem:[#allocation5 + $0x1f8] sm:$0xff]
    %v249 = vld [vmem:[#allocation5 + $0x200] sm:$0xff]
    %v250 = vld [vmem:[#allocation5 + $0x208] sm:$0xff]
    %v251 = vld [vmem:[#allocation5 + $0x210] sm:$0xff]
    %v252 = vld [vmem:[#allocation5 + $0x218] sm:$0xff]
    %v253 = vld [vmem:[#allocation5 + $0x220] sm:$0xff]
    %v254 = vld [vmem:[#allocation5 + $0x228] sm:$0xff]
    %v255 = vld [vmem:[#allocation5 + $0x230] sm:$0xff]
    %v256 = vld [vmem:[#allocation5 + $0x238] sm:$0xff]
    %v257 = vld [vmem:[#allocation5 + $0x240] sm:$0xff]
    %v258 = vld [vmem:[#allocation5 + $0x248] sm:$0xff]
    %v259 = vld [vmem:[#allocation5 + $0x250] sm:$0xff]
    %v260 = vld [vmem:[#allocation5 + $0x258] sm:$0xff]
    %v261 = vld [vmem:[#allocation5 + $0x260] sm:$0xff]
    %v262 = vld [vmem:[#allocation5 + $0x268] sm:$0xff]
    %v263 = vld [vmem:[#allocation5 + $0x270] sm:$0xff]
    %v264 = vld [vmem:[#allocation5 + $0x278] sm:$0xff]
    %v265 = vld [vmem:[#allocation5 + $0x280] sm:$0xff]
    %v266 = vld [vmem:[#allocation5 + $0x288] sm:$0xff]
    %v267 = vld [vmem:[#allocation5 + $0x290] sm:$0xff]
    %v268 = vld [vmem:[#allocation5 + $0x298] sm:$0xff]
    %v269 = vld [vmem:[#allocation5 + $0x2a0] sm:$0xff]
    %v270 = vld [vmem:[#allocation5 + $0x2a8] sm:$0xff]
    %v271 = vld [vmem:[#allocation5 + $0x2b0] sm:$0xff]
    %v272 = vld [vmem:[#allocation5 + $0x2b8] sm:$0xff]
    %v273 = vld [vmem:[#allocation5 + $0x2c0] sm:$0xff]
    %v274 = vld [vmem:[#allocation5 + $0x2c8] sm:$0xff]
    %v275 = vld [vmem:[#allocation5 + $0x2d0] sm:$0xff]
    %v276 = vld [vmem:[#allocation5 + $0x2d8] sm:$0xff]
    %v277 = vld [vmem:[#allocation5 + $0x2e0] sm:$0xff]
    %v278 = vld [vmem:[#allocation5 + $0x2e8] sm:$0xff]
    %v279 = vld [vmem:[#allocation5 + $0x2f0] sm:$0xff]
    %v280 = vld [vmem:[#allocation5 + $0x2f8] sm:$0xff]
    %v281 = vld [vmem:[#allocation5 + $0x300] sm:$0xff]
    %v282 = vld [vmem:[#allocation5 + $0x308] sm:$0xff]
    %v283 = vld [vmem:[#allocation5 + $0x310] sm:$0xff]
    %v284 = vld [vmem:[#allocation5 + $0x318] sm:$0xff]
    %v285 = vld [vmem:[#allocation5 + $0x320] sm:$0xff]
    %v286 = vld [vmem:[#allocation5 + $0x328] sm:$0xff]
    %v287 = vld [vmem:[#allocation5 + $0x330] sm:$0xff]
    %v288 = vld [vmem:[#allocation5 + $0x338] sm:$0xff]
    %v289 = vld [vmem:[#allocation5 + $0x340] sm:$0xff]
    %v290 = vld [vmem:[#allocation5 + $0x348] sm:$0xff]
    %v291 = vld [vmem:[#allocation5 + $0x350] sm:$0xff]
    %v292 = vld [vmem:[#allocation5 + $0x358] sm:$0xff]
    %v293 = vld [vmem:[#allocation5 + $0x360] sm:$0xff]
    %v294 = vld [vmem:[#allocation5 + $0x368] sm:$0xff]
    %v295 = vld [vmem:[#allocation5 + $0x370] sm:$0xff]
    %v296 = vld [vmem:[#allocation5 + $0x378] sm:$0xff]
    %v297 = vld [vmem:[#allocation5 + $0x380] sm:$0xff]
    %v298 = vld [vmem:[#allocation5 + $0x388] sm:$0xff]
    %v299 = vld [vmem:[#allocation5 + $0x390] sm:$0xff]
    %v300 = vld [vmem:[#allocation5 + $0x398] sm:$0xff]
    %v301 = vld [vmem:[#allocation5 + $0x3a0] sm:$0xff]
    %v302 = vld [vmem:[#allocation5 + $0x3a8] sm:$0xff]
    %v303 = vld [vmem:[#allocation5 + $0x3b0] sm:$0xff]
    %v304 = vld [vmem:[#allocation5 + $0x3b8] sm:$0xff]
    %v305 = vld [vmem:[#allocation5 + $0x3c0] sm:$0xff]
    %v306 = vld [vmem:[#allocation5 + $0x3c8] sm:$0xff]
    %v307 = vld [vmem:[#allocation5 + $0x3d0] sm:$0xff]
    %v308 = vld [vmem:[#allocation5 + $0x3d8] sm:$0xff]
    %v309 = vld [vmem:[#allocation5 + $0x3e0] sm:$0xff]
    %v310 = vld [vmem:[#allocation5 + $0x3e8] sm:$0xff]
    %v311 = vld [vmem:[#allocation5 + $0x3f0] sm:$0xff]
    %v312 = vld [vmem:[#allocation5 + $0x3f8] sm:$0xff]
    %v313 = vld [vmem:[#allocation5 + $0x400] sm:$0xff]
    %v314 = vld [vmem:[#allocation5 + $0x408] sm:$0xff]
    %v315 = vld [vmem:[#allocation5 + $0x410] sm:$0xff]
    %v316 = vld [vmem:[#allocation5 + $0x418] sm:$0xff]
    %v317 = vld [vmem:[#allocation5 + $0x420] sm:$0xff]
    %v318 = vld [vmem:[#allocation5 + $0x428] sm:$0xff]
    %v319 = vld [vmem:[#allocation5 + $0x430] sm:$0xff]
    %v320 = vld [vmem:[#allocation5 + $0x438] sm:$0xff]
    %v321 = vld [vmem:[#allocation5 + $0x440] sm:$0xff]
    %v322 = vld [vmem:[#allocation5 + $0x448] sm:$0xff]
    %v323 = vld [vmem:[#allocation5 + $0x450] sm:$0xff]
    %v324 = vld [vmem:[#allocation5 + $0x458] sm:$0xff]
    %v325 = vld [vmem:[#allocation5 + $0x460] sm:$0xff]
    %v326 = vld [vmem:[#allocation5 + $0x468] sm:$0xff]
    %v327 = vld [vmem:[#allocation5 + $0x470] sm:$0xff]
    %v328 = vld [vmem:[#allocation5 + $0x478] sm:$0xff]
    %v329 = vld [vmem:[#allocation5 + $0x480] sm:$0xff]
    %v330 = vld [vmem:[#allocation5 + $0x488] sm:$0xff]
    %v331 = vld [vmem:[#allocation5 + $0x490] sm:$0xff]
    %v332 = vld [vmem:[#allocation5 + $0x498] sm:$0xff]
    %v333 = vld [vmem:[#allocation5 + $0x4a0] sm:$0xff]
    %v334 = vld [vmem:[#allocation5 + $0x4a8] sm:$0xff]
    %v335 = vld [vmem:[#allocation5 + $0x4b0] sm:$0xff]
    %v336 = vld [vmem:[#allocation5 + $0x4b8] sm:$0xff]
    %v337 = vld [vmem:[#allocation5 + $0x4c0] sm:$0xff]
    %v338 = vld [vmem:[#allocation5 + $0x4c8] sm:$0xff]
    %v339 = vld [vmem:[#allocation5 + $0x4d0] sm:$0xff]
    %v340 = vld [vmem:[#allocation5 + $0x4d8] sm:$0xff]
    %v341 = vld [vmem:[#allocation5 + $0x4e0] sm:$0xff]
    %v342 = vld [vmem:[#allocation5 + $0x4e8] sm:$0xff]
    %v343 = vld [vmem:[#allocation5 + $0x4f0] sm:$0xff]
    %v344 = vld [vmem:[#allocation5 + $0x4f8] sm:$0xff]
    %v345 = vld [vmem:[#allocation5 + $0x500] sm:$0xff]
    %v346 = vld [vmem:[#allocation5 + $0x508] sm:$0xff]
    %v347 = vld [vmem:[#allocation5 + $0x510] sm:$0xff]
    %v348 = vld [vmem:[#allocation5 + $0x518] sm:$0xff]
    %v349 = vld [vmem:[#allocation5 + $0x520] sm:$0xff]
    %v350 = vld [vmem:[#allocation5 + $0x528] sm:$0xff]
    %v351 = vld [vmem:[#allocation5 + $0x530] sm:$0xff]
    %v352 = vld [vmem:[#allocation5 + $0x538] sm:$0xff]
    %v353 = vld [vmem:[#allocation5 + $0x540] sm:$0xff]
    %v354 = vld [vmem:[#allocation5 + $0x548] sm:$0xff]
    %v355 = vld [vmem:[#allocation5 + $0x550] sm:$0xff]
    %v356 = vld [vmem:[#allocation5 + $0x558] sm:$0xff]
    %v357 = vld [vmem:[#allocation5 + $0x560] sm:$0xff]
    %v358 = vld [vmem:[#allocation5 + $0x568] sm:$0xff]
    %v359 = vld [vmem:[#allocation5 + $0x570] sm:$0xff]
    %v360 = vld [vmem:[#allocation5 + $0x578] sm:$0xff]
    %v361 = vld [vmem:[#allocation5 + $0x580] sm:$0xff]
    %v362 = vld [vmem:[#allocation5 + $0x588] sm:$0xff]
    %v363 = vld [vmem:[#allocation5 + $0x590] sm:$0xff]
    %v364 = vld [vmem:[#allocation5 + $0x598] sm:$0xff]
    %v365 = vld [vmem:[#allocation5 + $0x5a0] sm:$0xff]
    %v366 = vld [vmem:[#allocation5 + $0x5a8] sm:$0xff]
    %v367 = vld [vmem:[#allocation5 + $0x5b0] sm:$0xff]
    %v368 = vld [vmem:[#allocation5 + $0x5b8] sm:$0xff]
    %v369 = vld [vmem:[#allocation5 + $0x5c0] sm:$0xff]
    %v370 = vld [vmem:[#allocation5 + $0x5c8] sm:$0xff]
    %v371 = vld [vmem:[#allocation5 + $0x5d0] sm:$0xff]
    %v372 = vld [vmem:[#allocation5 + $0x5d8] sm:$0xff]
    %v373 = vld [vmem:[#allocation5 + $0x5e0] sm:$0xff]
    %v374 = vld [vmem:[#allocation5 + $0x5e8] sm:$0xff]
    %v375 = vld [vmem:[#allocation5 + $0x5f0] sm:$0xff]
    %v376 = vld [vmem:[#allocation5 + $0x5f8] sm:$0xff]
    %v377 = vld [vmem:[#allocation5 + $0x600] sm:$0xff]
    %v378 = vld [vmem:[#allocation5 + $0x608] sm:$0xff]
    %v379 = vld [vmem:[#allocation5 + $0x610] sm:$0xff]
    %v380 = vld [vmem:[#allocation5 + $0x618] sm:$0xff]
    %v381 = vld [vmem:[#allocation5 + $0x620] sm:$0xff]
    %v382 = vld [vmem:[#allocation5 + $0x628] sm:$0xff]
    %v383 = vld [vmem:[#allocation5 + $0x630] sm:$0xff]
    %v384 = vld [vmem:[#allocation5 + $0x638] sm:$0xff]
    %v385 = vld [vmem:[#allocation5 + $0x640] sm:$0xff]
    %v386 = vld [vmem:[#allocation5 + $0x648] sm:$0xff]
    %v387 = vld [vmem:[#allocation5 + $0x650] sm:$0xff]
    %v388 = vld [vmem:[#allocation5 + $0x658] sm:$0xff]
    %v389 = vld [vmem:[#allocation5 + $0x660] sm:$0xff]
    %v390 = vld [vmem:[#allocation5 + $0x668] sm:$0xff]
    %v391 = vld [vmem:[#allocation5 + $0x670] sm:$0xff]
    %v392 = vld [vmem:[#allocation5 + $0x678] sm:$0xff]
    %v393 = vld [vmem:[#allocation5 + $0x680] sm:$0xff]
    %v394 = vld [vmem:[#allocation5 + $0x688] sm:$0xff]
    %v395 = vld [vmem:[#allocation5 + $0x690] sm:$0xff]
    %v396 = vld [vmem:[#allocation5 + $0x698] sm:$0xff]
    %v397 = vld [vmem:[#allocation5 + $0x6a0] sm:$0xff]
    %v398 = vld [vmem:[#allocation5 + $0x6a8] sm:$0xff]
    %v399 = vld [vmem:[#allocation5 + $0x6b0] sm:$0xff]
    %v400 = vld [vmem:[#allocation5 + $0x6b8] sm:$0xff]
    %v401 = vld [vmem:[#allocation5 + $0x6c0] sm:$0xff]
    %v402 = vld [vmem:[#allocation5 + $0x6c8] sm:$0xff]
    %v403 = vld [vmem:[#allocation5 + $0x6d0] sm:$0xff]
    %v404 = vld [vmem:[#allocation5 + $0x6d8] sm:$0xff]
    %v405 = vld [vmem:[#allocation5 + $0x6e0] sm:$0xff]
    %v406 = vld [vmem:[#allocation5 + $0x6e8] sm:$0xff]
    %v407 = vld [vmem:[#allocation5 + $0x6f0] sm:$0xff]
    %v408 = vld [vmem:[#allocation5 + $0x6f8] sm:$0xff]
    %v409 = vld [vmem:[#allocation5 + $0x700] sm:$0xff]
    %v410 = vld [vmem:[#allocation5 + $0x708] sm:$0xff]
    %v411 = vld [vmem:[#allocation5 + $0x710] sm:$0xff]
    %v412 = vld [vmem:[#allocation5 + $0x718] sm:$0xff]
    %v413 = vld [vmem:[#allocation5 + $0x720] sm:$0xff]
    %v414 = vld [vmem:[#allocation5 + $0x728] sm:$0xff]
    %v415 = vld [vmem:[#allocation5 + $0x730] sm:$0xff]
    %v416 = vld [vmem:[#allocation5 + $0x738] sm:$0xff]
    %v417 = vld [vmem:[#allocation5 + $0x740] sm:$0xff]
    %v418 = vld [vmem:[#allocation5 + $0x748] sm:$0xff]
    %v419 = vld [vmem:[#allocation5 + $0x750] sm:$0xff]
    %v420 = vld [vmem:[#allocation5 + $0x758] sm:$0xff]
    %v421 = vld [vmem:[#allocation5 + $0x760] sm:$0xff]
    %v422 = vld [vmem:[#allocation5 + $0x768] sm:$0xff]
    %v423 = vld [vmem:[#allocation5 + $0x770] sm:$0xff]
    %v424 = vld [vmem:[#allocation5 + $0x778] sm:$0xff]
    %v425 = vld [vmem:[#allocation5 + $0x780] sm:$0xff]
    %v426 = vld [vmem:[#allocation5 + $0x788] sm:$0xff]
    %v427 = vld [vmem:[#allocation5 + $0x790] sm:$0xff]
    %v428 = vld [vmem:[#allocation5 + $0x798] sm:$0xff]
    %v429 = vld [vmem:[#allocation5 + $0x7a0] sm:$0xff]
    %v430 = vld [vmem:[#allocation5 + $0x7a8] sm:$0xff]
    %v431 = vld [vmem:[#allocation5 + $0x7b0] sm:$0xff]
    %v432 = vld [vmem:[#allocation5 + $0x7b8] sm:$0xff]
    %v433 = vld [vmem:[#allocation5 + $0x7c0] sm:$0xff]
    %v434 = vld [vmem:[#allocation5 + $0x7c8] sm:$0xff]
    %v435 = vld [vmem:[#allocation5 + $0x7d0] sm:$0xff]
    %v436 = vld [vmem:[#allocation5 + $0x7d8] sm:$0xff]
    %v437 = vld [vmem:[#allocation5 + $0x7e0] sm:$0xff]
    %v438 = vld [vmem:[#allocation5 + $0x7e8] sm:$0xff]
    %v439 = vld [vmem:[#allocation5 + $0x7f0] sm:$0xff]
    %v440 = vld [vmem:[#allocation5 + $0x7f8] sm:$0xff]
    %v441 = vld [vmem:[#allocation5 + $0x800] sm:$0xff]
    %v442 = vld [vmem:[#allocation5 + $0x808] sm:$0xff]
    %v443 = vld [vmem:[#allocation5 + $0x810] sm:$0xff]
    %v444 = vld [vmem:[#allocation5 + $0x818] sm:$0xff]
    %v445 = vld [vmem:[#allocation5 + $0x820] sm:$0xff]
    %v446 = vld [vmem:[#allocation5 + $0x828] sm:$0xff]
    %v447 = vld [vmem:[#allocation5 + $0x830] sm:$0xff]
    %v448 = vld [vmem:[#allocation5 + $0x838] sm:$0xff]
    %v449 = vld [vmem:[#allocation5 + $0x840] sm:$0xff]
    %v450 = vld [vmem:[#allocation5 + $0x848] sm:$0xff]
    %v451 = vld [vmem:[#allocation5 + $0x850] sm:$0xff]
    %v452 = vld [vmem:[#allocation5 + $0x858] sm:$0xff]
    %v453 = vld [vmem:[#allocation5 + $0x860] sm:$0xff]
    %v454 = vld [vmem:[#allocation5 + $0x868] sm:$0xff]
    %v455 = vld [vmem:[#allocation5 + $0x870] sm:$0xff]
    %v456 = vld [vmem:[#allocation5 + $0x878] sm:$0xff]
    %v457 = vld [vmem:[#allocation5 + $0x880] sm:$0xff]
    %v458 = vld [vmem:[#allocation5 + $0x888] sm:$0xff]
    %v459 = vld [vmem:[#allocation5 + $0x890] sm:$0xff]
    %v460 = vld [vmem:[#allocation5 + $0x898] sm:$0xff]
    %v461 = vld [vmem:[#allocation5 + $0x8a0] sm:$0xff]
    %v462 = vld [vmem:[#allocation5 + $0x8a8] sm:$0xff]
    %v463 = vld [vmem:[#allocation5 + $0x8b0] sm:$0xff]
    %v464 = vld [vmem:[#allocation5 + $0x8b8] sm:$0xff]
    %v465 = vld [vmem:[#allocation5 + $0x8c0] sm:$0xff]
    %v466 = vld [vmem:[#allocation5 + $0x8c8] sm:$0xff]
    %v467 = vld [vmem:[#allocation5 + $0x8d0] sm:$0xff]
    %v468 = vld [vmem:[#allocation5 + $0x8d8] sm:$0xff]
    %v469 = vld [vmem:[#allocation5 + $0x8e0] sm:$0xff]
    %v470 = vld [vmem:[#allocation5 + $0x8e8] sm:$0xff]
    %v471 = vld [vmem:[#allocation5 + $0x8f0] sm:$0xff]
    %v472 = vld [vmem:[#allocation5 + $0x8f8] sm:$0xff]
    %v473 = vld [vmem:[#allocation5 + $0x900] sm:$0xff]
    %v474 = vld [vmem:[#allocation5 + $0x908] sm:$0xff]
    %v475 = vld [vmem:[#allocation5 + $0x910] sm:$0xff]
    %v476 = vld [vmem:[#allocation5 + $0x918] sm:$0xff]
    %v477 = vld [vmem:[#allocation5 + $0x920] sm:$0xff]
    %v478 = vld [vmem:[#allocation5 + $0x928] sm:$0xff]
    %v479 = vld [vmem:[#allocation5 + $0x930] sm:$0xff]
    %v480 = vld [vmem:[#allocation5 + $0x938] sm:$0xff]
    %v481 = vld [vmem:[#allocation5 + $0x940] sm:$0xff]
    %v482 = vld [vmem:[#allocation5 + $0x948] sm:$0xff]
    %v483 = vld [vmem:[#allocation5 + $0x950] sm:$0xff]
    %v484 = vld [vmem:[#allocation5 + $0x958] sm:$0xff]
    %v485 = vld [vmem:[#allocation5 + $0x960] sm:$0xff]
    %v486 = vld [vmem:[#allocation5 + $0x968] sm:$0xff]
    %v487 = vld [vmem:[#allocation5 + $0x970] sm:$0xff]
    %v488 = vld [vmem:[#allocation5 + $0x978] sm:$0xff]
    %v489 = vld [vmem:[#allocation5 + $0x980] sm:$0xff]
    %v490 = vld [vmem:[#allocation5 + $0x988] sm:$0xff]
    %v491 = vld [vmem:[#allocation5 + $0x990] sm:$0xff]
    %v492 = vld [vmem:[#allocation5 + $0x998] sm:$0xff]
    %v493 = vld [vmem:[#allocation5 + $0x9a0] sm:$0xff]
    %v494 = vld [vmem:[#allocation5 + $0x9a8] sm:$0xff]
    %v495 = vld [vmem:[#allocation5 + $0x9b0] sm:$0xff]
    %v496 = vld [vmem:[#allocation5 + $0x9b8] sm:$0xff]
    %v497 = vld [vmem:[#allocation5 + $0x9c0] sm:$0xff]
    %v498 = vld [vmem:[#allocation5 + $0x9c8] sm:$0xff]
    %v499 = vld [vmem:[#allocation5 + $0x9d0] sm:$0xff]
    %v500 = vld [vmem:[#allocation5 + $0x9d8] sm:$0xff]
    %v501 = vld [vmem:[#allocation5 + $0x9e0] sm:$0xff]
    %v502 = vld [vmem:[#allocation5 + $0x9e8] sm:$0xff]
    %v503 = vld [vmem:[#allocation5 + $0x9f0] sm:$0xff]
    %v504 = vld [vmem:[#allocation5 + $0x9f8] sm:$0xff]
    %v505 = vld [vmem:[#allocation5 + $0xa00] sm:$0xff]
    %v506 = vld [vmem:[#allocation5 + $0xa08] sm:$0xff]
    %v507 = vld [vmem:[#allocation5 + $0xa10] sm:$0xff]
    %v508 = vld [vmem:[#allocation5 + $0xa18] sm:$0xff]
    %v509 = vld [vmem:[#allocation5 + $0xa20] sm:$0xff]
    %v510 = vld [vmem:[#allocation5 + $0xa28] sm:$0xff]
    %v511 = vld [vmem:[#allocation5 + $0xa30] sm:$0xff]
    %v512 = vld [vmem:[#allocation5 + $0xa38] sm:$0xff]
    %v513 = vld [vmem:[#allocation5 + $0xa40] sm:$0xff]
    %v514 = vld [vmem:[#allocation5 + $0xa48] sm:$0xff]
    %v515 = vld [vmem:[#allocation5 + $0xa50] sm:$0xff]
    %v516 = vld [vmem:[#allocation5 + $0xa58] sm:$0xff]
    %v517 = vld [vmem:[#allocation5 + $0xa60] sm:$0xff]
    %v518 = vld [vmem:[#allocation5 + $0xa68] sm:$0xff]
    %v519 = vld [vmem:[#allocation5 + $0xa70] sm:$0xff]
    %v520 = vld [vmem:[#allocation5 + $0xa78] sm:$0xff]
    %v521 = vld [vmem:[#allocation5 + $0xa80] sm:$0xff]
    %v522 = vld [vmem:[#allocation5 + $0xa88] sm:$0xff]
    %v523 = vld [vmem:[#allocation5 + $0xa90] sm:$0xff]
    %v524 = vld [vmem:[#allocation5 + $0xa98] sm:$0xff]
    %v525 = vld [vmem:[#allocation5 + $0xaa0] sm:$0xff]
    %v526 = vld [vmem:[#allocation5 + $0xaa8] sm:$0xff]
    %v527 = vld [vmem:[#allocation5 + $0xab0] sm:$0xff]
    %v528 = vld [vmem:[#allocation5 + $0xab8] sm:$0xff]
    %v529 = vld [vmem:[#allocation5 + $0xac0] sm:$0xff]
    %v530 = vld [vmem:[#allocation5 + $0xac8] sm:$0xff]
    %v531 = vld [vmem:[#allocation5 + $0xad0] sm:$0xff]
    %v532 = vld [vmem:[#allocation5 + $0xad8] sm:$0xff]
    %v533 = vld [vmem:[#allocation5 + $0xae0] sm:$0xff]
    %v534 = vld [vmem:[#allocation5 + $0xae8] sm:$0xff]
    %v535 = vld [vmem:[#allocation5 + $0xaf0] sm:$0xff]
    %v536 = vld [vmem:[#allocation5 + $0xaf8] sm:$0xff]
    %v537 = vld [vmem:[#allocation5 + $0xb00] sm:$0xff]
    %v538 = vld [vmem:[#allocation5 + $0xb08] sm:$0xff]
    %v539 = vld [vmem:[#allocation5 + $0xb10] sm:$0xff]
    %v540 = vld [vmem:[#allocation5 + $0xb18] sm:$0xff]
    %v541 = vld [vmem:[#allocation5 + $0xb20] sm:$0xff]
    %v542 = vld [vmem:[#allocation5 + $0xb28] sm:$0xff]
    %v543 = vld [vmem:[#allocation5 + $0xb30] sm:$0xff]
    %v544 = vld [vmem:[#allocation5 + $0xb38] sm:$0xff]
    %v545 = vld [vmem:[#allocation5 + $0xb40] sm:$0xff]
    %v546 = vld [vmem:[#allocation5 + $0xb48] sm:$0xff]
    %v547 = vld [vmem:[#allocation5 + $0xb50] sm:$0xff]
    %v548 = vld [vmem:[#allocation5 + $0xb58] sm:$0xff]
    %v549 = vld [vmem:[#allocation5 + $0xb60] sm:$0xff]
    %v550 = vld [vmem:[#allocation5 + $0xb68] sm:$0xff]
    %v551 = vld [vmem:[#allocation5 + $0xb70] sm:$0xff]
    %v552 = vld [vmem:[#allocation5 + $0xb78] sm:$0xff]
    %v553 = vld [vmem:[#allocation5 + $0xb80] sm:$0xff]
    %v554 = vld [vmem:[#allocation5 + $0xb88] sm:$0xff]
    %v555 = vld [vmem:[#allocation5 + $0xb90] sm:$0xff]
    %v556 = vld [vmem:[#allocation5 + $0xb98] sm:$0xff]
    %v557 = vld [vmem:[#allocation5 + $0xba0] sm:$0xff]
    %v558 = vld [vmem:[#allocation5 + $0xba8] sm:$0xff]
    %v559 = vld [vmem:[#allocation5 + $0xbb0] sm:$0xff]
    %v560 = vld [vmem:[#allocation5 + $0xbb8] sm:$0xff]
    %v561 = vld [vmem:[#allocation5 + $0xbc0] sm:$0xff]
    %v562 = vld [vmem:[#allocation5 + $0xbc8] sm:$0xff]
    %v563 = vld [vmem:[#allocation5 + $0xbd0] sm:$0xff]
    %v564 = vld [vmem:[#allocation5 + $0xbd8] sm:$0xff]
    %v565 = vld [vmem:[#allocation5 + $0xbe0] sm:$0xff]
    %v566 = vld [vmem:[#allocation5 + $0xbe8] sm:$0xff]
    %v567 = vld [vmem:[#allocation5 + $0xbf0] sm:$0xff]
    %v568 = vld [vmem:[#allocation5 + $0xbf8] sm:$0xff]
    %v569 = vld [vmem:[#allocation5 + $0xc00] sm:$0xff]
    %v570 = vld [vmem:[#allocation5 + $0xc08] sm:$0xff]
    %v571 = vld [vmem:[#allocation5 + $0xc10] sm:$0xff]
    %v572 = vld [vmem:[#allocation5 + $0xc18] sm:$0xff]
    %v573 = vld [vmem:[#allocation5 + $0xc20] sm:$0xff]
    %v574 = vld [vmem:[#allocation5 + $0xc28] sm:$0xff]
    %v575 = vld [vmem:[#allocation5 + $0xc30] sm:$0xff]
    %v576 = vld [vmem:[#allocation5 + $0xc38] sm:$0xff]
    %v577 = vld [vmem:[#allocation5 + $0xc40] sm:$0xff]
    %v578 = vld [vmem:[#allocation5 + $0xc48] sm:$0xff]
    %v579 = vld [vmem:[#allocation5 + $0xc50] sm:$0xff]
    %v580 = vld [vmem:[#allocation5 + $0xc58] sm:$0xff]
    %v581 = vld [vmem:[#allocation5 + $0xc60] sm:$0xff]
    %v582 = vld [vmem:[#allocation5 + $0xc68] sm:$0xff]
    %v583 = vld [vmem:[#allocation5 + $0xc70] sm:$0xff]
    %v584 = vld [vmem:[#allocation5 + $0xc78] sm:$0xff]
    %v585 = vld [vmem:[#allocation5 + $0xc80] sm:$0xff]
    %v586 = vld [vmem:[#allocation5 + $0xc88] sm:$0xff]
    %v587 = vld [vmem:[#allocation5 + $0xc90] sm:$0xff]
    %v588 = vld [vmem:[#allocation5 + $0xc98] sm:$0xff]
    %v589 = vld [vmem:[#allocation5 + $0xca0] sm:$0xff]
    %v590 = vld [vmem:[#allocation5 + $0xca8] sm:$0xff]
    %v591 = vld [vmem:[#allocation5 + $0xcb0] sm:$0xff]
    %v592 = vld [vmem:[#allocation5 + $0xcb8] sm:$0xff]
    %v593 = vld [vmem:[#allocation5 + $0xcc0] sm:$0xff]
    %v594 = vld [vmem:[#allocation5 + $0xcc8] sm:$0xff]
    %v595 = vld [vmem:[#allocation5 + $0xcd0] sm:$0xff]
    %v596 = vld [vmem:[#allocation5 + $0xcd8] sm:$0xff]
    %v597 = vld [vmem:[#allocation5 + $0xce0] sm:$0xff]
    %v598 = vld [vmem:[#allocation5 + $0xce8] sm:$0xff]
    %v599 = vld [vmem:[#allocation5 + $0xcf0] sm:$0xff]
    %v600 = vld [vmem:[#allocation5 + $0xcf8] sm:$0xff]
    %v601 = vld [vmem:[#allocation5 + $0xd00] sm:$0xff]
    %v602 = vld [vmem:[#allocation5 + $0xd08] sm:$0xff]
    %v603 = vld [vmem:[#allocation5 + $0xd10] sm:$0xff]
    %v604 = vld [vmem:[#allocation5 + $0xd18] sm:$0xff]
    %v605 = vld [vmem:[#allocation5 + $0xd20] sm:$0xff]
    %v606 = vld [vmem:[#allocation5 + $0xd28] sm:$0xff]
    %v607 = vld [vmem:[#allocation5 + $0xd30] sm:$0xff]
    %v608 = vld [vmem:[#allocation5 + $0xd38] sm:$0xff]
    %v609 = vld [vmem:[#allocation5 + $0xd40] sm:$0xff]
    %v610 = vld [vmem:[#allocation5 + $0xd48] sm:$0xff]
    %v611 = vld [vmem:[#allocation5 + $0xd50] sm:$0xff]
    %v612 = vld [vmem:[#allocation5 + $0xd58] sm:$0xff]
    %v613 = vld [vmem:[#allocation5 + $0xd60] sm:$0xff]
    %v614 = vld [vmem:[#allocation5 + $0xd68] sm:$0xff]
    %v615 = vld [vmem:[#allocation5 + $0xd70] sm:$0xff]
    %v616 = vld [vmem:[#allocation5 + $0xd78] sm:$0xff]
    %v617 = vld [vmem:[#allocation5 + $0xd80] sm:$0xff]
    %v618 = vld [vmem:[#allocation5 + $0xd88] sm:$0xff]
    %v619 = vld [vmem:[#allocation5 + $0xd90] sm:$0xff]
    %v620 = vld [vmem:[#allocation5 + $0xd98] sm:$0xff]
    %v621 = vld [vmem:[#allocation5 + $0xda0] sm:$0xff]
    %v622 = vld [vmem:[#allocation5 + $0xda8] sm:$0xff]
    %v623 = vld [vmem:[#allocation5 + $0xdb0] sm:$0xff]
    %v624 = vld [vmem:[#allocation5 + $0xdb8] sm:$0xff]
    %v625 = vld [vmem:[#allocation5 + $0xdc0] sm:$0xff]
    %v626 = vld [vmem:[#allocation5 + $0xdc8] sm:$0xff]
    %v627 = vld [vmem:[#allocation5 + $0xdd0] sm:$0xff]
    %v628 = vld [vmem:[#allocation5 + $0xdd8] sm:$0xff]
    %v629 = vld [vmem:[#allocation5 + $0xde0] sm:$0xff]
    %v630 = vld [vmem:[#allocation5 + $0xde8] sm:$0xff]
    %v631 = vld [vmem:[#allocation5 + $0xdf0] sm:$0xff]
    %v632 = vld [vmem:[#allocation5 + $0xdf8] sm:$0xff]
    %v633 = vld [vmem:[#allocation5 + $0xe00] sm:$0xff]
    %v634 = vld [vmem:[#allocation5 + $0xe08] sm:$0xff]
    %v635 = vld [vmem:[#allocation5 + $0xe10] sm:$0xff]
    %v636 = vld [vmem:[#allocation5 + $0xe18] sm:$0xff]
    %v637 = vld [vmem:[#allocation5 + $0xe20] sm:$0xff]
    %v638 = vld [vmem:[#allocation5 + $0xe28] sm:$0xff]
    %v639 = vld [vmem:[#allocation5 + $0xe30] sm:$0xff]
    %v640 = vld [vmem:[#allocation5 + $0xe38] sm:$0xff]
    %v641 = vld [vmem:[#allocation5 + $0xe40] sm:$0xff]
    %v642 = vld [vmem:[#allocation5 + $0xe48] sm:$0xff]
    %v643 = vld [vmem:[#allocation5 + $0xe50] sm:$0xff]
    %v644 = vld [vmem:[#allocation5 + $0xe58] sm:$0xff]
    %v645 = vld [vmem:[#allocation5 + $0xe60] sm:$0xff]
    %v646 = vld [vmem:[#allocation5 + $0xe68] sm:$0xff]
    %v647 = vld [vmem:[#allocation5 + $0xe70] sm:$0xff]
    %v648 = vld [vmem:[#allocation5 + $0xe78] sm:$0xff]
    %v649 = vld [vmem:[#allocation5 + $0xe80] sm:$0xff]
    %v650 = vld [vmem:[#allocation5 + $0xe88] sm:$0xff]
    %v651 = vld [vmem:[#allocation5 + $0xe90] sm:$0xff]
    %v652 = vld [vmem:[#allocation5 + $0xe98] sm:$0xff]
    %v653 = vld [vmem:[#allocation5 + $0xea0] sm:$0xff]
    %v654 = vld [vmem:[#allocation5 + $0xea8] sm:$0xff]
    %v655 = vld [vmem:[#allocation5 + $0xeb0] sm:$0xff]
    %v656 = vld [vmem:[#allocation5 + $0xeb8] sm:$0xff]
    %v657 = vld [vmem:[#allocation5 + $0xec0] sm:$0xff]
    %v658 = vld [vmem:[#allocation5 + $0xec8] sm:$0xff]
    %v659 = vld [vmem:[#allocation5 + $0xed0] sm:$0xff]
    %v660 = vld [vmem:[#allocation5 + $0xed8] sm:$0xff]
    %v661 = vld [vmem:[#allocation5 + $0xee0] sm:$0xff]
    %v662 = vld [vmem:[#allocation5 + $0xee8] sm:$0xff]
    %v663 = vld [vmem:[#allocation5 + $0xef0] sm:$0xff]
    %v664 = vld [vmem:[#allocation5 + $0xef8] sm:$0xff]
    %v665 = vld [vmem:[#allocation5 + $0xf00] sm:$0xff]
    %v666 = vld [vmem:[#allocation5 + $0xf08] sm:$0xff]
    %v667 = vld [vmem:[#allocation5 + $0xf10] sm:$0xff]
    %v668 = vld [vmem:[#allocation5 + $0xf18] sm:$0xff]
    %v669 = vld [vmem:[#allocation5 + $0xf20] sm:$0xff]
    %v670 = vld [vmem:[#allocation5 + $0xf28] sm:$0xff]
    %v671 = vld [vmem:[#allocation5 + $0xf30] sm:$0xff]
    %v672 = vld [vmem:[#allocation5 + $0xf38] sm:$0xff]
    %v673 = vld [vmem:[#allocation5 + $0xf40] sm:$0xff]
    %v674 = vld [vmem:[#allocation5 + $0xf48] sm:$0xff]
    %v675 = vld [vmem:[#allocation5 + $0xf50] sm:$0xff]
    %v676 = vld [vmem:[#allocation5 + $0xf58] sm:$0xff]
    %v677 = vld [vmem:[#allocation5 + $0xf60] sm:$0xff]
    %v678 = vld [vmem:[#allocation5 + $0xf68] sm:$0xff]
    %v679 = vld [vmem:[#allocation5 + $0xf70] sm:$0xff]
    %v680 = vld [vmem:[#allocation5 + $0xf78] sm:$0xff]
    %v681 = vld [vmem:[#allocation5 + $0xf80] sm:$0xff]
    %v682 = vld [vmem:[#allocation5 + $0xf88] sm:$0xff]
    %v683 = vld [vmem:[#allocation5 + $0xf90] sm:$0xff]
    %v684 = vld [vmem:[#allocation5 + $0xf98] sm:$0xff]
    %v685 = vld [vmem:[#allocation5 + $0xfa0] sm:$0xff]
    %v686 = vld [vmem:[#allocation5 + $0xfa8] sm:$0xff]
    %v687 = vld [vmem:[#allocation5 + $0xfb0] sm:$0xff]
    %v688 = vld [vmem:[#allocation5 + $0xfb8] sm:$0xff]
    %v689 = vld [vmem:[#allocation5 + $0xfc0] sm:$0xff]
    %v690 = vld [vmem:[#allocation5 + $0xfc8] sm:$0xff]
    %v691 = vld [vmem:[#allocation5 + $0xfd0] sm:$0xff]
    %v692 = vld [vmem:[#allocation5 + $0xfd8] sm:$0xff]
    %v693 = vld [vmem:[#allocation5 + $0xfe0] sm:$0xff]
    %v694 = vld [vmem:[#allocation5 + $0xfe8] sm:$0xff]
    %v695 = vld [vmem:[#allocation5 + $0xff0] sm:$0xff]
    %v696 = vld [vmem:[#allocation5 + $0xff8] sm:$0xff]
    %v697 = vld [vmem:[#allocation5 + $0x1000] sm:$0xff]
    %v698 = vld [vmem:[#allocation5 + $0x1008] sm:$0xff]
    %v699 = vld [vmem:[#allocation5 + $0x1010] sm:$0xff]
    %v700 = vld [vmem:[#allocation5 + $0x1018] sm:$0xff]
    %v701 = vld [vmem:[#allocation5 + $0x1020] sm:$0xff]
    %v702 = vld [vmem:[#allocation5 + $0x1028] sm:$0xff]
    %v703 = vld [vmem:[#allocation5 + $0x1030] sm:$0xff]
    %v704 = vld [vmem:[#allocation5 + $0x1038] sm:$0xff]
    %v705 = vld [vmem:[#allocation5 + $0x1040] sm:$0xff]
    %v706 = vld [vmem:[#allocation5 + $0x1048] sm:$0xff]
    %v707 = vld [vmem:[#allocation5 + $0x1050] sm:$0xff]
    %v708 = vld [vmem:[#allocation5 + $0x1058] sm:$0xff]
    %v709 = vld [vmem:[#allocation5 + $0x1060] sm:$0xff]
    %v710 = vld [vmem:[#allocation5 + $0x1068] sm:$0xff]
    %v711 = vld [vmem:[#allocation5 + $0x1070] sm:$0xff]
    %v712 = vld [vmem:[#allocation5 + $0x1078] sm:$0xff]
    %v713 = vld [vmem:[#allocation5 + $0x1080] sm:$0xff]
    %v714 = vld [vmem:[#allocation5 + $0x1088] sm:$0xff]
    %v715 = vld [vmem:[#allocation5 + $0x1090] sm:$0xff]
    %v716 = vld [vmem:[#allocation5 + $0x1098] sm:$0xff]
    %v717 = vld [vmem:[#allocation5 + $0x10a0] sm:$0xff]
    %v718 = vld [vmem:[#allocation5 + $0x10a8] sm:$0xff]
    %v719 = vld [vmem:[#allocation5 + $0x10b0] sm:$0xff]
    %v720 = vld [vmem:[#allocation5 + $0x10b8] sm:$0xff]
    %v721 = vld [vmem:[#allocation5 + $0x10c0] sm:$0xff]
    %v722 = vld [vmem:[#allocation5 + $0x10c8] sm:$0xff]
    %v723 = vld [vmem:[#allocation5 + $0x10d0] sm:$0xff]
    %v724 = vld [vmem:[#allocation5 + $0x10d8] sm:$0xff]
    %v725 = vld [vmem:[#allocation5 + $0x10e0] sm:$0xff]
    %v726 = vld [vmem:[#allocation5 + $0x10e8] sm:$0xff]
    %v727 = vld [vmem:[#allocation5 + $0x10f0] sm:$0xff]
    %v728 = vld [vmem:[#allocation5 + $0x10f8] sm:$0xff]
    %v729 = vld [vmem:[#allocation5 + $0x1100] sm:$0xff]
    %v730 = vld [vmem:[#allocation5 + $0x1108] sm:$0xff]
    %v731 = vld [vmem:[#allocation5 + $0x1110] sm:$0xff]
    %v732 = vld [vmem:[#allocation5 + $0x1118] sm:$0xff]
    %v733 = vld [vmem:[#allocation5 + $0x1120] sm:$0xff]
    %v734 = vld [vmem:[#allocation5 + $0x1128] sm:$0xff]
    %v735 = vld [vmem:[#allocation5 + $0x1130] sm:$0xff]
    %v736 = vld [vmem:[#allocation5 + $0x1138] sm:$0xff]
    %v737 = vld [vmem:[#allocation5 + $0x1140] sm:$0xff]
    %v738 = vld [vmem:[#allocation5 + $0x1148] sm:$0xff]
    %v739 = vld [vmem:[#allocation5 + $0x1150] sm:$0xff]
    %v740 = vld [vmem:[#allocation5 + $0x1158] sm:$0xff]
    %v741 = vld [vmem:[#allocation5 + $0x1160] sm:$0xff]
    %v742 = vld [vmem:[#allocation5 + $0x1168] sm:$0xff]
    %v743 = vld [vmem:[#allocation5 + $0x1170] sm:$0xff]
    %v744 = vld [vmem:[#allocation5 + $0x1178] sm:$0xff]
    %v745 = vld [vmem:[#allocation5 + $0x1180] sm:$0xff]
    %v746 = vld [vmem:[#allocation5 + $0x1188] sm:$0xff]
    %v747 = vld [vmem:[#allocation5 + $0x1190] sm:$0xff]
    %v748 = vld [vmem:[#allocation5 + $0x1198] sm:$0xff]
    %v749 = vld [vmem:[#allocation5 + $0x11a0] sm:$0xff]
    %v750 = vld [vmem:[#allocation5 + $0x11a8] sm:$0xff]
    %v751 = vld [vmem:[#allocation5 + $0x11b0] sm:$0xff]
    %v752 = vld [vmem:[#allocation5 + $0x11b8] sm:$0xff]
    %v753 = vld [vmem:[#allocation5 + $0x11c0] sm:$0xff]
    %v754 = vld [vmem:[#allocation5 + $0x11c8] sm:$0xff]
    %v755 = vld [vmem:[#allocation5 + $0x11d0] sm:$0xff]
    %v756 = vld [vmem:[#allocation5 + $0x11d8] sm:$0xff]
    %v757 = vld [vmem:[#allocation5 + $0x11e0] sm:$0xff]
    %v758 = vld [vmem:[#allocation5 + $0x11e8] sm:$0xff]
    %v759 = vld [vmem:[#allocation5 + $0x11f0] sm:$0xff]
    %v760 = vld [vmem:[#allocation5 + $0x11f8] sm:$0xff]
    %v761 = vld [vmem:[#allocation5 + $0x1200] sm:$0xff]
    %v762 = vld [vmem:[#allocation5 + $0x1208] sm:$0xff]
    %v763 = vld [vmem:[#allocation5 + $0x1210] sm:$0xff]
    %v764 = vld [vmem:[#allocation5 + $0x1218] sm:$0xff]
    %v765 = vld [vmem:[#allocation5 + $0x1220] sm:$0xff]
    %v766 = vld [vmem:[#allocation5 + $0x1228] sm:$0xff]
    %v767 = vld [vmem:[#allocation5 + $0x1230] sm:$0xff]
    %v768 = vld [vmem:[#allocation5 + $0x1238] sm:$0xff]
    %v769 = vld [vmem:[#allocation5 + $0x1240] sm:$0xff]
    %v770 = vld [vmem:[#allocation5 + $0x1248] sm:$0xff]
    %v771 = vld [vmem:[#allocation5 + $0x1250] sm:$0xff]
    %v772 = vld [vmem:[#allocation5 + $0x1258] sm:$0xff]
    %v773 = vld [vmem:[#allocation5 + $0x1260] sm:$0xff]
    %v774 = vld [vmem:[#allocation5 + $0x1268] sm:$0xff]
    %v775 = vld [vmem:[#allocation5 + $0x1270] sm:$0xff]
    %v776 = vld [vmem:[#allocation5 + $0x1278] sm:$0xff]
    %v777 = vld [vmem:[#allocation5 + $0x1280] sm:$0xff]
    %v778 = vld [vmem:[#allocation5 + $0x1288] sm:$0xff]
    %v779 = vld [vmem:[#allocation5 + $0x1290] sm:$0xff]
    %v780 = vld [vmem:[#allocation5 + $0x1298] sm:$0xff]
    %v781 = vld [vmem:[#allocation5 + $0x12a0] sm:$0xff]
    %v782 = vld [vmem:[#allocation5 + $0x12a8] sm:$0xff]
    %v783 = vld [vmem:[#allocation5 + $0x12b0] sm:$0xff]
    %v784 = vld [vmem:[#allocation5 + $0x12b8] sm:$0xff]
    %v785 = vld [vmem:[#allocation5 + $0x12c0] sm:$0xff]
    %v786 = vld [vmem:[#allocation5 + $0x12c8] sm:$0xff]
    %v787 = vld [vmem:[#allocation5 + $0x12d0] sm:$0xff]
    %v788 = vld [vmem:[#allocation5 + $0x12d8] sm:$0xff]
    %v789 = vld [vmem:[#allocation5 + $0x12e0] sm:$0xff]
    %v790 = vld [vmem:[#allocation5 + $0x12e8] sm:$0xff]
    %v791 = vld [vmem:[#allocation5 + $0x12f0] sm:$0xff]
    %v792 = vld [vmem:[#allocation5 + $0x12f8] sm:$0xff]
    %v793 = vld [vmem:[#allocation5 + $0x1300] sm:$0xff]
    %v794 = vld [vmem:[#allocation5 + $0x1308] sm:$0xff]
    %v795 = vld [vmem:[#allocation5 + $0x1310] sm:$0xff]
    %v796 = vld [vmem:[#allocation5 + $0x1318] sm:$0xff]
    %v797 = vld [vmem:[#allocation5 + $0x1320] sm:$0xff]
    %v798 = vld [vmem:[#allocation5 + $0x1328] sm:$0xff]
    %v799 = vld [vmem:[#allocation5 + $0x1330] sm:$0xff]
    %v800 = vld [vmem:[#allocation5 + $0x1338] sm:$0xff]
    %v801 = vld [vmem:[#allocation5 + $0x1340] sm:$0xff]
    %v802 = vld [vmem:[#allocation5 + $0x1348] sm:$0xff]
    %v803 = vld [vmem:[#allocation5 + $0x1350] sm:$0xff]
    %v804 = vld [vmem:[#allocation5 + $0x1358] sm:$0xff]
    %v805 = vld [vmem:[#allocation5 + $0x1360] sm:$0xff]
    %v806 = vld [vmem:[#allocation5 + $0x1368] sm:$0xff]
    %v807 = vld [vmem:[#allocation5 + $0x1370] sm:$0xff]
    %v808 = vld [vmem:[#allocation5 + $0x1378] sm:$0xff]
    %v809 = vld [vmem:[#allocation5 + $0x1380] sm:$0xff]
    %v810 = vld [vmem:[#allocation5 + $0x1388] sm:$0xff]
    %v811 = vld [vmem:[#allocation5 + $0x1390] sm:$0xff]
    %v812 = vld [vmem:[#allocation5 + $0x1398] sm:$0xff]
    %v813 = vld [vmem:[#allocation5 + $0x13a0] sm:$0xff]
    %v814 = vld [vmem:[#allocation5 + $0x13a8] sm:$0xff]
    %v815 = vld [vmem:[#allocation5 + $0x13b0] sm:$0xff]
    %v816 = vld [vmem:[#allocation5 + $0x13b8] sm:$0xff]
    %v817 = vld [vmem:[#allocation5 + $0x13c0] sm:$0xff]
    %v818 = vld [vmem:[#allocation5 + $0x13c8] sm:$0xff]
    %v819 = vld [vmem:[#allocation5 + $0x13d0] sm:$0xff]
    %v820 = vld [vmem:[#allocation5 + $0x13d8] sm:$0xff]
    %v821 = vld [vmem:[#allocation5 + $0x13e0] sm:$0xff]
    %v822 = vld [vmem:[#allocation5 + $0x13e8] sm:$0xff]
    %v823 = vld [vmem:[#allocation5 + $0x13f0] sm:$0xff]
    %v824 = vld [vmem:[#allocation5 + $0x13f8] sm:$0xff]
    %v825 = vld [vmem:[#allocation5 + $0x1400] sm:$0xff]
    %v826 = vld [vmem:[#allocation5 + $0x1408] sm:$0xff]
    %v827 = vld [vmem:[#allocation5 + $0x1410] sm:$0xff]
    %v828 = vld [vmem:[#allocation5 + $0x1418] sm:$0xff]
    %v829 = vld [vmem:[#allocation5 + $0x1420] sm:$0xff]
    %v830 = vld [vmem:[#allocation5 + $0x1428] sm:$0xff]
    %v831 = vld [vmem:[#allocation5 + $0x1430] sm:$0xff]
    %v832 = vld [vmem:[#allocation5 + $0x1438] sm:$0xff]
    %v833 = vld [vmem:[#allocation5 + $0x1440] sm:$0xff]
    %v834 = vld [vmem:[#allocation5 + $0x1448] sm:$0xff]
    %v835 = vld [vmem:[#allocation5 + $0x1450] sm:$0xff]
    %v836 = vld [vmem:[#allocation5 + $0x1458] sm:$0xff]
    %v837 = vld [vmem:[#allocation5 + $0x1460] sm:$0xff]
    %v838 = vld [vmem:[#allocation5 + $0x1468] sm:$0xff]
    %v839 = vld [vmem:[#allocation5 + $0x1470] sm:$0xff]
    %v840 = vld [vmem:[#allocation5 + $0x1478] sm:$0xff]
    %v841 = vld [vmem:[#allocation5 + $0x1480] sm:$0xff]
    %v842 = vld [vmem:[#allocation5 + $0x1488] sm:$0xff]
    %v843 = vld [vmem:[#allocation5 + $0x1490] sm:$0xff]
    %v844 = vld [vmem:[#allocation5 + $0x1498] sm:$0xff]
    %v845 = vld [vmem:[#allocation5 + $0x14a0] sm:$0xff]
    %v846 = vld [vmem:[#allocation5 + $0x14a8] sm:$0xff]
    %v847 = vld [vmem:[#allocation5 + $0x14b0] sm:$0xff]
    %v848 = vld [vmem:[#allocation5 + $0x14b8] sm:$0xff]
    %v849 = vld [vmem:[#allocation5 + $0x14c0] sm:$0xff]
    %v850 = vld [vmem:[#allocation5 + $0x14c8] sm:$0xff]
    %v851 = vld [vmem:[#allocation5 + $0x14d0] sm:$0xff]
    %v852 = vld [vmem:[#allocation5 + $0x14d8] sm:$0xff]
    %v853 = vld [vmem:[#allocation5 + $0x14e0] sm:$0xff]
    %v854 = vld [vmem:[#allocation5 + $0x14e8] sm:$0xff]
    %v855 = vld [vmem:[#allocation5 + $0x14f0] sm:$0xff]
    %v856 = vld [vmem:[#allocation5 + $0x14f8] sm:$0xff]
    %v857 = vld [vmem:[#allocation5 + $0x1500] sm:$0xff]
    %v858 = vld [vmem:[#allocation5 + $0x1508] sm:$0xff]
    %v859 = vld [vmem:[#allocation5 + $0x1510] sm:$0xff]
    %v860 = vld [vmem:[#allocation5 + $0x1518] sm:$0xff]
    %v861 = vld [vmem:[#allocation5 + $0x1520] sm:$0xff]
    %v862 = vld [vmem:[#allocation5 + $0x1528] sm:$0xff]
    %v863 = vld [vmem:[#allocation5 + $0x1530] sm:$0xff]
    %v864 = vld [vmem:[#allocation5 + $0x1538] sm:$0xff]
    %v865 = vld [vmem:[#allocation5 + $0x1540] sm:$0xff]
    %v866 = vld [vmem:[#allocation5 + $0x1548] sm:$0xff]
    %v867 = vld [vmem:[#allocation5 + $0x1550] sm:$0xff]
    %v868 = vld [vmem:[#allocation5 + $0x1558] sm:$0xff]
    %v869 = vld [vmem:[#allocation5 + $0x1560] sm:$0xff]
    %v870 = vld [vmem:[#allocation5 + $0x1568] sm:$0xff]
    %v871 = vld [vmem:[#allocation5 + $0x1570] sm:$0xff]
    %v872 = vld [vmem:[#allocation5 + $0x1578] sm:$0xff]
    %v873 = vld [vmem:[#allocation5 + $0x1580] sm:$0xff]
    %v874 = vld [vmem:[#allocation5 + $0x1588] sm:$0xff]
    %v875 = vld [vmem:[#allocation5 + $0x1590] sm:$0xff]
    %v876 = vld [vmem:[#allocation5 + $0x1598] sm:$0xff]
    %v877 = vld [vmem:[#allocation5 + $0x15a0] sm:$0xff]
    %v878 = vld [vmem:[#allocation5 + $0x15a8] sm:$0xff]
    %v879 = vld [vmem:[#allocation5 + $0x15b0] sm:$0xff]
    %v880 = vld [vmem:[#allocation5 + $0x15b8] sm:$0xff]
    %v881 = vld [vmem:[#allocation5 + $0x15c0] sm:$0xff]
    %v882 = vld [vmem:[#allocation5 + $0x15c8] sm:$0xff]
    %v883 = vld [vmem:[#allocation5 + $0x15d0] sm:$0xff]
    %v884 = vld [vmem:[#allocation5 + $0x15d8] sm:$0xff]
    %v885 = vld [vmem:[#allocation5 + $0x15e0] sm:$0xff]
    %v886 = vld [vmem:[#allocation5 + $0x15e8] sm:$0xff]
    %v887 = vld [vmem:[#allocation5 + $0x15f0] sm:$0xff]
    %v888 = vld [vmem:[#allocation5 + $0x15f8] sm:$0xff]
    %v889 = vld [vmem:[#allocation5 + $0x1600] sm:$0xff]
    %v890 = vld [vmem:[#allocation5 + $0x1608] sm:$0xff]
    %v891 = vld [vmem:[#allocation5 + $0x1610] sm:$0xff]
    %v892 = vld [vmem:[#allocation5 + $0x1618] sm:$0xff]
    %v893 = vld [vmem:[#allocation5 + $0x1620] sm:$0xff]
    %v894 = vld [vmem:[#allocation5 + $0x1628] sm:$0xff]
    %v895 = vld [vmem:[#allocation5 + $0x1630] sm:$0xff]
    %v896 = vld [vmem:[#allocation5 + $0x1638] sm:$0xff]
    %v897 = vld [vmem:[#allocation5 + $0x1640] sm:$0xff]
    %v898 = vld [vmem:[#allocation5 + $0x1648] sm:$0xff]
    %v899 = vld [vmem:[#allocation5 + $0x1650] sm:$0xff]
    %v900 = vld [vmem:[#allocation5 + $0x1658] sm:$0xff]
    %v901 = vld [vmem:[#allocation5 + $0x1660] sm:$0xff]
    %v902 = vld [vmem:[#allocation5 + $0x1668] sm:$0xff]
    %v903 = vld [vmem:[#allocation5 + $0x1670] sm:$0xff]
    %v904 = vld [vmem:[#allocation5 + $0x1678] sm:$0xff]
    %v905 = vld [vmem:[#allocation5 + $0x1680] sm:$0xff]
    %v906 = vld [vmem:[#allocation5 + $0x1688] sm:$0xff]
    %v907 = vld [vmem:[#allocation5 + $0x1690] sm:$0xff]
    %v908 = vld [vmem:[#allocation5 + $0x1698] sm:$0xff]
    %v909 = vld [vmem:[#allocation5 + $0x16a0] sm:$0xff]
    %v910 = vld [vmem:[#allocation5 + $0x16a8] sm:$0xff]
    %v911 = vld [vmem:[#allocation5 + $0x16b0] sm:$0xff]
    %v912 = vld [vmem:[#allocation5 + $0x16b8] sm:$0xff]
    %v913 = vld [vmem:[#allocation5 + $0x16c0] sm:$0xff]
    %v914 = vld [vmem:[#allocation5 + $0x16c8] sm:$0xff]
    %v915 = vld [vmem:[#allocation5 + $0x16d0] sm:$0xff]
    %v916 = vld [vmem:[#allocation5 + $0x16d8] sm:$0xff]
    %v917 = vld [vmem:[#allocation5 + $0x16e0] sm:$0xff]
    %v918 = vld [vmem:[#allocation5 + $0x16e8] sm:$0xff]
    %v919 = vld [vmem:[#allocation5 + $0x16f0] sm:$0xff]
    %v920 = vld [vmem:[#allocation5 + $0x16f8] sm:$0xff]
    %v921 = vld [vmem:[#allocation5 + $0x1700] sm:$0xff]
    %v922 = vld [vmem:[#allocation5 + $0x1708] sm:$0xff]
    %v923 = vld [vmem:[#allocation5 + $0x1710] sm:$0xff]
    %v924 = vld [vmem:[#allocation5 + $0x1718] sm:$0xff]
    %v925 = vld [vmem:[#allocation5 + $0x1720] sm:$0xff]
    %v926 = vld [vmem:[#allocation5 + $0x1728] sm:$0xff]
    %v927 = vld [vmem:[#allocation5 + $0x1730] sm:$0xff]
    %v928 = vld [vmem:[#allocation5 + $0x1738] sm:$0xff]
    %v929 = vld [vmem:[#allocation5 + $0x1740] sm:$0xff]
    %v930 = vld [vmem:[#allocation5 + $0x1748] sm:$0xff]
    %v931 = vld [vmem:[#allocation5 + $0x1750] sm:$0xff]
    %v932 = vld [vmem:[#allocation5 + $0x1758] sm:$0xff]
    %v933 = vld [vmem:[#allocation5 + $0x1760] sm:$0xff]
    %v934 = vld [vmem:[#allocation5 + $0x1768] sm:$0xff]
    %v935 = vld [vmem:[#allocation5 + $0x1770] sm:$0xff]
    %v936 = vld [vmem:[#allocation5 + $0x1778] sm:$0xff]
    %v937 = vld [vmem:[#allocation5 + $0x1780] sm:$0xff]
    %v938 = vld [vmem:[#allocation5 + $0x1788] sm:$0xff]
    %v939 = vld [vmem:[#allocation5 + $0x1790] sm:$0xff]
    %v940 = vld [vmem:[#allocation5 + $0x1798] sm:$0xff]
    %v941 = vld [vmem:[#allocation5 + $0x17a0] sm:$0xff]
    %v942 = vld [vmem:[#allocation5 + $0x17a8] sm:$0xff]
    %v943 = vld [vmem:[#allocation5 + $0x17b0] sm:$0xff]
    %v944 = vld [vmem:[#allocation5 + $0x17b8] sm:$0xff]
    %v945 = vld [vmem:[#allocation5 + $0x17c0] sm:$0xff]
    %v946 = vld [vmem:[#allocation5 + $0x17c8] sm:$0xff]
    %v947 = vld [vmem:[#allocation5 + $0x17d0] sm:$0xff]
    %v948 = vld [vmem:[#allocation5 + $0x17d8] sm:$0xff]
    %v949 = vld [vmem:[#allocation5 + $0x17e0] sm:$0xff]
    %v950 = vld [vmem:[#allocation5 + $0x17e8] sm:$0xff]
    %v951 = vld [vmem:[#allocation5 + $0x17f0] sm:$0xff]
    %v952 = vld [vmem:[#allocation5 + $0x17f8] sm:$0xff]
    %v953 = vld [vmem:[#allocation5 + $0x1800] sm:$0xff]
    %v954 = vld [vmem:[#allocation5 + $0x1808] sm:$0xff]
    %v955 = vld [vmem:[#allocation5 + $0x1810] sm:$0xff]
    %v956 = vld [vmem:[#allocation5 + $0x1818] sm:$0xff]
    %v957 = vld [vmem:[#allocation5 + $0x1820] sm:$0xff]
    %v958 = vld [vmem:[#allocation5 + $0x1828] sm:$0xff]
    %v959 = vld [vmem:[#allocation5 + $0x1830] sm:$0xff]
    %v960 = vld [vmem:[#allocation5 + $0x1838] sm:$0xff]
    %v961 = vld [vmem:[#allocation5 + $0x1840] sm:$0xff]
    %v962 = vld [vmem:[#allocation5 + $0x1848] sm:$0xff]
    %v963 = vld [vmem:[#allocation5 + $0x1850] sm:$0xff]
    %v964 = vld [vmem:[#allocation5 + $0x1858] sm:$0xff]
    %v965 = vld [vmem:[#allocation5 + $0x1860] sm:$0xff]
    %v966 = vld [vmem:[#allocation5 + $0x1868] sm:$0xff]
    %v967 = vld [vmem:[#allocation5 + $0x1870] sm:$0xff]
    %v968 = vld [vmem:[#allocation5 + $0x1878] sm:$0xff]
    %v969 = vld [vmem:[#allocation5 + $0x1880] sm:$0xff]
    %v970 = vld [vmem:[#allocation5 + $0x1888] sm:$0xff]
    %v971 = vld [vmem:[#allocation5 + $0x1890] sm:$0xff]
    %v972 = vld [vmem:[#allocation5 + $0x1898] sm:$0xff]
    %v973 = vld [vmem:[#allocation5 + $0x18a0] sm:$0xff]
    %v974 = vld [vmem:[#allocation5 + $0x18a8] sm:$0xff]
    %v975 = vld [vmem:[#allocation5 + $0x18b0] sm:$0xff]
    %v976 = vld [vmem:[#allocation5 + $0x18b8] sm:$0xff]
    %v977 = vld [vmem:[#allocation5 + $0x18c0] sm:$0xff]
    %v978 = vld [vmem:[#allocation5 + $0x18c8] sm:$0xff]
    %v979 = vld [vmem:[#allocation5 + $0x18d0] sm:$0xff]
    %v980 = vld [vmem:[#allocation5 + $0x18d8] sm:$0xff]
    %v981 = vld [vmem:[#allocation5 + $0x18e0] sm:$0xff]
    %v982 = vld [vmem:[#allocation5 + $0x18e8] sm:$0xff]
    %v983 = vld [vmem:[#allocation5 + $0x18f0] sm:$0xff]
    %v984 = vld [vmem:[#allocation5 + $0x18f8] sm:$0xff]
    %v985 = vld [vmem:[#allocation5 + $0x1900] sm:$0xff]
    %v986 = vld [vmem:[#allocation5 + $0x1908] sm:$0xff]
    %v987 = vld [vmem:[#allocation5 + $0x1910] sm:$0xff]
    %v988 = vld [vmem:[#allocation5 + $0x1918] sm:$0xff]
    %v989 = vld [vmem:[#allocation5 + $0x1920] sm:$0xff]
    %v990 = vld [vmem:[#allocation5 + $0x1928] sm:$0xff]
    %v991 = vld [vmem:[#allocation5 + $0x1930] sm:$0xff]
    %v992 = vld [vmem:[#allocation5 + $0x1938] sm:$0xff]
    %v993 = vld [vmem:[#allocation5 + $0x1940] sm:$0xff]
    %v994 = vld [vmem:[#allocation5 + $0x1948] sm:$0xff]
    %v995 = vld [vmem:[#allocation5 + $0x1950] sm:$0xff]
    %v996 = vld [vmem:[#allocation5 + $0x1958] sm:$0xff]
    %v997 = vld [vmem:[#allocation5 + $0x1960] sm:$0xff]
    %v998 = vld [vmem:[#allocation5 + $0x1968] sm:$0xff]
    %v999 = vld [vmem:[#allocation5 + $0x1970] sm:$0xff]
    %v1000 = vld [vmem:[#allocation5 + $0x1978] sm:$0xff]
    %v1001 = vld [vmem:[#allocation5 + $0x1980] sm:$0xff]
    %v1002 = vld [vmem:[#allocation5 + $0x1988] sm:$0xff]
    %v1003 = vld [vmem:[#allocation5 + $0x1990] sm:$0xff]
    %v1004 = vld [vmem:[#allocation5 + $0x1998] sm:$0xff]
    %v1005 = vld [vmem:[#allocation5 + $0x19a0] sm:$0xff]
    %v1006 = vld [vmem:[#allocation5 + $0x19a8] sm:$0xff]
    %v1007 = vld [vmem:[#allocation5 + $0x19b0] sm:$0xff]
    %v1008 = vld [vmem:[#allocation5 + $0x19b8] sm:$0xff]
    %v1009 = vld [vmem:[#allocation5 + $0x19c0] sm:$0xff]
    %v1010 = vld [vmem:[#allocation5 + $0x19c8] sm:$0xff]
    %v1011 = vld [vmem:[#allocation5 + $0x19d0] sm:$0xff]
    %v1012 = vld [vmem:[#allocation5 + $0x19d8] sm:$0xff]
    %v1013 = vld [vmem:[#allocation5 + $0x19e0] sm:$0xff]
    %v1014 = vld [vmem:[#allocation5 + $0x19e8] sm:$0xff]
    %v1015 = vld [vmem:[#allocation5 + $0x19f0] sm:$0xff]
    %v1016 = vld [vmem:[#allocation5 + $0x19f8] sm:$0xff]
    %v1017 = vld [vmem:[#allocation5 + $0x1a00] sm:$0xff]
    %v1018 = vld [vmem:[#allocation5 + $0x1a08] sm:$0xff]
    %v1019 = vld [vmem:[#allocation5 + $0x1a10] sm:$0xff]
    %v1020 = vld [vmem:[#allocation5 + $0x1a18] sm:$0xff]
    %v1021 = vld [vmem:[#allocation5 + $0x1a20] sm:$0xff]
    %v1022 = vld [vmem:[#allocation5 + $0x1a28] sm:$0xff]
    %v1023 = vld [vmem:[#allocation5 + $0x1a30] sm:$0xff]
    %v1024 = vld [vmem:[#allocation5 + $0x1a38] sm:$0xff]
    %v1025 = vld [vmem:[#allocation5 + $0x1a40] sm:$0xff]
    %v1026 = vld [vmem:[#allocation5 + $0x1a48] sm:$0xff]
    %v1027 = vld [vmem:[#allocation5 + $0x1a50] sm:$0xff]
    %v1028 = vld [vmem:[#allocation5 + $0x1a58] sm:$0xff]
    %v1029 = vld [vmem:[#allocation5 + $0x1a60] sm:$0xff]
    %v1030 = vld [vmem:[#allocation5 + $0x1a68] sm:$0xff]
    %v1031 = vld [vmem:[#allocation5 + $0x1a70] sm:$0xff]
    %v1032 = vld [vmem:[#allocation5 + $0x1a78] sm:$0xff]
    %v1033 = vld [vmem:[#allocation5 + $0x1a80] sm:$0xff]
    %v1034 = vld [vmem:[#allocation5 + $0x1a88] sm:$0xff]
    %v1035 = vld [vmem:[#allocation5 + $0x1a90] sm:$0xff]
    %v1036 = vld [vmem:[#allocation5 + $0x1a98] sm:$0xff]
    %v1037 = vld [vmem:[#allocation5 + $0x1aa0] sm:$0xff]
    %v1038 = vld [vmem:[#allocation5 + $0x1aa8] sm:$0xff]
    %v1039 = vld [vmem:[#allocation5 + $0x1ab0] sm:$0xff]
    %v1040 = vld [vmem:[#allocation5 + $0x1ab8] sm:$0xff]
    %v1041 = vld [vmem:[#allocation5 + $0x1ac0] sm:$0xff]
    %v1042 = vld [vmem:[#allocation5 + $0x1ac8] sm:$0xff]
    %v1043 = vld [vmem:[#allocation5 + $0x1ad0] sm:$0xff]
    %v1044 = vld [vmem:[#allocation5 + $0x1ad8] sm:$0xff]
    %v1045 = vld [vmem:[#allocation5 + $0x1ae0] sm:$0xff]
    %v1046 = vld [vmem:[#allocation5 + $0x1ae8] sm:$0xff]
    %v1047 = vld [vmem:[#allocation5 + $0x1af0] sm:$0xff]
    %v1048 = vld [vmem:[#allocation5 + $0x1af8] sm:$0xff]
    %v1049 = vld [vmem:[#allocation5 + $0x1b00] sm:$0xff]
    %v1050 = vld [vmem:[#allocation5 + $0x1b08] sm:$0xff]
    %v1051 = vld [vmem:[#allocation5 + $0x1b10] sm:$0xff]
    %v1052 = vld [vmem:[#allocation5 + $0x1b18] sm:$0xff]
    %v1053 = vld [vmem:[#allocation5 + $0x1b20] sm:$0xff]
    %v1054 = vld [vmem:[#allocation5 + $0x1b28] sm:$0xff]
    %v1055 = vld [vmem:[#allocation5 + $0x1b30] sm:$0xff]
    %v1056 = vld [vmem:[#allocation5 + $0x1b38] sm:$0xff]
    %v1057 = vld [vmem:[#allocation5 + $0x1b40] sm:$0xff]
    %v1058 = vld [vmem:[#allocation5 + $0x1b48] sm:$0xff]
    %v1059 = vld [vmem:[#allocation5 + $0x1b50] sm:$0xff]
    %v1060 = vld [vmem:[#allocation5 + $0x1b58] sm:$0xff]
    %v1061 = vld [vmem:[#allocation5 + $0x1b60] sm:$0xff]
    %v1062 = vld [vmem:[#allocation5 + $0x1b68] sm:$0xff]
    %v1063 = vld [vmem:[#allocation5 + $0x1b70] sm:$0xff]
    %v1064 = vld [vmem:[#allocation5 + $0x1b78] sm:$0xff]
    %v1065 = vld [vmem:[#allocation5 + $0x1b80] sm:$0xff]
    %v1066 = vld [vmem:[#allocation5 + $0x1b88] sm:$0xff]
    %v1067 = vld [vmem:[#allocation5 + $0x1b90] sm:$0xff]
    %v1068 = vld [vmem:[#allocation5 + $0x1b98] sm:$0xff]
    %v1069 = vld [vmem:[#allocation5 + $0x1ba0] sm:$0xff]
    %v1070 = vld [vmem:[#allocation5 + $0x1ba8] sm:$0xff]
    %v1071 = vld [vmem:[#allocation5 + $0x1bb0] sm:$0xff]
    %v1072 = vld [vmem:[#allocation5 + $0x1bb8] sm:$0xff]
    %v1073 = vld [vmem:[#allocation5 + $0x1bc0] sm:$0xff]
    %v1074 = vld [vmem:[#allocation5 + $0x1bc8] sm:$0xff]
    %v1075 = vld [vmem:[#allocation5 + $0x1bd0] sm:$0xff]
    %v1076 = vld [vmem:[#allocation5 + $0x1bd8] sm:$0xff]
    %v1077 = vld [vmem:[#allocation5 + $0x1be0] sm:$0xff]
    %v1078 = vld [vmem:[#allocation5 + $0x1be8] sm:$0xff]
    %v1079 = vld [vmem:[#allocation5 + $0x1bf0] sm:$0xff]
    %v1080 = vld [vmem:[#allocation5 + $0x1bf8] sm:$0xff]
    %v1081 = vld [vmem:[#allocation5 + $0x1c00] sm:$0xff]
    %v1082 = vld [vmem:[#allocation5 + $0x1c08] sm:$0xff]
    %v1083 = vld [vmem:[#allocation5 + $0x1c10] sm:$0xff]
    %v1084 = vld [vmem:[#allocation5 + $0x1c18] sm:$0xff]
    %v1085 = vld [vmem:[#allocation5 + $0x1c20] sm:$0xff]
    %v1086 = vld [vmem:[#allocation5 + $0x1c28] sm:$0xff]
    %v1087 = vld [vmem:[#allocation5 + $0x1c30] sm:$0xff]
    %v1088 = vld [vmem:[#allocation5 + $0x1c38] sm:$0xff]
    %v1089 = vld [vmem:[#allocation5 + $0x1c40] sm:$0xff]
    %v1090 = vld [vmem:[#allocation5 + $0x1c48] sm:$0xff]
    %v1091 = vld [vmem:[#allocation5 + $0x1c50] sm:$0xff]
    %v1092 = vld [vmem:[#allocation5 + $0x1c58] sm:$0xff]
    %v1093 = vld [vmem:[#allocation5 + $0x1c60] sm:$0xff]
    %v1094 = vld [vmem:[#allocation5 + $0x1c68] sm:$0xff]
    %v1095 = vld [vmem:[#allocation5 + $0x1c70] sm:$0xff]
    %v1096 = vld [vmem:[#allocation5 + $0x1c78] sm:$0xff]
    %v1097 = vld [vmem:[#allocation5 + $0x1c80] sm:$0xff]
    %v1098 = vld [vmem:[#allocation5 + $0x1c88] sm:$0xff]
    %v1099 = vld [vmem:[#allocation5 + $0x1c90] sm:$0xff]
    %v1100 = vld [vmem:[#allocation5 + $0x1c98] sm:$0xff]
    %v1101 = vld [vmem:[#allocation5 + $0x1ca0] sm:$0xff]
    %v1102 = vld [vmem:[#allocation5 + $0x1ca8] sm:$0xff]
    %v1103 = vld [vmem:[#allocation5 + $0x1cb0] sm:$0xff]
    %v1104 = vld [vmem:[#allocation5 + $0x1cb8] sm:$0xff]
    %v1105 = vld [vmem:[#allocation5 + $0x1cc0] sm:$0xff]
    %v1106 = vld [vmem:[#allocation5 + $0x1cc8] sm:$0xff]
    %v1107 = vld [vmem:[#allocation5 + $0x1cd0] sm:$0xff]
    %v1108 = vld [vmem:[#allocation5 + $0x1cd8] sm:$0xff]
    %v1109 = vld [vmem:[#allocation5 + $0x1ce0] sm:$0xff]
    %v1110 = vld [vmem:[#allocation5 + $0x1ce8] sm:$0xff]
    %v1111 = vld [vmem:[#allocation5 + $0x1cf0] sm:$0xff]
    %v1112 = vld [vmem:[#allocation5 + $0x1cf8] sm:$0xff]
    %v1113 = vld [vmem:[#allocation5 + $0x1d00] sm:$0xff]
    %v1114 = vld [vmem:[#allocation5 + $0x1d08] sm:$0xff]
    %v1115 = vld [vmem:[#allocation5 + $0x1d10] sm:$0xff]
    %v1116 = vld [vmem:[#allocation5 + $0x1d18] sm:$0xff]
    %v1117 = vld [vmem:[#allocation5 + $0x1d20] sm:$0xff]
    %v1118 = vld [vmem:[#allocation5 + $0x1d28] sm:$0xff]
    %v1119 = vld [vmem:[#allocation5 + $0x1d30] sm:$0xff]
    %v1120 = vld [vmem:[#allocation5 + $0x1d38] sm:$0xff]
    %v1121 = vld [vmem:[#allocation5 + $0x1d40] sm:$0xff]
    %v1122 = vld [vmem:[#allocation5 + $0x1d48] sm:$0xff]
    %v1123 = vld [vmem:[#allocation5 + $0x1d50] sm:$0xff]
    %v1124 = vld [vmem:[#allocation5 + $0x1d58] sm:$0xff]
    %v1125 = vld [vmem:[#allocation5 + $0x1d60] sm:$0xff]
    %v1126 = vld [vmem:[#allocation5 + $0x1d68] sm:$0xff]
    %v1127 = vld [vmem:[#allocation5 + $0x1d70] sm:$0xff]
    %v1128 = vld [vmem:[#allocation5 + $0x1d78] sm:$0xff]
    %v1129 = vld [vmem:[#allocation5 + $0x1d80] sm:$0xff]
    %v1130 = vld [vmem:[#allocation5 + $0x1d88] sm:$0xff]
    %v1131 = vld [vmem:[#allocation5 + $0x1d90] sm:$0xff]
    %v1132 = vld [vmem:[#allocation5 + $0x1d98] sm:$0xff]
    %v1133 = vld [vmem:[#allocation5 + $0x1da0] sm:$0xff]
    %v1134 = vld [vmem:[#allocation5 + $0x1da8] sm:$0xff]
    %v1135 = vld [vmem:[#allocation5 + $0x1db0] sm:$0xff]
    %v1136 = vld [vmem:[#allocation5 + $0x1db8] sm:$0xff]
    %v1137 = vld [vmem:[#allocation5 + $0x1dc0] sm:$0xff]
    %v1138 = vld [vmem:[#allocation5 + $0x1dc8] sm:$0xff]
    %v1139 = vld [vmem:[#allocation5 + $0x1dd0] sm:$0xff]
    %v1140 = vld [vmem:[#allocation5 + $0x1dd8] sm:$0xff]
    %v1141 = vld [vmem:[#allocation5 + $0x1de0] sm:$0xff]
    %v1142 = vld [vmem:[#allocation5 + $0x1de8] sm:$0xff]
    %v1143 = vld [vmem:[#allocation5 + $0x1df0] sm:$0xff]
    %v1144 = vld [vmem:[#allocation5 + $0x1df8] sm:$0xff]
    %v1145 = vld [vmem:[#allocation5 + $0x1e00] sm:$0xff]
    %v1146 = vld [vmem:[#allocation5 + $0x1e08] sm:$0xff]
    %v1147 = vld [vmem:[#allocation5 + $0x1e10] sm:$0xff]
    %v1148 = vld [vmem:[#allocation5 + $0x1e18] sm:$0xff]
    %v1149 = vld [vmem:[#allocation5 + $0x1e20] sm:$0xff]
    %v1150 = vld [vmem:[#allocation5 + $0x1e28] sm:$0xff]
    %v1151 = vld [vmem:[#allocation5 + $0x1e30] sm:$0xff]
    %v1152 = vld [vmem:[#allocation5 + $0x1e38] sm:$0xff]
    %v1153 = vld [vmem:[#allocation5 + $0x1e40] sm:$0xff]
    %v1154 = vld [vmem:[#allocation5 + $0x1e48] sm:$0xff]
    %v1155 = vld [vmem:[#allocation5 + $0x1e50] sm:$0xff]
    %v1156 = vld [vmem:[#allocation5 + $0x1e58] sm:$0xff]
    %v1157 = vld [vmem:[#allocation5 + $0x1e60] sm:$0xff]
    %v1158 = vld [vmem:[#allocation5 + $0x1e68] sm:$0xff]
    %v1159 = vld [vmem:[#allocation5 + $0x1e70] sm:$0xff]
    %v1160 = vld [vmem:[#allocation5 + $0x1e78] sm:$0xff]
    %v1161 = vld [vmem:[#allocation5 + $0x1e80] sm:$0xff]
    %v1162 = vld [vmem:[#allocation5 + $0x1e88] sm:$0xff]
    %v1163 = vld [vmem:[#allocation5 + $0x1e90] sm:$0xff]
    %v1164 = vld [vmem:[#allocation5 + $0x1e98] sm:$0xff]
    %v1165 = vld [vmem:[#allocation5 + $0x1ea0] sm:$0xff]
    %v1166 = vld [vmem:[#allocation5 + $0x1ea8] sm:$0xff]
    %v1167 = vld [vmem:[#allocation5 + $0x1eb0] sm:$0xff]
    %v1168 = vld [vmem:[#allocation5 + $0x1eb8] sm:$0xff]
    %v1169 = vld [vmem:[#allocation5 + $0x1ec0] sm:$0xff]
    %v1170 = vld [vmem:[#allocation5 + $0x1ec8] sm:$0xff]
    %v1171 = vld [vmem:[#allocation5 + $0x1ed0] sm:$0xff]
    %v1172 = vld [vmem:[#allocation5 + $0x1ed8] sm:$0xff]
    %v1173 = vld [vmem:[#allocation5 + $0x1ee0] sm:$0xff]
    %v1174 = vld [vmem:[#allocation5 + $0x1ee8] sm:$0xff]
    %v1175 = vld [vmem:[#allocation5 + $0x1ef0] sm:$0xff]
    %v1176 = vld [vmem:[#allocation5 + $0x1ef8] sm:$0xff]
    %v1177 = vld [vmem:[#allocation5 + $0x1f00] sm:$0xff]
    %v1178 = vld [vmem:[#allocation5 + $0x1f08] sm:$0xff]
    %v1179 = vld [vmem:[#allocation5 + $0x1f10] sm:$0xff]
    %v1180 = vld [vmem:[#allocation5 + $0x1f18] sm:$0xff]
    %v1181 = vld [vmem:[#allocation5 + $0x1f20] sm:$0xff]
    %v1182 = vld [vmem:[#allocation5 + $0x1f28] sm:$0xff]
    %v1183 = vld [vmem:[#allocation5 + $0x1f30] sm:$0xff]
    %v1184 = vld [vmem:[#allocation5 + $0x1f38] sm:$0xff]
    %v1185 = vld [vmem:[#allocation5 + $0x1f40] sm:$0xff]
    %v1186 = vld [vmem:[#allocation5 + $0x1f48] sm:$0xff]
    %v1187 = vld [vmem:[#allocation5 + $0x1f50] sm:$0xff]
    %v1188 = vld [vmem:[#allocation5 + $0x1f58] sm:$0xff]
    %v1189 = vld [vmem:[#allocation5 + $0x1f60] sm:$0xff]
    %v1190 = vld [vmem:[#allocation5 + $0x1f68] sm:$0xff]
    %v1191 = vld [vmem:[#allocation5 + $0x1f70] sm:$0xff]
    %v1192 = vld [vmem:[#allocation5 + $0x1f78] sm:$0xff]
    %v1193 = vld [vmem:[#allocation5 + $0x1f80] sm:$0xff]
    %v1194 = vld [vmem:[#allocation5 + $0x1f88] sm:$0xff]
    %v1195 = vld [vmem:[#allocation5 + $0x1f90] sm:$0xff]
    %v1196 = vld [vmem:[#allocation5 + $0x1f98] sm:$0xff]
    %v1197 = vld [vmem:[#allocation5 + $0x1fa0] sm:$0xff]
    %v1198 = vld [vmem:[#allocation5 + $0x1fa8] sm:$0xff]
    %v1199 = vld [vmem:[#allocation5 + $0x1fb0] sm:$0xff]
    %v1200 = vld [vmem:[#allocation5 + $0x1fb8] sm:$0xff]
    %v1201 = vld [vmem:[#allocation5 + $0x1fc0] sm:$0xff]
    %v1202 = vld [vmem:[#allocation5 + $0x1fc8] sm:$0xff]
    %v1203 = vld [vmem:[#allocation5 + $0x1fd0] sm:$0xff]
    %v1204 = vld [vmem:[#allocation5 + $0x1fd8] sm:$0xff]
    %v1205 = vld [vmem:[#allocation5 + $0x1fe0] sm:$0xff]
    %v1206 = vld [vmem:[#allocation5 + $0x1fe8] sm:$0xff]
    %v1207 = vld [vmem:[#allocation5 + $0x1ff0] sm:$0xff]
    %v1208 = vld [vmem:[#allocation5 + $0x1ff8] sm:$0xff]
    %v1209 = vld [vmem:[#allocation5 + $0x2000] sm:$0xff]
    %v1210 = vld [vmem:[#allocation5 + $0x2008] sm:$0xff]
    %v1211 = vld [vmem:[#allocation5 + $0x2010] sm:$0xff]
    %v1212 = vld [vmem:[#allocation5 + $0x2018] sm:$0xff]
    %v1213 = vld [vmem:[#allocation5 + $0x2020] sm:$0xff]
    %v1214 = vld [vmem:[#allocation5 + $0x2028] sm:$0xff]
    %v1215 = vld [vmem:[#allocation5 + $0x2030] sm:$0xff]
    %v1216 = vld [vmem:[#allocation5 + $0x2038] sm:$0xff]
    %v1217 = vld [vmem:[#allocation5 + $0x2040] sm:$0xff]
    %v1218 = vld [vmem:[#allocation5 + $0x2048] sm:$0xff]
    %v1219 = vld [vmem:[#allocation5 + $0x2050] sm:$0xff]
    %v1220 = vld [vmem:[#allocation5 + $0x2058] sm:$0xff]
    %v1221 = vld [vmem:[#allocation5 + $0x2060] sm:$0xff]
    %v1222 = vld [vmem:[#allocation5 + $0x2068] sm:$0xff]
    %v1223 = vld [vmem:[#allocation5 + $0x2070] sm:$0xff]
    %v1224 = vld [vmem:[#allocation5 + $0x2078] sm:$0xff]
    %v1225 = vld [vmem:[#allocation5 + $0x2080] sm:$0xff]
    %v1226 = vld [vmem:[#allocation5 + $0x2088] sm:$0xff]
    %v1227 = vld [vmem:[#allocation5 + $0x2090] sm:$0xff]
    %v1228 = vld [vmem:[#allocation5 + $0x2098] sm:$0xff]
    %v1229 = vld [vmem:[#allocation5 + $0x20a0] sm:$0xff]
    %v1230 = vld [vmem:[#allocation5 + $0x20a8] sm:$0xff]
    %v1231 = vld [vmem:[#allocation5 + $0x20b0] sm:$0xff]
    %v1232 = vld [vmem:[#allocation5 + $0x20b8] sm:$0xff]
    %v1233 = vld [vmem:[#allocation5 + $0x20c0] sm:$0xff]
    %v1234 = vld [vmem:[#allocation5 + $0x20c8] sm:$0xff]
    %v1235 = vld [vmem:[#allocation5 + $0x20d0] sm:$0xff]
    %v1236 = vld [vmem:[#allocation5 + $0x20d8] sm:$0xff]
    %v1237 = vld [vmem:[#allocation5 + $0x20e0] sm:$0xff]
    %v1238 = vld [vmem:[#allocation5 + $0x20e8] sm:$0xff]
    %v1239 = vld [vmem:[#allocation5 + $0x20f0] sm:$0xff]
    %v1240 = vld [vmem:[#allocation5 + $0x20f8] sm:$0xff]
    %v1241 = vld [vmem:[#allocation5 + $0x2100] sm:$0xff]
    %v1242 = vld [vmem:[#allocation5 + $0x2108] sm:$0xff]
    %v1243 = vld [vmem:[#allocation5 + $0x2110] sm:$0xff]
    %v1244 = vld [vmem:[#allocation5 + $0x2118] sm:$0xff]
    %v1245 = vld [vmem:[#allocation5 + $0x2120] sm:$0xff]
    %v1246 = vld [vmem:[#allocation5 + $0x2128] sm:$0xff]
    %v1247 = vld [vmem:[#allocation5 + $0x2130] sm:$0xff]
    %v1248 = vld [vmem:[#allocation5 + $0x2138] sm:$0xff]
    %v1249 = vld [vmem:[#allocation5 + $0x2140] sm:$0xff]
    %v1250 = vld [vmem:[#allocation5 + $0x2148] sm:$0xff]
    %v1251 = vld [vmem:[#allocation5 + $0x2150] sm:$0xff]
    %v1252 = vld [vmem:[#allocation5 + $0x2158] sm:$0xff]
    %v1253 = vld [vmem:[#allocation5 + $0x2160] sm:$0xff]
    %v1254 = vld [vmem:[#allocation5 + $0x2168] sm:$0xff]
    %v1255 = vld [vmem:[#allocation5 + $0x2170] sm:$0xff]
    %v1256 = vld [vmem:[#allocation5 + $0x2178] sm:$0xff]
    %v1257 = vld [vmem:[#allocation5 + $0x2180] sm:$0xff]
    %v1258 = vld [vmem:[#allocation5 + $0x2188] sm:$0xff]
    %v1259 = vld [vmem:[#allocation5 + $0x2190] sm:$0xff]
    %v1260 = vld [vmem:[#allocation5 + $0x2198] sm:$0xff]
    %v1261 = vld [vmem:[#allocation5 + $0x21a0] sm:$0xff]
    %v1262 = vld [vmem:[#allocation5 + $0x21a8] sm:$0xff]
    %v1263 = vld [vmem:[#allocation5 + $0x21b0] sm:$0xff]
    %v1264 = vld [vmem:[#allocation5 + $0x21b8] sm:$0xff]
    %v1265 = vld [vmem:[#allocation5 + $0x21c0] sm:$0xff]
    %v1266 = vld [vmem:[#allocation5 + $0x21c8] sm:$0xff]
    %v1267 = vld [vmem:[#allocation5 + $0x21d0] sm:$0xff]
    %v1268 = vld [vmem:[#allocation5 + $0x21d8] sm:$0xff]
    %v1269 = vld [vmem:[#allocation5 + $0x21e0] sm:$0xff]
    %v1270 = vld [vmem:[#allocation5 + $0x21e8] sm:$0xff]
    %v1271 = vld [vmem:[#allocation5 + $0x21f0] sm:$0xff]
    %v1272 = vld [vmem:[#allocation5 + $0x21f8] sm:$0xff]
    %v1273 = vld [vmem:[#allocation5 + $0x2200] sm:$0xff]
    %v1274 = vld [vmem:[#allocation5 + $0x2208] sm:$0xff]
    %v1275 = vld [vmem:[#allocation5 + $0x2210] sm:$0xff]
    %v1276 = vld [vmem:[#allocation5 + $0x2218] sm:$0xff]
    %v1277 = vld [vmem:[#allocation5 + $0x2220] sm:$0xff]
    %v1278 = vld [vmem:[#allocation5 + $0x2228] sm:$0xff]
    %v1279 = vld [vmem:[#allocation5 + $0x2230] sm:$0xff]
    %v1280 = vld [vmem:[#allocation5 + $0x2238] sm:$0xff]
    %v1281 = vld [vmem:[#allocation5 + $0x2240] sm:$0xff]
    %v1282 = vld [vmem:[#allocation5 + $0x2248] sm:$0xff]
    %v1283 = vld [vmem:[#allocation5 + $0x2250] sm:$0xff]
    %v1284 = vld [vmem:[#allocation5 + $0x2258] sm:$0xff]
    %v1285 = vld [vmem:[#allocation5 + $0x2260] sm:$0xff]
    %v1286 = vld [vmem:[#allocation5 + $0x2268] sm:$0xff]
    %v1287 = vld [vmem:[#allocation5 + $0x2270] sm:$0xff]
    %v1288 = vld [vmem:[#allocation5 + $0x2278] sm:$0xff]
    %v1289 = vld [vmem:[#allocation5 + $0x2280] sm:$0xff]
    %v1290 = vld [vmem:[#allocation5 + $0x2288] sm:$0xff]
    %v1291 = vld [vmem:[#allocation5 + $0x2290] sm:$0xff]
    %v1292 = vld [vmem:[#allocation5 + $0x2298] sm:$0xff]
    %v1293 = vld [vmem:[#allocation5 + $0x22a0] sm:$0xff]
    %v1294 = vld [vmem:[#allocation5 + $0x22a8] sm:$0xff]
    %v1295 = vld [vmem:[#allocation5 + $0x22b0] sm:$0xff]
    %v1296 = vld [vmem:[#allocation5 + $0x22b8] sm:$0xff]
    %v1297 = vld [vmem:[#allocation5 + $0x22c0] sm:$0xff]
    %v1298 = vld [vmem:[#allocation5 + $0x22c8] sm:$0xff]
    %v1299 = vld [vmem:[#allocation5 + $0x22d0] sm:$0xff]
    %v1300 = vld [vmem:[#allocation5 + $0x22d8] sm:$0xff]
    %v1301 = vld [vmem:[#allocation5 + $0x22e0] sm:$0xff]
    %v1302 = vld [vmem:[#allocation5 + $0x22e8] sm:$0xff]
    %v1303 = vld [vmem:[#allocation5 + $0x22f0] sm:$0xff]
    %v1304 = vld [vmem:[#allocation5 + $0x22f8] sm:$0xff]
    %v1305 = vld [vmem:[#allocation5 + $0x2300] sm:$0xff]
    %v1306 = vld [vmem:[#allocation5 + $0x2308] sm:$0xff]
    %v1307 = vld [vmem:[#allocation5 + $0x2310] sm:$0xff]
    %v1308 = vld [vmem:[#allocation5 + $0x2318] sm:$0xff]
    %v1309 = vld [vmem:[#allocation5 + $0x2320] sm:$0xff]
    %v1310 = vld [vmem:[#allocation5 + $0x2328] sm:$0xff]
    %v1311 = vld [vmem:[#allocation5 + $0x2330] sm:$0xff]
    %v1312 = vld [vmem:[#allocation5 + $0x2338] sm:$0xff]
    %v1313 = vld [vmem:[#allocation5 + $0x2340] sm:$0xff]
    %v1314 = vld [vmem:[#allocation5 + $0x2348] sm:$0xff]
    %v1315 = vld [vmem:[#allocation5 + $0x2350] sm:$0xff]
    %v1316 = vld [vmem:[#allocation5 + $0x2358] sm:$0xff]
    %v1317 = vld [vmem:[#allocation5 + $0x2360] sm:$0xff]
    %v1318 = vld [vmem:[#allocation5 + $0x2368] sm:$0xff]
    %v1319 = vld [vmem:[#allocation5 + $0x2370] sm:$0xff]
    %v1320 = vld [vmem:[#allocation5 + $0x2378] sm:$0xff]
    %v1321 = vld [vmem:[#allocation5 + $0x2380] sm:$0xff]
    %v1322 = vld [vmem:[#allocation5 + $0x2388] sm:$0xff]
    %v1323 = vld [vmem:[#allocation5 + $0x2390] sm:$0xff]
    %v1324 = vld [vmem:[#allocation5 + $0x2398] sm:$0xff]
    %v1325 = vld [vmem:[#allocation5 + $0x23a0] sm:$0xff]
    %v1326 = vld [vmem:[#allocation5 + $0x23a8] sm:$0xff]
    %v1327 = vld [vmem:[#allocation5 + $0x23b0] sm:$0xff]
    %v1328 = vld [vmem:[#allocation5 + $0x23b8] sm:$0xff]
    %v1329 = vld [vmem:[#allocation5 + $0x23c0] sm:$0xff]
    %v1330 = vld [vmem:[#allocation5 + $0x23c8] sm:$0xff]
    %v1331 = vld [vmem:[#allocation5 + $0x23d0] sm:$0xff]
    %v1332 = vld [vmem:[#allocation5 + $0x23d8] sm:$0xff]
    %v1333 = vld [vmem:[#allocation5 + $0x23e0] sm:$0xff]
    %v1334 = vld [vmem:[#allocation5 + $0x23e8] sm:$0xff]
    %v1335 = vld [vmem:[#allocation5 + $0x23f0] sm:$0xff]
    %v1336 = vld [vmem:[#allocation5 + $0x23f8] sm:$0xff]
    %v1337 = vld [vmem:[#allocation5 + $0x2400] sm:$0xff]
    %v1338 = vld [vmem:[#allocation5 + $0x2408] sm:$0xff]
    %v1339 = vld [vmem:[#allocation5 + $0x2410] sm:$0xff]
    %v1340 = vld [vmem:[#allocation5 + $0x2418] sm:$0xff]
    %v1341 = vld [vmem:[#allocation5 + $0x2420] sm:$0xff]
    %v1342 = vld [vmem:[#allocation5 + $0x2428] sm:$0xff]
    %v1343 = vld [vmem:[#allocation5 + $0x2430] sm:$0xff]
    %v1344 = vld [vmem:[#allocation5 + $0x2438] sm:$0xff]
    %v1345 = vld [vmem:[#allocation5 + $0x2440] sm:$0xff]
    %v1346 = vld [vmem:[#allocation5 + $0x2448] sm:$0xff]
    %v1347 = vld [vmem:[#allocation5 + $0x2450] sm:$0xff]
    %v1348 = vld [vmem:[#allocation5 + $0x2458] sm:$0xff]
    %v1349 = vld [vmem:[#allocation5 + $0x2460] sm:$0xff]
    %v1350 = vld [vmem:[#allocation5 + $0x2468] sm:$0xff]
    %v1351 = vld [vmem:[#allocation5 + $0x2470] sm:$0xff]
    %v1352 = vld [vmem:[#allocation5 + $0x2478] sm:$0xff]
    %v1353 = vld [vmem:[#allocation5 + $0x2480] sm:$0xff]
    %v1354 = vld [vmem:[#allocation5 + $0x2488] sm:$0xff]
    %v1355 = vld [vmem:[#allocation5 + $0x2490] sm:$0xff]
    %v1356 = vld [vmem:[#allocation5 + $0x2498] sm:$0xff]
    %v1357 = vld [vmem:[#allocation5 + $0x24a0] sm:$0xff]
    %v1358 = vld [vmem:[#allocation5 + $0x24a8] sm:$0xff]
    %v1359 = vld [vmem:[#allocation5 + $0x24b0] sm:$0xff]
    %v1360 = vld [vmem:[#allocation5 + $0x24b8] sm:$0xff]
    %v1361 = vld [vmem:[#allocation5 + $0x24c0] sm:$0xff]
    %v1362 = vld [vmem:[#allocation5 + $0x24c8] sm:$0xff]
    %v1363 = vld [vmem:[#allocation5 + $0x24d0] sm:$0xff]
    %v1364 = vld [vmem:[#allocation5 + $0x24d8] sm:$0xff]
    %v1365 = vld [vmem:[#allocation5 + $0x24e0] sm:$0xff]
    %v1366 = vld [vmem:[#allocation5 + $0x24e8] sm:$0xff]
    %v1367 = vld [vmem:[#allocation5 + $0x24f0] sm:$0xff]
    %v1368 = vld [vmem:[#allocation5 + $0x24f8] sm:$0xff]
    %v1369 = vld [vmem:[#allocation5 + $0x2500] sm:$0xff]
    %v1370 = vld [vmem:[#allocation5 + $0x2508] sm:$0xff]
    %v1371 = vld [vmem:[#allocation5 + $0x2510] sm:$0xff]
    %v1372 = vld [vmem:[#allocation5 + $0x2518] sm:$0xff]
    %v1373 = vld [vmem:[#allocation5 + $0x2520] sm:$0xff]
    %v1374 = vld [vmem:[#allocation5 + $0x2528] sm:$0xff]
    %v1375 = vld [vmem:[#allocation5 + $0x2530] sm:$0xff]
    %v1376 = vld [vmem:[#allocation5 + $0x2538] sm:$0xff]
    %v1377 = vld [vmem:[#allocation5 + $0x2540] sm:$0xff]
    %v1378 = vld [vmem:[#allocation5 + $0x2548] sm:$0xff]
    %v1379 = vld [vmem:[#allocation5 + $0x2550] sm:$0xff]
    %v1380 = vld [vmem:[#allocation5 + $0x2558] sm:$0xff]
    %v1381 = vld [vmem:[#allocation5 + $0x2560] sm:$0xff]
    %v1382 = vld [vmem:[#allocation5 + $0x2568] sm:$0xff]
    %v1383 = vld [vmem:[#allocation5 + $0x2570] sm:$0xff]
    %v1384 = vld [vmem:[#allocation5 + $0x2578] sm:$0xff]
    %v1385 = vld [vmem:[#allocation5 + $0x2580] sm:$0xff]
    %v1386 = vld [vmem:[#allocation5 + $0x2588] sm:$0xff]
    %v1387 = vld [vmem:[#allocation5 + $0x2590] sm:$0xff]
    %v1388 = vld [vmem:[#allocation5 + $0x2598] sm:$0xff]
    %v1389 = vld [vmem:[#allocation5 + $0x25a0] sm:$0xff]
    %v1390 = vld [vmem:[#allocation5 + $0x25a8] sm:$0xff]
    %v1391 = vld [vmem:[#allocation5 + $0x25b0] sm:$0xff]
    %v1392 = vld [vmem:[#allocation5 + $0x25b8] sm:$0xff]
    %v1393 = vld [vmem:[#allocation5 + $0x25c0] sm:$0xff]
    %v1394 = vld [vmem:[#allocation5 + $0x25c8] sm:$0xff]
    %v1395 = vld [vmem:[#allocation5 + $0x25d0] sm:$0xff]
    %v1396 = vld [vmem:[#allocation5 + $0x25d8] sm:$0xff]
    %v1397 = vld [vmem:[#allocation5 + $0x25e0] sm:$0xff]
    %v1398 = vld [vmem:[#allocation5 + $0x25e8] sm:$0xff]
    %v1399 = vld [vmem:[#allocation5 + $0x25f0] sm:$0xff]
    %v1400 = vld [vmem:[#allocation5 + $0x25f8] sm:$0xff]
    %v1401 = vld [vmem:[#allocation5 + $0x2600] sm:$0xff]
    %v1402 = vld [vmem:[#allocation5 + $0x2608] sm:$0xff]
    %v1403 = vld [vmem:[#allocation5 + $0x2610] sm:$0xff]
    %v1404 = vld [vmem:[#allocation5 + $0x2618] sm:$0xff]
    %v1405 = vld [vmem:[#allocation5 + $0x2620] sm:$0xff]
    %v1406 = vld [vmem:[#allocation5 + $0x2628] sm:$0xff]
    %v1407 = vld [vmem:[#allocation5 + $0x2630] sm:$0xff]
    %v1408 = vld [vmem:[#allocation5 + $0x2638] sm:$0xff]
    %v1409 = vld [vmem:[#allocation5 + $0x2640] sm:$0xff]
    %v1410 = vld [vmem:[#allocation5 + $0x2648] sm:$0xff]
    %v1411 = vld [vmem:[#allocation5 + $0x2650] sm:$0xff]
    %v1412 = vld [vmem:[#allocation5 + $0x2658] sm:$0xff]
    %v1413 = vld [vmem:[#allocation5 + $0x2660] sm:$0xff]
    %v1414 = vld [vmem:[#allocation5 + $0x2668] sm:$0xff]
    %v1415 = vld [vmem:[#allocation5 + $0x2670] sm:$0xff]
    %v1416 = vld [vmem:[#allocation5 + $0x2678] sm:$0xff]
    %v1417 = vld [vmem:[#allocation5 + $0x2680] sm:$0xff]
    %v1418 = vld [vmem:[#allocation5 + $0x2688] sm:$0xff]
    %v1419 = vld [vmem:[#allocation5 + $0x2690] sm:$0xff]
    %v1420 = vld [vmem:[#allocation5 + $0x2698] sm:$0xff]
    %v1421 = vld [vmem:[#allocation5 + $0x26a0] sm:$0xff]
    %v1422 = vld [vmem:[#allocation5 + $0x26a8] sm:$0xff]
    %v1423 = vld [vmem:[#allocation5 + $0x26b0] sm:$0xff]
    %v1424 = vld [vmem:[#allocation5 + $0x26b8] sm:$0xff]
    %v1425 = vld [vmem:[#allocation5 + $0x26c0] sm:$0xff]
    %v1426 = vld [vmem:[#allocation5 + $0x26c8] sm:$0xff]
    %v1427 = vld [vmem:[#allocation5 + $0x26d0] sm:$0xff]
    %v1428 = vld [vmem:[#allocation5 + $0x26d8] sm:$0xff]
    %v1429 = vld [vmem:[#allocation5 + $0x26e0] sm:$0xff]
    %v1430 = vld [vmem:[#allocation5 + $0x26e8] sm:$0xff]
    %v1431 = vld [vmem:[#allocation5 + $0x26f0] sm:$0xff]
    %v1432 = vld [vmem:[#allocation5 + $0x26f8] sm:$0xff]
    %v1433 = vld [vmem:[#allocation5 + $0x2700] sm:$0xff]
    %v1434 = vld [vmem:[#allocation5 + $0x2708] sm:$0xff]
    %v1435 = vld [vmem:[#allocation5 + $0x2710] sm:$0xff]
    %v1436 = vld [vmem:[#allocation5 + $0x2718] sm:$0xff]
    %v1437 = vld [vmem:[#allocation5 + $0x2720] sm:$0xff]
    %v1438 = vld [vmem:[#allocation5 + $0x2728] sm:$0xff]
    %v1439 = vld [vmem:[#allocation5 + $0x2730] sm:$0xff]
    %v1440 = vld [vmem:[#allocation5 + $0x2738] sm:$0xff]
    %v1441 = vld [vmem:[#allocation5 + $0x2740] sm:$0xff]
    %v1442 = vld [vmem:[#allocation5 + $0x2748] sm:$0xff]
    %v1443 = vld [vmem:[#allocation5 + $0x2750] sm:$0xff]
    %v1444 = vld [vmem:[#allocation5 + $0x2758] sm:$0xff]
    %v1445 = vld [vmem:[#allocation5 + $0x2760] sm:$0xff]
    %v1446 = vld [vmem:[#allocation5 + $0x2768] sm:$0xff]
    %v1447 = vld [vmem:[#allocation5 + $0x2770] sm:$0xff]
    %v1448 = vld [vmem:[#allocation5 + $0x2778] sm:$0xff]
    %v1449 = vld [vmem:[#allocation5 + $0x2780] sm:$0xff]
    %v1450 = vld [vmem:[#allocation5 + $0x2788] sm:$0xff]
    %v1451 = vld [vmem:[#allocation5 + $0x2790] sm:$0xff]
    %v1452 = vld [vmem:[#allocation5 + $0x2798] sm:$0xff]
    %v1453 = vld [vmem:[#allocation5 + $0x27a0] sm:$0xff]
    %v1454 = vld [vmem:[#allocation5 + $0x27a8] sm:$0xff]
    %v1455 = vld [vmem:[#allocation5 + $0x27b0] sm:$0xff]
    %v1456 = vld [vmem:[#allocation5 + $0x27b8] sm:$0xff]
    %v1457 = vld [vmem:[#allocation5 + $0x27c0] sm:$0xff]
    %v1458 = vld [vmem:[#allocation5 + $0x27c8] sm:$0xff]
    %v1459 = vld [vmem:[#allocation5 + $0x27d0] sm:$0xff]
    %v1460 = vld [vmem:[#allocation5 + $0x27d8] sm:$0xff]
    %v1461 = vld [vmem:[#allocation5 + $0x27e0] sm:$0xff]
    %v1462 = vld [vmem:[#allocation5 + $0x27e8] sm:$0xff]
    %v1463 = vld [vmem:[#allocation5 + $0x27f0] sm:$0xff]
    %v1464 = vld [vmem:[#allocation5 + $0x27f8] sm:$0xff]
    %v1465 = vld [vmem:[#allocation5 + $0x2800] sm:$0xff]
    %v1466 = vld [vmem:[#allocation5 + $0x2808] sm:$0xff]
    %v1467 = vld [vmem:[#allocation5 + $0x2810] sm:$0xff]
    %v1468 = vld [vmem:[#allocation5 + $0x2818] sm:$0xff]
    %v1469 = vld [vmem:[#allocation5 + $0x2820] sm:$0xff]
    %v1470 = vld [vmem:[#allocation5 + $0x2828] sm:$0xff]
    %v1471 = vld [vmem:[#allocation5 + $0x2830] sm:$0xff]
    %v1472 = vld [vmem:[#allocation5 + $0x2838] sm:$0xff]
    %v1473 = vld [vmem:[#allocation5 + $0x2840] sm:$0xff]
    %v1474 = vld [vmem:[#allocation5 + $0x2848] sm:$0xff]
    %v1475 = vld [vmem:[#allocation5 + $0x2850] sm:$0xff]
    %v1476 = vld [vmem:[#allocation5 + $0x2858] sm:$0xff]
    %v1477 = vld [vmem:[#allocation5 + $0x2860] sm:$0xff]
    %v1478 = vld [vmem:[#allocation5 + $0x2868] sm:$0xff]
    %v1479 = vld [vmem:[#allocation5 + $0x2870] sm:$0xff]
    %v1480 = vld [vmem:[#allocation5 + $0x2878] sm:$0xff]
    %v1481 = vld [vmem:[#allocation5 + $0x2880] sm:$0xff]
    %v1482 = vld [vmem:[#allocation5 + $0x2888] sm:$0xff]
    %v1483 = vld [vmem:[#allocation5 + $0x2890] sm:$0xff]
    %v1484 = vld [vmem:[#allocation5 + $0x2898] sm:$0xff]
    %v1485 = vld [vmem:[#allocation5 + $0x28a0] sm:$0xff]
    %v1486 = vld [vmem:[#allocation5 + $0x28a8] sm:$0xff]
    %v1487 = vld [vmem:[#allocation5 + $0x28b0] sm:$0xff]
    %v1488 = vld [vmem:[#allocation5 + $0x28b8] sm:$0xff]
    %v1489 = vld [vmem:[#allocation5 + $0x28c0] sm:$0xff]
    %v1490 = vld [vmem:[#allocation5 + $0x28c8] sm:$0xff]
    %v1491 = vld [vmem:[#allocation5 + $0x28d0] sm:$0xff]
    %v1492 = vld [vmem:[#allocation5 + $0x28d8] sm:$0xff]
    %v1493 = vld [vmem:[#allocation5 + $0x28e0] sm:$0xff]
    %v1494 = vld [vmem:[#allocation5 + $0x28e8] sm:$0xff]
    %v1495 = vld [vmem:[#allocation5 + $0x28f0] sm:$0xff]
    %v1496 = vld [vmem:[#allocation5 + $0x28f8] sm:$0xff]
    %v1497 = vld [vmem:[#allocation5 + $0x2900] sm:$0xff]
    %v1498 = vld [vmem:[#allocation5 + $0x2908] sm:$0xff]
    %v1499 = vld [vmem:[#allocation5 + $0x2910] sm:$0xff]
    %v1500 = vld [vmem:[#allocation5 + $0x2918] sm:$0xff]
    %v1501 = vld [vmem:[#allocation5 + $0x2920] sm:$0xff]
    %v1502 = vld [vmem:[#allocation5 + $0x2928] sm:$0xff]
    %v1503 = vld [vmem:[#allocation5 + $0x2930] sm:$0xff]
    %v1504 = vld [vmem:[#allocation5 + $0x2938] sm:$0xff]
    %v1505 = vld [vmem:[#allocation7] sm:$0xff]
    %v1507 = vlaneseq
    %v1508 = vshrl.u32 %v1507, 7
    %v1509 = vsub.s32 0, %v1508
    %v1510 = vrot.slane %v1505, %v1509
    %v1511 = vlaneseq
    %v1512 = vshrl.u32 %v1511, 7
    %v1513 = vsub.s32 1, %v1512
    %v1514 = vrot.slane %v1505, %v1513
    %v1515 = vlaneseq
    %v1516 = vshrl.u32 %v1515, 7
    %v1517 = vsub.s32 2, %v1516
    %v1518 = vrot.slane %v1505, %v1517
    %v1519 = vlaneseq
    %v1520 = vshrl.u32 %v1519, 7
    %v1521 = vsub.s32 3, %v1520
    %v1522 = vrot.slane %v1505, %v1521
    %v1523 = vlaneseq
    %v1524 = vshrl.u32 %v1523, 7
    %v1525 = vsub.s32 4, %v1524
    %v1526 = vrot.slane %v1505, %v1525
    %v1527 = vlaneseq
    %v1528 = vshrl.u32 %v1527, 7
    %v1529 = vsub.s32 5, %v1528
    %v1530 = vrot.slane %v1505, %v1529
    %v1531 = vlaneseq
    %v1532 = vshrl.u32 %v1531, 7
    %v1533 = vsub.s32 6, %v1532
    %v1534 = vrot.slane %v1505, %v1533
    %v1535 = vlaneseq
    %v1536 = vshrl.u32 %v1535, 7
    %v1537 = vsub.s32 7, %v1536
    %v1538 = vrot.slane %v1505, %v1537
    %v2867 = vunpack.c.l.b16 %v185
    %v2868 = vunpack.c.h.b16 %v185
    %v2869 = vunpack.c.l.b16 %v186
    %v2870 = vunpack.c.h.b16 %v186
    %v2871 = vunpack.c.l.b16 %v187
    %v2872 = vunpack.c.h.b16 %v187
    %v2873 = vunpack.c.l.b16 %v188
    %v2874 = vunpack.c.h.b16 %v188
    %v2875 = vunpack.c.l.b16 %v189
    %v2876 = vunpack.c.h.b16 %v189
    %v2877 = vunpack.c.l.b16 %v190
    %v2878 = vunpack.c.h.b16 %v190
    %v2879 = vunpack.c.l.b16 %v191
    %v2880 = vunpack.c.h.b16 %v191
    %v2881 = vunpack.c.l.b16 %v192
    %v2882 = vunpack.c.h.b16 %v192
    %v2883 = vunpack.c.l.b16 %v193
    %v2884 = vunpack.c.h.b16 %v193
    %v2885 = vunpack.c.l.b16 %v194
    %v2886 = vunpack.c.h.b16 %v194
    %v2887 = vunpack.c.l.b16 %v195
    %v2888 = vunpack.c.h.b16 %v195
    %v2889 = vunpack.c.l.b16 %v196
    %v2890 = vunpack.c.h.b16 %v196
    %v2891 = vunpack.c.l.b16 %v197
    %v2892 = vunpack.c.h.b16 %v197
    %v2893 = vunpack.c.l.b16 %v198
    %v2894 = vunpack.c.h.b16 %v198
    %v2895 = vunpack.c.l.b16 %v199
    %v2896 = vunpack.c.h.b16 %v199
    %v2897 = vunpack.c.l.b16 %v200
    %v2898 = vunpack.c.h.b16 %v200
    %v2899 = vunpack.c.l.b16 %v201
    %v2900 = vunpack.c.h.b16 %v201
    %v2901 = vunpack.c.l.b16 %v202
    %v2902 = vunpack.c.h.b16 %v202
    %v2903 = vunpack.c.l.b16 %v203
    %v2904 = vunpack.c.h.b16 %v203
    %v2905 = vunpack.c.l.b16 %v204
    %v2906 = vunpack.c.h.b16 %v204
    %v2907 = vunpack.c.l.b16 %v205
    %v2908 = vunpack.c.h.b16 %v205
    %v2909 = vunpack.c.l.b16 %v206
    %v2910 = vunpack.c.h.b16 %v206
    %v2911 = vunpack.c.l.b16 %v207
    %v2912 = vunpack.c.h.b16 %v207
    %v2913 = vunpack.c.l.b16 %v208
    %v2914 = vunpack.c.h.b16 %v208
    %v2915 = vunpack.c.l.b16 %v209
    %v2916 = vunpack.c.h.b16 %v209
    %v2917 = vunpack.c.l.b16 %v210
    %v2918 = vunpack.c.h.b16 %v210
    %v2919 = vunpack.c.l.b16 %v211
    %v2920 = vunpack.c.h.b16 %v211
    %v2921 = vunpack.c.l.b16 %v212
    %v2922 = vunpack.c.h.b16 %v212
    %v2923 = vunpack.c.l.b16 %v213
    %v2924 = vunpack.c.h.b16 %v213
    %v2925 = vunpack.c.l.b16 %v214
    %v2926 = vunpack.c.h.b16 %v214
    %v2927 = vunpack.c.l.b16 %v215
    %v2928 = vunpack.c.h.b16 %v215
    %v2929 = vunpack.c.l.b16 %v216
    %v2930 = vunpack.c.h.b16 %v216
    %v2931 = vunpack.c.l.b16 %v217
    %v2932 = vunpack.c.h.b16 %v217
    %v2933 = vunpack.c.l.b16 %v218
    %v2934 = vunpack.c.h.b16 %v218
    %v2935 = vunpack.c.l.b16 %v219
    %v2936 = vunpack.c.h.b16 %v219
    %v2937 = vunpack.c.l.b16 %v220
    %v2938 = vunpack.c.h.b16 %v220
    %v2939 = vunpack.c.l.b16 %v221
    %v2940 = vunpack.c.h.b16 %v221
    %v2941 = vunpack.c.l.b16 %v222
    %v2942 = vunpack.c.h.b16 %v222
    %v2943 = vunpack.c.l.b16 %v223
    %v2944 = vunpack.c.h.b16 %v223
    %v2945 = vunpack.c.l.b16 %v224
    %v2946 = vunpack.c.h.b16 %v224
    %v2947 = vunpack.c.l.b16 %v225
    %v2948 = vunpack.c.h.b16 %v225
    %v2949 = vunpack.c.l.b16 %v226
    %v2950 = vunpack.c.h.b16 %v226
    %v2951 = vunpack.c.l.b16 %v227
    %v2952 = vunpack.c.h.b16 %v227
    %v2953 = vunpack.c.l.b16 %v228
    %v2954 = vunpack.c.h.b16 %v228
    %v2955 = vunpack.c.l.b16 %v229
    %v2956 = vunpack.c.h.b16 %v229
    %v2957 = vunpack.c.l.b16 %v230
    %v2958 = vunpack.c.h.b16 %v230
    %v2959 = vunpack.c.l.b16 %v231
    %v2960 = vunpack.c.h.b16 %v231
    %v2961 = vunpack.c.l.b16 %v232
    %v2962 = vunpack.c.h.b16 %v232
    %v2963 = vunpack.c.l.b16 %v233
    %v2964 = vunpack.c.h.b16 %v233
    %v2965 = vunpack.c.l.b16 %v234
    %v2966 = vunpack.c.h.b16 %v234
    %v2967 = vunpack.c.l.b16 %v235
    %v2968 = vunpack.c.h.b16 %v235
    %v2969 = vunpack.c.l.b16 %v236
    %v2970 = vunpack.c.h.b16 %v236
    %v2971 = vunpack.c.l.b16 %v237
    %v2972 = vunpack.c.h.b16 %v237
    %v2973 = vunpack.c.l.b16 %v238
    %v2974 = vunpack.c.h.b16 %v238
    %v2975 = vunpack.c.l.b16 %v239
    %v2976 = vunpack.c.h.b16 %v239
    %v2977 = vunpack.c.l.b16 %v240
    %v2978 = vunpack.c.h.b16 %v240
    %v2979 = vunpack.c.l.b16 %v241
    %v2980 = vunpack.c.h.b16 %v241
    %v2981 = vunpack.c.l.b16 %v242
    %v2982 = vunpack.c.h.b16 %v242
    %v2983 = vunpack.c.l.b16 %v243
    %v2984 = vunpack.c.h.b16 %v243
    %v2985 = vunpack.c.l.b16 %v244
    %v2986 = vunpack.c.h.b16 %v244
    %v2987 = vunpack.c.l.b16 %v245
    %v2988 = vunpack.c.h.b16 %v245
    %v2989 = vunpack.c.l.b16 %v246
    %v2990 = vunpack.c.h.b16 %v246
    %v2991 = vunpack.c.l.b16 %v247
    %v2992 = vunpack.c.h.b16 %v247
    %v2993 = vunpack.c.l.b16 %v248
    %v2994 = vunpack.c.h.b16 %v248
    %v2995 = vunpack.c.l.b16 %v249
    %v2996 = vunpack.c.h.b16 %v249
    %v2997 = vunpack.c.l.b16 %v250
    %v2998 = vunpack.c.h.b16 %v250
    %v2999 = vunpack.c.l.b16 %v251
    %v3000 = vunpack.c.h.b16 %v251
    %v3001 = vunpack.c.l.b16 %v252
    %v3002 = vunpack.c.h.b16 %v252
    %v3003 = vunpack.c.l.b16 %v253
    %v3004 = vunpack.c.h.b16 %v253
    %v3005 = vunpack.c.l.b16 %v254
    %v3006 = vunpack.c.h.b16 %v254
    %v3007 = vunpack.c.l.b16 %v255
    %v3008 = vunpack.c.h.b16 %v255
    %v3009 = vunpack.c.l.b16 %v256
    %v3010 = vunpack.c.h.b16 %v256
    %v3011 = vunpack.c.l.b16 %v257
    %v3012 = vunpack.c.h.b16 %v257
    %v3013 = vunpack.c.l.b16 %v258
    %v3014 = vunpack.c.h.b16 %v258
    %v3015 = vunpack.c.l.b16 %v259
    %v3016 = vunpack.c.h.b16 %v259
    %v3017 = vunpack.c.l.b16 %v260
    %v3018 = vunpack.c.h.b16 %v260
    %v3019 = vunpack.c.l.b16 %v261
    %v3020 = vunpack.c.h.b16 %v261
    %v3021 = vunpack.c.l.b16 %v262
    %v3022 = vunpack.c.h.b16 %v262
    %v3023 = vunpack.c.l.b16 %v263
    %v3024 = vunpack.c.h.b16 %v263
    %v3025 = vunpack.c.l.b16 %v264
    %v3026 = vunpack.c.h.b16 %v264
    %v3027 = vunpack.c.l.b16 %v265
    %v3028 = vunpack.c.h.b16 %v265
    %v3029 = vunpack.c.l.b16 %v266
    %v3030 = vunpack.c.h.b16 %v266
    %v3031 = vunpack.c.l.b16 %v267
    %v3032 = vunpack.c.h.b16 %v267
    %v3033 = vunpack.c.l.b16 %v268
    %v3034 = vunpack.c.h.b16 %v268
    %v3035 = vunpack.c.l.b16 %v269
    %v3036 = vunpack.c.h.b16 %v269
    %v3037 = vunpack.c.l.b16 %v270
    %v3038 = vunpack.c.h.b16 %v270
    %v3039 = vunpack.c.l.b16 %v271
    %v3040 = vunpack.c.h.b16 %v271
    %v3041 = vunpack.c.l.b16 %v272
    %v3042 = vunpack.c.h.b16 %v272
    %v3043 = vunpack.c.l.b16 %v273
    %v3044 = vunpack.c.h.b16 %v273
    %v3045 = vunpack.c.l.b16 %v274
    %v3046 = vunpack.c.h.b16 %v274
    %v3047 = vunpack.c.l.b16 %v275
    %v3048 = vunpack.c.h.b16 %v275
    %v3049 = vunpack.c.l.b16 %v276
    %v3050 = vunpack.c.h.b16 %v276
    %v3051 = vunpack.c.l.b16 %v277
    %v3052 = vunpack.c.h.b16 %v277
    %v3053 = vunpack.c.l.b16 %v278
    %v3054 = vunpack.c.h.b16 %v278
    %v3055 = vunpack.c.l.b16 %v279
    %v3056 = vunpack.c.h.b16 %v279
    %v3057 = vunpack.c.l.b16 %v280
    %v3058 = vunpack.c.h.b16 %v280
    %v3059 = vunpack.c.l.b16 %v281
    %v3060 = vunpack.c.h.b16 %v281
    %v3061 = vunpack.c.l.b16 %v282
    %v3062 = vunpack.c.h.b16 %v282
    %v3063 = vunpack.c.l.b16 %v283
    %v3064 = vunpack.c.h.b16 %v283
    %v3065 = vunpack.c.l.b16 %v284
    %v3066 = vunpack.c.h.b16 %v284
    %v3067 = vunpack.c.l.b16 %v285
    %v3068 = vunpack.c.h.b16 %v285
    %v3069 = vunpack.c.l.b16 %v286
    %v3070 = vunpack.c.h.b16 %v286
    %v3071 = vunpack.c.l.b16 %v287
    %v3072 = vunpack.c.h.b16 %v287
    %v3073 = vunpack.c.l.b16 %v288
    %v3074 = vunpack.c.h.b16 %v288
    %v3075 = vunpack.c.l.b16 %v289
    %v3076 = vunpack.c.h.b16 %v289
    %v3077 = vunpack.c.l.b16 %v290
    %v3078 = vunpack.c.h.b16 %v290
    %v3079 = vunpack.c.l.b16 %v291
    %v3080 = vunpack.c.h.b16 %v291
    %v3081 = vunpack.c.l.b16 %v292
    %v3082 = vunpack.c.h.b16 %v292
    %v3083 = vunpack.c.l.b16 %v293
    %v3084 = vunpack.c.h.b16 %v293
    %v3085 = vunpack.c.l.b16 %v294
    %v3086 = vunpack.c.h.b16 %v294
    %v3087 = vunpack.c.l.b16 %v295
    %v3088 = vunpack.c.h.b16 %v295
    %v3089 = vunpack.c.l.b16 %v296
    %v3090 = vunpack.c.h.b16 %v296
    %v3091 = vunpack.c.l.b16 %v297
    %v3092 = vunpack.c.h.b16 %v297
    %v3093 = vunpack.c.l.b16 %v298
    %v3094 = vunpack.c.h.b16 %v298
    %v3095 = vunpack.c.l.b16 %v299
    %v3096 = vunpack.c.h.b16 %v299
    %v3097 = vunpack.c.l.b16 %v300
    %v3098 = vunpack.c.h.b16 %v300
    %v3099 = vunpack.c.l.b16 %v301
    %v3100 = vunpack.c.h.b16 %v301
    %v3101 = vunpack.c.l.b16 %v302
    %v3102 = vunpack.c.h.b16 %v302
    %v3103 = vunpack.c.l.b16 %v303
    %v3104 = vunpack.c.h.b16 %v303
    %v3105 = vunpack.c.l.b16 %v304
    %v3106 = vunpack.c.h.b16 %v304
    %v3107 = vunpack.c.l.b16 %v305
    %v3108 = vunpack.c.h.b16 %v305
    %v3109 = vunpack.c.l.b16 %v306
    %v3110 = vunpack.c.h.b16 %v306
    %v3111 = vunpack.c.l.b16 %v307
    %v3112 = vunpack.c.h.b16 %v307
    %v3113 = vunpack.c.l.b16 %v308
    %v3114 = vunpack.c.h.b16 %v308
    %v3115 = vunpack.c.l.b16 %v309
    %v3116 = vunpack.c.h.b16 %v309
    %v3117 = vunpack.c.l.b16 %v310
    %v3118 = vunpack.c.h.b16 %v310
    %v3119 = vunpack.c.l.b16 %v311
    %v3120 = vunpack.c.h.b16 %v311
    %v3121 = vunpack.c.l.b16 %v312
    %v3122 = vunpack.c.h.b16 %v312
    %v3123 = vunpack.c.l.b16 %v313
    %v3124 = vunpack.c.h.b16 %v313
    %v3125 = vunpack.c.l.b16 %v314
    %v3126 = vunpack.c.h.b16 %v314
    %v3127 = vunpack.c.l.b16 %v315
    %v3128 = vunpack.c.h.b16 %v315
    %v3129 = vunpack.c.l.b16 %v316
    %v3130 = vunpack.c.h.b16 %v316
    %v3131 = vunpack.c.l.b16 %v317
    %v3132 = vunpack.c.h.b16 %v317
    %v3133 = vunpack.c.l.b16 %v318
    %v3134 = vunpack.c.h.b16 %v318
    %v3135 = vunpack.c.l.b16 %v319
    %v3136 = vunpack.c.h.b16 %v319
    %v3137 = vunpack.c.l.b16 %v320
    %v3138 = vunpack.c.h.b16 %v320
    %v3139 = vunpack.c.l.b16 %v321
    %v3140 = vunpack.c.h.b16 %v321
    %v3141 = vunpack.c.l.b16 %v322
    %v3142 = vunpack.c.h.b16 %v322
    %v3143 = vunpack.c.l.b16 %v323
    %v3144 = vunpack.c.h.b16 %v323
    %v3145 = vunpack.c.l.b16 %v324
    %v3146 = vunpack.c.h.b16 %v324
    %v3147 = vunpack.c.l.b16 %v325
    %v3148 = vunpack.c.h.b16 %v325
    %v3149 = vunpack.c.l.b16 %v326
    %v3150 = vunpack.c.h.b16 %v326
    %v3151 = vunpack.c.l.b16 %v327
    %v3152 = vunpack.c.h.b16 %v327
    %v3153 = vunpack.c.l.b16 %v328
    %v3154 = vunpack.c.h.b16 %v328
    %v3155 = vunpack.c.l.b16 %v329
    %v3156 = vunpack.c.h.b16 %v329
    %v3157 = vunpack.c.l.b16 %v330
    %v3158 = vunpack.c.h.b16 %v330
    %v3159 = vunpack.c.l.b16 %v331
    %v3160 = vunpack.c.h.b16 %v331
    %v3161 = vunpack.c.l.b16 %v332
    %v3162 = vunpack.c.h.b16 %v332
    %v3163 = vunpack.c.l.b16 %v333
    %v3164 = vunpack.c.h.b16 %v333
    %v3165 = vunpack.c.l.b16 %v334
    %v3166 = vunpack.c.h.b16 %v334
    %v3167 = vunpack.c.l.b16 %v335
    %v3168 = vunpack.c.h.b16 %v335
    %v3169 = vunpack.c.l.b16 %v336
    %v3170 = vunpack.c.h.b16 %v336
    %v3171 = vunpack.c.l.b16 %v337
    %v3172 = vunpack.c.h.b16 %v337
    %v3173 = vunpack.c.l.b16 %v338
    %v3174 = vunpack.c.h.b16 %v338
    %v3175 = vunpack.c.l.b16 %v339
    %v3176 = vunpack.c.h.b16 %v339
    %v3177 = vunpack.c.l.b16 %v340
    %v3178 = vunpack.c.h.b16 %v340
    %v3179 = vunpack.c.l.b16 %v341
    %v3180 = vunpack.c.h.b16 %v341
    %v3181 = vunpack.c.l.b16 %v342
    %v3182 = vunpack.c.h.b16 %v342
    %v3183 = vunpack.c.l.b16 %v343
    %v3184 = vunpack.c.h.b16 %v343
    %v3185 = vunpack.c.l.b16 %v344
    %v3186 = vunpack.c.h.b16 %v344
    %v3187 = vunpack.c.l.b16 %v345
    %v3188 = vunpack.c.h.b16 %v345
    %v3189 = vunpack.c.l.b16 %v346
    %v3190 = vunpack.c.h.b16 %v346
    %v3191 = vunpack.c.l.b16 %v347
    %v3192 = vunpack.c.h.b16 %v347
    %v3193 = vunpack.c.l.b16 %v348
    %v3194 = vunpack.c.h.b16 %v348
    %v3195 = vunpack.c.l.b16 %v349
    %v3196 = vunpack.c.h.b16 %v349
    %v3197 = vunpack.c.l.b16 %v350
    %v3198 = vunpack.c.h.b16 %v350
    %v3199 = vunpack.c.l.b16 %v351
    %v3200 = vunpack.c.h.b16 %v351
    %v3201 = vunpack.c.l.b16 %v352
    %v3202 = vunpack.c.h.b16 %v352
    %v3203 = vunpack.c.l.b16 %v353
    %v3204 = vunpack.c.h.b16 %v353
    %v3205 = vunpack.c.l.b16 %v354
    %v3206 = vunpack.c.h.b16 %v354
    %v3207 = vunpack.c.l.b16 %v355
    %v3208 = vunpack.c.h.b16 %v355
    %v3209 = vunpack.c.l.b16 %v356
    %v3210 = vunpack.c.h.b16 %v356
    %v3211 = vunpack.c.l.b16 %v357
    %v3212 = vunpack.c.h.b16 %v357
    %v3213 = vunpack.c.l.b16 %v358
    %v3214 = vunpack.c.h.b16 %v358
    %v3215 = vunpack.c.l.b16 %v359
    %v3216 = vunpack.c.h.b16 %v359
    %v3217 = vunpack.c.l.b16 %v360
    %v3218 = vunpack.c.h.b16 %v360
    %v3219 = vunpack.c.l.b16 %v361
    %v3220 = vunpack.c.h.b16 %v361
    %v3221 = vunpack.c.l.b16 %v362
    %v3222 = vunpack.c.h.b16 %v362
    %v3223 = vunpack.c.l.b16 %v363
    %v3224 = vunpack.c.h.b16 %v363
    %v3225 = vunpack.c.l.b16 %v364
    %v3226 = vunpack.c.h.b16 %v364
    %v3227 = vunpack.c.l.b16 %v365
    %v3228 = vunpack.c.h.b16 %v365
    %v3229 = vunpack.c.l.b16 %v366
    %v3230 = vunpack.c.h.b16 %v366
    %v3231 = vunpack.c.l.b16 %v367
    %v3232 = vunpack.c.h.b16 %v367
    %v3233 = vunpack.c.l.b16 %v368
    %v3234 = vunpack.c.h.b16 %v368
    %v3235 = vunpack.c.l.b16 %v369
    %v3236 = vunpack.c.h.b16 %v369
    %v3237 = vunpack.c.l.b16 %v370
    %v3238 = vunpack.c.h.b16 %v370
    %v3239 = vunpack.c.l.b16 %v371
    %v3240 = vunpack.c.h.b16 %v371
    %v3241 = vunpack.c.l.b16 %v372
    %v3242 = vunpack.c.h.b16 %v372
    %v3243 = vunpack.c.l.b16 %v373
    %v3244 = vunpack.c.h.b16 %v373
    %v3245 = vunpack.c.l.b16 %v374
    %v3246 = vunpack.c.h.b16 %v374
    %v3247 = vunpack.c.l.b16 %v375
    %v3248 = vunpack.c.h.b16 %v375
    %v3249 = vunpack.c.l.b16 %v376
    %v3250 = vunpack.c.h.b16 %v376
    %v3251 = vunpack.c.l.b16 %v377
    %v3252 = vunpack.c.h.b16 %v377
    %v3253 = vunpack.c.l.b16 %v378
    %v3254 = vunpack.c.h.b16 %v378
    %v3255 = vunpack.c.l.b16 %v379
    %v3256 = vunpack.c.h.b16 %v379
    %v3257 = vunpack.c.l.b16 %v380
    %v3258 = vunpack.c.h.b16 %v380
    %v3259 = vunpack.c.l.b16 %v381
    %v3260 = vunpack.c.h.b16 %v381
    %v3261 = vunpack.c.l.b16 %v382
    %v3262 = vunpack.c.h.b16 %v382
    %v3263 = vunpack.c.l.b16 %v383
    %v3264 = vunpack.c.h.b16 %v383
    %v3265 = vunpack.c.l.b16 %v384
    %v3266 = vunpack.c.h.b16 %v384
    %v3267 = vunpack.c.l.b16 %v385
    %v3268 = vunpack.c.h.b16 %v385
    %v3269 = vunpack.c.l.b16 %v386
    %v3270 = vunpack.c.h.b16 %v386
    %v3271 = vunpack.c.l.b16 %v387
    %v3272 = vunpack.c.h.b16 %v387
    %v3273 = vunpack.c.l.b16 %v388
    %v3274 = vunpack.c.h.b16 %v388
    %v3275 = vunpack.c.l.b16 %v389
    %v3276 = vunpack.c.h.b16 %v389
    %v3277 = vunpack.c.l.b16 %v390
    %v3278 = vunpack.c.h.b16 %v390
    %v3279 = vunpack.c.l.b16 %v391
    %v3280 = vunpack.c.h.b16 %v391
    %v3281 = vunpack.c.l.b16 %v392
    %v3282 = vunpack.c.h.b16 %v392
    %v3283 = vunpack.c.l.b16 %v393
    %v3284 = vunpack.c.h.b16 %v393
    %v3285 = vunpack.c.l.b16 %v394
    %v3286 = vunpack.c.h.b16 %v394
    %v3287 = vunpack.c.l.b16 %v395
    %v3288 = vunpack.c.h.b16 %v395
    %v3289 = vunpack.c.l.b16 %v396
    %v3290 = vunpack.c.h.b16 %v396
    %v3291 = vunpack.c.l.b16 %v397
    %v3292 = vunpack.c.h.b16 %v397
    %v3293 = vunpack.c.l.b16 %v398
    %v3294 = vunpack.c.h.b16 %v398
    %v3295 = vunpack.c.l.b16 %v399
    %v3296 = vunpack.c.h.b16 %v399
    %v3297 = vunpack.c.l.b16 %v400
    %v3298 = vunpack.c.h.b16 %v400
    %v3299 = vunpack.c.l.b16 %v401
    %v3300 = vunpack.c.h.b16 %v401
    %v3301 = vunpack.c.l.b16 %v402
    %v3302 = vunpack.c.h.b16 %v402
    %v3303 = vunpack.c.l.b16 %v403
    %v3304 = vunpack.c.h.b16 %v403
    %v3305 = vunpack.c.l.b16 %v404
    %v3306 = vunpack.c.h.b16 %v404
    %v3307 = vunpack.c.l.b16 %v405
    %v3308 = vunpack.c.h.b16 %v405
    %v3309 = vunpack.c.l.b16 %v406
    %v3310 = vunpack.c.h.b16 %v406
    %v3311 = vunpack.c.l.b16 %v407
    %v3312 = vunpack.c.h.b16 %v407
    %v3313 = vunpack.c.l.b16 %v408
    %v3314 = vunpack.c.h.b16 %v408
    %v3315 = vunpack.c.l.b16 %v409
    %v3316 = vunpack.c.h.b16 %v409
    %v3317 = vunpack.c.l.b16 %v410
    %v3318 = vunpack.c.h.b16 %v410
    %v3319 = vunpack.c.l.b16 %v411
    %v3320 = vunpack.c.h.b16 %v411
    %v3321 = vunpack.c.l.b16 %v412
    %v3322 = vunpack.c.h.b16 %v412
    %v3323 = vunpack.c.l.b16 %v413
    %v3324 = vunpack.c.h.b16 %v413
    %v3325 = vunpack.c.l.b16 %v414
    %v3326 = vunpack.c.h.b16 %v414
    %v3327 = vunpack.c.l.b16 %v415
    %v3328 = vunpack.c.h.b16 %v415
    %v3329 = vunpack.c.l.b16 %v416
    %v3330 = vunpack.c.h.b16 %v416
    %v3331 = vunpack.c.l.b16 %v417
    %v3332 = vunpack.c.h.b16 %v417
    %v3333 = vunpack.c.l.b16 %v418
    %v3334 = vunpack.c.h.b16 %v418
    %v3335 = vunpack.c.l.b16 %v419
    %v3336 = vunpack.c.h.b16 %v419
    %v3337 = vunpack.c.l.b16 %v420
    %v3338 = vunpack.c.h.b16 %v420
    %v3339 = vunpack.c.l.b16 %v421
    %v3340 = vunpack.c.h.b16 %v421
    %v3341 = vunpack.c.l.b16 %v422
    %v3342 = vunpack.c.h.b16 %v422
    %v3343 = vunpack.c.l.b16 %v423
    %v3344 = vunpack.c.h.b16 %v423
    %v3345 = vunpack.c.l.b16 %v424
    %v3346 = vunpack.c.h.b16 %v424
    %v3347 = vunpack.c.l.b16 %v425
    %v3348 = vunpack.c.h.b16 %v425
    %v3349 = vunpack.c.l.b16 %v426
    %v3350 = vunpack.c.h.b16 %v426
    %v3351 = vunpack.c.l.b16 %v427
    %v3352 = vunpack.c.h.b16 %v427
    %v3353 = vunpack.c.l.b16 %v428
    %v3354 = vunpack.c.h.b16 %v428
    %v3355 = vunpack.c.l.b16 %v429
    %v3356 = vunpack.c.h.b16 %v429
    %v3357 = vunpack.c.l.b16 %v430
    %v3358 = vunpack.c.h.b16 %v430
    %v3359 = vunpack.c.l.b16 %v431
    %v3360 = vunpack.c.h.b16 %v431
    %v3361 = vunpack.c.l.b16 %v432
    %v3362 = vunpack.c.h.b16 %v432
    %v3363 = vunpack.c.l.b16 %v433
    %v3364 = vunpack.c.h.b16 %v433
    %v3365 = vunpack.c.l.b16 %v434
    %v3366 = vunpack.c.h.b16 %v434
    %v3367 = vunpack.c.l.b16 %v435
    %v3368 = vunpack.c.h.b16 %v435
    %v3369 = vunpack.c.l.b16 %v436
    %v3370 = vunpack.c.h.b16 %v436
    %v3371 = vunpack.c.l.b16 %v437
    %v3372 = vunpack.c.h.b16 %v437
    %v3373 = vunpack.c.l.b16 %v438
    %v3374 = vunpack.c.h.b16 %v438
    %v3375 = vunpack.c.l.b16 %v439
    %v3376 = vunpack.c.h.b16 %v439
    %v3377 = vunpack.c.l.b16 %v440
    %v3378 = vunpack.c.h.b16 %v440
    %v3379 = vunpack.c.l.b16 %v441
    %v3380 = vunpack.c.h.b16 %v441
    %v3381 = vunpack.c.l.b16 %v442
    %v3382 = vunpack.c.h.b16 %v442
    %v3383 = vunpack.c.l.b16 %v443
    %v3384 = vunpack.c.h.b16 %v443
    %v3385 = vunpack.c.l.b16 %v444
    %v3386 = vunpack.c.h.b16 %v444
    %v3387 = vunpack.c.l.b16 %v445
    %v3388 = vunpack.c.h.b16 %v445
    %v3389 = vunpack.c.l.b16 %v446
    %v3390 = vunpack.c.h.b16 %v446
    %v3391 = vunpack.c.l.b16 %v447
    %v3392 = vunpack.c.h.b16 %v447
    %v3393 = vunpack.c.l.b16 %v448
    %v3394 = vunpack.c.h.b16 %v448
    %v3395 = vunpack.c.l.b16 %v449
    %v3396 = vunpack.c.h.b16 %v449
    %v3397 = vunpack.c.l.b16 %v450
    %v3398 = vunpack.c.h.b16 %v450
    %v3399 = vunpack.c.l.b16 %v451
    %v3400 = vunpack.c.h.b16 %v451
    %v3401 = vunpack.c.l.b16 %v452
    %v3402 = vunpack.c.h.b16 %v452
    %v3403 = vunpack.c.l.b16 %v453
    %v3404 = vunpack.c.h.b16 %v453
    %v3405 = vunpack.c.l.b16 %v454
    %v3406 = vunpack.c.h.b16 %v454
    %v3407 = vunpack.c.l.b16 %v455
    %v3408 = vunpack.c.h.b16 %v455
    %v3409 = vunpack.c.l.b16 %v456
    %v3410 = vunpack.c.h.b16 %v456
    %v3411 = vunpack.c.l.b16 %v457
    %v3412 = vunpack.c.h.b16 %v457
    %v3413 = vunpack.c.l.b16 %v458
    %v3414 = vunpack.c.h.b16 %v458
    %v3415 = vunpack.c.l.b16 %v459
    %v3416 = vunpack.c.h.b16 %v459
    %v3417 = vunpack.c.l.b16 %v460
    %v3418 = vunpack.c.h.b16 %v460
    %v3419 = vunpack.c.l.b16 %v461
    %v3420 = vunpack.c.h.b16 %v461
    %v3421 = vunpack.c.l.b16 %v462
    %v3422 = vunpack.c.h.b16 %v462
    %v3423 = vunpack.c.l.b16 %v463
    %v3424 = vunpack.c.h.b16 %v463
    %v3425 = vunpack.c.l.b16 %v464
    %v3426 = vunpack.c.h.b16 %v464
    %v3427 = vunpack.c.l.b16 %v465
    %v3428 = vunpack.c.h.b16 %v465
    %v3429 = vunpack.c.l.b16 %v466
    %v3430 = vunpack.c.h.b16 %v466
    %v3431 = vunpack.c.l.b16 %v467
    %v3432 = vunpack.c.h.b16 %v467
    %v3433 = vunpack.c.l.b16 %v468
    %v3434 = vunpack.c.h.b16 %v468
    %v3435 = vunpack.c.l.b16 %v469
    %v3436 = vunpack.c.h.b16 %v469
    %v3437 = vunpack.c.l.b16 %v470
    %v3438 = vunpack.c.h.b16 %v470
    %v3439 = vunpack.c.l.b16 %v471
    %v3440 = vunpack.c.h.b16 %v471
    %v3441 = vunpack.c.l.b16 %v472
    %v3442 = vunpack.c.h.b16 %v472
    %v3443 = vunpack.c.l.b16 %v473
    %v3444 = vunpack.c.h.b16 %v473
    %v3445 = vunpack.c.l.b16 %v474
    %v3446 = vunpack.c.h.b16 %v474
    %v3447 = vunpack.c.l.b16 %v475
    %v3448 = vunpack.c.h.b16 %v475
    %v3449 = vunpack.c.l.b16 %v476
    %v3450 = vunpack.c.h.b16 %v476
    %v3451 = vunpack.c.l.b16 %v477
    %v3452 = vunpack.c.h.b16 %v477
    %v3453 = vunpack.c.l.b16 %v478
    %v3454 = vunpack.c.h.b16 %v478
    %v3455 = vunpack.c.l.b16 %v479
    %v3456 = vunpack.c.h.b16 %v479
    %v3457 = vunpack.c.l.b16 %v480
    %v3458 = vunpack.c.h.b16 %v480
    %v3459 = vunpack.c.l.b16 %v481
    %v3460 = vunpack.c.h.b16 %v481
    %v3461 = vunpack.c.l.b16 %v482
    %v3462 = vunpack.c.h.b16 %v482
    %v3463 = vunpack.c.l.b16 %v483
    %v3464 = vunpack.c.h.b16 %v483
    %v3465 = vunpack.c.l.b16 %v484
    %v3466 = vunpack.c.h.b16 %v484
    %v3467 = vunpack.c.l.b16 %v485
    %v3468 = vunpack.c.h.b16 %v485
    %v3469 = vunpack.c.l.b16 %v486
    %v3470 = vunpack.c.h.b16 %v486
    %v3471 = vunpack.c.l.b16 %v487
    %v3472 = vunpack.c.h.b16 %v487
    %v3473 = vunpack.c.l.b16 %v488
    %v3474 = vunpack.c.h.b16 %v488
    %v3475 = vunpack.c.l.b16 %v489
    %v3476 = vunpack.c.h.b16 %v489
    %v3477 = vunpack.c.l.b16 %v490
    %v3478 = vunpack.c.h.b16 %v490
    %v3479 = vunpack.c.l.b16 %v491
    %v3480 = vunpack.c.h.b16 %v491
    %v3481 = vunpack.c.l.b16 %v492
    %v3482 = vunpack.c.h.b16 %v492
    %v3483 = vunpack.c.l.b16 %v493
    %v3484 = vunpack.c.h.b16 %v493
    %v3485 = vunpack.c.l.b16 %v494
    %v3486 = vunpack.c.h.b16 %v494
    %v3487 = vunpack.c.l.b16 %v495
    %v3488 = vunpack.c.h.b16 %v495
    %v3489 = vunpack.c.l.b16 %v496
    %v3490 = vunpack.c.h.b16 %v496
    %v3491 = vunpack.c.l.b16 %v497
    %v3492 = vunpack.c.h.b16 %v497
    %v3493 = vunpack.c.l.b16 %v498
    %v3494 = vunpack.c.h.b16 %v498
    %v3495 = vunpack.c.l.b16 %v499
    %v3496 = vunpack.c.h.b16 %v499
    %v3497 = vunpack.c.l.b16 %v500
    %v3498 = vunpack.c.h.b16 %v500
    %v3499 = vunpack.c.l.b16 %v501
    %v3500 = vunpack.c.h.b16 %v501
    %v3501 = vunpack.c.l.b16 %v502
    %v3502 = vunpack.c.h.b16 %v502
    %v3503 = vunpack.c.l.b16 %v503
    %v3504 = vunpack.c.h.b16 %v503
    %v3505 = vunpack.c.l.b16 %v504
    %v3506 = vunpack.c.h.b16 %v504
    %v3507 = vunpack.c.l.b16 %v505
    %v3508 = vunpack.c.h.b16 %v505
    %v3509 = vunpack.c.l.b16 %v506
    %v3510 = vunpack.c.h.b16 %v506
    %v3511 = vunpack.c.l.b16 %v507
    %v3512 = vunpack.c.h.b16 %v507
    %v3513 = vunpack.c.l.b16 %v508
    %v3514 = vunpack.c.h.b16 %v508
    %v3515 = vunpack.c.l.b16 %v509
    %v3516 = vunpack.c.h.b16 %v509
    %v3517 = vunpack.c.l.b16 %v510
    %v3518 = vunpack.c.h.b16 %v510
    %v3519 = vunpack.c.l.b16 %v511
    %v3520 = vunpack.c.h.b16 %v511
    %v3521 = vunpack.c.l.b16 %v512
    %v3522 = vunpack.c.h.b16 %v512
    %v3523 = vunpack.c.l.b16 %v513
    %v3524 = vunpack.c.h.b16 %v513
    %v3525 = vunpack.c.l.b16 %v514
    %v3526 = vunpack.c.h.b16 %v514
    %v3527 = vunpack.c.l.b16 %v515
    %v3528 = vunpack.c.h.b16 %v515
    %v3529 = vunpack.c.l.b16 %v516
    %v3530 = vunpack.c.h.b16 %v516
    %v3531 = vunpack.c.l.b16 %v517
    %v3532 = vunpack.c.h.b16 %v517
    %v3533 = vunpack.c.l.b16 %v518
    %v3534 = vunpack.c.h.b16 %v518
    %v3535 = vunpack.c.l.b16 %v519
    %v3536 = vunpack.c.h.b16 %v519
    %v3537 = vunpack.c.l.b16 %v520
    %v3538 = vunpack.c.h.b16 %v520
    %v3539 = vunpack.c.l.b16 %v521
    %v3540 = vunpack.c.h.b16 %v521
    %v3541 = vunpack.c.l.b16 %v522
    %v3542 = vunpack.c.h.b16 %v522
    %v3543 = vunpack.c.l.b16 %v523
    %v3544 = vunpack.c.h.b16 %v523
    %v3545 = vunpack.c.l.b16 %v524
    %v3546 = vunpack.c.h.b16 %v524
    %v3547 = vunpack.c.l.b16 %v525
    %v3548 = vunpack.c.h.b16 %v525
    %v3549 = vunpack.c.l.b16 %v526
    %v3550 = vunpack.c.h.b16 %v526
    %v3551 = vunpack.c.l.b16 %v527
    %v3552 = vunpack.c.h.b16 %v527
    %v3553 = vunpack.c.l.b16 %v528
    %v3554 = vunpack.c.h.b16 %v528
    %v3555 = vunpack.c.l.b16 %v529
    %v3556 = vunpack.c.h.b16 %v529
    %v3557 = vunpack.c.l.b16 %v530
    %v3558 = vunpack.c.h.b16 %v530
    %v3559 = vunpack.c.l.b16 %v531
    %v3560 = vunpack.c.h.b16 %v531
    %v3561 = vunpack.c.l.b16 %v532
    %v3562 = vunpack.c.h.b16 %v532
    %v3563 = vunpack.c.l.b16 %v533
    %v3564 = vunpack.c.h.b16 %v533
    %v3565 = vunpack.c.l.b16 %v534
    %v3566 = vunpack.c.h.b16 %v534
    %v3567 = vunpack.c.l.b16 %v535
    %v3568 = vunpack.c.h.b16 %v535
    %v3569 = vunpack.c.l.b16 %v536
    %v3570 = vunpack.c.h.b16 %v536
    %v3571 = vunpack.c.l.b16 %v537
    %v3572 = vunpack.c.h.b16 %v537
    %v3573 = vunpack.c.l.b16 %v538
    %v3574 = vunpack.c.h.b16 %v538
    %v3575 = vunpack.c.l.b16 %v539
    %v3576 = vunpack.c.h.b16 %v539
    %v3577 = vunpack.c.l.b16 %v540
    %v3578 = vunpack.c.h.b16 %v540
    %v3579 = vunpack.c.l.b16 %v541
    %v3580 = vunpack.c.h.b16 %v541
    %v3581 = vunpack.c.l.b16 %v542
    %v3582 = vunpack.c.h.b16 %v542
    %v3583 = vunpack.c.l.b16 %v543
    %v3584 = vunpack.c.h.b16 %v543
    %v3585 = vunpack.c.l.b16 %v544
    %v3586 = vunpack.c.h.b16 %v544
    %v3587 = vunpack.c.l.b16 %v545
    %v3588 = vunpack.c.h.b16 %v545
    %v3589 = vunpack.c.l.b16 %v546
    %v3590 = vunpack.c.h.b16 %v546
    %v3591 = vunpack.c.l.b16 %v547
    %v3592 = vunpack.c.h.b16 %v547
    %v3593 = vunpack.c.l.b16 %v548
    %v3594 = vunpack.c.h.b16 %v548
    %v3595 = vunpack.c.l.b16 %v549
    %v3596 = vunpack.c.h.b16 %v549
    %v3597 = vunpack.c.l.b16 %v550
    %v3598 = vunpack.c.h.b16 %v550
    %v3599 = vunpack.c.l.b16 %v551
    %v3600 = vunpack.c.h.b16 %v551
    %v3601 = vunpack.c.l.b16 %v552
    %v3602 = vunpack.c.h.b16 %v552
    %v3603 = vunpack.c.l.b16 %v553
    %v3604 = vunpack.c.h.b16 %v553
    %v3605 = vunpack.c.l.b16 %v554
    %v3606 = vunpack.c.h.b16 %v554
    %v3607 = vunpack.c.l.b16 %v555
    %v3608 = vunpack.c.h.b16 %v555
    %v3609 = vunpack.c.l.b16 %v556
    %v3610 = vunpack.c.h.b16 %v556
    %v3611 = vunpack.c.l.b16 %v557
    %v3612 = vunpack.c.h.b16 %v557
    %v3613 = vunpack.c.l.b16 %v558
    %v3614 = vunpack.c.h.b16 %v558
    %v3615 = vunpack.c.l.b16 %v559
    %v3616 = vunpack.c.h.b16 %v559
    %v3617 = vunpack.c.l.b16 %v560
    %v3618 = vunpack.c.h.b16 %v560
    %v3619 = vunpack.c.l.b16 %v561
    %v3620 = vunpack.c.h.b16 %v561
    %v3621 = vunpack.c.l.b16 %v562
    %v3622 = vunpack.c.h.b16 %v562
    %v3623 = vunpack.c.l.b16 %v563
    %v3624 = vunpack.c.h.b16 %v563
    %v3625 = vunpack.c.l.b16 %v564
    %v3626 = vunpack.c.h.b16 %v564
    %v3627 = vunpack.c.l.b16 %v565
    %v3628 = vunpack.c.h.b16 %v565
    %v3629 = vunpack.c.l.b16 %v566
    %v3630 = vunpack.c.h.b16 %v566
    %v3631 = vunpack.c.l.b16 %v567
    %v3632 = vunpack.c.h.b16 %v567
    %v3633 = vunpack.c.l.b16 %v568
    %v3634 = vunpack.c.h.b16 %v568
    %v3635 = vunpack.c.l.b16 %v569
    %v3636 = vunpack.c.h.b16 %v569
    %v3637 = vunpack.c.l.b16 %v570
    %v3638 = vunpack.c.h.b16 %v570
    %v3639 = vunpack.c.l.b16 %v571
    %v3640 = vunpack.c.h.b16 %v571
    %v3641 = vunpack.c.l.b16 %v572
    %v3642 = vunpack.c.h.b16 %v572
    %v3643 = vunpack.c.l.b16 %v573
    %v3644 = vunpack.c.h.b16 %v573
    %v3645 = vunpack.c.l.b16 %v574
    %v3646 = vunpack.c.h.b16 %v574
    %v3647 = vunpack.c.l.b16 %v575
    %v3648 = vunpack.c.h.b16 %v575
    %v3649 = vunpack.c.l.b16 %v576
    %v3650 = vunpack.c.h.b16 %v576
    %v3651 = vunpack.c.l.b16 %v577
    %v3652 = vunpack.c.h.b16 %v577
    %v3653 = vunpack.c.l.b16 %v578
    %v3654 = vunpack.c.h.b16 %v578
    %v3655 = vunpack.c.l.b16 %v579
    %v3656 = vunpack.c.h.b16 %v579
    %v3657 = vunpack.c.l.b16 %v580
    %v3658 = vunpack.c.h.b16 %v580
    %v3659 = vunpack.c.l.b16 %v581
    %v3660 = vunpack.c.h.b16 %v581
    %v3661 = vunpack.c.l.b16 %v582
    %v3662 = vunpack.c.h.b16 %v582
    %v3663 = vunpack.c.l.b16 %v583
    %v3664 = vunpack.c.h.b16 %v583
    %v3665 = vunpack.c.l.b16 %v584
    %v3666 = vunpack.c.h.b16 %v584
    %v3667 = vunpack.c.l.b16 %v585
    %v3668 = vunpack.c.h.b16 %v585
    %v3669 = vunpack.c.l.b16 %v586
    %v3670 = vunpack.c.h.b16 %v586
    %v3671 = vunpack.c.l.b16 %v587
    %v3672 = vunpack.c.h.b16 %v587
    %v3673 = vunpack.c.l.b16 %v588
    %v3674 = vunpack.c.h.b16 %v588
    %v3675 = vunpack.c.l.b16 %v589
    %v3676 = vunpack.c.h.b16 %v589
    %v3677 = vunpack.c.l.b16 %v590
    %v3678 = vunpack.c.h.b16 %v590
    %v3679 = vunpack.c.l.b16 %v591
    %v3680 = vunpack.c.h.b16 %v591
    %v3681 = vunpack.c.l.b16 %v592
    %v3682 = vunpack.c.h.b16 %v592
    %v3683 = vunpack.c.l.b16 %v593
    %v3684 = vunpack.c.h.b16 %v593
    %v3685 = vunpack.c.l.b16 %v594
    %v3686 = vunpack.c.h.b16 %v594
    %v3687 = vunpack.c.l.b16 %v595
    %v3688 = vunpack.c.h.b16 %v595
    %v3689 = vunpack.c.l.b16 %v596
    %v3690 = vunpack.c.h.b16 %v596
    %v3691 = vunpack.c.l.b16 %v597
    %v3692 = vunpack.c.h.b16 %v597
    %v3693 = vunpack.c.l.b16 %v598
    %v3694 = vunpack.c.h.b16 %v598
    %v3695 = vunpack.c.l.b16 %v599
    %v3696 = vunpack.c.h.b16 %v599
    %v3697 = vunpack.c.l.b16 %v600
    %v3698 = vunpack.c.h.b16 %v600
    %v3699 = vunpack.c.l.b16 %v601
    %v3700 = vunpack.c.h.b16 %v601
    %v3701 = vunpack.c.l.b16 %v602
    %v3702 = vunpack.c.h.b16 %v602
    %v3703 = vunpack.c.l.b16 %v603
    %v3704 = vunpack.c.h.b16 %v603
    %v3705 = vunpack.c.l.b16 %v604
    %v3706 = vunpack.c.h.b16 %v604
    %v3707 = vunpack.c.l.b16 %v605
    %v3708 = vunpack.c.h.b16 %v605
    %v3709 = vunpack.c.l.b16 %v606
    %v3710 = vunpack.c.h.b16 %v606
    %v3711 = vunpack.c.l.b16 %v607
    %v3712 = vunpack.c.h.b16 %v607
    %v3713 = vunpack.c.l.b16 %v608
    %v3714 = vunpack.c.h.b16 %v608
    %v3715 = vunpack.c.l.b16 %v609
    %v3716 = vunpack.c.h.b16 %v609
    %v3717 = vunpack.c.l.b16 %v610
    %v3718 = vunpack.c.h.b16 %v610
    %v3719 = vunpack.c.l.b16 %v611
    %v3720 = vunpack.c.h.b16 %v611
    %v3721 = vunpack.c.l.b16 %v612
    %v3722 = vunpack.c.h.b16 %v612
    %v3723 = vunpack.c.l.b16 %v613
    %v3724 = vunpack.c.h.b16 %v613
    %v3725 = vunpack.c.l.b16 %v614
    %v3726 = vunpack.c.h.b16 %v614
    %v3727 = vunpack.c.l.b16 %v615
    %v3728 = vunpack.c.h.b16 %v615
    %v3729 = vunpack.c.l.b16 %v616
    %v3730 = vunpack.c.h.b16 %v616
    %v3731 = vunpack.c.l.b16 %v617
    %v3732 = vunpack.c.h.b16 %v617
    %v3733 = vunpack.c.l.b16 %v618
    %v3734 = vunpack.c.h.b16 %v618
    %v3735 = vunpack.c.l.b16 %v619
    %v3736 = vunpack.c.h.b16 %v619
    %v3737 = vunpack.c.l.b16 %v620
    %v3738 = vunpack.c.h.b16 %v620
    %v3739 = vunpack.c.l.b16 %v621
    %v3740 = vunpack.c.h.b16 %v621
    %v3741 = vunpack.c.l.b16 %v622
    %v3742 = vunpack.c.h.b16 %v622
    %v3743 = vunpack.c.l.b16 %v623
    %v3744 = vunpack.c.h.b16 %v623
    %v3745 = vunpack.c.l.b16 %v624
    %v3746 = vunpack.c.h.b16 %v624
    %v3747 = vunpack.c.l.b16 %v625
    %v3748 = vunpack.c.h.b16 %v625
    %v3749 = vunpack.c.l.b16 %v626
    %v3750 = vunpack.c.h.b16 %v626
    %v3751 = vunpack.c.l.b16 %v627
    %v3752 = vunpack.c.h.b16 %v627
    %v3753 = vunpack.c.l.b16 %v628
    %v3754 = vunpack.c.h.b16 %v628
    %v3755 = vunpack.c.l.b16 %v629
    %v3756 = vunpack.c.h.b16 %v629
    %v3757 = vunpack.c.l.b16 %v630
    %v3758 = vunpack.c.h.b16 %v630
    %v3759 = vunpack.c.l.b16 %v631
    %v3760 = vunpack.c.h.b16 %v631
    %v3761 = vunpack.c.l.b16 %v632
    %v3762 = vunpack.c.h.b16 %v632
    %v3763 = vunpack.c.l.b16 %v633
    %v3764 = vunpack.c.h.b16 %v633
    %v3765 = vunpack.c.l.b16 %v634
    %v3766 = vunpack.c.h.b16 %v634
    %v3767 = vunpack.c.l.b16 %v635
    %v3768 = vunpack.c.h.b16 %v635
    %v3769 = vunpack.c.l.b16 %v636
    %v3770 = vunpack.c.h.b16 %v636
    %v3771 = vunpack.c.l.b16 %v637
    %v3772 = vunpack.c.h.b16 %v637
    %v3773 = vunpack.c.l.b16 %v638
    %v3774 = vunpack.c.h.b16 %v638
    %v3775 = vunpack.c.l.b16 %v639
    %v3776 = vunpack.c.h.b16 %v639
    %v3777 = vunpack.c.l.b16 %v640
    %v3778 = vunpack.c.h.b16 %v640
    %v3779 = vunpack.c.l.b16 %v641
    %v3780 = vunpack.c.h.b16 %v641
    %v3781 = vunpack.c.l.b16 %v642
    %v3782 = vunpack.c.h.b16 %v642
    %v3783 = vunpack.c.l.b16 %v643
    %v3784 = vunpack.c.h.b16 %v643
    %v3785 = vunpack.c.l.b16 %v644
    %v3786 = vunpack.c.h.b16 %v644
    %v3787 = vunpack.c.l.b16 %v645
    %v3788 = vunpack.c.h.b16 %v645
    %v3789 = vunpack.c.l.b16 %v646
    %v3790 = vunpack.c.h.b16 %v646
    %v3791 = vunpack.c.l.b16 %v647
    %v3792 = vunpack.c.h.b16 %v647
    %v3793 = vunpack.c.l.b16 %v648
    %v3794 = vunpack.c.h.b16 %v648
    %v3795 = vunpack.c.l.b16 %v649
    %v3796 = vunpack.c.h.b16 %v649
    %v3797 = vunpack.c.l.b16 %v650
    %v3798 = vunpack.c.h.b16 %v650
    %v3799 = vunpack.c.l.b16 %v651
    %v3800 = vunpack.c.h.b16 %v651
    %v3801 = vunpack.c.l.b16 %v652
    %v3802 = vunpack.c.h.b16 %v652
    %v3803 = vunpack.c.l.b16 %v653
    %v3804 = vunpack.c.h.b16 %v653
    %v3805 = vunpack.c.l.b16 %v654
    %v3806 = vunpack.c.h.b16 %v654
    %v3807 = vunpack.c.l.b16 %v655
    %v3808 = vunpack.c.h.b16 %v655
    %v3809 = vunpack.c.l.b16 %v656
    %v3810 = vunpack.c.h.b16 %v656
    %v3811 = vunpack.c.l.b16 %v657
    %v3812 = vunpack.c.h.b16 %v657
    %v3813 = vunpack.c.l.b16 %v658
    %v3814 = vunpack.c.h.b16 %v658
    %v3815 = vunpack.c.l.b16 %v659
    %v3816 = vunpack.c.h.b16 %v659
    %v3817 = vunpack.c.l.b16 %v660
    %v3818 = vunpack.c.h.b16 %v660
    %v3819 = vunpack.c.l.b16 %v661
    %v3820 = vunpack.c.h.b16 %v661
    %v3821 = vunpack.c.l.b16 %v662
    %v3822 = vunpack.c.h.b16 %v662
    %v3823 = vunpack.c.l.b16 %v663
    %v3824 = vunpack.c.h.b16 %v663
    %v3825 = vunpack.c.l.b16 %v664
    %v3826 = vunpack.c.h.b16 %v664
    %v3827 = vunpack.c.l.b16 %v665
    %v3828 = vunpack.c.h.b16 %v665
    %v3829 = vunpack.c.l.b16 %v666
    %v3830 = vunpack.c.h.b16 %v666
    %v3831 = vunpack.c.l.b16 %v667
    %v3832 = vunpack.c.h.b16 %v667
    %v3833 = vunpack.c.l.b16 %v668
    %v3834 = vunpack.c.h.b16 %v668
    %v3835 = vunpack.c.l.b16 %v669
    %v3836 = vunpack.c.h.b16 %v669
    %v3837 = vunpack.c.l.b16 %v670
    %v3838 = vunpack.c.h.b16 %v670
    %v3839 = vunpack.c.l.b16 %v671
    %v3840 = vunpack.c.h.b16 %v671
    %v3841 = vunpack.c.l.b16 %v672
    %v3842 = vunpack.c.h.b16 %v672
    %v3843 = vunpack.c.l.b16 %v673
    %v3844 = vunpack.c.h.b16 %v673
    %v3845 = vunpack.c.l.b16 %v674
    %v3846 = vunpack.c.h.b16 %v674
    %v3847 = vunpack.c.l.b16 %v675
    %v3848 = vunpack.c.h.b16 %v675
    %v3849 = vunpack.c.l.b16 %v676
    %v3850 = vunpack.c.h.b16 %v676
    %v3851 = vunpack.c.l.b16 %v677
    %v3852 = vunpack.c.h.b16 %v677
    %v3853 = vunpack.c.l.b16 %v678
    %v3854 = vunpack.c.h.b16 %v678
    %v3855 = vunpack.c.l.b16 %v679
    %v3856 = vunpack.c.h.b16 %v679
    %v3857 = vunpack.c.l.b16 %v680
    %v3858 = vunpack.c.h.b16 %v680
    %v3859 = vunpack.c.l.b16 %v681
    %v3860 = vunpack.c.h.b16 %v681
    %v3861 = vunpack.c.l.b16 %v682
    %v3862 = vunpack.c.h.b16 %v682
    %v3863 = vunpack.c.l.b16 %v683
    %v3864 = vunpack.c.h.b16 %v683
    %v3865 = vunpack.c.l.b16 %v684
    %v3866 = vunpack.c.h.b16 %v684
    %v3867 = vunpack.c.l.b16 %v685
    %v3868 = vunpack.c.h.b16 %v685
    %v3869 = vunpack.c.l.b16 %v686
    %v3870 = vunpack.c.h.b16 %v686
    %v3871 = vunpack.c.l.b16 %v687
    %v3872 = vunpack.c.h.b16 %v687
    %v3873 = vunpack.c.l.b16 %v688
    %v3874 = vunpack.c.h.b16 %v688
    %v3875 = vunpack.c.l.b16 %v689
    %v3876 = vunpack.c.h.b16 %v689
    %v3877 = vunpack.c.l.b16 %v690
    %v3878 = vunpack.c.h.b16 %v690
    %v3879 = vunpack.c.l.b16 %v691
    %v3880 = vunpack.c.h.b16 %v691
    %v3881 = vunpack.c.l.b16 %v692
    %v3882 = vunpack.c.h.b16 %v692
    %v3883 = vunpack.c.l.b16 %v693
    %v3884 = vunpack.c.h.b16 %v693
    %v3885 = vunpack.c.l.b16 %v694
    %v3886 = vunpack.c.h.b16 %v694
    %v3887 = vunpack.c.l.b16 %v695
    %v3888 = vunpack.c.h.b16 %v695
    %v3889 = vunpack.c.l.b16 %v696
    %v3890 = vunpack.c.h.b16 %v696
    %v3891 = vunpack.c.l.b16 %v697
    %v3892 = vunpack.c.h.b16 %v697
    %v3893 = vunpack.c.l.b16 %v698
    %v3894 = vunpack.c.h.b16 %v698
    %v3895 = vunpack.c.l.b16 %v699
    %v3896 = vunpack.c.h.b16 %v699
    %v3897 = vunpack.c.l.b16 %v700
    %v3898 = vunpack.c.h.b16 %v700
    %v3899 = vunpack.c.l.b16 %v701
    %v3900 = vunpack.c.h.b16 %v701
    %v3901 = vunpack.c.l.b16 %v702
    %v3902 = vunpack.c.h.b16 %v702
    %v3903 = vunpack.c.l.b16 %v703
    %v3904 = vunpack.c.h.b16 %v703
    %v3905 = vunpack.c.l.b16 %v704
    %v3906 = vunpack.c.h.b16 %v704
    %v3907 = vunpack.c.l.b16 %v705
    %v3908 = vunpack.c.h.b16 %v705
    %v3909 = vunpack.c.l.b16 %v706
    %v3910 = vunpack.c.h.b16 %v706
    %v3911 = vunpack.c.l.b16 %v707
    %v3912 = vunpack.c.h.b16 %v707
    %v3913 = vunpack.c.l.b16 %v708
    %v3914 = vunpack.c.h.b16 %v708
    %v3915 = vunpack.c.l.b16 %v709
    %v3916 = vunpack.c.h.b16 %v709
    %v3917 = vunpack.c.l.b16 %v710
    %v3918 = vunpack.c.h.b16 %v710
    %v3919 = vunpack.c.l.b16 %v711
    %v3920 = vunpack.c.h.b16 %v711
    %v3921 = vunpack.c.l.b16 %v712
    %v3922 = vunpack.c.h.b16 %v712
    %v3923 = vunpack.c.l.b16 %v713
    %v3924 = vunpack.c.h.b16 %v713
    %v3925 = vunpack.c.l.b16 %v714
    %v3926 = vunpack.c.h.b16 %v714
    %v3927 = vunpack.c.l.b16 %v715
    %v3928 = vunpack.c.h.b16 %v715
    %v3929 = vunpack.c.l.b16 %v716
    %v3930 = vunpack.c.h.b16 %v716
    %v3931 = vunpack.c.l.b16 %v717
    %v3932 = vunpack.c.h.b16 %v717
    %v3933 = vunpack.c.l.b16 %v718
    %v3934 = vunpack.c.h.b16 %v718
    %v3935 = vunpack.c.l.b16 %v719
    %v3936 = vunpack.c.h.b16 %v719
    %v3937 = vunpack.c.l.b16 %v720
    %v3938 = vunpack.c.h.b16 %v720
    %v3939 = vunpack.c.l.b16 %v721
    %v3940 = vunpack.c.h.b16 %v721
    %v3941 = vunpack.c.l.b16 %v722
    %v3942 = vunpack.c.h.b16 %v722
    %v3943 = vunpack.c.l.b16 %v723
    %v3944 = vunpack.c.h.b16 %v723
    %v3945 = vunpack.c.l.b16 %v724
    %v3946 = vunpack.c.h.b16 %v724
    %v3947 = vunpack.c.l.b16 %v725
    %v3948 = vunpack.c.h.b16 %v725
    %v3949 = vunpack.c.l.b16 %v726
    %v3950 = vunpack.c.h.b16 %v726
    %v3951 = vunpack.c.l.b16 %v727
    %v3952 = vunpack.c.h.b16 %v727
    %v3953 = vunpack.c.l.b16 %v728
    %v3954 = vunpack.c.h.b16 %v728
    %v3955 = vunpack.c.l.b16 %v729
    %v3956 = vunpack.c.h.b16 %v729
    %v3957 = vunpack.c.l.b16 %v730
    %v3958 = vunpack.c.h.b16 %v730
    %v3959 = vunpack.c.l.b16 %v731
    %v3960 = vunpack.c.h.b16 %v731
    %v3961 = vunpack.c.l.b16 %v732
    %v3962 = vunpack.c.h.b16 %v732
    %v3963 = vunpack.c.l.b16 %v733
    %v3964 = vunpack.c.h.b16 %v733
    %v3965 = vunpack.c.l.b16 %v734
    %v3966 = vunpack.c.h.b16 %v734
    %v3967 = vunpack.c.l.b16 %v735
    %v3968 = vunpack.c.h.b16 %v735
    %v3969 = vunpack.c.l.b16 %v736
    %v3970 = vunpack.c.h.b16 %v736
    %v3971 = vunpack.c.l.b16 %v737
    %v3972 = vunpack.c.h.b16 %v737
    %v3973 = vunpack.c.l.b16 %v738
    %v3974 = vunpack.c.h.b16 %v738
    %v3975 = vunpack.c.l.b16 %v739
    %v3976 = vunpack.c.h.b16 %v739
    %v3977 = vunpack.c.l.b16 %v740
    %v3978 = vunpack.c.h.b16 %v740
    %v3979 = vunpack.c.l.b16 %v741
    %v3980 = vunpack.c.h.b16 %v741
    %v3981 = vunpack.c.l.b16 %v742
    %v3982 = vunpack.c.h.b16 %v742
    %v3983 = vunpack.c.l.b16 %v743
    %v3984 = vunpack.c.h.b16 %v743
    %v3985 = vunpack.c.l.b16 %v744
    %v3986 = vunpack.c.h.b16 %v744
    %v3987 = vunpack.c.l.b16 %v745
    %v3988 = vunpack.c.h.b16 %v745
    %v3989 = vunpack.c.l.b16 %v746
    %v3990 = vunpack.c.h.b16 %v746
    %v3991 = vunpack.c.l.b16 %v747
    %v3992 = vunpack.c.h.b16 %v747
    %v3993 = vunpack.c.l.b16 %v748
    %v3994 = vunpack.c.h.b16 %v748
    %v3995 = vunpack.c.l.b16 %v749
    %v3996 = vunpack.c.h.b16 %v749
    %v3997 = vunpack.c.l.b16 %v750
    %v3998 = vunpack.c.h.b16 %v750
    %v3999 = vunpack.c.l.b16 %v751
    %v4000 = vunpack.c.h.b16 %v751
    %v4001 = vunpack.c.l.b16 %v752
    %v4002 = vunpack.c.h.b16 %v752
    %v4003 = vunpack.c.l.b16 %v753
    %v4004 = vunpack.c.h.b16 %v753
    %v4005 = vunpack.c.l.b16 %v754
    %v4006 = vunpack.c.h.b16 %v754
    %v4007 = vunpack.c.l.b16 %v755
    %v4008 = vunpack.c.h.b16 %v755
    %v4009 = vunpack.c.l.b16 %v756
    %v4010 = vunpack.c.h.b16 %v756
    %v4011 = vunpack.c.l.b16 %v757
    %v4012 = vunpack.c.h.b16 %v757
    %v4013 = vunpack.c.l.b16 %v758
    %v4014 = vunpack.c.h.b16 %v758
    %v4015 = vunpack.c.l.b16 %v759
    %v4016 = vunpack.c.h.b16 %v759
    %v4017 = vunpack.c.l.b16 %v760
    %v4018 = vunpack.c.h.b16 %v760
    %v4019 = vunpack.c.l.b16 %v761
    %v4020 = vunpack.c.h.b16 %v761
    %v4021 = vunpack.c.l.b16 %v762
    %v4022 = vunpack.c.h.b16 %v762
    %v4023 = vunpack.c.l.b16 %v763
    %v4024 = vunpack.c.h.b16 %v763
    %v4025 = vunpack.c.l.b16 %v764
    %v4026 = vunpack.c.h.b16 %v764
    %v4027 = vunpack.c.l.b16 %v765
    %v4028 = vunpack.c.h.b16 %v765
    %v4029 = vunpack.c.l.b16 %v766
    %v4030 = vunpack.c.h.b16 %v766
    %v4031 = vunpack.c.l.b16 %v767
    %v4032 = vunpack.c.h.b16 %v767
    %v4033 = vunpack.c.l.b16 %v768
    %v4034 = vunpack.c.h.b16 %v768
    %v4035 = vunpack.c.l.b16 %v769
    %v4036 = vunpack.c.h.b16 %v769
    %v4037 = vunpack.c.l.b16 %v770
    %v4038 = vunpack.c.h.b16 %v770
    %v4039 = vunpack.c.l.b16 %v771
    %v4040 = vunpack.c.h.b16 %v771
    %v4041 = vunpack.c.l.b16 %v772
    %v4042 = vunpack.c.h.b16 %v772
    %v4043 = vunpack.c.l.b16 %v773
    %v4044 = vunpack.c.h.b16 %v773
    %v4045 = vunpack.c.l.b16 %v774
    %v4046 = vunpack.c.h.b16 %v774
    %v4047 = vunpack.c.l.b16 %v775
    %v4048 = vunpack.c.h.b16 %v775
    %v4049 = vunpack.c.l.b16 %v776
    %v4050 = vunpack.c.h.b16 %v776
    %v4051 = vunpack.c.l.b16 %v777
    %v4052 = vunpack.c.h.b16 %v777
    %v4053 = vunpack.c.l.b16 %v778
    %v4054 = vunpack.c.h.b16 %v778
    %v4055 = vunpack.c.l.b16 %v779
    %v4056 = vunpack.c.h.b16 %v779
    %v4057 = vunpack.c.l.b16 %v780
    %v4058 = vunpack.c.h.b16 %v780
    %v4059 = vunpack.c.l.b16 %v781
    %v4060 = vunpack.c.h.b16 %v781
    %v4061 = vunpack.c.l.b16 %v782
    %v4062 = vunpack.c.h.b16 %v782
    %v4063 = vunpack.c.l.b16 %v783
    %v4064 = vunpack.c.h.b16 %v783
    %v4065 = vunpack.c.l.b16 %v784
    %v4066 = vunpack.c.h.b16 %v784
    %v4067 = vunpack.c.l.b16 %v785
    %v4068 = vunpack.c.h.b16 %v785
    %v4069 = vunpack.c.l.b16 %v786
    %v4070 = vunpack.c.h.b16 %v786
    %v4071 = vunpack.c.l.b16 %v787
    %v4072 = vunpack.c.h.b16 %v787
    %v4073 = vunpack.c.l.b16 %v788
    %v4074 = vunpack.c.h.b16 %v788
    %v4075 = vunpack.c.l.b16 %v789
    %v4076 = vunpack.c.h.b16 %v789
    %v4077 = vunpack.c.l.b16 %v790
    %v4078 = vunpack.c.h.b16 %v790
    %v4079 = vunpack.c.l.b16 %v791
    %v4080 = vunpack.c.h.b16 %v791
    %v4081 = vunpack.c.l.b16 %v792
    %v4082 = vunpack.c.h.b16 %v792
    %v4083 = vunpack.c.l.b16 %v793
    %v4084 = vunpack.c.h.b16 %v793
    %v4085 = vunpack.c.l.b16 %v794
    %v4086 = vunpack.c.h.b16 %v794
    %v4087 = vunpack.c.l.b16 %v795
    %v4088 = vunpack.c.h.b16 %v795
    %v4089 = vunpack.c.l.b16 %v796
    %v4090 = vunpack.c.h.b16 %v796
    %v4091 = vunpack.c.l.b16 %v797
    %v4092 = vunpack.c.h.b16 %v797
    %v4093 = vunpack.c.l.b16 %v798
    %v4094 = vunpack.c.h.b16 %v798
    %v4095 = vunpack.c.l.b16 %v799
    %v4096 = vunpack.c.h.b16 %v799
    %v4097 = vunpack.c.l.b16 %v800
    %v4098 = vunpack.c.h.b16 %v800
    %v4099 = vunpack.c.l.b16 %v801
    %v4100 = vunpack.c.h.b16 %v801
    %v4101 = vunpack.c.l.b16 %v802
    %v4102 = vunpack.c.h.b16 %v802
    %v4103 = vunpack.c.l.b16 %v803
    %v4104 = vunpack.c.h.b16 %v803
    %v4105 = vunpack.c.l.b16 %v804
    %v4106 = vunpack.c.h.b16 %v804
    %v4107 = vunpack.c.l.b16 %v805
    %v4108 = vunpack.c.h.b16 %v805
    %v4109 = vunpack.c.l.b16 %v806
    %v4110 = vunpack.c.h.b16 %v806
    %v4111 = vunpack.c.l.b16 %v807
    %v4112 = vunpack.c.h.b16 %v807
    %v4113 = vunpack.c.l.b16 %v808
    %v4114 = vunpack.c.h.b16 %v808
    %v4115 = vunpack.c.l.b16 %v809
    %v4116 = vunpack.c.h.b16 %v809
    %v4117 = vunpack.c.l.b16 %v810
    %v4118 = vunpack.c.h.b16 %v810
    %v4119 = vunpack.c.l.b16 %v811
    %v4120 = vunpack.c.h.b16 %v811
    %v4121 = vunpack.c.l.b16 %v812
    %v4122 = vunpack.c.h.b16 %v812
    %v4123 = vunpack.c.l.b16 %v813
    %v4124 = vunpack.c.h.b16 %v813
    %v4125 = vunpack.c.l.b16 %v814
    %v4126 = vunpack.c.h.b16 %v814
    %v4127 = vunpack.c.l.b16 %v815
    %v4128 = vunpack.c.h.b16 %v815
    %v4129 = vunpack.c.l.b16 %v816
    %v4130 = vunpack.c.h.b16 %v816
    %v4131 = vunpack.c.l.b16 %v817
    %v4132 = vunpack.c.h.b16 %v817
    %v4133 = vunpack.c.l.b16 %v818
    %v4134 = vunpack.c.h.b16 %v818
    %v4135 = vunpack.c.l.b16 %v819
    %v4136 = vunpack.c.h.b16 %v819
    %v4137 = vunpack.c.l.b16 %v820
    %v4138 = vunpack.c.h.b16 %v820
    %v4139 = vunpack.c.l.b16 %v821
    %v4140 = vunpack.c.h.b16 %v821
    %v4141 = vunpack.c.l.b16 %v822
    %v4142 = vunpack.c.h.b16 %v822
    %v4143 = vunpack.c.l.b16 %v823
    %v4144 = vunpack.c.h.b16 %v823
    %v4145 = vunpack.c.l.b16 %v824
    %v4146 = vunpack.c.h.b16 %v824
    %v4147 = vunpack.c.l.b16 %v825
    %v4148 = vunpack.c.h.b16 %v825
    %v4149 = vunpack.c.l.b16 %v826
    %v4150 = vunpack.c.h.b16 %v826
    %v4151 = vunpack.c.l.b16 %v827
    %v4152 = vunpack.c.h.b16 %v827
    %v4153 = vunpack.c.l.b16 %v828
    %v4154 = vunpack.c.h.b16 %v828
    %v4155 = vunpack.c.l.b16 %v829
    %v4156 = vunpack.c.h.b16 %v829
    %v4157 = vunpack.c.l.b16 %v830
    %v4158 = vunpack.c.h.b16 %v830
    %v4159 = vunpack.c.l.b16 %v831
    %v4160 = vunpack.c.h.b16 %v831
    %v4161 = vunpack.c.l.b16 %v832
    %v4162 = vunpack.c.h.b16 %v832
    %v4163 = vunpack.c.l.b16 %v833
    %v4164 = vunpack.c.h.b16 %v833
    %v4165 = vunpack.c.l.b16 %v834
    %v4166 = vunpack.c.h.b16 %v834
    %v4167 = vunpack.c.l.b16 %v835
    %v4168 = vunpack.c.h.b16 %v835
    %v4169 = vunpack.c.l.b16 %v836
    %v4170 = vunpack.c.h.b16 %v836
    %v4171 = vunpack.c.l.b16 %v837
    %v4172 = vunpack.c.h.b16 %v837
    %v4173 = vunpack.c.l.b16 %v838
    %v4174 = vunpack.c.h.b16 %v838
    %v4175 = vunpack.c.l.b16 %v839
    %v4176 = vunpack.c.h.b16 %v839
    %v4177 = vunpack.c.l.b16 %v840
    %v4178 = vunpack.c.h.b16 %v840
    %v4179 = vunpack.c.l.b16 %v841
    %v4180 = vunpack.c.h.b16 %v841
    %v4181 = vunpack.c.l.b16 %v842
    %v4182 = vunpack.c.h.b16 %v842
    %v4183 = vunpack.c.l.b16 %v843
    %v4184 = vunpack.c.h.b16 %v843
    %v4185 = vunpack.c.l.b16 %v844
    %v4186 = vunpack.c.h.b16 %v844
    %v4187 = vunpack.c.l.b16 %v845
    %v4188 = vunpack.c.h.b16 %v845
    %v4189 = vunpack.c.l.b16 %v846
    %v4190 = vunpack.c.h.b16 %v846
    %v4191 = vunpack.c.l.b16 %v847
    %v4192 = vunpack.c.h.b16 %v847
    %v4193 = vunpack.c.l.b16 %v848
    %v4194 = vunpack.c.h.b16 %v848
    %v4195 = vunpack.c.l.b16 %v849
    %v4196 = vunpack.c.h.b16 %v849
    %v4197 = vunpack.c.l.b16 %v850
    %v4198 = vunpack.c.h.b16 %v850
    %v4199 = vunpack.c.l.b16 %v851
    %v4200 = vunpack.c.h.b16 %v851
    %v4201 = vunpack.c.l.b16 %v852
    %v4202 = vunpack.c.h.b16 %v852
    %v4203 = vunpack.c.l.b16 %v853
    %v4204 = vunpack.c.h.b16 %v853
    %v4205 = vunpack.c.l.b16 %v854
    %v4206 = vunpack.c.h.b16 %v854
    %v4207 = vunpack.c.l.b16 %v855
    %v4208 = vunpack.c.h.b16 %v855
    %v4209 = vunpack.c.l.b16 %v856
    %v4210 = vunpack.c.h.b16 %v856
    %v4211 = vunpack.c.l.b16 %v857
    %v4212 = vunpack.c.h.b16 %v857
    %v4213 = vunpack.c.l.b16 %v858
    %v4214 = vunpack.c.h.b16 %v858
    %v4215 = vunpack.c.l.b16 %v859
    %v4216 = vunpack.c.h.b16 %v859
    %v4217 = vunpack.c.l.b16 %v860
    %v4218 = vunpack.c.h.b16 %v860
    %v4219 = vunpack.c.l.b16 %v861
    %v4220 = vunpack.c.h.b16 %v861
    %v4221 = vunpack.c.l.b16 %v862
    %v4222 = vunpack.c.h.b16 %v862
    %v4223 = vunpack.c.l.b16 %v863
    %v4224 = vunpack.c.h.b16 %v863
    %v4225 = vunpack.c.l.b16 %v864
    %v4226 = vunpack.c.h.b16 %v864
    %v4227 = vunpack.c.l.b16 %v865
    %v4228 = vunpack.c.h.b16 %v865
    %v4229 = vunpack.c.l.b16 %v866
    %v4230 = vunpack.c.h.b16 %v866
    %v4231 = vunpack.c.l.b16 %v867
    %v4232 = vunpack.c.h.b16 %v867
    %v4233 = vunpack.c.l.b16 %v868
    %v4234 = vunpack.c.h.b16 %v868
    %v4235 = vunpack.c.l.b16 %v869
    %v4236 = vunpack.c.h.b16 %v869
    %v4237 = vunpack.c.l.b16 %v870
    %v4238 = vunpack.c.h.b16 %v870
    %v4239 = vunpack.c.l.b16 %v871
    %v4240 = vunpack.c.h.b16 %v871
    %v4241 = vunpack.c.l.b16 %v872
    %v4242 = vunpack.c.h.b16 %v872
    %v4243 = vunpack.c.l.b16 %v873
    %v4244 = vunpack.c.h.b16 %v873
    %v4245 = vunpack.c.l.b16 %v874
    %v4246 = vunpack.c.h.b16 %v874
    %v4247 = vunpack.c.l.b16 %v875
    %v4248 = vunpack.c.h.b16 %v875
    %v4249 = vunpack.c.l.b16 %v876
    %v4250 = vunpack.c.h.b16 %v876
    %v4251 = vunpack.c.l.b16 %v877
    %v4252 = vunpack.c.h.b16 %v877
    %v4253 = vunpack.c.l.b16 %v878
    %v4254 = vunpack.c.h.b16 %v878
    %v4255 = vunpack.c.l.b16 %v879
    %v4256 = vunpack.c.h.b16 %v879
    %v4257 = vunpack.c.l.b16 %v880
    %v4258 = vunpack.c.h.b16 %v880
    %v4259 = vunpack.c.l.b16 %v881
    %v4260 = vunpack.c.h.b16 %v881
    %v4261 = vunpack.c.l.b16 %v882
    %v4262 = vunpack.c.h.b16 %v882
    %v4263 = vunpack.c.l.b16 %v883
    %v4264 = vunpack.c.h.b16 %v883
    %v4265 = vunpack.c.l.b16 %v884
    %v4266 = vunpack.c.h.b16 %v884
    %v4267 = vunpack.c.l.b16 %v885
    %v4268 = vunpack.c.h.b16 %v885
    %v4269 = vunpack.c.l.b16 %v886
    %v4270 = vunpack.c.h.b16 %v886
    %v4271 = vunpack.c.l.b16 %v887
    %v4272 = vunpack.c.h.b16 %v887
    %v4273 = vunpack.c.l.b16 %v888
    %v4274 = vunpack.c.h.b16 %v888
    %v4275 = vunpack.c.l.b16 %v889
    %v4276 = vunpack.c.h.b16 %v889
    %v4277 = vunpack.c.l.b16 %v890
    %v4278 = vunpack.c.h.b16 %v890
    %v4279 = vunpack.c.l.b16 %v891
    %v4280 = vunpack.c.h.b16 %v891
    %v4281 = vunpack.c.l.b16 %v892
    %v4282 = vunpack.c.h.b16 %v892
    %v4283 = vunpack.c.l.b16 %v893
    %v4284 = vunpack.c.h.b16 %v893
    %v4285 = vunpack.c.l.b16 %v894
    %v4286 = vunpack.c.h.b16 %v894
    %v4287 = vunpack.c.l.b16 %v895
    %v4288 = vunpack.c.h.b16 %v895
    %v4289 = vunpack.c.l.b16 %v896
    %v4290 = vunpack.c.h.b16 %v896
    %v4291 = vunpack.c.l.b16 %v897
    %v4292 = vunpack.c.h.b16 %v897
    %v4293 = vunpack.c.l.b16 %v898
    %v4294 = vunpack.c.h.b16 %v898
    %v4295 = vunpack.c.l.b16 %v899
    %v4296 = vunpack.c.h.b16 %v899
    %v4297 = vunpack.c.l.b16 %v900
    %v4298 = vunpack.c.h.b16 %v900
    %v4299 = vunpack.c.l.b16 %v901
    %v4300 = vunpack.c.h.b16 %v901
    %v4301 = vunpack.c.l.b16 %v902
    %v4302 = vunpack.c.h.b16 %v902
    %v4303 = vunpack.c.l.b16 %v903
    %v4304 = vunpack.c.h.b16 %v903
    %v4305 = vunpack.c.l.b16 %v904
    %v4306 = vunpack.c.h.b16 %v904
    %v4307 = vunpack.c.l.b16 %v905
    %v4308 = vunpack.c.h.b16 %v905
    %v4309 = vunpack.c.l.b16 %v906
    %v4310 = vunpack.c.h.b16 %v906
    %v4311 = vunpack.c.l.b16 %v907
    %v4312 = vunpack.c.h.b16 %v907
    %v4313 = vunpack.c.l.b16 %v908
    %v4314 = vunpack.c.h.b16 %v908
    %v4315 = vunpack.c.l.b16 %v909
    %v4316 = vunpack.c.h.b16 %v909
    %v4317 = vunpack.c.l.b16 %v910
    %v4318 = vunpack.c.h.b16 %v910
    %v4319 = vunpack.c.l.b16 %v911
    %v4320 = vunpack.c.h.b16 %v911
    %v4321 = vunpack.c.l.b16 %v912
    %v4322 = vunpack.c.h.b16 %v912
    %v4323 = vunpack.c.l.b16 %v913
    %v4324 = vunpack.c.h.b16 %v913
    %v4325 = vunpack.c.l.b16 %v914
    %v4326 = vunpack.c.h.b16 %v914
    %v4327 = vunpack.c.l.b16 %v915
    %v4328 = vunpack.c.h.b16 %v915
    %v4329 = vunpack.c.l.b16 %v916
    %v4330 = vunpack.c.h.b16 %v916
    %v4331 = vunpack.c.l.b16 %v917
    %v4332 = vunpack.c.h.b16 %v917
    %v4333 = vunpack.c.l.b16 %v918
    %v4334 = vunpack.c.h.b16 %v918
    %v4335 = vunpack.c.l.b16 %v919
    %v4336 = vunpack.c.h.b16 %v919
    %v4337 = vunpack.c.l.b16 %v920
    %v4338 = vunpack.c.h.b16 %v920
    %v4339 = vunpack.c.l.b16 %v921
    %v4340 = vunpack.c.h.b16 %v921
    %v4341 = vunpack.c.l.b16 %v922
    %v4342 = vunpack.c.h.b16 %v922
    %v4343 = vunpack.c.l.b16 %v923
    %v4344 = vunpack.c.h.b16 %v923
    %v4345 = vunpack.c.l.b16 %v924
    %v4346 = vunpack.c.h.b16 %v924
    %v4347 = vunpack.c.l.b16 %v925
    %v4348 = vunpack.c.h.b16 %v925
    %v4349 = vunpack.c.l.b16 %v926
    %v4350 = vunpack.c.h.b16 %v926
    %v4351 = vunpack.c.l.b16 %v927
    %v4352 = vunpack.c.h.b16 %v927
    %v4353 = vunpack.c.l.b16 %v928
    %v4354 = vunpack.c.h.b16 %v928
    %v4355 = vunpack.c.l.b16 %v929
    %v4356 = vunpack.c.h.b16 %v929
    %v4357 = vunpack.c.l.b16 %v930
    %v4358 = vunpack.c.h.b16 %v930
    %v4359 = vunpack.c.l.b16 %v931
    %v4360 = vunpack.c.h.b16 %v931
    %v4361 = vunpack.c.l.b16 %v932
    %v4362 = vunpack.c.h.b16 %v932
    %v4363 = vunpack.c.l.b16 %v933
    %v4364 = vunpack.c.h.b16 %v933
    %v4365 = vunpack.c.l.b16 %v934
    %v4366 = vunpack.c.h.b16 %v934
    %v4367 = vunpack.c.l.b16 %v935
    %v4368 = vunpack.c.h.b16 %v935
    %v4369 = vunpack.c.l.b16 %v936
    %v4370 = vunpack.c.h.b16 %v936
    %v4371 = vunpack.c.l.b16 %v937
    %v4372 = vunpack.c.h.b16 %v937
    %v4373 = vunpack.c.l.b16 %v938
    %v4374 = vunpack.c.h.b16 %v938
    %v4375 = vunpack.c.l.b16 %v939
    %v4376 = vunpack.c.h.b16 %v939
    %v4377 = vunpack.c.l.b16 %v940
    %v4378 = vunpack.c.h.b16 %v940
    %v4379 = vunpack.c.l.b16 %v941
    %v4380 = vunpack.c.h.b16 %v941
    %v4381 = vunpack.c.l.b16 %v942
    %v4382 = vunpack.c.h.b16 %v942
    %v4383 = vunpack.c.l.b16 %v943
    %v4384 = vunpack.c.h.b16 %v943
    %v4385 = vunpack.c.l.b16 %v944
    %v4386 = vunpack.c.h.b16 %v944
    %v4387 = vunpack.c.l.b16 %v945
    %v4388 = vunpack.c.h.b16 %v945
    %v4389 = vunpack.c.l.b16 %v946
    %v4390 = vunpack.c.h.b16 %v946
    %v4391 = vunpack.c.l.b16 %v947
    %v4392 = vunpack.c.h.b16 %v947
    %v4393 = vunpack.c.l.b16 %v948
    %v4394 = vunpack.c.h.b16 %v948
    %v4395 = vunpack.c.l.b16 %v949
    %v4396 = vunpack.c.h.b16 %v949
    %v4397 = vunpack.c.l.b16 %v950
    %v4398 = vunpack.c.h.b16 %v950
    %v4399 = vunpack.c.l.b16 %v951
    %v4400 = vunpack.c.h.b16 %v951
    %v4401 = vunpack.c.l.b16 %v952
    %v4402 = vunpack.c.h.b16 %v952
    %v4403 = vunpack.c.l.b16 %v953
    %v4404 = vunpack.c.h.b16 %v953
    %v4405 = vunpack.c.l.b16 %v954
    %v4406 = vunpack.c.h.b16 %v954
    %v4407 = vunpack.c.l.b16 %v955
    %v4408 = vunpack.c.h.b16 %v955
    %v4409 = vunpack.c.l.b16 %v956
    %v4410 = vunpack.c.h.b16 %v956
    %v4411 = vunpack.c.l.b16 %v957
    %v4412 = vunpack.c.h.b16 %v957
    %v4413 = vunpack.c.l.b16 %v958
    %v4414 = vunpack.c.h.b16 %v958
    %v4415 = vunpack.c.l.b16 %v959
    %v4416 = vunpack.c.h.b16 %v959
    %v4417 = vunpack.c.l.b16 %v960
    %v4418 = vunpack.c.h.b16 %v960
    %v4419 = vunpack.c.l.b16 %v961
    %v4420 = vunpack.c.h.b16 %v961
    %v4421 = vunpack.c.l.b16 %v962
    %v4422 = vunpack.c.h.b16 %v962
    %v4423 = vunpack.c.l.b16 %v963
    %v4424 = vunpack.c.h.b16 %v963
    %v4425 = vunpack.c.l.b16 %v964
    %v4426 = vunpack.c.h.b16 %v964
    %v4427 = vunpack.c.l.b16 %v965
    %v4428 = vunpack.c.h.b16 %v965
    %v4429 = vunpack.c.l.b16 %v966
    %v4430 = vunpack.c.h.b16 %v966
    %v4431 = vunpack.c.l.b16 %v967
    %v4432 = vunpack.c.h.b16 %v967
    %v4433 = vunpack.c.l.b16 %v968
    %v4434 = vunpack.c.h.b16 %v968
    %v4435 = vunpack.c.l.b16 %v969
    %v4436 = vunpack.c.h.b16 %v969
    %v4437 = vunpack.c.l.b16 %v970
    %v4438 = vunpack.c.h.b16 %v970
    %v4439 = vunpack.c.l.b16 %v971
    %v4440 = vunpack.c.h.b16 %v971
    %v4441 = vunpack.c.l.b16 %v972
    %v4442 = vunpack.c.h.b16 %v972
    %v4443 = vunpack.c.l.b16 %v973
    %v4444 = vunpack.c.h.b16 %v973
    %v4445 = vunpack.c.l.b16 %v974
    %v4446 = vunpack.c.h.b16 %v974
    %v4447 = vunpack.c.l.b16 %v975
    %v4448 = vunpack.c.h.b16 %v975
    %v4449 = vunpack.c.l.b16 %v976
    %v4450 = vunpack.c.h.b16 %v976
    %v4451 = vunpack.c.l.b16 %v977
    %v4452 = vunpack.c.h.b16 %v977
    %v4453 = vunpack.c.l.b16 %v978
    %v4454 = vunpack.c.h.b16 %v978
    %v4455 = vunpack.c.l.b16 %v979
    %v4456 = vunpack.c.h.b16 %v979
    %v4457 = vunpack.c.l.b16 %v980
    %v4458 = vunpack.c.h.b16 %v980
    %v4459 = vunpack.c.l.b16 %v981
    %v4460 = vunpack.c.h.b16 %v981
    %v4461 = vunpack.c.l.b16 %v982
    %v4462 = vunpack.c.h.b16 %v982
    %v4463 = vunpack.c.l.b16 %v983
    %v4464 = vunpack.c.h.b16 %v983
    %v4465 = vunpack.c.l.b16 %v984
    %v4466 = vunpack.c.h.b16 %v984
    %v4467 = vunpack.c.l.b16 %v985
    %v4468 = vunpack.c.h.b16 %v985
    %v4469 = vunpack.c.l.b16 %v986
    %v4470 = vunpack.c.h.b16 %v986
    %v4471 = vunpack.c.l.b16 %v987
    %v4472 = vunpack.c.h.b16 %v987
    %v4473 = vunpack.c.l.b16 %v988
    %v4474 = vunpack.c.h.b16 %v988
    %v4475 = vunpack.c.l.b16 %v989
    %v4476 = vunpack.c.h.b16 %v989
    %v4477 = vunpack.c.l.b16 %v990
    %v4478 = vunpack.c.h.b16 %v990
    %v4479 = vunpack.c.l.b16 %v991
    %v4480 = vunpack.c.h.b16 %v991
    %v4481 = vunpack.c.l.b16 %v992
    %v4482 = vunpack.c.h.b16 %v992
    %v4483 = vunpack.c.l.b16 %v993
    %v4484 = vunpack.c.h.b16 %v993
    %v4485 = vunpack.c.l.b16 %v994
    %v4486 = vunpack.c.h.b16 %v994
    %v4487 = vunpack.c.l.b16 %v995
    %v4488 = vunpack.c.h.b16 %v995
    %v4489 = vunpack.c.l.b16 %v996
    %v4490 = vunpack.c.h.b16 %v996
    %v4491 = vunpack.c.l.b16 %v997
    %v4492 = vunpack.c.h.b16 %v997
    %v4493 = vunpack.c.l.b16 %v998
    %v4494 = vunpack.c.h.b16 %v998
    %v4495 = vunpack.c.l.b16 %v999
    %v4496 = vunpack.c.h.b16 %v999
    %v4497 = vunpack.c.l.b16 %v1000
    %v4498 = vunpack.c.h.b16 %v1000
    %v4499 = vunpack.c.l.b16 %v1001
    %v4500 = vunpack.c.h.b16 %v1001
    %v4501 = vunpack.c.l.b16 %v1002
    %v4502 = vunpack.c.h.b16 %v1002
    %v4503 = vunpack.c.l.b16 %v1003
    %v4504 = vunpack.c.h.b16 %v1003
    %v4505 = vunpack.c.l.b16 %v1004
    %v4506 = vunpack.c.h.b16 %v1004
    %v4507 = vunpack.c.l.b16 %v1005
    %v4508 = vunpack.c.h.b16 %v1005
    %v4509 = vunpack.c.l.b16 %v1006
    %v4510 = vunpack.c.h.b16 %v1006
    %v4511 = vunpack.c.l.b16 %v1007
    %v4512 = vunpack.c.h.b16 %v1007
    %v4513 = vunpack.c.l.b16 %v1008
    %v4514 = vunpack.c.h.b16 %v1008
    %v4515 = vunpack.c.l.b16 %v1009
    %v4516 = vunpack.c.h.b16 %v1009
    %v4517 = vunpack.c.l.b16 %v1010
    %v4518 = vunpack.c.h.b16 %v1010
    %v4519 = vunpack.c.l.b16 %v1011
    %v4520 = vunpack.c.h.b16 %v1011
    %v4521 = vunpack.c.l.b16 %v1012
    %v4522 = vunpack.c.h.b16 %v1012
    %v4523 = vunpack.c.l.b16 %v1013
    %v4524 = vunpack.c.h.b16 %v1013
    %v4525 = vunpack.c.l.b16 %v1014
    %v4526 = vunpack.c.h.b16 %v1014
    %v4527 = vunpack.c.l.b16 %v1015
    %v4528 = vunpack.c.h.b16 %v1015
    %v4529 = vunpack.c.l.b16 %v1016
    %v4530 = vunpack.c.h.b16 %v1016
    %v4531 = vunpack.c.l.b16 %v1017
    %v4532 = vunpack.c.h.b16 %v1017
    %v4533 = vunpack.c.l.b16 %v1018
    %v4534 = vunpack.c.h.b16 %v1018
    %v4535 = vunpack.c.l.b16 %v1019
    %v4536 = vunpack.c.h.b16 %v1019
    %v4537 = vunpack.c.l.b16 %v1020
    %v4538 = vunpack.c.h.b16 %v1020
    %v4539 = vunpack.c.l.b16 %v1021
    %v4540 = vunpack.c.h.b16 %v1021
    %v4541 = vunpack.c.l.b16 %v1022
    %v4542 = vunpack.c.h.b16 %v1022
    %v4543 = vunpack.c.l.b16 %v1023
    %v4544 = vunpack.c.h.b16 %v1023
    %v4545 = vunpack.c.l.b16 %v1024
    %v4546 = vunpack.c.h.b16 %v1024
    %v4547 = vunpack.c.l.b16 %v1025
    %v4548 = vunpack.c.h.b16 %v1025
    %v4549 = vunpack.c.l.b16 %v1026
    %v4550 = vunpack.c.h.b16 %v1026
    %v4551 = vunpack.c.l.b16 %v1027
    %v4552 = vunpack.c.h.b16 %v1027
    %v4553 = vunpack.c.l.b16 %v1028
    %v4554 = vunpack.c.h.b16 %v1028
    %v4555 = vunpack.c.l.b16 %v1029
    %v4556 = vunpack.c.h.b16 %v1029
    %v4557 = vunpack.c.l.b16 %v1030
    %v4558 = vunpack.c.h.b16 %v1030
    %v4559 = vunpack.c.l.b16 %v1031
    %v4560 = vunpack.c.h.b16 %v1031
    %v4561 = vunpack.c.l.b16 %v1032
    %v4562 = vunpack.c.h.b16 %v1032
    %v4563 = vunpack.c.l.b16 %v1033
    %v4564 = vunpack.c.h.b16 %v1033
    %v4565 = vunpack.c.l.b16 %v1034
    %v4566 = vunpack.c.h.b16 %v1034
    %v4567 = vunpack.c.l.b16 %v1035
    %v4568 = vunpack.c.h.b16 %v1035
    %v4569 = vunpack.c.l.b16 %v1036
    %v4570 = vunpack.c.h.b16 %v1036
    %v4571 = vunpack.c.l.b16 %v1037
    %v4572 = vunpack.c.h.b16 %v1037
    %v4573 = vunpack.c.l.b16 %v1038
    %v4574 = vunpack.c.h.b16 %v1038
    %v4575 = vunpack.c.l.b16 %v1039
    %v4576 = vunpack.c.h.b16 %v1039
    %v4577 = vunpack.c.l.b16 %v1040
    %v4578 = vunpack.c.h.b16 %v1040
    %v4579 = vunpack.c.l.b16 %v1041
    %v4580 = vunpack.c.h.b16 %v1041
    %v4581 = vunpack.c.l.b16 %v1042
    %v4582 = vunpack.c.h.b16 %v1042
    %v4583 = vunpack.c.l.b16 %v1043
    %v4584 = vunpack.c.h.b16 %v1043
    %v4585 = vunpack.c.l.b16 %v1044
    %v4586 = vunpack.c.h.b16 %v1044
    %v4587 = vunpack.c.l.b16 %v1045
    %v4588 = vunpack.c.h.b16 %v1045
    %v4589 = vunpack.c.l.b16 %v1046
    %v4590 = vunpack.c.h.b16 %v1046
    %v4591 = vunpack.c.l.b16 %v1047
    %v4592 = vunpack.c.h.b16 %v1047
    %v4593 = vunpack.c.l.b16 %v1048
    %v4594 = vunpack.c.h.b16 %v1048
    %v4595 = vunpack.c.l.b16 %v1049
    %v4596 = vunpack.c.h.b16 %v1049
    %v4597 = vunpack.c.l.b16 %v1050
    %v4598 = vunpack.c.h.b16 %v1050
    %v4599 = vunpack.c.l.b16 %v1051
    %v4600 = vunpack.c.h.b16 %v1051
    %v4601 = vunpack.c.l.b16 %v1052
    %v4602 = vunpack.c.h.b16 %v1052
    %v4603 = vunpack.c.l.b16 %v1053
    %v4604 = vunpack.c.h.b16 %v1053
    %v4605 = vunpack.c.l.b16 %v1054
    %v4606 = vunpack.c.h.b16 %v1054
    %v4607 = vunpack.c.l.b16 %v1055
    %v4608 = vunpack.c.h.b16 %v1055
    %v4609 = vunpack.c.l.b16 %v1056
    %v4610 = vunpack.c.h.b16 %v1056
    %v4611 = vunpack.c.l.b16 %v1057
    %v4612 = vunpack.c.h.b16 %v1057
    %v4613 = vunpack.c.l.b16 %v1058
    %v4614 = vunpack.c.h.b16 %v1058
    %v4615 = vunpack.c.l.b16 %v1059
    %v4616 = vunpack.c.h.b16 %v1059
    %v4617 = vunpack.c.l.b16 %v1060
    %v4618 = vunpack.c.h.b16 %v1060
    %v4619 = vunpack.c.l.b16 %v1061
    %v4620 = vunpack.c.h.b16 %v1061
    %v4621 = vunpack.c.l.b16 %v1062
    %v4622 = vunpack.c.h.b16 %v1062
    %v4623 = vunpack.c.l.b16 %v1063
    %v4624 = vunpack.c.h.b16 %v1063
    %v4625 = vunpack.c.l.b16 %v1064
    %v4626 = vunpack.c.h.b16 %v1064
    %v4627 = vunpack.c.l.b16 %v1065
    %v4628 = vunpack.c.h.b16 %v1065
    %v4629 = vunpack.c.l.b16 %v1066
    %v4630 = vunpack.c.h.b16 %v1066
    %v4631 = vunpack.c.l.b16 %v1067
    %v4632 = vunpack.c.h.b16 %v1067
    %v4633 = vunpack.c.l.b16 %v1068
    %v4634 = vunpack.c.h.b16 %v1068
    %v4635 = vunpack.c.l.b16 %v1069
    %v4636 = vunpack.c.h.b16 %v1069
    %v4637 = vunpack.c.l.b16 %v1070
    %v4638 = vunpack.c.h.b16 %v1070
    %v4639 = vunpack.c.l.b16 %v1071
    %v4640 = vunpack.c.h.b16 %v1071
    %v4641 = vunpack.c.l.b16 %v1072
    %v4642 = vunpack.c.h.b16 %v1072
    %v4643 = vunpack.c.l.b16 %v1073
    %v4644 = vunpack.c.h.b16 %v1073
    %v4645 = vunpack.c.l.b16 %v1074
    %v4646 = vunpack.c.h.b16 %v1074
    %v4647 = vunpack.c.l.b16 %v1075
    %v4648 = vunpack.c.h.b16 %v1075
    %v4649 = vunpack.c.l.b16 %v1076
    %v4650 = vunpack.c.h.b16 %v1076
    %v4651 = vunpack.c.l.b16 %v1077
    %v4652 = vunpack.c.h.b16 %v1077
    %v4653 = vunpack.c.l.b16 %v1078
    %v4654 = vunpack.c.h.b16 %v1078
    %v4655 = vunpack.c.l.b16 %v1079
    %v4656 = vunpack.c.h.b16 %v1079
    %v4657 = vunpack.c.l.b16 %v1080
    %v4658 = vunpack.c.h.b16 %v1080
    %v4659 = vunpack.c.l.b16 %v1081
    %v4660 = vunpack.c.h.b16 %v1081
    %v4661 = vunpack.c.l.b16 %v1082
    %v4662 = vunpack.c.h.b16 %v1082
    %v4663 = vunpack.c.l.b16 %v1083
    %v4664 = vunpack.c.h.b16 %v1083
    %v4665 = vunpack.c.l.b16 %v1084
    %v4666 = vunpack.c.h.b16 %v1084
    %v4667 = vunpack.c.l.b16 %v1085
    %v4668 = vunpack.c.h.b16 %v1085
    %v4669 = vunpack.c.l.b16 %v1086
    %v4670 = vunpack.c.h.b16 %v1086
    %v4671 = vunpack.c.l.b16 %v1087
    %v4672 = vunpack.c.h.b16 %v1087
    %v4673 = vunpack.c.l.b16 %v1088
    %v4674 = vunpack.c.h.b16 %v1088
    %v4675 = vunpack.c.l.b16 %v1089
    %v4676 = vunpack.c.h.b16 %v1089
    %v4677 = vunpack.c.l.b16 %v1090
    %v4678 = vunpack.c.h.b16 %v1090
    %v4679 = vunpack.c.l.b16 %v1091
    %v4680 = vunpack.c.h.b16 %v1091
    %v4681 = vunpack.c.l.b16 %v1092
    %v4682 = vunpack.c.h.b16 %v1092
    %v4683 = vunpack.c.l.b16 %v1093
    %v4684 = vunpack.c.h.b16 %v1093
    %v4685 = vunpack.c.l.b16 %v1094
    %v4686 = vunpack.c.h.b16 %v1094
    %v4687 = vunpack.c.l.b16 %v1095
    %v4688 = vunpack.c.h.b16 %v1095
    %v4689 = vunpack.c.l.b16 %v1096
    %v4690 = vunpack.c.h.b16 %v1096
    %v4691 = vunpack.c.l.b16 %v1097
    %v4692 = vunpack.c.h.b16 %v1097
    %v4693 = vunpack.c.l.b16 %v1098
    %v4694 = vunpack.c.h.b16 %v1098
    %v4695 = vunpack.c.l.b16 %v1099
    %v4696 = vunpack.c.h.b16 %v1099
    %v4697 = vunpack.c.l.b16 %v1100
    %v4698 = vunpack.c.h.b16 %v1100
    %v4699 = vunpack.c.l.b16 %v1101
    %v4700 = vunpack.c.h.b16 %v1101
    %v4701 = vunpack.c.l.b16 %v1102
    %v4702 = vunpack.c.h.b16 %v1102
    %v4703 = vunpack.c.l.b16 %v1103
    %v4704 = vunpack.c.h.b16 %v1103
    %v4705 = vunpack.c.l.b16 %v1104
    %v4706 = vunpack.c.h.b16 %v1104
    %v4707 = vunpack.c.l.b16 %v1105
    %v4708 = vunpack.c.h.b16 %v1105
    %v4709 = vunpack.c.l.b16 %v1106
    %v4710 = vunpack.c.h.b16 %v1106
    %v4711 = vunpack.c.l.b16 %v1107
    %v4712 = vunpack.c.h.b16 %v1107
    %v4713 = vunpack.c.l.b16 %v1108
    %v4714 = vunpack.c.h.b16 %v1108
    %v4715 = vunpack.c.l.b16 %v1109
    %v4716 = vunpack.c.h.b16 %v1109
    %v4717 = vunpack.c.l.b16 %v1110
    %v4718 = vunpack.c.h.b16 %v1110
    %v4719 = vunpack.c.l.b16 %v1111
    %v4720 = vunpack.c.h.b16 %v1111
    %v4721 = vunpack.c.l.b16 %v1112
    %v4722 = vunpack.c.h.b16 %v1112
    %v4723 = vunpack.c.l.b16 %v1113
    %v4724 = vunpack.c.h.b16 %v1113
    %v4725 = vunpack.c.l.b16 %v1114
    %v4726 = vunpack.c.h.b16 %v1114
    %v4727 = vunpack.c.l.b16 %v1115
    %v4728 = vunpack.c.h.b16 %v1115
    %v4729 = vunpack.c.l.b16 %v1116
    %v4730 = vunpack.c.h.b16 %v1116
    %v4731 = vunpack.c.l.b16 %v1117
    %v4732 = vunpack.c.h.b16 %v1117
    %v4733 = vunpack.c.l.b16 %v1118
    %v4734 = vunpack.c.h.b16 %v1118
    %v4735 = vunpack.c.l.b16 %v1119
    %v4736 = vunpack.c.h.b16 %v1119
    %v4737 = vunpack.c.l.b16 %v1120
    %v4738 = vunpack.c.h.b16 %v1120
    %v4739 = vunpack.c.l.b16 %v1121
    %v4740 = vunpack.c.h.b16 %v1121
    %v4741 = vunpack.c.l.b16 %v1122
    %v4742 = vunpack.c.h.b16 %v1122
    %v4743 = vunpack.c.l.b16 %v1123
    %v4744 = vunpack.c.h.b16 %v1123
    %v4745 = vunpack.c.l.b16 %v1124
    %v4746 = vunpack.c.h.b16 %v1124
    %v4747 = vunpack.c.l.b16 %v1125
    %v4748 = vunpack.c.h.b16 %v1125
    %v4749 = vunpack.c.l.b16 %v1126
    %v4750 = vunpack.c.h.b16 %v1126
    %v4751 = vunpack.c.l.b16 %v1127
    %v4752 = vunpack.c.h.b16 %v1127
    %v4753 = vunpack.c.l.b16 %v1128
    %v4754 = vunpack.c.h.b16 %v1128
    %v4755 = vunpack.c.l.b16 %v1129
    %v4756 = vunpack.c.h.b16 %v1129
    %v4757 = vunpack.c.l.b16 %v1130
    %v4758 = vunpack.c.h.b16 %v1130
    %v4759 = vunpack.c.l.b16 %v1131
    %v4760 = vunpack.c.h.b16 %v1131
    %v4761 = vunpack.c.l.b16 %v1132
    %v4762 = vunpack.c.h.b16 %v1132
    %v4763 = vunpack.c.l.b16 %v1133
    %v4764 = vunpack.c.h.b16 %v1133
    %v4765 = vunpack.c.l.b16 %v1134
    %v4766 = vunpack.c.h.b16 %v1134
    %v4767 = vunpack.c.l.b16 %v1135
    %v4768 = vunpack.c.h.b16 %v1135
    %v4769 = vunpack.c.l.b16 %v1136
    %v4770 = vunpack.c.h.b16 %v1136
    %v4771 = vunpack.c.l.b16 %v1137
    %v4772 = vunpack.c.h.b16 %v1137
    %v4773 = vunpack.c.l.b16 %v1138
    %v4774 = vunpack.c.h.b16 %v1138
    %v4775 = vunpack.c.l.b16 %v1139
    %v4776 = vunpack.c.h.b16 %v1139
    %v4777 = vunpack.c.l.b16 %v1140
    %v4778 = vunpack.c.h.b16 %v1140
    %v4779 = vunpack.c.l.b16 %v1141
    %v4780 = vunpack.c.h.b16 %v1141
    %v4781 = vunpack.c.l.b16 %v1142
    %v4782 = vunpack.c.h.b16 %v1142
    %v4783 = vunpack.c.l.b16 %v1143
    %v4784 = vunpack.c.h.b16 %v1143
    %v4785 = vunpack.c.l.b16 %v1144
    %v4786 = vunpack.c.h.b16 %v1144
    %v4787 = vunpack.c.l.b16 %v1145
    %v4788 = vunpack.c.h.b16 %v1145
    %v4789 = vunpack.c.l.b16 %v1146
    %v4790 = vunpack.c.h.b16 %v1146
    %v4791 = vunpack.c.l.b16 %v1147
    %v4792 = vunpack.c.h.b16 %v1147
    %v4793 = vunpack.c.l.b16 %v1148
    %v4794 = vunpack.c.h.b16 %v1148
    %v4795 = vunpack.c.l.b16 %v1149
    %v4796 = vunpack.c.h.b16 %v1149
    %v4797 = vunpack.c.l.b16 %v1150
    %v4798 = vunpack.c.h.b16 %v1150
    %v4799 = vunpack.c.l.b16 %v1151
    %v4800 = vunpack.c.h.b16 %v1151
    %v4801 = vunpack.c.l.b16 %v1152
    %v4802 = vunpack.c.h.b16 %v1152
    %v4803 = vunpack.c.l.b16 %v1153
    %v4804 = vunpack.c.h.b16 %v1153
    %v4805 = vunpack.c.l.b16 %v1154
    %v4806 = vunpack.c.h.b16 %v1154
    %v4807 = vunpack.c.l.b16 %v1155
    %v4808 = vunpack.c.h.b16 %v1155
    %v4809 = vunpack.c.l.b16 %v1156
    %v4810 = vunpack.c.h.b16 %v1156
    %v4811 = vunpack.c.l.b16 %v1157
    %v4812 = vunpack.c.h.b16 %v1157
    %v4813 = vunpack.c.l.b16 %v1158
    %v4814 = vunpack.c.h.b16 %v1158
    %v4815 = vunpack.c.l.b16 %v1159
    %v4816 = vunpack.c.h.b16 %v1159
    %v4817 = vunpack.c.l.b16 %v1160
    %v4818 = vunpack.c.h.b16 %v1160
    %v4819 = vunpack.c.l.b16 %v1161
    %v4820 = vunpack.c.h.b16 %v1161
    %v4821 = vunpack.c.l.b16 %v1162
    %v4822 = vunpack.c.h.b16 %v1162
    %v4823 = vunpack.c.l.b16 %v1163
    %v4824 = vunpack.c.h.b16 %v1163
    %v4825 = vunpack.c.l.b16 %v1164
    %v4826 = vunpack.c.h.b16 %v1164
    %v4827 = vunpack.c.l.b16 %v1165
    %v4828 = vunpack.c.h.b16 %v1165
    %v4829 = vunpack.c.l.b16 %v1166
    %v4830 = vunpack.c.h.b16 %v1166
    %v4831 = vunpack.c.l.b16 %v1167
    %v4832 = vunpack.c.h.b16 %v1167
    %v4833 = vunpack.c.l.b16 %v1168
    %v4834 = vunpack.c.h.b16 %v1168
    %v4835 = vunpack.c.l.b16 %v1169
    %v4836 = vunpack.c.h.b16 %v1169
    %v4837 = vunpack.c.l.b16 %v1170
    %v4838 = vunpack.c.h.b16 %v1170
    %v4839 = vunpack.c.l.b16 %v1171
    %v4840 = vunpack.c.h.b16 %v1171
    %v4841 = vunpack.c.l.b16 %v1172
    %v4842 = vunpack.c.h.b16 %v1172
    %v4843 = vunpack.c.l.b16 %v1173
    %v4844 = vunpack.c.h.b16 %v1173
    %v4845 = vunpack.c.l.b16 %v1174
    %v4846 = vunpack.c.h.b16 %v1174
    %v4847 = vunpack.c.l.b16 %v1175
    %v4848 = vunpack.c.h.b16 %v1175
    %v4849 = vunpack.c.l.b16 %v1176
    %v4850 = vunpack.c.h.b16 %v1176
    %v4851 = vunpack.c.l.b16 %v1177
    %v4852 = vunpack.c.h.b16 %v1177
    %v4853 = vunpack.c.l.b16 %v1178
    %v4854 = vunpack.c.h.b16 %v1178
    %v4855 = vunpack.c.l.b16 %v1179
    %v4856 = vunpack.c.h.b16 %v1179
    %v4857 = vunpack.c.l.b16 %v1180
    %v4858 = vunpack.c.h.b16 %v1180
    %v4859 = vunpack.c.l.b16 %v1181
    %v4860 = vunpack.c.h.b16 %v1181
    %v4861 = vunpack.c.l.b16 %v1182
    %v4862 = vunpack.c.h.b16 %v1182
    %v4863 = vunpack.c.l.b16 %v1183
    %v4864 = vunpack.c.h.b16 %v1183
    %v4865 = vunpack.c.l.b16 %v1184
    %v4866 = vunpack.c.h.b16 %v1184
    %v4867 = vunpack.c.l.b16 %v1185
    %v4868 = vunpack.c.h.b16 %v1185
    %v4869 = vunpack.c.l.b16 %v1186
    %v4870 = vunpack.c.h.b16 %v1186
    %v4871 = vunpack.c.l.b16 %v1187
    %v4872 = vunpack.c.h.b16 %v1187
    %v4873 = vunpack.c.l.b16 %v1188
    %v4874 = vunpack.c.h.b16 %v1188
    %v4875 = vunpack.c.l.b16 %v1189
    %v4876 = vunpack.c.h.b16 %v1189
    %v4877 = vunpack.c.l.b16 %v1190
    %v4878 = vunpack.c.h.b16 %v1190
    %v4879 = vunpack.c.l.b16 %v1191
    %v4880 = vunpack.c.h.b16 %v1191
    %v4881 = vunpack.c.l.b16 %v1192
    %v4882 = vunpack.c.h.b16 %v1192
    %v4883 = vunpack.c.l.b16 %v1193
    %v4884 = vunpack.c.h.b16 %v1193
    %v4885 = vunpack.c.l.b16 %v1194
    %v4886 = vunpack.c.h.b16 %v1194
    %v4887 = vunpack.c.l.b16 %v1195
    %v4888 = vunpack.c.h.b16 %v1195
    %v4889 = vunpack.c.l.b16 %v1196
    %v4890 = vunpack.c.h.b16 %v1196
    %v4891 = vunpack.c.l.b16 %v1197
    %v4892 = vunpack.c.h.b16 %v1197
    %v4893 = vunpack.c.l.b16 %v1198
    %v4894 = vunpack.c.h.b16 %v1198
    %v4895 = vunpack.c.l.b16 %v1199
    %v4896 = vunpack.c.h.b16 %v1199
    %v4897 = vunpack.c.l.b16 %v1200
    %v4898 = vunpack.c.h.b16 %v1200
    %v4899 = vunpack.c.l.b16 %v1201
    %v4900 = vunpack.c.h.b16 %v1201
    %v4901 = vunpack.c.l.b16 %v1202
    %v4902 = vunpack.c.h.b16 %v1202
    %v4903 = vunpack.c.l.b16 %v1203
    %v4904 = vunpack.c.h.b16 %v1203
    %v4905 = vunpack.c.l.b16 %v1204
    %v4906 = vunpack.c.h.b16 %v1204
    %v4907 = vunpack.c.l.b16 %v1205
    %v4908 = vunpack.c.h.b16 %v1205
    %v4909 = vunpack.c.l.b16 %v1206
    %v4910 = vunpack.c.h.b16 %v1206
    %v4911 = vunpack.c.l.b16 %v1207
    %v4912 = vunpack.c.h.b16 %v1207
    %v4913 = vunpack.c.l.b16 %v1208
    %v4914 = vunpack.c.h.b16 %v1208
    %v4915 = vunpack.c.l.b16 %v1209
    %v4916 = vunpack.c.h.b16 %v1209
    %v4917 = vunpack.c.l.b16 %v1210
    %v4918 = vunpack.c.h.b16 %v1210
    %v4919 = vunpack.c.l.b16 %v1211
    %v4920 = vunpack.c.h.b16 %v1211
    %v4921 = vunpack.c.l.b16 %v1212
    %v4922 = vunpack.c.h.b16 %v1212
    %v4923 = vunpack.c.l.b16 %v1213
    %v4924 = vunpack.c.h.b16 %v1213
    %v4925 = vunpack.c.l.b16 %v1214
    %v4926 = vunpack.c.h.b16 %v1214
    %v4927 = vunpack.c.l.b16 %v1215
    %v4928 = vunpack.c.h.b16 %v1215
    %v4929 = vunpack.c.l.b16 %v1216
    %v4930 = vunpack.c.h.b16 %v1216
    %v4931 = vunpack.c.l.b16 %v1217
    %v4932 = vunpack.c.h.b16 %v1217
    %v4933 = vunpack.c.l.b16 %v1218
    %v4934 = vunpack.c.h.b16 %v1218
    %v4935 = vunpack.c.l.b16 %v1219
    %v4936 = vunpack.c.h.b16 %v1219
    %v4937 = vunpack.c.l.b16 %v1220
    %v4938 = vunpack.c.h.b16 %v1220
    %v4939 = vunpack.c.l.b16 %v1221
    %v4940 = vunpack.c.h.b16 %v1221
    %v4941 = vunpack.c.l.b16 %v1222
    %v4942 = vunpack.c.h.b16 %v1222
    %v4943 = vunpack.c.l.b16 %v1223
    %v4944 = vunpack.c.h.b16 %v1223
    %v4945 = vunpack.c.l.b16 %v1224
    %v4946 = vunpack.c.h.b16 %v1224
    %v4947 = vunpack.c.l.b16 %v1225
    %v4948 = vunpack.c.h.b16 %v1225
    %v4949 = vunpack.c.l.b16 %v1226
    %v4950 = vunpack.c.h.b16 %v1226
    %v4951 = vunpack.c.l.b16 %v1227
    %v4952 = vunpack.c.h.b16 %v1227
    %v4953 = vunpack.c.l.b16 %v1228
    %v4954 = vunpack.c.h.b16 %v1228
    %v4955 = vunpack.c.l.b16 %v1229
    %v4956 = vunpack.c.h.b16 %v1229
    %v4957 = vunpack.c.l.b16 %v1230
    %v4958 = vunpack.c.h.b16 %v1230
    %v4959 = vunpack.c.l.b16 %v1231
    %v4960 = vunpack.c.h.b16 %v1231
    %v4961 = vunpack.c.l.b16 %v1232
    %v4962 = vunpack.c.h.b16 %v1232
    %v4963 = vunpack.c.l.b16 %v1233
    %v4964 = vunpack.c.h.b16 %v1233
    %v4965 = vunpack.c.l.b16 %v1234
    %v4966 = vunpack.c.h.b16 %v1234
    %v4967 = vunpack.c.l.b16 %v1235
    %v4968 = vunpack.c.h.b16 %v1235
    %v4969 = vunpack.c.l.b16 %v1236
    %v4970 = vunpack.c.h.b16 %v1236
    %v4971 = vunpack.c.l.b16 %v1237
    %v4972 = vunpack.c.h.b16 %v1237
    %v4973 = vunpack.c.l.b16 %v1238
    %v4974 = vunpack.c.h.b16 %v1238
    %v4975 = vunpack.c.l.b16 %v1239
    %v4976 = vunpack.c.h.b16 %v1239
    %v4977 = vunpack.c.l.b16 %v1240
    %v4978 = vunpack.c.h.b16 %v1240
    %v4979 = vunpack.c.l.b16 %v1241
    %v4980 = vunpack.c.h.b16 %v1241
    %v4981 = vunpack.c.l.b16 %v1242
    %v4982 = vunpack.c.h.b16 %v1242
    %v4983 = vunpack.c.l.b16 %v1243
    %v4984 = vunpack.c.h.b16 %v1243
    %v4985 = vunpack.c.l.b16 %v1244
    %v4986 = vunpack.c.h.b16 %v1244
    %v4987 = vunpack.c.l.b16 %v1245
    %v4988 = vunpack.c.h.b16 %v1245
    %v4989 = vunpack.c.l.b16 %v1246
    %v4990 = vunpack.c.h.b16 %v1246
    %v4991 = vunpack.c.l.b16 %v1247
    %v4992 = vunpack.c.h.b16 %v1247
    %v4993 = vunpack.c.l.b16 %v1248
    %v4994 = vunpack.c.h.b16 %v1248
    %v4995 = vunpack.c.l.b16 %v1249
    %v4996 = vunpack.c.h.b16 %v1249
    %v4997 = vunpack.c.l.b16 %v1250
    %v4998 = vunpack.c.h.b16 %v1250
    %v4999 = vunpack.c.l.b16 %v1251
    %v5000 = vunpack.c.h.b16 %v1251
    %v5001 = vunpack.c.l.b16 %v1252
    %v5002 = vunpack.c.h.b16 %v1252
    %v5003 = vunpack.c.l.b16 %v1253
    %v5004 = vunpack.c.h.b16 %v1253
    %v5005 = vunpack.c.l.b16 %v1254
    %v5006 = vunpack.c.h.b16 %v1254
    %v5007 = vunpack.c.l.b16 %v1255
    %v5008 = vunpack.c.h.b16 %v1255
    %v5009 = vunpack.c.l.b16 %v1256
    %v5010 = vunpack.c.h.b16 %v1256
    %v5011 = vunpack.c.l.b16 %v1257
    %v5012 = vunpack.c.h.b16 %v1257
    %v5013 = vunpack.c.l.b16 %v1258
    %v5014 = vunpack.c.h.b16 %v1258
    %v5015 = vunpack.c.l.b16 %v1259
    %v5016 = vunpack.c.h.b16 %v1259
    %v5017 = vunpack.c.l.b16 %v1260
    %v5018 = vunpack.c.h.b16 %v1260
    %v5019 = vunpack.c.l.b16 %v1261
    %v5020 = vunpack.c.h.b16 %v1261
    %v5021 = vunpack.c.l.b16 %v1262
    %v5022 = vunpack.c.h.b16 %v1262
    %v5023 = vunpack.c.l.b16 %v1263
    %v5024 = vunpack.c.h.b16 %v1263
    %v5025 = vunpack.c.l.b16 %v1264
    %v5026 = vunpack.c.h.b16 %v1264
    %v5027 = vunpack.c.l.b16 %v1265
    %v5028 = vunpack.c.h.b16 %v1265
    %v5029 = vunpack.c.l.b16 %v1266
    %v5030 = vunpack.c.h.b16 %v1266
    %v5031 = vunpack.c.l.b16 %v1267
    %v5032 = vunpack.c.h.b16 %v1267
    %v5033 = vunpack.c.l.b16 %v1268
    %v5034 = vunpack.c.h.b16 %v1268
    %v5035 = vunpack.c.l.b16 %v1269
    %v5036 = vunpack.c.h.b16 %v1269
    %v5037 = vunpack.c.l.b16 %v1270
    %v5038 = vunpack.c.h.b16 %v1270
    %v5039 = vunpack.c.l.b16 %v1271
    %v5040 = vunpack.c.h.b16 %v1271
    %v5041 = vunpack.c.l.b16 %v1272
    %v5042 = vunpack.c.h.b16 %v1272
    %v5043 = vunpack.c.l.b16 %v1273
    %v5044 = vunpack.c.h.b16 %v1273
    %v5045 = vunpack.c.l.b16 %v1274
    %v5046 = vunpack.c.h.b16 %v1274
    %v5047 = vunpack.c.l.b16 %v1275
    %v5048 = vunpack.c.h.b16 %v1275
    %v5049 = vunpack.c.l.b16 %v1276
    %v5050 = vunpack.c.h.b16 %v1276
    %v5051 = vunpack.c.l.b16 %v1277
    %v5052 = vunpack.c.h.b16 %v1277
    %v5053 = vunpack.c.l.b16 %v1278
    %v5054 = vunpack.c.h.b16 %v1278
    %v5055 = vunpack.c.l.b16 %v1279
    %v5056 = vunpack.c.h.b16 %v1279
    %v5057 = vunpack.c.l.b16 %v1280
    %v5058 = vunpack.c.h.b16 %v1280
    %v5059 = vunpack.c.l.b16 %v1281
    %v5060 = vunpack.c.h.b16 %v1281
    %v5061 = vunpack.c.l.b16 %v1282
    %v5062 = vunpack.c.h.b16 %v1282
    %v5063 = vunpack.c.l.b16 %v1283
    %v5064 = vunpack.c.h.b16 %v1283
    %v5065 = vunpack.c.l.b16 %v1284
    %v5066 = vunpack.c.h.b16 %v1284
    %v5067 = vunpack.c.l.b16 %v1285
    %v5068 = vunpack.c.h.b16 %v1285
    %v5069 = vunpack.c.l.b16 %v1286
    %v5070 = vunpack.c.h.b16 %v1286
    %v5071 = vunpack.c.l.b16 %v1287
    %v5072 = vunpack.c.h.b16 %v1287
    %v5073 = vunpack.c.l.b16 %v1288
    %v5074 = vunpack.c.h.b16 %v1288
    %v5075 = vunpack.c.l.b16 %v1289
    %v5076 = vunpack.c.h.b16 %v1289
    %v5077 = vunpack.c.l.b16 %v1290
    %v5078 = vunpack.c.h.b16 %v1290
    %v5079 = vunpack.c.l.b16 %v1291
    %v5080 = vunpack.c.h.b16 %v1291
    %v5081 = vunpack.c.l.b16 %v1292
    %v5082 = vunpack.c.h.b16 %v1292
    %v5083 = vunpack.c.l.b16 %v1293
    %v5084 = vunpack.c.h.b16 %v1293
    %v5085 = vunpack.c.l.b16 %v1294
    %v5086 = vunpack.c.h.b16 %v1294
    %v5087 = vunpack.c.l.b16 %v1295
    %v5088 = vunpack.c.h.b16 %v1295
    %v5089 = vunpack.c.l.b16 %v1296
    %v5090 = vunpack.c.h.b16 %v1296
    %v5091 = vunpack.c.l.b16 %v1297
    %v5092 = vunpack.c.h.b16 %v1297
    %v5093 = vunpack.c.l.b16 %v1298
    %v5094 = vunpack.c.h.b16 %v1298
    %v5095 = vunpack.c.l.b16 %v1299
    %v5096 = vunpack.c.h.b16 %v1299
    %v5097 = vunpack.c.l.b16 %v1300
    %v5098 = vunpack.c.h.b16 %v1300
    %v5099 = vunpack.c.l.b16 %v1301
    %v5100 = vunpack.c.h.b16 %v1301
    %v5101 = vunpack.c.l.b16 %v1302
    %v5102 = vunpack.c.h.b16 %v1302
    %v5103 = vunpack.c.l.b16 %v1303
    %v5104 = vunpack.c.h.b16 %v1303
    %v5105 = vunpack.c.l.b16 %v1304
    %v5106 = vunpack.c.h.b16 %v1304
    %v5107 = vunpack.c.l.b16 %v1305
    %v5108 = vunpack.c.h.b16 %v1305
    %v5109 = vunpack.c.l.b16 %v1306
    %v5110 = vunpack.c.h.b16 %v1306
    %v5111 = vunpack.c.l.b16 %v1307
    %v5112 = vunpack.c.h.b16 %v1307
    %v5113 = vunpack.c.l.b16 %v1308
    %v5114 = vunpack.c.h.b16 %v1308
    %v5115 = vunpack.c.l.b16 %v1309
    %v5116 = vunpack.c.h.b16 %v1309
    %v5117 = vunpack.c.l.b16 %v1310
    %v5118 = vunpack.c.h.b16 %v1310
    %v5119 = vunpack.c.l.b16 %v1311
    %v5120 = vunpack.c.h.b16 %v1311
    %v5121 = vunpack.c.l.b16 %v1312
    %v5122 = vunpack.c.h.b16 %v1312
    %v5123 = vunpack.c.l.b16 %v1313
    %v5124 = vunpack.c.h.b16 %v1313
    %v5125 = vunpack.c.l.b16 %v1314
    %v5126 = vunpack.c.h.b16 %v1314
    %v5127 = vunpack.c.l.b16 %v1315
    %v5128 = vunpack.c.h.b16 %v1315
    %v5129 = vunpack.c.l.b16 %v1316
    %v5130 = vunpack.c.h.b16 %v1316
    %v5131 = vunpack.c.l.b16 %v1317
    %v5132 = vunpack.c.h.b16 %v1317
    %v5133 = vunpack.c.l.b16 %v1318
    %v5134 = vunpack.c.h.b16 %v1318
    %v5135 = vunpack.c.l.b16 %v1319
    %v5136 = vunpack.c.h.b16 %v1319
    %v5137 = vunpack.c.l.b16 %v1320
    %v5138 = vunpack.c.h.b16 %v1320
    %v5139 = vunpack.c.l.b16 %v1321
    %v5140 = vunpack.c.h.b16 %v1321
    %v5141 = vunpack.c.l.b16 %v1322
    %v5142 = vunpack.c.h.b16 %v1322
    %v5143 = vunpack.c.l.b16 %v1323
    %v5144 = vunpack.c.h.b16 %v1323
    %v5145 = vunpack.c.l.b16 %v1324
    %v5146 = vunpack.c.h.b16 %v1324
    %v5147 = vunpack.c.l.b16 %v1325
    %v5148 = vunpack.c.h.b16 %v1325
    %v5149 = vunpack.c.l.b16 %v1326
    %v5150 = vunpack.c.h.b16 %v1326
    %v5151 = vunpack.c.l.b16 %v1327
    %v5152 = vunpack.c.h.b16 %v1327
    %v5153 = vunpack.c.l.b16 %v1328
    %v5154 = vunpack.c.h.b16 %v1328
    %v5155 = vunpack.c.l.b16 %v1329
    %v5156 = vunpack.c.h.b16 %v1329
    %v5157 = vunpack.c.l.b16 %v1330
    %v5158 = vunpack.c.h.b16 %v1330
    %v5159 = vunpack.c.l.b16 %v1331
    %v5160 = vunpack.c.h.b16 %v1331
    %v5161 = vunpack.c.l.b16 %v1332
    %v5162 = vunpack.c.h.b16 %v1332
    %v5163 = vunpack.c.l.b16 %v1333
    %v5164 = vunpack.c.h.b16 %v1333
    %v5165 = vunpack.c.l.b16 %v1334
    %v5166 = vunpack.c.h.b16 %v1334
    %v5167 = vunpack.c.l.b16 %v1335
    %v5168 = vunpack.c.h.b16 %v1335
    %v5169 = vunpack.c.l.b16 %v1336
    %v5170 = vunpack.c.h.b16 %v1336
    %v5171 = vunpack.c.l.b16 %v1337
    %v5172 = vunpack.c.h.b16 %v1337
    %v5173 = vunpack.c.l.b16 %v1338
    %v5174 = vunpack.c.h.b16 %v1338
    %v5175 = vunpack.c.l.b16 %v1339
    %v5176 = vunpack.c.h.b16 %v1339
    %v5177 = vunpack.c.l.b16 %v1340
    %v5178 = vunpack.c.h.b16 %v1340
    %v5179 = vunpack.c.l.b16 %v1341
    %v5180 = vunpack.c.h.b16 %v1341
    %v5181 = vunpack.c.l.b16 %v1342
    %v5182 = vunpack.c.h.b16 %v1342
    %v5183 = vunpack.c.l.b16 %v1343
    %v5184 = vunpack.c.h.b16 %v1343
    %v5185 = vunpack.c.l.b16 %v1344
    %v5186 = vunpack.c.h.b16 %v1344
    %v5187 = vunpack.c.l.b16 %v1345
    %v5188 = vunpack.c.h.b16 %v1345
    %v5189 = vunpack.c.l.b16 %v1346
    %v5190 = vunpack.c.h.b16 %v1346
    %v5191 = vunpack.c.l.b16 %v1347
    %v5192 = vunpack.c.h.b16 %v1347
    %v5193 = vunpack.c.l.b16 %v1348
    %v5194 = vunpack.c.h.b16 %v1348
    %v5195 = vunpack.c.l.b16 %v1349
    %v5196 = vunpack.c.h.b16 %v1349
    %v5197 = vunpack.c.l.b16 %v1350
    %v5198 = vunpack.c.h.b16 %v1350
    %v5199 = vunpack.c.l.b16 %v1351
    %v5200 = vunpack.c.h.b16 %v1351
    %v5201 = vunpack.c.l.b16 %v1352
    %v5202 = vunpack.c.h.b16 %v1352
    %v5203 = vunpack.c.l.b16 %v1353
    %v5204 = vunpack.c.h.b16 %v1353
    %v5205 = vunpack.c.l.b16 %v1354
    %v5206 = vunpack.c.h.b16 %v1354
    %v5207 = vunpack.c.l.b16 %v1355
    %v5208 = vunpack.c.h.b16 %v1355
    %v5209 = vunpack.c.l.b16 %v1356
    %v5210 = vunpack.c.h.b16 %v1356
    %v5211 = vunpack.c.l.b16 %v1357
    %v5212 = vunpack.c.h.b16 %v1357
    %v5213 = vunpack.c.l.b16 %v1358
    %v5214 = vunpack.c.h.b16 %v1358
    %v5215 = vunpack.c.l.b16 %v1359
    %v5216 = vunpack.c.h.b16 %v1359
    %v5217 = vunpack.c.l.b16 %v1360
    %v5218 = vunpack.c.h.b16 %v1360
    %v5219 = vunpack.c.l.b16 %v1361
    %v5220 = vunpack.c.h.b16 %v1361
    %v5221 = vunpack.c.l.b16 %v1362
    %v5222 = vunpack.c.h.b16 %v1362
    %v5223 = vunpack.c.l.b16 %v1363
    %v5224 = vunpack.c.h.b16 %v1363
    %v5225 = vunpack.c.l.b16 %v1364
    %v5226 = vunpack.c.h.b16 %v1364
    %v5227 = vunpack.c.l.b16 %v1365
    %v5228 = vunpack.c.h.b16 %v1365
    %v5229 = vunpack.c.l.b16 %v1366
    %v5230 = vunpack.c.h.b16 %v1366
    %v5231 = vunpack.c.l.b16 %v1367
    %v5232 = vunpack.c.h.b16 %v1367
    %v5233 = vunpack.c.l.b16 %v1368
    %v5234 = vunpack.c.h.b16 %v1368
    %v5235 = vunpack.c.l.b16 %v1369
    %v5236 = vunpack.c.h.b16 %v1369
    %v5237 = vunpack.c.l.b16 %v1370
    %v5238 = vunpack.c.h.b16 %v1370
    %v5239 = vunpack.c.l.b16 %v1371
    %v5240 = vunpack.c.h.b16 %v1371
    %v5241 = vunpack.c.l.b16 %v1372
    %v5242 = vunpack.c.h.b16 %v1372
    %v5243 = vunpack.c.l.b16 %v1373
    %v5244 = vunpack.c.h.b16 %v1373
    %v5245 = vunpack.c.l.b16 %v1374
    %v5246 = vunpack.c.h.b16 %v1374
    %v5247 = vunpack.c.l.b16 %v1375
    %v5248 = vunpack.c.h.b16 %v1375
    %v5249 = vunpack.c.l.b16 %v1376
    %v5250 = vunpack.c.h.b16 %v1376
    %v5251 = vunpack.c.l.b16 %v1377
    %v5252 = vunpack.c.h.b16 %v1377
    %v5253 = vunpack.c.l.b16 %v1378
    %v5254 = vunpack.c.h.b16 %v1378
    %v5255 = vunpack.c.l.b16 %v1379
    %v5256 = vunpack.c.h.b16 %v1379
    %v5257 = vunpack.c.l.b16 %v1380
    %v5258 = vunpack.c.h.b16 %v1380
    %v5259 = vunpack.c.l.b16 %v1381
    %v5260 = vunpack.c.h.b16 %v1381
    %v5261 = vunpack.c.l.b16 %v1382
    %v5262 = vunpack.c.h.b16 %v1382
    %v5263 = vunpack.c.l.b16 %v1383
    %v5264 = vunpack.c.h.b16 %v1383
    %v5265 = vunpack.c.l.b16 %v1384
    %v5266 = vunpack.c.h.b16 %v1384
    %v5267 = vunpack.c.l.b16 %v1385
    %v5268 = vunpack.c.h.b16 %v1385
    %v5269 = vunpack.c.l.b16 %v1386
    %v5270 = vunpack.c.h.b16 %v1386
    %v5271 = vunpack.c.l.b16 %v1387
    %v5272 = vunpack.c.h.b16 %v1387
    %v5273 = vunpack.c.l.b16 %v1388
    %v5274 = vunpack.c.h.b16 %v1388
    %v5275 = vunpack.c.l.b16 %v1389
    %v5276 = vunpack.c.h.b16 %v1389
    %v5277 = vunpack.c.l.b16 %v1390
    %v5278 = vunpack.c.h.b16 %v1390
    %v5279 = vunpack.c.l.b16 %v1391
    %v5280 = vunpack.c.h.b16 %v1391
    %v5281 = vunpack.c.l.b16 %v1392
    %v5282 = vunpack.c.h.b16 %v1392
    %v5283 = vunpack.c.l.b16 %v1393
    %v5284 = vunpack.c.h.b16 %v1393
    %v5285 = vunpack.c.l.b16 %v1394
    %v5286 = vunpack.c.h.b16 %v1394
    %v5287 = vunpack.c.l.b16 %v1395
    %v5288 = vunpack.c.h.b16 %v1395
    %v5289 = vunpack.c.l.b16 %v1396
    %v5290 = vunpack.c.h.b16 %v1396
    %v5291 = vunpack.c.l.b16 %v1397
    %v5292 = vunpack.c.h.b16 %v1397
    %v5293 = vunpack.c.l.b16 %v1398
    %v5294 = vunpack.c.h.b16 %v1398
    %v5295 = vunpack.c.l.b16 %v1399
    %v5296 = vunpack.c.h.b16 %v1399
    %v5297 = vunpack.c.l.b16 %v1400
    %v5298 = vunpack.c.h.b16 %v1400
    %v5299 = vunpack.c.l.b16 %v1401
    %v5300 = vunpack.c.h.b16 %v1401
    %v5301 = vunpack.c.l.b16 %v1402
    %v5302 = vunpack.c.h.b16 %v1402
    %v5303 = vunpack.c.l.b16 %v1403
    %v5304 = vunpack.c.h.b16 %v1403
    %v5305 = vunpack.c.l.b16 %v1404
    %v5306 = vunpack.c.h.b16 %v1404
    %v5307 = vunpack.c.l.b16 %v1405
    %v5308 = vunpack.c.h.b16 %v1405
    %v5309 = vunpack.c.l.b16 %v1406
    %v5310 = vunpack.c.h.b16 %v1406
    %v5311 = vunpack.c.l.b16 %v1407
    %v5312 = vunpack.c.h.b16 %v1407
    %v5313 = vunpack.c.l.b16 %v1408
    %v5314 = vunpack.c.h.b16 %v1408
    %v5315 = vunpack.c.l.b16 %v1409
    %v5316 = vunpack.c.h.b16 %v1409
    %v5317 = vunpack.c.l.b16 %v1410
    %v5318 = vunpack.c.h.b16 %v1410
    %v5319 = vunpack.c.l.b16 %v1411
    %v5320 = vunpack.c.h.b16 %v1411
    %v5321 = vunpack.c.l.b16 %v1412
    %v5322 = vunpack.c.h.b16 %v1412
    %v5323 = vunpack.c.l.b16 %v1413
    %v5324 = vunpack.c.h.b16 %v1413
    %v5325 = vunpack.c.l.b16 %v1414
    %v5326 = vunpack.c.h.b16 %v1414
    %v5327 = vunpack.c.l.b16 %v1415
    %v5328 = vunpack.c.h.b16 %v1415
    %v5329 = vunpack.c.l.b16 %v1416
    %v5330 = vunpack.c.h.b16 %v1416
    %v5331 = vunpack.c.l.b16 %v1417
    %v5332 = vunpack.c.h.b16 %v1417
    %v5333 = vunpack.c.l.b16 %v1418
    %v5334 = vunpack.c.h.b16 %v1418
    %v5335 = vunpack.c.l.b16 %v1419
    %v5336 = vunpack.c.h.b16 %v1419
    %v5337 = vunpack.c.l.b16 %v1420
    %v5338 = vunpack.c.h.b16 %v1420
    %v5339 = vunpack.c.l.b16 %v1421
    %v5340 = vunpack.c.h.b16 %v1421
    %v5341 = vunpack.c.l.b16 %v1422
    %v5342 = vunpack.c.h.b16 %v1422
    %v5343 = vunpack.c.l.b16 %v1423
    %v5344 = vunpack.c.h.b16 %v1423
    %v5345 = vunpack.c.l.b16 %v1424
    %v5346 = vunpack.c.h.b16 %v1424
    %v5347 = vunpack.c.l.b16 %v1425
    %v5348 = vunpack.c.h.b16 %v1425
    %v5349 = vunpack.c.l.b16 %v1426
    %v5350 = vunpack.c.h.b16 %v1426
    %v5351 = vunpack.c.l.b16 %v1427
    %v5352 = vunpack.c.h.b16 %v1427
    %v5353 = vunpack.c.l.b16 %v1428
    %v5354 = vunpack.c.h.b16 %v1428
    %v5355 = vunpack.c.l.b16 %v1429
    %v5356 = vunpack.c.h.b16 %v1429
    %v5357 = vunpack.c.l.b16 %v1430
    %v5358 = vunpack.c.h.b16 %v1430
    %v5359 = vunpack.c.l.b16 %v1431
    %v5360 = vunpack.c.h.b16 %v1431
    %v5361 = vunpack.c.l.b16 %v1432
    %v5362 = vunpack.c.h.b16 %v1432
    %v5363 = vunpack.c.l.b16 %v1433
    %v5364 = vunpack.c.h.b16 %v1433
    %v5365 = vunpack.c.l.b16 %v1434
    %v5366 = vunpack.c.h.b16 %v1434
    %v5367 = vunpack.c.l.b16 %v1435
    %v5368 = vunpack.c.h.b16 %v1435
    %v5369 = vunpack.c.l.b16 %v1436
    %v5370 = vunpack.c.h.b16 %v1436
    %v5371 = vunpack.c.l.b16 %v1437
    %v5372 = vunpack.c.h.b16 %v1437
    %v5373 = vunpack.c.l.b16 %v1438
    %v5374 = vunpack.c.h.b16 %v1438
    %v5375 = vunpack.c.l.b16 %v1439
    %v5376 = vunpack.c.h.b16 %v1439
    %v5377 = vunpack.c.l.b16 %v1440
    %v5378 = vunpack.c.h.b16 %v1440
    %v5379 = vunpack.c.l.b16 %v1441
    %v5380 = vunpack.c.h.b16 %v1441
    %v5381 = vunpack.c.l.b16 %v1442
    %v5382 = vunpack.c.h.b16 %v1442
    %v5383 = vunpack.c.l.b16 %v1443
    %v5384 = vunpack.c.h.b16 %v1443
    %v5385 = vunpack.c.l.b16 %v1444
    %v5386 = vunpack.c.h.b16 %v1444
    %v5387 = vunpack.c.l.b16 %v1445
    %v5388 = vunpack.c.h.b16 %v1445
    %v5389 = vunpack.c.l.b16 %v1446
    %v5390 = vunpack.c.h.b16 %v1446
    %v5391 = vunpack.c.l.b16 %v1447
    %v5392 = vunpack.c.h.b16 %v1447
    %v5393 = vunpack.c.l.b16 %v1448
    %v5394 = vunpack.c.h.b16 %v1448
    %v5395 = vunpack.c.l.b16 %v1449
    %v5396 = vunpack.c.h.b16 %v1449
    %v5397 = vunpack.c.l.b16 %v1450
    %v5398 = vunpack.c.h.b16 %v1450
    %v5399 = vunpack.c.l.b16 %v1451
    %v5400 = vunpack.c.h.b16 %v1451
    %v5401 = vunpack.c.l.b16 %v1452
    %v5402 = vunpack.c.h.b16 %v1452
    %v5403 = vunpack.c.l.b16 %v1453
    %v5404 = vunpack.c.h.b16 %v1453
    %v5405 = vunpack.c.l.b16 %v1454
    %v5406 = vunpack.c.h.b16 %v1454
    %v5407 = vunpack.c.l.b16 %v1455
    %v5408 = vunpack.c.h.b16 %v1455
    %v5409 = vunpack.c.l.b16 %v1456
    %v5410 = vunpack.c.h.b16 %v1456
    %v5411 = vunpack.c.l.b16 %v1457
    %v5412 = vunpack.c.h.b16 %v1457
    %v5413 = vunpack.c.l.b16 %v1458
    %v5414 = vunpack.c.h.b16 %v1458
    %v5415 = vunpack.c.l.b16 %v1459
    %v5416 = vunpack.c.h.b16 %v1459
    %v5417 = vunpack.c.l.b16 %v1460
    %v5418 = vunpack.c.h.b16 %v1460
    %v5419 = vunpack.c.l.b16 %v1461
    %v5420 = vunpack.c.h.b16 %v1461
    %v5421 = vunpack.c.l.b16 %v1462
    %v5422 = vunpack.c.h.b16 %v1462
    %v5423 = vunpack.c.l.b16 %v1463
    %v5424 = vunpack.c.h.b16 %v1463
    %v5425 = vunpack.c.l.b16 %v1464
    %v5426 = vunpack.c.h.b16 %v1464
    %v5427 = vunpack.c.l.b16 %v1465
    %v5428 = vunpack.c.h.b16 %v1465
    %v5429 = vunpack.c.l.b16 %v1466
    %v5430 = vunpack.c.h.b16 %v1466
    %v5431 = vunpack.c.l.b16 %v1467
    %v5432 = vunpack.c.h.b16 %v1467
    %v5433 = vunpack.c.l.b16 %v1468
    %v5434 = vunpack.c.h.b16 %v1468
    %v5435 = vunpack.c.l.b16 %v1469
    %v5436 = vunpack.c.h.b16 %v1469
    %v5437 = vunpack.c.l.b16 %v1470
    %v5438 = vunpack.c.h.b16 %v1470
    %v5439 = vunpack.c.l.b16 %v1471
    %v5440 = vunpack.c.h.b16 %v1471
    %v5441 = vunpack.c.l.b16 %v1472
    %v5442 = vunpack.c.h.b16 %v1472
    %v5443 = vunpack.c.l.b16 %v1473
    %v5444 = vunpack.c.h.b16 %v1473
    %v5445 = vunpack.c.l.b16 %v1474
    %v5446 = vunpack.c.h.b16 %v1474
    %v5447 = vunpack.c.l.b16 %v1475
    %v5448 = vunpack.c.h.b16 %v1475
    %v5449 = vunpack.c.l.b16 %v1476
    %v5450 = vunpack.c.h.b16 %v1476
    %v5451 = vunpack.c.l.b16 %v1477
    %v5452 = vunpack.c.h.b16 %v1477
    %v5453 = vunpack.c.l.b16 %v1478
    %v5454 = vunpack.c.h.b16 %v1478
    %v5455 = vunpack.c.l.b16 %v1479
    %v5456 = vunpack.c.h.b16 %v1479
    %v5457 = vunpack.c.l.b16 %v1480
    %v5458 = vunpack.c.h.b16 %v1480
    %v5459 = vunpack.c.l.b16 %v1481
    %v5460 = vunpack.c.h.b16 %v1481
    %v5461 = vunpack.c.l.b16 %v1482
    %v5462 = vunpack.c.h.b16 %v1482
    %v5463 = vunpack.c.l.b16 %v1483
    %v5464 = vunpack.c.h.b16 %v1483
    %v5465 = vunpack.c.l.b16 %v1484
    %v5466 = vunpack.c.h.b16 %v1484
    %v5467 = vunpack.c.l.b16 %v1485
    %v5468 = vunpack.c.h.b16 %v1485
    %v5469 = vunpack.c.l.b16 %v1486
    %v5470 = vunpack.c.h.b16 %v1486
    %v5471 = vunpack.c.l.b16 %v1487
    %v5472 = vunpack.c.h.b16 %v1487
    %v5473 = vunpack.c.l.b16 %v1488
    %v5474 = vunpack.c.h.b16 %v1488
    %v5475 = vunpack.c.l.b16 %v1489
    %v5476 = vunpack.c.h.b16 %v1489
    %v5477 = vunpack.c.l.b16 %v1490
    %v5478 = vunpack.c.h.b16 %v1490
    %v5479 = vunpack.c.l.b16 %v1491
    %v5480 = vunpack.c.h.b16 %v1491
    %v5481 = vunpack.c.l.b16 %v1492
    %v5482 = vunpack.c.h.b16 %v1492
    %v5483 = vunpack.c.l.b16 %v1493
    %v5484 = vunpack.c.h.b16 %v1493
    %v5485 = vunpack.c.l.b16 %v1494
    %v5486 = vunpack.c.h.b16 %v1494
    %v5487 = vunpack.c.l.b16 %v1495
    %v5488 = vunpack.c.h.b16 %v1495
    %v5489 = vunpack.c.l.b16 %v1496
    %v5490 = vunpack.c.h.b16 %v1496
    %v5491 = vunpack.c.l.b16 %v1497
    %v5492 = vunpack.c.h.b16 %v1497
    %v5493 = vunpack.c.l.b16 %v1498
    %v5494 = vunpack.c.h.b16 %v1498
    %v5495 = vunpack.c.l.b16 %v1499
    %v5496 = vunpack.c.h.b16 %v1499
    %v5497 = vunpack.c.l.b16 %v1500
    %v5498 = vunpack.c.h.b16 %v1500
    %v5499 = vunpack.c.l.b16 %v1501
    %v5500 = vunpack.c.h.b16 %v1501
    %v5501 = vunpack.c.l.b16 %v1502
    %v5502 = vunpack.c.h.b16 %v1502
    %v5503 = vunpack.c.l.b16 %v1503
    %v5504 = vunpack.c.h.b16 %v1503
    %v5505 = vunpack.c.l.b16 %v1504
    %v5506 = vunpack.c.h.b16 %v1504
    %v5507 = vpack.c.b16 %v2875, %v2867
    %v5508 = vpack.c.b16 %v2876, %v2868
    %v5509 = vpack.c.b16 %v2877, %v2869
    %v5510 = vpack.c.b16 %v2878, %v2870
    %v5511 = vpack.c.b16 %v2879, %v2871
    %v5512 = vpack.c.b16 %v2880, %v2872
    %v5513 = vpack.c.b16 %v2881, %v2873
    %v5514 = vpack.c.b16 %v2882, %v2874
    %v5515 = vpack.c.b16 %v2891, %v2883
    %v5516 = vpack.c.b16 %v2892, %v2884
    %v5517 = vpack.c.b16 %v2893, %v2885
    %v5518 = vpack.c.b16 %v2894, %v2886
    %v5519 = vpack.c.b16 %v2895, %v2887
    %v5520 = vpack.c.b16 %v2896, %v2888
    %v5521 = vpack.c.b16 %v2897, %v2889
    %v5522 = vpack.c.b16 %v2898, %v2890
    %v5523 = vpack.c.b16 %v2907, %v2899
    %v5524 = vpack.c.b16 %v2908, %v2900
    %v5525 = vpack.c.b16 %v2909, %v2901
    %v5526 = vpack.c.b16 %v2910, %v2902
    %v5527 = vpack.c.b16 %v2911, %v2903
    %v5528 = vpack.c.b16 %v2912, %v2904
    %v5529 = vpack.c.b16 %v2913, %v2905
    %v5530 = vpack.c.b16 %v2914, %v2906
    %v5531 = vpack.c.b16 %v2923, %v2915
    %v5532 = vpack.c.b16 %v2924, %v2916
    %v5533 = vpack.c.b16 %v2925, %v2917
    %v5534 = vpack.c.b16 %v2926, %v2918
    %v5535 = vpack.c.b16 %v2927, %v2919
    %v5536 = vpack.c.b16 %v2928, %v2920
    %v5537 = vpack.c.b16 %v2929, %v2921
    %v5538 = vpack.c.b16 %v2930, %v2922
    %v5539 = vpack.c.b16 %v2939, %v2931
    %v5540 = vpack.c.b16 %v2940, %v2932
    %v5541 = vpack.c.b16 %v2941, %v2933
    %v5542 = vpack.c.b16 %v2942, %v2934
    %v5543 = vpack.c.b16 %v2943, %v2935
    %v5544 = vpack.c.b16 %v2944, %v2936
    %v5545 = vpack.c.b16 %v2945, %v2937
    %v5546 = vpack.c.b16 %v2946, %v2938
    %v5547 = vpack.c.b16 %v2955, %v2947
    %v5548 = vpack.c.b16 %v2956, %v2948
    %v5549 = vpack.c.b16 %v2957, %v2949
    %v5550 = vpack.c.b16 %v2958, %v2950
    %v5551 = vpack.c.b16 %v2959, %v2951
    %v5552 = vpack.c.b16 %v2960, %v2952
    %v5553 = vpack.c.b16 %v2961, %v2953
    %v5554 = vpack.c.b16 %v2962, %v2954
    %v5555 = vpack.c.b16 %v2971, %v2963
    %v5556 = vpack.c.b16 %v2972, %v2964
    %v5557 = vpack.c.b16 %v2973, %v2965
    %v5558 = vpack.c.b16 %v2974, %v2966
    %v5559 = vpack.c.b16 %v2975, %v2967
    %v5560 = vpack.c.b16 %v2976, %v2968
    %v5561 = vpack.c.b16 %v2977, %v2969
    %v5562 = vpack.c.b16 %v2978, %v2970
    %v5563 = vpack.c.b16 %v2987, %v2979
    %v5564 = vpack.c.b16 %v2988, %v2980
    %v5565 = vpack.c.b16 %v2989, %v2981
    %v5566 = vpack.c.b16 %v2990, %v2982
    %v5567 = vpack.c.b16 %v2991, %v2983
    %v5568 = vpack.c.b16 %v2992, %v2984
    %v5569 = vpack.c.b16 %v2993, %v2985
    %v5570 = vpack.c.b16 %v2994, %v2986
    %v5571 = vpack.c.b16 %v3003, %v2995
    %v5572 = vpack.c.b16 %v3004, %v2996
    %v5573 = vpack.c.b16 %v3005, %v2997
    %v5574 = vpack.c.b16 %v3006, %v2998
    %v5575 = vpack.c.b16 %v3007, %v2999
    %v5576 = vpack.c.b16 %v3008, %v3000
    %v5577 = vpack.c.b16 %v3009, %v3001
    %v5578 = vpack.c.b16 %v3010, %v3002
    %v5579 = vpack.c.b16 %v3019, %v3011
    %v5580 = vpack.c.b16 %v3020, %v3012
    %v5581 = vpack.c.b16 %v3021, %v3013
    %v5582 = vpack.c.b16 %v3022, %v3014
    %v5583 = vpack.c.b16 %v3023, %v3015
    %v5584 = vpack.c.b16 %v3024, %v3016
    %v5585 = vpack.c.b16 %v3025, %v3017
    %v5586 = vpack.c.b16 %v3026, %v3018
    %v5587 = vpack.c.b16 %v3035, %v3027
    %v5588 = vpack.c.b16 %v3036, %v3028
    %v5589 = vpack.c.b16 %v3037, %v3029
    %v5590 = vpack.c.b16 %v3038, %v3030
    %v5591 = vpack.c.b16 %v3039, %v3031
    %v5592 = vpack.c.b16 %v3040, %v3032
    %v5593 = vpack.c.b16 %v3041, %v3033
    %v5594 = vpack.c.b16 %v3042, %v3034
    %v5595 = vpack.c.b16 %v3051, %v3043
    %v5596 = vpack.c.b16 %v3052, %v3044
    %v5597 = vpack.c.b16 %v3053, %v3045
    %v5598 = vpack.c.b16 %v3054, %v3046
    %v5599 = vpack.c.b16 %v3055, %v3047
    %v5600 = vpack.c.b16 %v3056, %v3048
    %v5601 = vpack.c.b16 %v3057, %v3049
    %v5602 = vpack.c.b16 %v3058, %v3050
    %v5603 = vpack.c.b16 %v3067, %v3059
    %v5604 = vpack.c.b16 %v3068, %v3060
    %v5605 = vpack.c.b16 %v3069, %v3061
    %v5606 = vpack.c.b16 %v3070, %v3062
    %v5607 = vpack.c.b16 %v3071, %v3063
    %v5608 = vpack.c.b16 %v3072, %v3064
    %v5609 = vpack.c.b16 %v3073, %v3065
    %v5610 = vpack.c.b16 %v3074, %v3066
    %v5611 = vpack.c.b16 %v3083, %v3075
    %v5612 = vpack.c.b16 %v3084, %v3076
    %v5613 = vpack.c.b16 %v3085, %v3077
    %v5614 = vpack.c.b16 %v3086, %v3078
    %v5615 = vpack.c.b16 %v3087, %v3079
    %v5616 = vpack.c.b16 %v3088, %v3080
    %v5617 = vpack.c.b16 %v3089, %v3081
    %v5618 = vpack.c.b16 %v3090, %v3082
    %v5619 = vpack.c.b16 %v3099, %v3091
    %v5620 = vpack.c.b16 %v3100, %v3092
    %v5621 = vpack.c.b16 %v3101, %v3093
    %v5622 = vpack.c.b16 %v3102, %v3094
    %v5623 = vpack.c.b16 %v3103, %v3095
    %v5624 = vpack.c.b16 %v3104, %v3096
    %v5625 = vpack.c.b16 %v3105, %v3097
    %v5626 = vpack.c.b16 %v3106, %v3098
    %v5627 = vpack.c.b16 %v3115, %v3107
    %v5628 = vpack.c.b16 %v3116, %v3108
    %v5629 = vpack.c.b16 %v3117, %v3109
    %v5630 = vpack.c.b16 %v3118, %v3110
    %v5631 = vpack.c.b16 %v3119, %v3111
    %v5632 = vpack.c.b16 %v3120, %v3112
    %v5633 = vpack.c.b16 %v3121, %v3113
    %v5634 = vpack.c.b16 %v3122, %v3114
    %v5635 = vpack.c.b16 %v3131, %v3123
    %v5636 = vpack.c.b16 %v3132, %v3124
    %v5637 = vpack.c.b16 %v3133, %v3125
    %v5638 = vpack.c.b16 %v3134, %v3126
    %v5639 = vpack.c.b16 %v3135, %v3127
    %v5640 = vpack.c.b16 %v3136, %v3128
    %v5641 = vpack.c.b16 %v3137, %v3129
    %v5642 = vpack.c.b16 %v3138, %v3130
    %v5643 = vpack.c.b16 %v3147, %v3139
    %v5644 = vpack.c.b16 %v3148, %v3140
    %v5645 = vpack.c.b16 %v3149, %v3141
    %v5646 = vpack.c.b16 %v3150, %v3142
    %v5647 = vpack.c.b16 %v3151, %v3143
    %v5648 = vpack.c.b16 %v3152, %v3144
    %v5649 = vpack.c.b16 %v3153, %v3145
    %v5650 = vpack.c.b16 %v3154, %v3146
    %v5651 = vpack.c.b16 %v3163, %v3155
    %v5652 = vpack.c.b16 %v3164, %v3156
    %v5653 = vpack.c.b16 %v3165, %v3157
    %v5654 = vpack.c.b16 %v3166, %v3158
    %v5655 = vpack.c.b16 %v3167, %v3159
    %v5656 = vpack.c.b16 %v3168, %v3160
    %v5657 = vpack.c.b16 %v3169, %v3161
    %v5658 = vpack.c.b16 %v3170, %v3162
    %v5659 = vpack.c.b16 %v3179, %v3171
    %v5660 = vpack.c.b16 %v3180, %v3172
    %v5661 = vpack.c.b16 %v3181, %v3173
    %v5662 = vpack.c.b16 %v3182, %v3174
    %v5663 = vpack.c.b16 %v3183, %v3175
    %v5664 = vpack.c.b16 %v3184, %v3176
    %v5665 = vpack.c.b16 %v3185, %v3177
    %v5666 = vpack.c.b16 %v3186, %v3178
    %v5667 = vpack.c.b16 %v3195, %v3187
    %v5668 = vpack.c.b16 %v3196, %v3188
    %v5669 = vpack.c.b16 %v3197, %v3189
    %v5670 = vpack.c.b16 %v3198, %v3190
    %v5671 = vpack.c.b16 %v3199, %v3191
    %v5672 = vpack.c.b16 %v3200, %v3192
    %v5673 = vpack.c.b16 %v3201, %v3193
    %v5674 = vpack.c.b16 %v3202, %v3194
    %v5675 = vpack.c.b16 %v3211, %v3203
    %v5676 = vpack.c.b16 %v3212, %v3204
    %v5677 = vpack.c.b16 %v3213, %v3205
    %v5678 = vpack.c.b16 %v3214, %v3206
    %v5679 = vpack.c.b16 %v3215, %v3207
    %v5680 = vpack.c.b16 %v3216, %v3208
    %v5681 = vpack.c.b16 %v3217, %v3209
    %v5682 = vpack.c.b16 %v3218, %v3210
    %v5683 = vpack.c.b16 %v3227, %v3219
    %v5684 = vpack.c.b16 %v3228, %v3220
    %v5685 = vpack.c.b16 %v3229, %v3221
    %v5686 = vpack.c.b16 %v3230, %v3222
    %v5687 = vpack.c.b16 %v3231, %v3223
    %v5688 = vpack.c.b16 %v3232, %v3224
    %v5689 = vpack.c.b16 %v3233, %v3225
    %v5690 = vpack.c.b16 %v3234, %v3226
    %v5691 = vpack.c.b16 %v3243, %v3235
    %v5692 = vpack.c.b16 %v3244, %v3236
    %v5693 = vpack.c.b16 %v3245, %v3237
    %v5694 = vpack.c.b16 %v3246, %v3238
    %v5695 = vpack.c.b16 %v3247, %v3239
    %v5696 = vpack.c.b16 %v3248, %v3240
    %v5697 = vpack.c.b16 %v3249, %v3241
    %v5698 = vpack.c.b16 %v3250, %v3242
    %v5699 = vpack.c.b16 %v3259, %v3251
    %v5700 = vpack.c.b16 %v3260, %v3252
    %v5701 = vpack.c.b16 %v3261, %v3253
    %v5702 = vpack.c.b16 %v3262, %v3254
    %v5703 = vpack.c.b16 %v3263, %v3255
    %v5704 = vpack.c.b16 %v3264, %v3256
    %v5705 = vpack.c.b16 %v3265, %v3257
    %v5706 = vpack.c.b16 %v3266, %v3258
    %v5707 = vpack.c.b16 %v3275, %v3267
    %v5708 = vpack.c.b16 %v3276, %v3268
    %v5709 = vpack.c.b16 %v3277, %v3269
    %v5710 = vpack.c.b16 %v3278, %v3270
    %v5711 = vpack.c.b16 %v3279, %v3271
    %v5712 = vpack.c.b16 %v3280, %v3272
    %v5713 = vpack.c.b16 %v3281, %v3273
    %v5714 = vpack.c.b16 %v3282, %v3274
    %v5715 = vpack.c.b16 %v3291, %v3283
    %v5716 = vpack.c.b16 %v3292, %v3284
    %v5717 = vpack.c.b16 %v3293, %v3285
    %v5718 = vpack.c.b16 %v3294, %v3286
    %v5719 = vpack.c.b16 %v3295, %v3287
    %v5720 = vpack.c.b16 %v3296, %v3288
    %v5721 = vpack.c.b16 %v3297, %v3289
    %v5722 = vpack.c.b16 %v3298, %v3290
    %v5723 = vpack.c.b16 %v3307, %v3299
    %v5724 = vpack.c.b16 %v3308, %v3300
    %v5725 = vpack.c.b16 %v3309, %v3301
    %v5726 = vpack.c.b16 %v3310, %v3302
    %v5727 = vpack.c.b16 %v3311, %v3303
    %v5728 = vpack.c.b16 %v3312, %v3304
    %v5729 = vpack.c.b16 %v3313, %v3305
    %v5730 = vpack.c.b16 %v3314, %v3306
    %v5731 = vpack.c.b16 %v3323, %v3315
    %v5732 = vpack.c.b16 %v3324, %v3316
    %v5733 = vpack.c.b16 %v3325, %v3317
    %v5734 = vpack.c.b16 %v3326, %v3318
    %v5735 = vpack.c.b16 %v3327, %v3319
    %v5736 = vpack.c.b16 %v3328, %v3320
    %v5737 = vpack.c.b16 %v3329, %v3321
    %v5738 = vpack.c.b16 %v3330, %v3322
    %v5739 = vpack.c.b16 %v3339, %v3331
    %v5740 = vpack.c.b16 %v3340, %v3332
    %v5741 = vpack.c.b16 %v3341, %v3333
    %v5742 = vpack.c.b16 %v3342, %v3334
    %v5743 = vpack.c.b16 %v3343, %v3335
    %v5744 = vpack.c.b16 %v3344, %v3336
    %v5745 = vpack.c.b16 %v3345, %v3337
    %v5746 = vpack.c.b16 %v3346, %v3338
    %v5747 = vpack.c.b16 %v3355, %v3347
    %v5748 = vpack.c.b16 %v3356, %v3348
    %v5749 = vpack.c.b16 %v3357, %v3349
    %v5750 = vpack.c.b16 %v3358, %v3350
    %v5751 = vpack.c.b16 %v3359, %v3351
    %v5752 = vpack.c.b16 %v3360, %v3352
    %v5753 = vpack.c.b16 %v3361, %v3353
    %v5754 = vpack.c.b16 %v3362, %v3354
    %v5755 = vpack.c.b16 %v3371, %v3363
    %v5756 = vpack.c.b16 %v3372, %v3364
    %v5757 = vpack.c.b16 %v3373, %v3365
    %v5758 = vpack.c.b16 %v3374, %v3366
    %v5759 = vpack.c.b16 %v3375, %v3367
    %v5760 = vpack.c.b16 %v3376, %v3368
    %v5761 = vpack.c.b16 %v3377, %v3369
    %v5762 = vpack.c.b16 %v3378, %v3370
    %v5763 = vpack.c.b16 %v3387, %v3379
    %v5764 = vpack.c.b16 %v3388, %v3380
    %v5765 = vpack.c.b16 %v3389, %v3381
    %v5766 = vpack.c.b16 %v3390, %v3382
    %v5767 = vpack.c.b16 %v3391, %v3383
    %v5768 = vpack.c.b16 %v3392, %v3384
    %v5769 = vpack.c.b16 %v3393, %v3385
    %v5770 = vpack.c.b16 %v3394, %v3386
    %v5771 = vpack.c.b16 %v3403, %v3395
    %v5772 = vpack.c.b16 %v3404, %v3396
    %v5773 = vpack.c.b16 %v3405, %v3397
    %v5774 = vpack.c.b16 %v3406, %v3398
    %v5775 = vpack.c.b16 %v3407, %v3399
    %v5776 = vpack.c.b16 %v3408, %v3400
    %v5777 = vpack.c.b16 %v3409, %v3401
    %v5778 = vpack.c.b16 %v3410, %v3402
    %v5779 = vpack.c.b16 %v3419, %v3411
    %v5780 = vpack.c.b16 %v3420, %v3412
    %v5781 = vpack.c.b16 %v3421, %v3413
    %v5782 = vpack.c.b16 %v3422, %v3414
    %v5783 = vpack.c.b16 %v3423, %v3415
    %v5784 = vpack.c.b16 %v3424, %v3416
    %v5785 = vpack.c.b16 %v3425, %v3417
    %v5786 = vpack.c.b16 %v3426, %v3418
    %v5787 = vpack.c.b16 %v3435, %v3427
    %v5788 = vpack.c.b16 %v3436, %v3428
    %v5789 = vpack.c.b16 %v3437, %v3429
    %v5790 = vpack.c.b16 %v3438, %v3430
    %v5791 = vpack.c.b16 %v3439, %v3431
    %v5792 = vpack.c.b16 %v3440, %v3432
    %v5793 = vpack.c.b16 %v3441, %v3433
    %v5794 = vpack.c.b16 %v3442, %v3434
    %v5795 = vpack.c.b16 %v3451, %v3443
    %v5796 = vpack.c.b16 %v3452, %v3444
    %v5797 = vpack.c.b16 %v3453, %v3445
    %v5798 = vpack.c.b16 %v3454, %v3446
    %v5799 = vpack.c.b16 %v3455, %v3447
    %v5800 = vpack.c.b16 %v3456, %v3448
    %v5801 = vpack.c.b16 %v3457, %v3449
    %v5802 = vpack.c.b16 %v3458, %v3450
    %v5803 = vpack.c.b16 %v3467, %v3459
    %v5804 = vpack.c.b16 %v3468, %v3460
    %v5805 = vpack.c.b16 %v3469, %v3461
    %v5806 = vpack.c.b16 %v3470, %v3462
    %v5807 = vpack.c.b16 %v3471, %v3463
    %v5808 = vpack.c.b16 %v3472, %v3464
    %v5809 = vpack.c.b16 %v3473, %v3465
    %v5810 = vpack.c.b16 %v3474, %v3466
    %v5811 = vpack.c.b16 %v3483, %v3475
    %v5812 = vpack.c.b16 %v3484, %v3476
    %v5813 = vpack.c.b16 %v3485, %v3477
    %v5814 = vpack.c.b16 %v3486, %v3478
    %v5815 = vpack.c.b16 %v3487, %v3479
    %v5816 = vpack.c.b16 %v3488, %v3480
    %v5817 = vpack.c.b16 %v3489, %v3481
    %v5818 = vpack.c.b16 %v3490, %v3482
    %v5819 = vpack.c.b16 %v3499, %v3491
    %v5820 = vpack.c.b16 %v3500, %v3492
    %v5821 = vpack.c.b16 %v3501, %v3493
    %v5822 = vpack.c.b16 %v3502, %v3494
    %v5823 = vpack.c.b16 %v3503, %v3495
    %v5824 = vpack.c.b16 %v3504, %v3496
    %v5825 = vpack.c.b16 %v3505, %v3497
    %v5826 = vpack.c.b16 %v3506, %v3498
    %v5827 = vpack.c.b16 %v3515, %v3507
    %v5828 = vpack.c.b16 %v3516, %v3508
    %v5829 = vpack.c.b16 %v3517, %v3509
    %v5830 = vpack.c.b16 %v3518, %v3510
    %v5831 = vpack.c.b16 %v3519, %v3511
    %v5832 = vpack.c.b16 %v3520, %v3512
    %v5833 = vpack.c.b16 %v3521, %v3513
    %v5834 = vpack.c.b16 %v3522, %v3514
    %v5835 = vpack.c.b16 %v3531, %v3523
    %v5836 = vpack.c.b16 %v3532, %v3524
    %v5837 = vpack.c.b16 %v3533, %v3525
    %v5838 = vpack.c.b16 %v3534, %v3526
    %v5839 = vpack.c.b16 %v3535, %v3527
    %v5840 = vpack.c.b16 %v3536, %v3528
    %v5841 = vpack.c.b16 %v3537, %v3529
    %v5842 = vpack.c.b16 %v3538, %v3530
    %v5843 = vpack.c.b16 %v3547, %v3539
    %v5844 = vpack.c.b16 %v3548, %v3540
    %v5845 = vpack.c.b16 %v3549, %v3541
    %v5846 = vpack.c.b16 %v3550, %v3542
    %v5847 = vpack.c.b16 %v3551, %v3543
    %v5848 = vpack.c.b16 %v3552, %v3544
    %v5849 = vpack.c.b16 %v3553, %v3545
    %v5850 = vpack.c.b16 %v3554, %v3546
    %v5851 = vpack.c.b16 %v3563, %v3555
    %v5852 = vpack.c.b16 %v3564, %v3556
    %v5853 = vpack.c.b16 %v3565, %v3557
    %v5854 = vpack.c.b16 %v3566, %v3558
    %v5855 = vpack.c.b16 %v3567, %v3559
    %v5856 = vpack.c.b16 %v3568, %v3560
    %v5857 = vpack.c.b16 %v3569, %v3561
    %v5858 = vpack.c.b16 %v3570, %v3562
    %v5859 = vpack.c.b16 %v3579, %v3571
    %v5860 = vpack.c.b16 %v3580, %v3572
    %v5861 = vpack.c.b16 %v3581, %v3573
    %v5862 = vpack.c.b16 %v3582, %v3574
    %v5863 = vpack.c.b16 %v3583, %v3575
    %v5864 = vpack.c.b16 %v3584, %v3576
    %v5865 = vpack.c.b16 %v3585, %v3577
    %v5866 = vpack.c.b16 %v3586, %v3578
    %v5867 = vpack.c.b16 %v3595, %v3587
    %v5868 = vpack.c.b16 %v3596, %v3588
    %v5869 = vpack.c.b16 %v3597, %v3589
    %v5870 = vpack.c.b16 %v3598, %v3590
    %v5871 = vpack.c.b16 %v3599, %v3591
    %v5872 = vpack.c.b16 %v3600, %v3592
    %v5873 = vpack.c.b16 %v3601, %v3593
    %v5874 = vpack.c.b16 %v3602, %v3594
    %v5875 = vpack.c.b16 %v3611, %v3603
    %v5876 = vpack.c.b16 %v3612, %v3604
    %v5877 = vpack.c.b16 %v3613, %v3605
    %v5878 = vpack.c.b16 %v3614, %v3606
    %v5879 = vpack.c.b16 %v3615, %v3607
    %v5880 = vpack.c.b16 %v3616, %v3608
    %v5881 = vpack.c.b16 %v3617, %v3609
    %v5882 = vpack.c.b16 %v3618, %v3610
    %v5883 = vpack.c.b16 %v3627, %v3619
    %v5884 = vpack.c.b16 %v3628, %v3620
    %v5885 = vpack.c.b16 %v3629, %v3621
    %v5886 = vpack.c.b16 %v3630, %v3622
    %v5887 = vpack.c.b16 %v3631, %v3623
    %v5888 = vpack.c.b16 %v3632, %v3624
    %v5889 = vpack.c.b16 %v3633, %v3625
    %v5890 = vpack.c.b16 %v3634, %v3626
    %v5891 = vpack.c.b16 %v3643, %v3635
    %v5892 = vpack.c.b16 %v3644, %v3636
    %v5893 = vpack.c.b16 %v3645, %v3637
    %v5894 = vpack.c.b16 %v3646, %v3638
    %v5895 = vpack.c.b16 %v3647, %v3639
    %v5896 = vpack.c.b16 %v3648, %v3640
    %v5897 = vpack.c.b16 %v3649, %v3641
    %v5898 = vpack.c.b16 %v3650, %v3642
    %v5899 = vpack.c.b16 %v3659, %v3651
    %v5900 = vpack.c.b16 %v3660, %v3652
    %v5901 = vpack.c.b16 %v3661, %v3653
    %v5902 = vpack.c.b16 %v3662, %v3654
    %v5903 = vpack.c.b16 %v3663, %v3655
    %v5904 = vpack.c.b16 %v3664, %v3656
    %v5905 = vpack.c.b16 %v3665, %v3657
    %v5906 = vpack.c.b16 %v3666, %v3658
    %v5907 = vpack.c.b16 %v3675, %v3667
    %v5908 = vpack.c.b16 %v3676, %v3668
    %v5909 = vpack.c.b16 %v3677, %v3669
    %v5910 = vpack.c.b16 %v3678, %v3670
    %v5911 = vpack.c.b16 %v3679, %v3671
    %v5912 = vpack.c.b16 %v3680, %v3672
    %v5913 = vpack.c.b16 %v3681, %v3673
    %v5914 = vpack.c.b16 %v3682, %v3674
    %v5915 = vpack.c.b16 %v3691, %v3683
    %v5916 = vpack.c.b16 %v3692, %v3684
    %v5917 = vpack.c.b16 %v3693, %v3685
    %v5918 = vpack.c.b16 %v3694, %v3686
    %v5919 = vpack.c.b16 %v3695, %v3687
    %v5920 = vpack.c.b16 %v3696, %v3688
    %v5921 = vpack.c.b16 %v3697, %v3689
    %v5922 = vpack.c.b16 %v3698, %v3690
    %v5923 = vpack.c.b16 %v3707, %v3699
    %v5924 = vpack.c.b16 %v3708, %v3700
    %v5925 = vpack.c.b16 %v3709, %v3701
    %v5926 = vpack.c.b16 %v3710, %v3702
    %v5927 = vpack.c.b16 %v3711, %v3703
    %v5928 = vpack.c.b16 %v3712, %v3704
    %v5929 = vpack.c.b16 %v3713, %v3705
    %v5930 = vpack.c.b16 %v3714, %v3706
    %v5931 = vpack.c.b16 %v3723, %v3715
    %v5932 = vpack.c.b16 %v3724, %v3716
    %v5933 = vpack.c.b16 %v3725, %v3717
    %v5934 = vpack.c.b16 %v3726, %v3718
    %v5935 = vpack.c.b16 %v3727, %v3719
    %v5936 = vpack.c.b16 %v3728, %v3720
    %v5937 = vpack.c.b16 %v3729, %v3721
    %v5938 = vpack.c.b16 %v3730, %v3722
    %v5939 = vpack.c.b16 %v3739, %v3731
    %v5940 = vpack.c.b16 %v3740, %v3732
    %v5941 = vpack.c.b16 %v3741, %v3733
    %v5942 = vpack.c.b16 %v3742, %v3734
    %v5943 = vpack.c.b16 %v3743, %v3735
    %v5944 = vpack.c.b16 %v3744, %v3736
    %v5945 = vpack.c.b16 %v3745, %v3737
    %v5946 = vpack.c.b16 %v3746, %v3738
    %v5947 = vpack.c.b16 %v3755, %v3747
    %v5948 = vpack.c.b16 %v3756, %v3748
    %v5949 = vpack.c.b16 %v3757, %v3749
    %v5950 = vpack.c.b16 %v3758, %v3750
    %v5951 = vpack.c.b16 %v3759, %v3751
    %v5952 = vpack.c.b16 %v3760, %v3752
    %v5953 = vpack.c.b16 %v3761, %v3753
    %v5954 = vpack.c.b16 %v3762, %v3754
    %v5955 = vpack.c.b16 %v3771, %v3763
    %v5956 = vpack.c.b16 %v3772, %v3764
    %v5957 = vpack.c.b16 %v3773, %v3765
    %v5958 = vpack.c.b16 %v3774, %v3766
    %v5959 = vpack.c.b16 %v3775, %v3767
    %v5960 = vpack.c.b16 %v3776, %v3768
    %v5961 = vpack.c.b16 %v3777, %v3769
    %v5962 = vpack.c.b16 %v3778, %v3770
    %v5963 = vpack.c.b16 %v3787, %v3779
    %v5964 = vpack.c.b16 %v3788, %v3780
    %v5965 = vpack.c.b16 %v3789, %v3781
    %v5966 = vpack.c.b16 %v3790, %v3782
    %v5967 = vpack.c.b16 %v3791, %v3783
    %v5968 = vpack.c.b16 %v3792, %v3784
    %v5969 = vpack.c.b16 %v3793, %v3785
    %v5970 = vpack.c.b16 %v3794, %v3786
    %v5971 = vpack.c.b16 %v3803, %v3795
    %v5972 = vpack.c.b16 %v3804, %v3796
    %v5973 = vpack.c.b16 %v3805, %v3797
    %v5974 = vpack.c.b16 %v3806, %v3798
    %v5975 = vpack.c.b16 %v3807, %v3799
    %v5976 = vpack.c.b16 %v3808, %v3800
    %v5977 = vpack.c.b16 %v3809, %v3801
    %v5978 = vpack.c.b16 %v3810, %v3802
    %v5979 = vpack.c.b16 %v3819, %v3811
    %v5980 = vpack.c.b16 %v3820, %v3812
    %v5981 = vpack.c.b16 %v3821, %v3813
    %v5982 = vpack.c.b16 %v3822, %v3814
    %v5983 = vpack.c.b16 %v3823, %v3815
    %v5984 = vpack.c.b16 %v3824, %v3816
    %v5985 = vpack.c.b16 %v3825, %v3817
    %v5986 = vpack.c.b16 %v3826, %v3818
    %v5987 = vpack.c.b16 %v3835, %v3827
    %v5988 = vpack.c.b16 %v3836, %v3828
    %v5989 = vpack.c.b16 %v3837, %v3829
    %v5990 = vpack.c.b16 %v3838, %v3830
    %v5991 = vpack.c.b16 %v3839, %v3831
    %v5992 = vpack.c.b16 %v3840, %v3832
    %v5993 = vpack.c.b16 %v3841, %v3833
    %v5994 = vpack.c.b16 %v3842, %v3834
    %v5995 = vpack.c.b16 %v3851, %v3843
    %v5996 = vpack.c.b16 %v3852, %v3844
    %v5997 = vpack.c.b16 %v3853, %v3845
    %v5998 = vpack.c.b16 %v3854, %v3846
    %v5999 = vpack.c.b16 %v3855, %v3847
    %v6000 = vpack.c.b16 %v3856, %v3848
    %v6001 = vpack.c.b16 %v3857, %v3849
    %v6002 = vpack.c.b16 %v3858, %v3850
    %v6003 = vpack.c.b16 %v3867, %v3859
    %v6004 = vpack.c.b16 %v3868, %v3860
    %v6005 = vpack.c.b16 %v3869, %v3861
    %v6006 = vpack.c.b16 %v3870, %v3862
    %v6007 = vpack.c.b16 %v3871, %v3863
    %v6008 = vpack.c.b16 %v3872, %v3864
    %v6009 = vpack.c.b16 %v3873, %v3865
    %v6010 = vpack.c.b16 %v3874, %v3866
    %v6011 = vpack.c.b16 %v3883, %v3875
    %v6012 = vpack.c.b16 %v3884, %v3876
    %v6013 = vpack.c.b16 %v3885, %v3877
    %v6014 = vpack.c.b16 %v3886, %v3878
    %v6015 = vpack.c.b16 %v3887, %v3879
    %v6016 = vpack.c.b16 %v3888, %v3880
    %v6017 = vpack.c.b16 %v3889, %v3881
    %v6018 = vpack.c.b16 %v3890, %v3882
    %v6019 = vpack.c.b16 %v3899, %v3891
    %v6020 = vpack.c.b16 %v3900, %v3892
    %v6021 = vpack.c.b16 %v3901, %v3893
    %v6022 = vpack.c.b16 %v3902, %v3894
    %v6023 = vpack.c.b16 %v3903, %v3895
    %v6024 = vpack.c.b16 %v3904, %v3896
    %v6025 = vpack.c.b16 %v3905, %v3897
    %v6026 = vpack.c.b16 %v3906, %v3898
    %v6027 = vpack.c.b16 %v3915, %v3907
    %v6028 = vpack.c.b16 %v3916, %v3908
    %v6029 = vpack.c.b16 %v3917, %v3909
    %v6030 = vpack.c.b16 %v3918, %v3910
    %v6031 = vpack.c.b16 %v3919, %v3911
    %v6032 = vpack.c.b16 %v3920, %v3912
    %v6033 = vpack.c.b16 %v3921, %v3913
    %v6034 = vpack.c.b16 %v3922, %v3914
    %v6035 = vpack.c.b16 %v3931, %v3923
    %v6036 = vpack.c.b16 %v3932, %v3924
    %v6037 = vpack.c.b16 %v3933, %v3925
    %v6038 = vpack.c.b16 %v3934, %v3926
    %v6039 = vpack.c.b16 %v3935, %v3927
    %v6040 = vpack.c.b16 %v3936, %v3928
    %v6041 = vpack.c.b16 %v3937, %v3929
    %v6042 = vpack.c.b16 %v3938, %v3930
    %v6043 = vpack.c.b16 %v3947, %v3939
    %v6044 = vpack.c.b16 %v3948, %v3940
    %v6045 = vpack.c.b16 %v3949, %v3941
    %v6046 = vpack.c.b16 %v3950, %v3942
    %v6047 = vpack.c.b16 %v3951, %v3943
    %v6048 = vpack.c.b16 %v3952, %v3944
    %v6049 = vpack.c.b16 %v3953, %v3945
    %v6050 = vpack.c.b16 %v3954, %v3946
    %v6051 = vpack.c.b16 %v3963, %v3955
    %v6052 = vpack.c.b16 %v3964, %v3956
    %v6053 = vpack.c.b16 %v3965, %v3957
    %v6054 = vpack.c.b16 %v3966, %v3958
    %v6055 = vpack.c.b16 %v3967, %v3959
    %v6056 = vpack.c.b16 %v3968, %v3960
    %v6057 = vpack.c.b16 %v3969, %v3961
    %v6058 = vpack.c.b16 %v3970, %v3962
    %v6059 = vpack.c.b16 %v3979, %v3971
    %v6060 = vpack.c.b16 %v3980, %v3972
    %v6061 = vpack.c.b16 %v3981, %v3973
    %v6062 = vpack.c.b16 %v3982, %v3974
    %v6063 = vpack.c.b16 %v3983, %v3975
    %v6064 = vpack.c.b16 %v3984, %v3976
    %v6065 = vpack.c.b16 %v3985, %v3977
    %v6066 = vpack.c.b16 %v3986, %v3978
    %v6067 = vpack.c.b16 %v3995, %v3987
    %v6068 = vpack.c.b16 %v3996, %v3988
    %v6069 = vpack.c.b16 %v3997, %v3989
    %v6070 = vpack.c.b16 %v3998, %v3990
    %v6071 = vpack.c.b16 %v3999, %v3991
    %v6072 = vpack.c.b16 %v4000, %v3992
    %v6073 = vpack.c.b16 %v4001, %v3993
    %v6074 = vpack.c.b16 %v4002, %v3994
    %v6075 = vpack.c.b16 %v4011, %v4003
    %v6076 = vpack.c.b16 %v4012, %v4004
    %v6077 = vpack.c.b16 %v4013, %v4005
    %v6078 = vpack.c.b16 %v4014, %v4006
    %v6079 = vpack.c.b16 %v4015, %v4007
    %v6080 = vpack.c.b16 %v4016, %v4008
    %v6081 = vpack.c.b16 %v4017, %v4009
    %v6082 = vpack.c.b16 %v4018, %v4010
    %v6083 = vpack.c.b16 %v4027, %v4019
    %v6084 = vpack.c.b16 %v4028, %v4020
    %v6085 = vpack.c.b16 %v4029, %v4021
    %v6086 = vpack.c.b16 %v4030, %v4022
    %v6087 = vpack.c.b16 %v4031, %v4023
    %v6088 = vpack.c.b16 %v4032, %v4024
    %v6089 = vpack.c.b16 %v4033, %v4025
    %v6090 = vpack.c.b16 %v4034, %v4026
    %v6091 = vpack.c.b16 %v4043, %v4035
    %v6092 = vpack.c.b16 %v4044, %v4036
    %v6093 = vpack.c.b16 %v4045, %v4037
    %v6094 = vpack.c.b16 %v4046, %v4038
    %v6095 = vpack.c.b16 %v4047, %v4039
    %v6096 = vpack.c.b16 %v4048, %v4040
    %v6097 = vpack.c.b16 %v4049, %v4041
    %v6098 = vpack.c.b16 %v4050, %v4042
    %v6099 = vpack.c.b16 %v4059, %v4051
    %v6100 = vpack.c.b16 %v4060, %v4052
    %v6101 = vpack.c.b16 %v4061, %v4053
    %v6102 = vpack.c.b16 %v4062, %v4054
    %v6103 = vpack.c.b16 %v4063, %v4055
    %v6104 = vpack.c.b16 %v4064, %v4056
    %v6105 = vpack.c.b16 %v4065, %v4057
    %v6106 = vpack.c.b16 %v4066, %v4058
    %v6107 = vpack.c.b16 %v4075, %v4067
    %v6108 = vpack.c.b16 %v4076, %v4068
    %v6109 = vpack.c.b16 %v4077, %v4069
    %v6110 = vpack.c.b16 %v4078, %v4070
    %v6111 = vpack.c.b16 %v4079, %v4071
    %v6112 = vpack.c.b16 %v4080, %v4072
    %v6113 = vpack.c.b16 %v4081, %v4073
    %v6114 = vpack.c.b16 %v4082, %v4074
    %v6115 = vpack.c.b16 %v4091, %v4083
    %v6116 = vpack.c.b16 %v4092, %v4084
    %v6117 = vpack.c.b16 %v4093, %v4085
    %v6118 = vpack.c.b16 %v4094, %v4086
    %v6119 = vpack.c.b16 %v4095, %v4087
    %v6120 = vpack.c.b16 %v4096, %v4088
    %v6121 = vpack.c.b16 %v4097, %v4089
    %v6122 = vpack.c.b16 %v4098, %v4090
    %v6123 = vpack.c.b16 %v4107, %v4099
    %v6124 = vpack.c.b16 %v4108, %v4100
    %v6125 = vpack.c.b16 %v4109, %v4101
    %v6126 = vpack.c.b16 %v4110, %v4102
    %v6127 = vpack.c.b16 %v4111, %v4103
    %v6128 = vpack.c.b16 %v4112, %v4104
    %v6129 = vpack.c.b16 %v4113, %v4105
    %v6130 = vpack.c.b16 %v4114, %v4106
    %v6131 = vpack.c.b16 %v4123, %v4115
    %v6132 = vpack.c.b16 %v4124, %v4116
    %v6133 = vpack.c.b16 %v4125, %v4117
    %v6134 = vpack.c.b16 %v4126, %v4118
    %v6135 = vpack.c.b16 %v4127, %v4119
    %v6136 = vpack.c.b16 %v4128, %v4120
    %v6137 = vpack.c.b16 %v4129, %v4121
    %v6138 = vpack.c.b16 %v4130, %v4122
    %v6139 = vpack.c.b16 %v4139, %v4131
    %v6140 = vpack.c.b16 %v4140, %v4132
    %v6141 = vpack.c.b16 %v4141, %v4133
    %v6142 = vpack.c.b16 %v4142, %v4134
    %v6143 = vpack.c.b16 %v4143, %v4135
    %v6144 = vpack.c.b16 %v4144, %v4136
    %v6145 = vpack.c.b16 %v4145, %v4137
    %v6146 = vpack.c.b16 %v4146, %v4138
    %v6147 = vpack.c.b16 %v4155, %v4147
    %v6148 = vpack.c.b16 %v4156, %v4148
    %v6149 = vpack.c.b16 %v4157, %v4149
    %v6150 = vpack.c.b16 %v4158, %v4150
    %v6151 = vpack.c.b16 %v4159, %v4151
    %v6152 = vpack.c.b16 %v4160, %v4152
    %v6153 = vpack.c.b16 %v4161, %v4153
    %v6154 = vpack.c.b16 %v4162, %v4154
    %v6155 = vpack.c.b16 %v4171, %v4163
    %v6156 = vpack.c.b16 %v4172, %v4164
    %v6157 = vpack.c.b16 %v4173, %v4165
    %v6158 = vpack.c.b16 %v4174, %v4166
    %v6159 = vpack.c.b16 %v4175, %v4167
    %v6160 = vpack.c.b16 %v4176, %v4168
    %v6161 = vpack.c.b16 %v4177, %v4169
    %v6162 = vpack.c.b16 %v4178, %v4170
    %v6163 = vpack.c.b16 %v4187, %v4179
    %v6164 = vpack.c.b16 %v4188, %v4180
    %v6165 = vpack.c.b16 %v4189, %v4181
    %v6166 = vpack.c.b16 %v4190, %v4182
    %v6167 = vpack.c.b16 %v4191, %v4183
    %v6168 = vpack.c.b16 %v4192, %v4184
    %v6169 = vpack.c.b16 %v4193, %v4185
    %v6170 = vpack.c.b16 %v4194, %v4186
    %v6171 = vpack.c.b16 %v4203, %v4195
    %v6172 = vpack.c.b16 %v4204, %v4196
    %v6173 = vpack.c.b16 %v4205, %v4197
    %v6174 = vpack.c.b16 %v4206, %v4198
    %v6175 = vpack.c.b16 %v4207, %v4199
    %v6176 = vpack.c.b16 %v4208, %v4200
    %v6177 = vpack.c.b16 %v4209, %v4201
    %v6178 = vpack.c.b16 %v4210, %v4202
    %v6179 = vpack.c.b16 %v4219, %v4211
    %v6180 = vpack.c.b16 %v4220, %v4212
    %v6181 = vpack.c.b16 %v4221, %v4213
    %v6182 = vpack.c.b16 %v4222, %v4214
    %v6183 = vpack.c.b16 %v4223, %v4215
    %v6184 = vpack.c.b16 %v4224, %v4216
    %v6185 = vpack.c.b16 %v4225, %v4217
    %v6186 = vpack.c.b16 %v4226, %v4218
    %v6187 = vpack.c.b16 %v4235, %v4227
    %v6188 = vpack.c.b16 %v4236, %v4228
    %v6189 = vpack.c.b16 %v4237, %v4229
    %v6190 = vpack.c.b16 %v4238, %v4230
    %v6191 = vpack.c.b16 %v4239, %v4231
    %v6192 = vpack.c.b16 %v4240, %v4232
    %v6193 = vpack.c.b16 %v4241, %v4233
    %v6194 = vpack.c.b16 %v4242, %v4234
    %v6195 = vpack.c.b16 %v4251, %v4243
    %v6196 = vpack.c.b16 %v4252, %v4244
    %v6197 = vpack.c.b16 %v4253, %v4245
    %v6198 = vpack.c.b16 %v4254, %v4246
    %v6199 = vpack.c.b16 %v4255, %v4247
    %v6200 = vpack.c.b16 %v4256, %v4248
    %v6201 = vpack.c.b16 %v4257, %v4249
    %v6202 = vpack.c.b16 %v4258, %v4250
    %v6203 = vpack.c.b16 %v4267, %v4259
    %v6204 = vpack.c.b16 %v4268, %v4260
    %v6205 = vpack.c.b16 %v4269, %v4261
    %v6206 = vpack.c.b16 %v4270, %v4262
    %v6207 = vpack.c.b16 %v4271, %v4263
    %v6208 = vpack.c.b16 %v4272, %v4264
    %v6209 = vpack.c.b16 %v4273, %v4265
    %v6210 = vpack.c.b16 %v4274, %v4266
    %v6211 = vpack.c.b16 %v4283, %v4275
    %v6212 = vpack.c.b16 %v4284, %v4276
    %v6213 = vpack.c.b16 %v4285, %v4277
    %v6214 = vpack.c.b16 %v4286, %v4278
    %v6215 = vpack.c.b16 %v4287, %v4279
    %v6216 = vpack.c.b16 %v4288, %v4280
    %v6217 = vpack.c.b16 %v4289, %v4281
    %v6218 = vpack.c.b16 %v4290, %v4282
    %v6219 = vpack.c.b16 %v4299, %v4291
    %v6220 = vpack.c.b16 %v4300, %v4292
    %v6221 = vpack.c.b16 %v4301, %v4293
    %v6222 = vpack.c.b16 %v4302, %v4294
    %v6223 = vpack.c.b16 %v4303, %v4295
    %v6224 = vpack.c.b16 %v4304, %v4296
    %v6225 = vpack.c.b16 %v4305, %v4297
    %v6226 = vpack.c.b16 %v4306, %v4298
    %v6227 = vpack.c.b16 %v4315, %v4307
    %v6228 = vpack.c.b16 %v4316, %v4308
    %v6229 = vpack.c.b16 %v4317, %v4309
    %v6230 = vpack.c.b16 %v4318, %v4310
    %v6231 = vpack.c.b16 %v4319, %v4311
    %v6232 = vpack.c.b16 %v4320, %v4312
    %v6233 = vpack.c.b16 %v4321, %v4313
    %v6234 = vpack.c.b16 %v4322, %v4314
    %v6235 = vpack.c.b16 %v4331, %v4323
    %v6236 = vpack.c.b16 %v4332, %v4324
    %v6237 = vpack.c.b16 %v4333, %v4325
    %v6238 = vpack.c.b16 %v4334, %v4326
    %v6239 = vpack.c.b16 %v4335, %v4327
    %v6240 = vpack.c.b16 %v4336, %v4328
    %v6241 = vpack.c.b16 %v4337, %v4329
    %v6242 = vpack.c.b16 %v4338, %v4330
    %v6243 = vpack.c.b16 %v4347, %v4339
    %v6244 = vpack.c.b16 %v4348, %v4340
    %v6245 = vpack.c.b16 %v4349, %v4341
    %v6246 = vpack.c.b16 %v4350, %v4342
    %v6247 = vpack.c.b16 %v4351, %v4343
    %v6248 = vpack.c.b16 %v4352, %v4344
    %v6249 = vpack.c.b16 %v4353, %v4345
    %v6250 = vpack.c.b16 %v4354, %v4346
    %v6251 = vpack.c.b16 %v4363, %v4355
    %v6252 = vpack.c.b16 %v4364, %v4356
    %v6253 = vpack.c.b16 %v4365, %v4357
    %v6254 = vpack.c.b16 %v4366, %v4358
    %v6255 = vpack.c.b16 %v4367, %v4359
    %v6256 = vpack.c.b16 %v4368, %v4360
    %v6257 = vpack.c.b16 %v4369, %v4361
    %v6258 = vpack.c.b16 %v4370, %v4362
    %v6259 = vpack.c.b16 %v4379, %v4371
    %v6260 = vpack.c.b16 %v4380, %v4372
    %v6261 = vpack.c.b16 %v4381, %v4373
    %v6262 = vpack.c.b16 %v4382, %v4374
    %v6263 = vpack.c.b16 %v4383, %v4375
    %v6264 = vpack.c.b16 %v4384, %v4376
    %v6265 = vpack.c.b16 %v4385, %v4377
    %v6266 = vpack.c.b16 %v4386, %v4378
    %v6267 = vpack.c.b16 %v4395, %v4387
    %v6268 = vpack.c.b16 %v4396, %v4388
    %v6269 = vpack.c.b16 %v4397, %v4389
    %v6270 = vpack.c.b16 %v4398, %v4390
    %v6271 = vpack.c.b16 %v4399, %v4391
    %v6272 = vpack.c.b16 %v4400, %v4392
    %v6273 = vpack.c.b16 %v4401, %v4393
    %v6274 = vpack.c.b16 %v4402, %v4394
    %v6275 = vpack.c.b16 %v4411, %v4403
    %v6276 = vpack.c.b16 %v4412, %v4404
    %v6277 = vpack.c.b16 %v4413, %v4405
    %v6278 = vpack.c.b16 %v4414, %v4406
    %v6279 = vpack.c.b16 %v4415, %v4407
    %v6280 = vpack.c.b16 %v4416, %v4408
    %v6281 = vpack.c.b16 %v4417, %v4409
    %v6282 = vpack.c.b16 %v4418, %v4410
    %v6283 = vpack.c.b16 %v4427, %v4419
    %v6284 = vpack.c.b16 %v4428, %v4420
    %v6285 = vpack.c.b16 %v4429, %v4421
    %v6286 = vpack.c.b16 %v4430, %v4422
    %v6287 = vpack.c.b16 %v4431, %v4423
    %v6288 = vpack.c.b16 %v4432, %v4424
    %v6289 = vpack.c.b16 %v4433, %v4425
    %v6290 = vpack.c.b16 %v4434, %v4426
    %v6291 = vpack.c.b16 %v4443, %v4435
    %v6292 = vpack.c.b16 %v4444, %v4436
    %v6293 = vpack.c.b16 %v4445, %v4437
    %v6294 = vpack.c.b16 %v4446, %v4438
    %v6295 = vpack.c.b16 %v4447, %v4439
    %v6296 = vpack.c.b16 %v4448, %v4440
    %v6297 = vpack.c.b16 %v4449, %v4441
    %v6298 = vpack.c.b16 %v4450, %v4442
    %v6299 = vpack.c.b16 %v4459, %v4451
    %v6300 = vpack.c.b16 %v4460, %v4452
    %v6301 = vpack.c.b16 %v4461, %v4453
    %v6302 = vpack.c.b16 %v4462, %v4454
    %v6303 = vpack.c.b16 %v4463, %v4455
    %v6304 = vpack.c.b16 %v4464, %v4456
    %v6305 = vpack.c.b16 %v4465, %v4457
    %v6306 = vpack.c.b16 %v4466, %v4458
    %v6307 = vpack.c.b16 %v4475, %v4467
    %v6308 = vpack.c.b16 %v4476, %v4468
    %v6309 = vpack.c.b16 %v4477, %v4469
    %v6310 = vpack.c.b16 %v4478, %v4470
    %v6311 = vpack.c.b16 %v4479, %v4471
    %v6312 = vpack.c.b16 %v4480, %v4472
    %v6313 = vpack.c.b16 %v4481, %v4473
    %v6314 = vpack.c.b16 %v4482, %v4474
    %v6315 = vpack.c.b16 %v4491, %v4483
    %v6316 = vpack.c.b16 %v4492, %v4484
    %v6317 = vpack.c.b16 %v4493, %v4485
    %v6318 = vpack.c.b16 %v4494, %v4486
    %v6319 = vpack.c.b16 %v4495, %v4487
    %v6320 = vpack.c.b16 %v4496, %v4488
    %v6321 = vpack.c.b16 %v4497, %v4489
    %v6322 = vpack.c.b16 %v4498, %v4490
    %v6323 = vpack.c.b16 %v4507, %v4499
    %v6324 = vpack.c.b16 %v4508, %v4500
    %v6325 = vpack.c.b16 %v4509, %v4501
    %v6326 = vpack.c.b16 %v4510, %v4502
    %v6327 = vpack.c.b16 %v4511, %v4503
    %v6328 = vpack.c.b16 %v4512, %v4504
    %v6329 = vpack.c.b16 %v4513, %v4505
    %v6330 = vpack.c.b16 %v4514, %v4506
    %v6331 = vpack.c.b16 %v4523, %v4515
    %v6332 = vpack.c.b16 %v4524, %v4516
    %v6333 = vpack.c.b16 %v4525, %v4517
    %v6334 = vpack.c.b16 %v4526, %v4518
    %v6335 = vpack.c.b16 %v4527, %v4519
    %v6336 = vpack.c.b16 %v4528, %v4520
    %v6337 = vpack.c.b16 %v4529, %v4521
    %v6338 = vpack.c.b16 %v4530, %v4522
    %v6339 = vpack.c.b16 %v4539, %v4531
    %v6340 = vpack.c.b16 %v4540, %v4532
    %v6341 = vpack.c.b16 %v4541, %v4533
    %v6342 = vpack.c.b16 %v4542, %v4534
    %v6343 = vpack.c.b16 %v4543, %v4535
    %v6344 = vpack.c.b16 %v4544, %v4536
    %v6345 = vpack.c.b16 %v4545, %v4537
    %v6346 = vpack.c.b16 %v4546, %v4538
    %v6347 = vpack.c.b16 %v4555, %v4547
    %v6348 = vpack.c.b16 %v4556, %v4548
    %v6349 = vpack.c.b16 %v4557, %v4549
    %v6350 = vpack.c.b16 %v4558, %v4550
    %v6351 = vpack.c.b16 %v4559, %v4551
    %v6352 = vpack.c.b16 %v4560, %v4552
    %v6353 = vpack.c.b16 %v4561, %v4553
    %v6354 = vpack.c.b16 %v4562, %v4554
    %v6355 = vpack.c.b16 %v4571, %v4563
    %v6356 = vpack.c.b16 %v4572, %v4564
    %v6357 = vpack.c.b16 %v4573, %v4565
    %v6358 = vpack.c.b16 %v4574, %v4566
    %v6359 = vpack.c.b16 %v4575, %v4567
    %v6360 = vpack.c.b16 %v4576, %v4568
    %v6361 = vpack.c.b16 %v4577, %v4569
    %v6362 = vpack.c.b16 %v4578, %v4570
    %v6363 = vpack.c.b16 %v4587, %v4579
    %v6364 = vpack.c.b16 %v4588, %v4580
    %v6365 = vpack.c.b16 %v4589, %v4581
    %v6366 = vpack.c.b16 %v4590, %v4582
    %v6367 = vpack.c.b16 %v4591, %v4583
    %v6368 = vpack.c.b16 %v4592, %v4584
    %v6369 = vpack.c.b16 %v4593, %v4585
    %v6370 = vpack.c.b16 %v4594, %v4586
    %v6371 = vpack.c.b16 %v4603, %v4595
    %v6372 = vpack.c.b16 %v4604, %v4596
    %v6373 = vpack.c.b16 %v4605, %v4597
    %v6374 = vpack.c.b16 %v4606, %v4598
    %v6375 = vpack.c.b16 %v4607, %v4599
    %v6376 = vpack.c.b16 %v4608, %v4600
    %v6377 = vpack.c.b16 %v4609, %v4601
    %v6378 = vpack.c.b16 %v4610, %v4602
    %v6379 = vpack.c.b16 %v4619, %v4611
    %v6380 = vpack.c.b16 %v4620, %v4612
    %v6381 = vpack.c.b16 %v4621, %v4613
    %v6382 = vpack.c.b16 %v4622, %v4614
    %v6383 = vpack.c.b16 %v4623, %v4615
    %v6384 = vpack.c.b16 %v4624, %v4616
    %v6385 = vpack.c.b16 %v4625, %v4617
    %v6386 = vpack.c.b16 %v4626, %v4618
    %v6387 = vpack.c.b16 %v4635, %v4627
    %v6388 = vpack.c.b16 %v4636, %v4628
    %v6389 = vpack.c.b16 %v4637, %v4629
    %v6390 = vpack.c.b16 %v4638, %v4630
    %v6391 = vpack.c.b16 %v4639, %v4631
    %v6392 = vpack.c.b16 %v4640, %v4632
    %v6393 = vpack.c.b16 %v4641, %v4633
    %v6394 = vpack.c.b16 %v4642, %v4634
    %v6395 = vpack.c.b16 %v4651, %v4643
    %v6396 = vpack.c.b16 %v4652, %v4644
    %v6397 = vpack.c.b16 %v4653, %v4645
    %v6398 = vpack.c.b16 %v4654, %v4646
    %v6399 = vpack.c.b16 %v4655, %v4647
    %v6400 = vpack.c.b16 %v4656, %v4648
    %v6401 = vpack.c.b16 %v4657, %v4649
    %v6402 = vpack.c.b16 %v4658, %v4650
    %v6403 = vpack.c.b16 %v4667, %v4659
    %v6404 = vpack.c.b16 %v4668, %v4660
    %v6405 = vpack.c.b16 %v4669, %v4661
    %v6406 = vpack.c.b16 %v4670, %v4662
    %v6407 = vpack.c.b16 %v4671, %v4663
    %v6408 = vpack.c.b16 %v4672, %v4664
    %v6409 = vpack.c.b16 %v4673, %v4665
    %v6410 = vpack.c.b16 %v4674, %v4666
    %v6411 = vpack.c.b16 %v4683, %v4675
    %v6412 = vpack.c.b16 %v4684, %v4676
    %v6413 = vpack.c.b16 %v4685, %v4677
    %v6414 = vpack.c.b16 %v4686, %v4678
    %v6415 = vpack.c.b16 %v4687, %v4679
    %v6416 = vpack.c.b16 %v4688, %v4680
    %v6417 = vpack.c.b16 %v4689, %v4681
    %v6418 = vpack.c.b16 %v4690, %v4682
    %v6419 = vpack.c.b16 %v4699, %v4691
    %v6420 = vpack.c.b16 %v4700, %v4692
    %v6421 = vpack.c.b16 %v4701, %v4693
    %v6422 = vpack.c.b16 %v4702, %v4694
    %v6423 = vpack.c.b16 %v4703, %v4695
    %v6424 = vpack.c.b16 %v4704, %v4696
    %v6425 = vpack.c.b16 %v4705, %v4697
    %v6426 = vpack.c.b16 %v4706, %v4698
    %v6427 = vpack.c.b16 %v4715, %v4707
    %v6428 = vpack.c.b16 %v4716, %v4708
    %v6429 = vpack.c.b16 %v4717, %v4709
    %v6430 = vpack.c.b16 %v4718, %v4710
    %v6431 = vpack.c.b16 %v4719, %v4711
    %v6432 = vpack.c.b16 %v4720, %v4712
    %v6433 = vpack.c.b16 %v4721, %v4713
    %v6434 = vpack.c.b16 %v4722, %v4714
    %v6435 = vpack.c.b16 %v4731, %v4723
    %v6436 = vpack.c.b16 %v4732, %v4724
    %v6437 = vpack.c.b16 %v4733, %v4725
    %v6438 = vpack.c.b16 %v4734, %v4726
    %v6439 = vpack.c.b16 %v4735, %v4727
    %v6440 = vpack.c.b16 %v4736, %v4728
    %v6441 = vpack.c.b16 %v4737, %v4729
    %v6442 = vpack.c.b16 %v4738, %v4730
    %v6443 = vpack.c.b16 %v4747, %v4739
    %v6444 = vpack.c.b16 %v4748, %v4740
    %v6445 = vpack.c.b16 %v4749, %v4741
    %v6446 = vpack.c.b16 %v4750, %v4742
    %v6447 = vpack.c.b16 %v4751, %v4743
    %v6448 = vpack.c.b16 %v4752, %v4744
    %v6449 = vpack.c.b16 %v4753, %v4745
    %v6450 = vpack.c.b16 %v4754, %v4746
    %v6451 = vpack.c.b16 %v4763, %v4755
    %v6452 = vpack.c.b16 %v4764, %v4756
    %v6453 = vpack.c.b16 %v4765, %v4757
    %v6454 = vpack.c.b16 %v4766, %v4758
    %v6455 = vpack.c.b16 %v4767, %v4759
    %v6456 = vpack.c.b16 %v4768, %v4760
    %v6457 = vpack.c.b16 %v4769, %v4761
    %v6458 = vpack.c.b16 %v4770, %v4762
    %v6459 = vpack.c.b16 %v4779, %v4771
    %v6460 = vpack.c.b16 %v4780, %v4772
    %v6461 = vpack.c.b16 %v4781, %v4773
    %v6462 = vpack.c.b16 %v4782, %v4774
    %v6463 = vpack.c.b16 %v4783, %v4775
    %v6464 = vpack.c.b16 %v4784, %v4776
    %v6465 = vpack.c.b16 %v4785, %v4777
    %v6466 = vpack.c.b16 %v4786, %v4778
    %v6467 = vpack.c.b16 %v4795, %v4787
    %v6468 = vpack.c.b16 %v4796, %v4788
    %v6469 = vpack.c.b16 %v4797, %v4789
    %v6470 = vpack.c.b16 %v4798, %v4790
    %v6471 = vpack.c.b16 %v4799, %v4791
    %v6472 = vpack.c.b16 %v4800, %v4792
    %v6473 = vpack.c.b16 %v4801, %v4793
    %v6474 = vpack.c.b16 %v4802, %v4794
    %v6475 = vpack.c.b16 %v4811, %v4803
    %v6476 = vpack.c.b16 %v4812, %v4804
    %v6477 = vpack.c.b16 %v4813, %v4805
    %v6478 = vpack.c.b16 %v4814, %v4806
    %v6479 = vpack.c.b16 %v4815, %v4807
    %v6480 = vpack.c.b16 %v4816, %v4808
    %v6481 = vpack.c.b16 %v4817, %v4809
    %v6482 = vpack.c.b16 %v4818, %v4810
    %v6483 = vpack.c.b16 %v4827, %v4819
    %v6484 = vpack.c.b16 %v4828, %v4820
    %v6485 = vpack.c.b16 %v4829, %v4821
    %v6486 = vpack.c.b16 %v4830, %v4822
    %v6487 = vpack.c.b16 %v4831, %v4823
    %v6488 = vpack.c.b16 %v4832, %v4824
    %v6489 = vpack.c.b16 %v4833, %v4825
    %v6490 = vpack.c.b16 %v4834, %v4826
    %v6491 = vpack.c.b16 %v4843, %v4835
    %v6492 = vpack.c.b16 %v4844, %v4836
    %v6493 = vpack.c.b16 %v4845, %v4837
    %v6494 = vpack.c.b16 %v4846, %v4838
    %v6495 = vpack.c.b16 %v4847, %v4839
    %v6496 = vpack.c.b16 %v4848, %v4840
    %v6497 = vpack.c.b16 %v4849, %v4841
    %v6498 = vpack.c.b16 %v4850, %v4842
    %v6499 = vpack.c.b16 %v4859, %v4851
    %v6500 = vpack.c.b16 %v4860, %v4852
    %v6501 = vpack.c.b16 %v4861, %v4853
    %v6502 = vpack.c.b16 %v4862, %v4854
    %v6503 = vpack.c.b16 %v4863, %v4855
    %v6504 = vpack.c.b16 %v4864, %v4856
    %v6505 = vpack.c.b16 %v4865, %v4857
    %v6506 = vpack.c.b16 %v4866, %v4858
    %v6507 = vpack.c.b16 %v4875, %v4867
    %v6508 = vpack.c.b16 %v4876, %v4868
    %v6509 = vpack.c.b16 %v4877, %v4869
    %v6510 = vpack.c.b16 %v4878, %v4870
    %v6511 = vpack.c.b16 %v4879, %v4871
    %v6512 = vpack.c.b16 %v4880, %v4872
    %v6513 = vpack.c.b16 %v4881, %v4873
    %v6514 = vpack.c.b16 %v4882, %v4874
    %v6515 = vpack.c.b16 %v4891, %v4883
    %v6516 = vpack.c.b16 %v4892, %v4884
    %v6517 = vpack.c.b16 %v4893, %v4885
    %v6518 = vpack.c.b16 %v4894, %v4886
    %v6519 = vpack.c.b16 %v4895, %v4887
    %v6520 = vpack.c.b16 %v4896, %v4888
    %v6521 = vpack.c.b16 %v4897, %v4889
    %v6522 = vpack.c.b16 %v4898, %v4890
    %v6523 = vpack.c.b16 %v4907, %v4899
    %v6524 = vpack.c.b16 %v4908, %v4900
    %v6525 = vpack.c.b16 %v4909, %v4901
    %v6526 = vpack.c.b16 %v4910, %v4902
    %v6527 = vpack.c.b16 %v4911, %v4903
    %v6528 = vpack.c.b16 %v4912, %v4904
    %v6529 = vpack.c.b16 %v4913, %v4905
    %v6530 = vpack.c.b16 %v4914, %v4906
    %v6531 = vpack.c.b16 %v4923, %v4915
    %v6532 = vpack.c.b16 %v4924, %v4916
    %v6533 = vpack.c.b16 %v4925, %v4917
    %v6534 = vpack.c.b16 %v4926, %v4918
    %v6535 = vpack.c.b16 %v4927, %v4919
    %v6536 = vpack.c.b16 %v4928, %v4920
    %v6537 = vpack.c.b16 %v4929, %v4921
    %v6538 = vpack.c.b16 %v4930, %v4922
    %v6539 = vpack.c.b16 %v4939, %v4931
    %v6540 = vpack.c.b16 %v4940, %v4932
    %v6541 = vpack.c.b16 %v4941, %v4933
    %v6542 = vpack.c.b16 %v4942, %v4934
    %v6543 = vpack.c.b16 %v4943, %v4935
    %v6544 = vpack.c.b16 %v4944, %v4936
    %v6545 = vpack.c.b16 %v4945, %v4937
    %v6546 = vpack.c.b16 %v4946, %v4938
    %v6547 = vpack.c.b16 %v4955, %v4947
    %v6548 = vpack.c.b16 %v4956, %v4948
    %v6549 = vpack.c.b16 %v4957, %v4949
    %v6550 = vpack.c.b16 %v4958, %v4950
    %v6551 = vpack.c.b16 %v4959, %v4951
    %v6552 = vpack.c.b16 %v4960, %v4952
    %v6553 = vpack.c.b16 %v4961, %v4953
    %v6554 = vpack.c.b16 %v4962, %v4954
    %v6555 = vpack.c.b16 %v4971, %v4963
    %v6556 = vpack.c.b16 %v4972, %v4964
    %v6557 = vpack.c.b16 %v4973, %v4965
    %v6558 = vpack.c.b16 %v4974, %v4966
    %v6559 = vpack.c.b16 %v4975, %v4967
    %v6560 = vpack.c.b16 %v4976, %v4968
    %v6561 = vpack.c.b16 %v4977, %v4969
    %v6562 = vpack.c.b16 %v4978, %v4970
    %v6563 = vpack.c.b16 %v4987, %v4979
    %v6564 = vpack.c.b16 %v4988, %v4980
    %v6565 = vpack.c.b16 %v4989, %v4981
    %v6566 = vpack.c.b16 %v4990, %v4982
    %v6567 = vpack.c.b16 %v4991, %v4983
    %v6568 = vpack.c.b16 %v4992, %v4984
    %v6569 = vpack.c.b16 %v4993, %v4985
    %v6570 = vpack.c.b16 %v4994, %v4986
    %v6571 = vpack.c.b16 %v5003, %v4995
    %v6572 = vpack.c.b16 %v5004, %v4996
    %v6573 = vpack.c.b16 %v5005, %v4997
    %v6574 = vpack.c.b16 %v5006, %v4998
    %v6575 = vpack.c.b16 %v5007, %v4999
    %v6576 = vpack.c.b16 %v5008, %v5000
    %v6577 = vpack.c.b16 %v5009, %v5001
    %v6578 = vpack.c.b16 %v5010, %v5002
    %v6579 = vpack.c.b16 %v5019, %v5011
    %v6580 = vpack.c.b16 %v5020, %v5012
    %v6581 = vpack.c.b16 %v5021, %v5013
    %v6582 = vpack.c.b16 %v5022, %v5014
    %v6583 = vpack.c.b16 %v5023, %v5015
    %v6584 = vpack.c.b16 %v5024, %v5016
    %v6585 = vpack.c.b16 %v5025, %v5017
    %v6586 = vpack.c.b16 %v5026, %v5018
    %v6587 = vpack.c.b16 %v5035, %v5027
    %v6588 = vpack.c.b16 %v5036, %v5028
    %v6589 = vpack.c.b16 %v5037, %v5029
    %v6590 = vpack.c.b16 %v5038, %v5030
    %v6591 = vpack.c.b16 %v5039, %v5031
    %v6592 = vpack.c.b16 %v5040, %v5032
    %v6593 = vpack.c.b16 %v5041, %v5033
    %v6594 = vpack.c.b16 %v5042, %v5034
    %v6595 = vpack.c.b16 %v5051, %v5043
    %v6596 = vpack.c.b16 %v5052, %v5044
    %v6597 = vpack.c.b16 %v5053, %v5045
    %v6598 = vpack.c.b16 %v5054, %v5046
    %v6599 = vpack.c.b16 %v5055, %v5047
    %v6600 = vpack.c.b16 %v5056, %v5048
    %v6601 = vpack.c.b16 %v5057, %v5049
    %v6602 = vpack.c.b16 %v5058, %v5050
    %v6603 = vpack.c.b16 %v5067, %v5059
    %v6604 = vpack.c.b16 %v5068, %v5060
    %v6605 = vpack.c.b16 %v5069, %v5061
    %v6606 = vpack.c.b16 %v5070, %v5062
    %v6607 = vpack.c.b16 %v5071, %v5063
    %v6608 = vpack.c.b16 %v5072, %v5064
    %v6609 = vpack.c.b16 %v5073, %v5065
    %v6610 = vpack.c.b16 %v5074, %v5066
    %v6611 = vpack.c.b16 %v5083, %v5075
    %v6612 = vpack.c.b16 %v5084, %v5076
    %v6613 = vpack.c.b16 %v5085, %v5077
    %v6614 = vpack.c.b16 %v5086, %v5078
    %v6615 = vpack.c.b16 %v5087, %v5079
    %v6616 = vpack.c.b16 %v5088, %v5080
    %v6617 = vpack.c.b16 %v5089, %v5081
    %v6618 = vpack.c.b16 %v5090, %v5082
    %v6619 = vpack.c.b16 %v5099, %v5091
    %v6620 = vpack.c.b16 %v5100, %v5092
    %v6621 = vpack.c.b16 %v5101, %v5093
    %v6622 = vpack.c.b16 %v5102, %v5094
    %v6623 = vpack.c.b16 %v5103, %v5095
    %v6624 = vpack.c.b16 %v5104, %v5096
    %v6625 = vpack.c.b16 %v5105, %v5097
    %v6626 = vpack.c.b16 %v5106, %v5098
    %v6627 = vpack.c.b16 %v5115, %v5107
    %v6628 = vpack.c.b16 %v5116, %v5108
    %v6629 = vpack.c.b16 %v5117, %v5109
    %v6630 = vpack.c.b16 %v5118, %v5110
    %v6631 = vpack.c.b16 %v5119, %v5111
    %v6632 = vpack.c.b16 %v5120, %v5112
    %v6633 = vpack.c.b16 %v5121, %v5113
    %v6634 = vpack.c.b16 %v5122, %v5114
    %v6635 = vpack.c.b16 %v5131, %v5123
    %v6636 = vpack.c.b16 %v5132, %v5124
    %v6637 = vpack.c.b16 %v5133, %v5125
    %v6638 = vpack.c.b16 %v5134, %v5126
    %v6639 = vpack.c.b16 %v5135, %v5127
    %v6640 = vpack.c.b16 %v5136, %v5128
    %v6641 = vpack.c.b16 %v5137, %v5129
    %v6642 = vpack.c.b16 %v5138, %v5130
    %v6643 = vpack.c.b16 %v5147, %v5139
    %v6644 = vpack.c.b16 %v5148, %v5140
    %v6645 = vpack.c.b16 %v5149, %v5141
    %v6646 = vpack.c.b16 %v5150, %v5142
    %v6647 = vpack.c.b16 %v5151, %v5143
    %v6648 = vpack.c.b16 %v5152, %v5144
    %v6649 = vpack.c.b16 %v5153, %v5145
    %v6650 = vpack.c.b16 %v5154, %v5146
    %v6651 = vpack.c.b16 %v5163, %v5155
    %v6652 = vpack.c.b16 %v5164, %v5156
    %v6653 = vpack.c.b16 %v5165, %v5157
    %v6654 = vpack.c.b16 %v5166, %v5158
    %v6655 = vpack.c.b16 %v5167, %v5159
    %v6656 = vpack.c.b16 %v5168, %v5160
    %v6657 = vpack.c.b16 %v5169, %v5161
    %v6658 = vpack.c.b16 %v5170, %v5162
    %v6659 = vpack.c.b16 %v5179, %v5171
    %v6660 = vpack.c.b16 %v5180, %v5172
    %v6661 = vpack.c.b16 %v5181, %v5173
    %v6662 = vpack.c.b16 %v5182, %v5174
    %v6663 = vpack.c.b16 %v5183, %v5175
    %v6664 = vpack.c.b16 %v5184, %v5176
    %v6665 = vpack.c.b16 %v5185, %v5177
    %v6666 = vpack.c.b16 %v5186, %v5178
    %v6667 = vpack.c.b16 %v5195, %v5187
    %v6668 = vpack.c.b16 %v5196, %v5188
    %v6669 = vpack.c.b16 %v5197, %v5189
    %v6670 = vpack.c.b16 %v5198, %v5190
    %v6671 = vpack.c.b16 %v5199, %v5191
    %v6672 = vpack.c.b16 %v5200, %v5192
    %v6673 = vpack.c.b16 %v5201, %v5193
    %v6674 = vpack.c.b16 %v5202, %v5194
    %v6675 = vpack.c.b16 %v5211, %v5203
    %v6676 = vpack.c.b16 %v5212, %v5204
    %v6677 = vpack.c.b16 %v5213, %v5205
    %v6678 = vpack.c.b16 %v5214, %v5206
    %v6679 = vpack.c.b16 %v5215, %v5207
    %v6680 = vpack.c.b16 %v5216, %v5208
    %v6681 = vpack.c.b16 %v5217, %v5209
    %v6682 = vpack.c.b16 %v5218, %v5210
    %v6683 = vpack.c.b16 %v5227, %v5219
    %v6684 = vpack.c.b16 %v5228, %v5220
    %v6685 = vpack.c.b16 %v5229, %v5221
    %v6686 = vpack.c.b16 %v5230, %v5222
    %v6687 = vpack.c.b16 %v5231, %v5223
    %v6688 = vpack.c.b16 %v5232, %v5224
    %v6689 = vpack.c.b16 %v5233, %v5225
    %v6690 = vpack.c.b16 %v5234, %v5226
    %v6691 = vpack.c.b16 %v5243, %v5235
    %v6692 = vpack.c.b16 %v5244, %v5236
    %v6693 = vpack.c.b16 %v5245, %v5237
    %v6694 = vpack.c.b16 %v5246, %v5238
    %v6695 = vpack.c.b16 %v5247, %v5239
    %v6696 = vpack.c.b16 %v5248, %v5240
    %v6697 = vpack.c.b16 %v5249, %v5241
    %v6698 = vpack.c.b16 %v5250, %v5242
    %v6699 = vpack.c.b16 %v5259, %v5251
    %v6700 = vpack.c.b16 %v5260, %v5252
    %v6701 = vpack.c.b16 %v5261, %v5253
    %v6702 = vpack.c.b16 %v5262, %v5254
    %v6703 = vpack.c.b16 %v5263, %v5255
    %v6704 = vpack.c.b16 %v5264, %v5256
    %v6705 = vpack.c.b16 %v5265, %v5257
    %v6706 = vpack.c.b16 %v5266, %v5258
    %v6707 = vpack.c.b16 %v5275, %v5267
    %v6708 = vpack.c.b16 %v5276, %v5268
    %v6709 = vpack.c.b16 %v5277, %v5269
    %v6710 = vpack.c.b16 %v5278, %v5270
    %v6711 = vpack.c.b16 %v5279, %v5271
    %v6712 = vpack.c.b16 %v5280, %v5272
    %v6713 = vpack.c.b16 %v5281, %v5273
    %v6714 = vpack.c.b16 %v5282, %v5274
    %v6715 = vpack.c.b16 %v5291, %v5283
    %v6716 = vpack.c.b16 %v5292, %v5284
    %v6717 = vpack.c.b16 %v5293, %v5285
    %v6718 = vpack.c.b16 %v5294, %v5286
    %v6719 = vpack.c.b16 %v5295, %v5287
    %v6720 = vpack.c.b16 %v5296, %v5288
    %v6721 = vpack.c.b16 %v5297, %v5289
    %v6722 = vpack.c.b16 %v5298, %v5290
    %v6723 = vpack.c.b16 %v5307, %v5299
    %v6724 = vpack.c.b16 %v5308, %v5300
    %v6725 = vpack.c.b16 %v5309, %v5301
    %v6726 = vpack.c.b16 %v5310, %v5302
    %v6727 = vpack.c.b16 %v5311, %v5303
    %v6728 = vpack.c.b16 %v5312, %v5304
    %v6729 = vpack.c.b16 %v5313, %v5305
    %v6730 = vpack.c.b16 %v5314, %v5306
    %v6731 = vpack.c.b16 %v5323, %v5315
    %v6732 = vpack.c.b16 %v5324, %v5316
    %v6733 = vpack.c.b16 %v5325, %v5317
    %v6734 = vpack.c.b16 %v5326, %v5318
    %v6735 = vpack.c.b16 %v5327, %v5319
    %v6736 = vpack.c.b16 %v5328, %v5320
    %v6737 = vpack.c.b16 %v5329, %v5321
    %v6738 = vpack.c.b16 %v5330, %v5322
    %v6739 = vpack.c.b16 %v5339, %v5331
    %v6740 = vpack.c.b16 %v5340, %v5332
    %v6741 = vpack.c.b16 %v5341, %v5333
    %v6742 = vpack.c.b16 %v5342, %v5334
    %v6743 = vpack.c.b16 %v5343, %v5335
    %v6744 = vpack.c.b16 %v5344, %v5336
    %v6745 = vpack.c.b16 %v5345, %v5337
    %v6746 = vpack.c.b16 %v5346, %v5338
    %v6747 = vpack.c.b16 %v5355, %v5347
    %v6748 = vpack.c.b16 %v5356, %v5348
    %v6749 = vpack.c.b16 %v5357, %v5349
    %v6750 = vpack.c.b16 %v5358, %v5350
    %v6751 = vpack.c.b16 %v5359, %v5351
    %v6752 = vpack.c.b16 %v5360, %v5352
    %v6753 = vpack.c.b16 %v5361, %v5353
    %v6754 = vpack.c.b16 %v5362, %v5354
    %v6755 = vpack.c.b16 %v5371, %v5363
    %v6756 = vpack.c.b16 %v5372, %v5364
    %v6757 = vpack.c.b16 %v5373, %v5365
    %v6758 = vpack.c.b16 %v5374, %v5366
    %v6759 = vpack.c.b16 %v5375, %v5367
    %v6760 = vpack.c.b16 %v5376, %v5368
    %v6761 = vpack.c.b16 %v5377, %v5369
    %v6762 = vpack.c.b16 %v5378, %v5370
    %v6763 = vpack.c.b16 %v5387, %v5379
    %v6764 = vpack.c.b16 %v5388, %v5380
    %v6765 = vpack.c.b16 %v5389, %v5381
    %v6766 = vpack.c.b16 %v5390, %v5382
    %v6767 = vpack.c.b16 %v5391, %v5383
    %v6768 = vpack.c.b16 %v5392, %v5384
    %v6769 = vpack.c.b16 %v5393, %v5385
    %v6770 = vpack.c.b16 %v5394, %v5386
    %v6771 = vpack.c.b16 %v5403, %v5395
    %v6772 = vpack.c.b16 %v5404, %v5396
    %v6773 = vpack.c.b16 %v5405, %v5397
    %v6774 = vpack.c.b16 %v5406, %v5398
    %v6775 = vpack.c.b16 %v5407, %v5399
    %v6776 = vpack.c.b16 %v5408, %v5400
    %v6777 = vpack.c.b16 %v5409, %v5401
    %v6778 = vpack.c.b16 %v5410, %v5402
    %v6779 = vpack.c.b16 %v5419, %v5411
    %v6780 = vpack.c.b16 %v5420, %v5412
    %v6781 = vpack.c.b16 %v5421, %v5413
    %v6782 = vpack.c.b16 %v5422, %v5414
    %v6783 = vpack.c.b16 %v5423, %v5415
    %v6784 = vpack.c.b16 %v5424, %v5416
    %v6785 = vpack.c.b16 %v5425, %v5417
    %v6786 = vpack.c.b16 %v5426, %v5418
    %v6787 = vpack.c.b16 %v5435, %v5427
    %v6788 = vpack.c.b16 %v5436, %v5428
    %v6789 = vpack.c.b16 %v5437, %v5429
    %v6790 = vpack.c.b16 %v5438, %v5430
    %v6791 = vpack.c.b16 %v5439, %v5431
    %v6792 = vpack.c.b16 %v5440, %v5432
    %v6793 = vpack.c.b16 %v5441, %v5433
    %v6794 = vpack.c.b16 %v5442, %v5434
    %v6795 = vpack.c.b16 %v5451, %v5443
    %v6796 = vpack.c.b16 %v5452, %v5444
    %v6797 = vpack.c.b16 %v5453, %v5445
    %v6798 = vpack.c.b16 %v5454, %v5446
    %v6799 = vpack.c.b16 %v5455, %v5447
    %v6800 = vpack.c.b16 %v5456, %v5448
    %v6801 = vpack.c.b16 %v5457, %v5449
    %v6802 = vpack.c.b16 %v5458, %v5450
    %v6803 = vpack.c.b16 %v5467, %v5459
    %v6804 = vpack.c.b16 %v5468, %v5460
    %v6805 = vpack.c.b16 %v5469, %v5461
    %v6806 = vpack.c.b16 %v5470, %v5462
    %v6807 = vpack.c.b16 %v5471, %v5463
    %v6808 = vpack.c.b16 %v5472, %v5464
    %v6809 = vpack.c.b16 %v5473, %v5465
    %v6810 = vpack.c.b16 %v5474, %v5466
    %v6811 = vpack.c.b16 %v5483, %v5475
    %v6812 = vpack.c.b16 %v5484, %v5476
    %v6813 = vpack.c.b16 %v5485, %v5477
    %v6814 = vpack.c.b16 %v5486, %v5478
    %v6815 = vpack.c.b16 %v5487, %v5479
    %v6816 = vpack.c.b16 %v5488, %v5480
    %v6817 = vpack.c.b16 %v5489, %v5481
    %v6818 = vpack.c.b16 %v5490, %v5482
    %v6819 = vpack.c.b16 %v5499, %v5491
    %v6820 = vpack.c.b16 %v5500, %v5492
    %v6821 = vpack.c.b16 %v5501, %v5493
    %v6822 = vpack.c.b16 %v5502, %v5494
    %v6823 = vpack.c.b16 %v5503, %v5495
    %v6824 = vpack.c.b16 %v5504, %v5496
    %v6825 = vpack.c.b16 %v5505, %v5497
    %v6826 = vpack.c.b16 %v5506, %v5498
    %vm8147 = vcmask 654336
    %v8149 = vsel %vm8147, %v184, 0
    %8151 = vmatprep.subr.bf16.mxu0 %v5564
    %8152 = vmatpush1.bf16.msra.mxu0 %v5563
    %8153 = vmatprep.subr.bf16.mxu0 %v5556
    %8154 = vmatpush1.bf16.msra.mxu0 %v5555
    %8155 = vmatprep.subr.bf16.mxu0 %v5548
    %8156 = vmatpush1.bf16.msra.mxu0 %v5547
    %8157 = vmatprep.subr.bf16.mxu0 %v5540
    %8158 = vmatpush1.bf16.msra.mxu0 %v5539
    %8159 = vmatprep.subr.bf16.mxu0 %v5532
    %8160 = vmatpush1.bf16.msra.mxu0 %v5531
    %8161 = vmatprep.subr.bf16.mxu0 %v5524
    %8162 = vmatpush1.bf16.msra.mxu0 %v5523
    %8163 = vmatprep.subr.bf16.mxu0 %v5516
    %8164 = vmatpush1.bf16.msra.mxu0 %v5515
    %8165 = vmatprep.subr.bf16.mxu0 %v5508
    %8166 = vmatpush1.bf16.msra.mxu0 %v5507
    %8167 = vmatprep.subr.bf16.mxu0 %v5628
    %8168 = vmatpush2.bf16.msra.mxu0 %v5627
    %8169 = vmatprep.subr.bf16.mxu0 %v5620
    %8170 = vmatpush2.bf16.msra.mxu0 %v5619
    %8171 = vmatprep.subr.bf16.mxu0 %v5612
    %8172 = vmatpush2.bf16.msra.mxu0 %v5611
    %8173 = vmatprep.subr.bf16.mxu0 %v5604
    %8174 = vmatpush2.bf16.msra.mxu0 %v5603
    %8175 = vmatprep.subr.bf16.mxu0 %v5596
    %8176 = vmatpush2.bf16.msra.mxu0 %v5595
    %8177 = vmatprep.subr.bf16.mxu0 %v5588
    %8178 = vmatpush2.bf16.msra.mxu0 %v5587
    %8179 = vmatprep.subr.bf16.mxu0 %v5580
    %8180 = vmatpush2.bf16.msra.mxu0 %v5579
    %8181 = vmatprep.subr.bf16.mxu0 %v5572
    %8182 = vmatpush2.bf16.msra.mxu0 %v5571
    %8183 = vmatprep.mubr.bf16.mxu0 %v165
    %8184 = vmatmul.mubr.bf16.gmra.mxu0 %v164
    %v8185 = vpop.f32.mrf.mxu0
    %v8186 = vadd.f32 %v1510, %v8185
    %v8187 = vpop.f32.mrf.mxu0
    %v8188 = vadd.f32 %v1514, %v8187
    %v8189 = vpop.f32.mrf.mxu0
    %v8190 = vadd.f32 %v1510, %v8189
    %v8191 = vpop.f32.mrf.mxu0
    %v8192 = vadd.f32 %v1514, %v8191
    %8193 = vdwg.mxu0
    %8194 = vmatprep.subr.bf16.mxu0 %v5692
    %8195 = vmatpush1.bf16.msra.mxu0 %v5691
    %8196 = vmatprep.subr.bf16.mxu0 %v5684
    %8197 = vmatpush1.bf16.msra.mxu0 %v5683
    %8198 = vmatprep.subr.bf16.mxu0 %v5676
    %8199 = vmatpush1.bf16.msra.mxu0 %v5675
    %8200 = vmatprep.subr.bf16.mxu0 %v5668
    %8201 = vmatpush1.bf16.msra.mxu0 %v5667
    %8202 = vmatprep.subr.bf16.mxu0 %v5660
    %8203 = vmatpush1.bf16.msra.mxu0 %v5659
    %8204 = vmatprep.subr.bf16.mxu0 %v5652
    %8205 = vmatpush1.bf16.msra.mxu0 %v5651
    %8206 = vmatprep.subr.bf16.mxu0 %v5644
    %8207 = vmatpush1.bf16.msra.mxu0 %v5643
    %8208 = vmatprep.subr.bf16.mxu0 %v5636
    %8209 = vmatpush1.bf16.msra.mxu0 %v5635
    %8210 = vmatprep.subr.bf16.mxu0 %v5756
    %8211 = vmatpush2.bf16.msra.mxu0 %v5755
    %8212 = vmatprep.subr.bf16.mxu0 %v5748
    %8213 = vmatpush2.bf16.msra.mxu0 %v5747
    %8214 = vmatprep.subr.bf16.mxu0 %v5740
    %8215 = vmatpush2.bf16.msra.mxu0 %v5739
    %8216 = vmatprep.subr.bf16.mxu0 %v5732
    %8217 = vmatpush2.bf16.msra.mxu0 %v5731
    %8218 = vmatprep.subr.bf16.mxu0 %v5724
    %8219 = vmatpush2.bf16.msra.mxu0 %v5723
    %8220 = vmatprep.subr.bf16.mxu0 %v5716
    %8221 = vmatpush2.bf16.msra.mxu0 %v5715
    %8222 = vmatprep.subr.bf16.mxu0 %v5708
    %8223 = vmatpush2.bf16.msra.mxu0 %v5707
    %8224 = vmatprep.subr.bf16.mxu0 %v5700
    %8225 = vmatpush2.bf16.msra.mxu0 %v5699
    %8226 = vmatprep.mubr.bf16.mxu0 %v167
    %8227 = vmatmul.mubr.bf16.gmra.mxu0 %v166
    %v8228 = vpop.f32.mrf.mxu0
    %v8229 = vadd.f32 %v8186, %v8228
    %v8230 = vpop.f32.mrf.mxu0
    %v8231 = vadd.f32 %v8188, %v8230
    %v8232 = vpop.f32.mrf.mxu0
    %v8233 = vadd.f32 %v8190, %v8232
    %v8234 = vpop.f32.mrf.mxu0
    %v8235 = vadd.f32 %v8192, %v8234
    %8236 = vdwg.mxu0
    %8237 = vmatprep.subr.bf16.mxu0 %v5820
    %8238 = vmatpush1.bf16.msra.mxu0 %v5819
    %8239 = vmatprep.subr.bf16.mxu0 %v5812
    %8240 = vmatpush1.bf16.msra.mxu0 %v5811
    %8241 = vmatprep.subr.bf16.mxu0 %v5804
    %8242 = vmatpush1.bf16.msra.mxu0 %v5803
    %8243 = vmatprep.subr.bf16.mxu0 %v5796
    %8244 = vmatpush1.bf16.msra.mxu0 %v5795
    %8245 = vmatprep.subr.bf16.mxu0 %v5788
    %8246 = vmatpush1.bf16.msra.mxu0 %v5787
    %8247 = vmatprep.subr.bf16.mxu0 %v5780
    %8248 = vmatpush1.bf16.msra.mxu0 %v5779
    %8249 = vmatprep.subr.bf16.mxu0 %v5772
    %8250 = vmatpush1.bf16.msra.mxu0 %v5771
    %8251 = vmatprep.subr.bf16.mxu0 %v5764
    %8252 = vmatpush1.bf16.msra.mxu0 %v5763
    %8253 = vmatprep.subr.bf16.mxu0 %v5884
    %8254 = vmatpush2.bf16.msra.mxu0 %v5883
    %8255 = vmatprep.subr.bf16.mxu0 %v5876
    %8256 = vmatpush2.bf16.msra.mxu0 %v5875
    %8257 = vmatprep.subr.bf16.mxu0 %v5868
    %8258 = vmatpush2.bf16.msra.mxu0 %v5867
    %8259 = vmatprep.subr.bf16.mxu0 %v5860
    %8260 = vmatpush2.bf16.msra.mxu0 %v5859
    %8261 = vmatprep.subr.bf16.mxu0 %v5852
    %8262 = vmatpush2.bf16.msra.mxu0 %v5851
    %8263 = vmatprep.subr.bf16.mxu0 %v5844
    %8264 = vmatpush2.bf16.msra.mxu0 %v5843
    %8265 = vmatprep.subr.bf16.mxu0 %v5836
    %8266 = vmatpush2.bf16.msra.mxu0 %v5835
    %8267 = vmatprep.subr.bf16.mxu0 %v5828
    %8268 = vmatpush2.bf16.msra.mxu0 %v5827
    %8269 = vmatprep.mubr.bf16.mxu0 %v169
    %8270 = vmatmul.mubr.bf16.gmra.mxu0 %v168
    %v8271 = vpop.f32.mrf.mxu0
    %v8272 = vadd.f32 %v8229, %v8271
    %v8273 = vpop.f32.mrf.mxu0
    %v8274 = vadd.f32 %v8231, %v8273
    %v8275 = vpop.f32.mrf.mxu0
    %v8276 = vadd.f32 %v8233, %v8275
    %v8277 = vpop.f32.mrf.mxu0
    %v8278 = vadd.f32 %v8235, %v8277
    %8279 = vdwg.mxu0
    %8280 = vmatprep.subr.bf16.mxu0 %v5948
    %8281 = vmatpush1.bf16.msra.mxu0 %v5947
    %8282 = vmatprep.subr.bf16.mxu0 %v5940
    %8283 = vmatpush1.bf16.msra.mxu0 %v5939
    %8284 = vmatprep.subr.bf16.mxu0 %v5932
    %8285 = vmatpush1.bf16.msra.mxu0 %v5931
    %8286 = vmatprep.subr.bf16.mxu0 %v5924
    %8287 = vmatpush1.bf16.msra.mxu0 %v5923
    %8288 = vmatprep.subr.bf16.mxu0 %v5916
    %8289 = vmatpush1.bf16.msra.mxu0 %v5915
    %8290 = vmatprep.subr.bf16.mxu0 %v5908
    %8291 = vmatpush1.bf16.msra.mxu0 %v5907
    %8292 = vmatprep.subr.bf16.mxu0 %v5900
    %8293 = vmatpush1.bf16.msra.mxu0 %v5899
    %8294 = vmatprep.subr.bf16.mxu0 %v5892
    %8295 = vmatpush1.bf16.msra.mxu0 %v5891
    %8296 = vmatprep.subr.bf16.mxu0 %v6012
    %8297 = vmatpush2.bf16.msra.mxu0 %v6011
    %8298 = vmatprep.subr.bf16.mxu0 %v6004
    %8299 = vmatpush2.bf16.msra.mxu0 %v6003
    %8300 = vmatprep.subr.bf16.mxu0 %v5996
    %8301 = vmatpush2.bf16.msra.mxu0 %v5995
    %8302 = vmatprep.subr.bf16.mxu0 %v5988
    %8303 = vmatpush2.bf16.msra.mxu0 %v5987
    %8304 = vmatprep.subr.bf16.mxu0 %v5980
    %8305 = vmatpush2.bf16.msra.mxu0 %v5979
    %8306 = vmatprep.subr.bf16.mxu0 %v5972
    %8307 = vmatpush2.bf16.msra.mxu0 %v5971
    %8308 = vmatprep.subr.bf16.mxu0 %v5964
    %8309 = vmatpush2.bf16.msra.mxu0 %v5963
    %8310 = vmatprep.subr.bf16.mxu0 %v5956
    %8311 = vmatpush2.bf16.msra.mxu0 %v5955
    %8312 = vmatprep.mubr.bf16.mxu0 %v171
    %8313 = vmatmul.mubr.bf16.gmra.mxu0 %v170
    %v8314 = vpop.f32.mrf.mxu0
    %v8315 = vadd.f32 %v8272, %v8314
    %v8316 = vpop.f32.mrf.mxu0
    %v8317 = vadd.f32 %v8274, %v8316
    %v8318 = vpop.f32.mrf.mxu0
    %v8319 = vadd.f32 %v8276, %v8318
    %v8320 = vpop.f32.mrf.mxu0
    %v8321 = vadd.f32 %v8278, %v8320
    %8322 = vdwg.mxu0
    %8323 = vmatprep.subr.bf16.mxu0 %v6076
    %8324 = vmatpush1.bf16.msra.mxu0 %v6075
    %8325 = vmatprep.subr.bf16.mxu0 %v6068
    %8326 = vmatpush1.bf16.msra.mxu0 %v6067
    %8327 = vmatprep.subr.bf16.mxu0 %v6060
    %8328 = vmatpush1.bf16.msra.mxu0 %v6059
    %8329 = vmatprep.subr.bf16.mxu0 %v6052
    %8330 = vmatpush1.bf16.msra.mxu0 %v6051
    %8331 = vmatprep.subr.bf16.mxu0 %v6044
    %8332 = vmatpush1.bf16.msra.mxu0 %v6043
    %8333 = vmatprep.subr.bf16.mxu0 %v6036
    %8334 = vmatpush1.bf16.msra.mxu0 %v6035
    %8335 = vmatprep.subr.bf16.mxu0 %v6028
    %8336 = vmatpush1.bf16.msra.mxu0 %v6027
    %8337 = vmatprep.subr.bf16.mxu0 %v6020
    %8338 = vmatpush1.bf16.msra.mxu0 %v6019
    %8339 = vmatprep.subr.bf16.mxu0 %v6140
    %8340 = vmatpush2.bf16.msra.mxu0 %v6139
    %8341 = vmatprep.subr.bf16.mxu0 %v6132
    %8342 = vmatpush2.bf16.msra.mxu0 %v6131
    %8343 = vmatprep.subr.bf16.mxu0 %v6124
    %8344 = vmatpush2.bf16.msra.mxu0 %v6123
    %8345 = vmatprep.subr.bf16.mxu0 %v6116
    %8346 = vmatpush2.bf16.msra.mxu0 %v6115
    %8347 = vmatprep.subr.bf16.mxu0 %v6108
    %8348 = vmatpush2.bf16.msra.mxu0 %v6107
    %8349 = vmatprep.subr.bf16.mxu0 %v6100
    %8350 = vmatpush2.bf16.msra.mxu0 %v6099
    %8351 = vmatprep.subr.bf16.mxu0 %v6092
    %8352 = vmatpush2.bf16.msra.mxu0 %v6091
    %8353 = vmatprep.subr.bf16.mxu0 %v6084
    %8354 = vmatpush2.bf16.msra.mxu0 %v6083
    %8355 = vmatprep.mubr.bf16.mxu0 %v173
    %8356 = vmatmul.mubr.bf16.gmra.mxu0 %v172
    %v8357 = vpop.f32.mrf.mxu0
    %v8358 = vadd.f32 %v8315, %v8357
    %v8359 = vpop.f32.mrf.mxu0
    %v8360 = vadd.f32 %v8317, %v8359
    %v8361 = vpop.f32.mrf.mxu0
    %v8362 = vadd.f32 %v8319, %v8361
    %v8363 = vpop.f32.mrf.mxu0
    %v8364 = vadd.f32 %v8321, %v8363
    %8365 = vdwg.mxu0
    %8366 = vmatprep.subr.bf16.mxu0 %v6204
    %8367 = vmatpush1.bf16.msra.mxu0 %v6203
    %8368 = vmatprep.subr.bf16.mxu0 %v6196
    %8369 = vmatpush1.bf16.msra.mxu0 %v6195
    %8370 = vmatprep.subr.bf16.mxu0 %v6188
    %8371 = vmatpush1.bf16.msra.mxu0 %v6187
    %8372 = vmatprep.subr.bf16.mxu0 %v6180
    %8373 = vmatpush1.bf16.msra.mxu0 %v6179
    %8374 = vmatprep.subr.bf16.mxu0 %v6172
    %8375 = vmatpush1.bf16.msra.mxu0 %v6171
    %8376 = vmatprep.subr.bf16.mxu0 %v6164
    %8377 = vmatpush1.bf16.msra.mxu0 %v6163
    %8378 = vmatprep.subr.bf16.mxu0 %v6156
    %8379 = vmatpush1.bf16.msra.mxu0 %v6155
    %8380 = vmatprep.subr.bf16.mxu0 %v6148
    %8381 = vmatpush1.bf16.msra.mxu0 %v6147
    %8382 = vmatprep.subr.bf16.mxu0 %v6268
    %8383 = vmatpush2.bf16.msra.mxu0 %v6267
    %8384 = vmatprep.subr.bf16.mxu0 %v6260
    %8385 = vmatpush2.bf16.msra.mxu0 %v6259
    %8386 = vmatprep.subr.bf16.mxu0 %v6252
    %8387 = vmatpush2.bf16.msra.mxu0 %v6251
    %8388 = vmatprep.subr.bf16.mxu0 %v6244
    %8389 = vmatpush2.bf16.msra.mxu0 %v6243
    %8390 = vmatprep.subr.bf16.mxu0 %v6236
    %8391 = vmatpush2.bf16.msra.mxu0 %v6235
    %8392 = vmatprep.subr.bf16.mxu0 %v6228
    %8393 = vmatpush2.bf16.msra.mxu0 %v6227
    %8394 = vmatprep.subr.bf16.mxu0 %v6220
    %8395 = vmatpush2.bf16.msra.mxu0 %v6219
    %8396 = vmatprep.subr.bf16.mxu0 %v6212
    %8397 = vmatpush2.bf16.msra.mxu0 %v6211
    %8398 = vmatprep.mubr.bf16.mxu0 %v175
    %8399 = vmatmul.mubr.bf16.gmra.mxu0 %v174
    %v8400 = vpop.f32.mrf.mxu0
    %v8401 = vadd.f32 %v8358, %v8400
    %v8402 = vpop.f32.mrf.mxu0
    %v8403 = vadd.f32 %v8360, %v8402
    %v8404 = vpop.f32.mrf.mxu0
    %v8405 = vadd.f32 %v8362, %v8404
    %v8406 = vpop.f32.mrf.mxu0
    %v8407 = vadd.f32 %v8364, %v8406
    %8408 = vdwg.mxu0
    %8409 = vmatprep.subr.bf16.mxu0 %v6332
    %8410 = vmatpush1.bf16.msra.mxu0 %v6331
    %8411 = vmatprep.subr.bf16.mxu0 %v6324
    %8412 = vmatpush1.bf16.msra.mxu0 %v6323
    %8413 = vmatprep.subr.bf16.mxu0 %v6316
    %8414 = vmatpush1.bf16.msra.mxu0 %v6315
    %8415 = vmatprep.subr.bf16.mxu0 %v6308
    %8416 = vmatpush1.bf16.msra.mxu0 %v6307
    %8417 = vmatprep.subr.bf16.mxu0 %v6300
    %8418 = vmatpush1.bf16.msra.mxu0 %v6299
    %8419 = vmatprep.subr.bf16.mxu0 %v6292
    %8420 = vmatpush1.bf16.msra.mxu0 %v6291
    %8421 = vmatprep.subr.bf16.mxu0 %v6284
    %8422 = vmatpush1.bf16.msra.mxu0 %v6283
    %8423 = vmatprep.subr.bf16.mxu0 %v6276
    %8424 = vmatpush1.bf16.msra.mxu0 %v6275
    %8425 = vmatprep.subr.bf16.mxu0 %v6396
    %8426 = vmatpush2.bf16.msra.mxu0 %v6395
    %8427 = vmatprep.subr.bf16.mxu0 %v6388
    %8428 = vmatpush2.bf16.msra.mxu0 %v6387
    %8429 = vmatprep.subr.bf16.mxu0 %v6380
    %8430 = vmatpush2.bf16.msra.mxu0 %v6379
    %8431 = vmatprep.subr.bf16.mxu0 %v6372
    %8432 = vmatpush2.bf16.msra.mxu0 %v6371
    %8433 = vmatprep.subr.bf16.mxu0 %v6364
    %8434 = vmatpush2.bf16.msra.mxu0 %v6363
    %8435 = vmatprep.subr.bf16.mxu0 %v6356
    %8436 = vmatpush2.bf16.msra.mxu0 %v6355
    %8437 = vmatprep.subr.bf16.mxu0 %v6348
    %8438 = vmatpush2.bf16.msra.mxu0 %v6347
    %8439 = vmatprep.subr.bf16.mxu0 %v6340
    %8440 = vmatpush2.bf16.msra.mxu0 %v6339
    %8441 = vmatprep.mubr.bf16.mxu0 %v177
    %8442 = vmatmul.mubr.bf16.gmra.mxu0 %v176
    %v8443 = vpop.f32.mrf.mxu0
    %v8444 = vadd.f32 %v8401, %v8443
    %v8445 = vpop.f32.mrf.mxu0
    %v8446 = vadd.f32 %v8403, %v8445
    %v8447 = vpop.f32.mrf.mxu0
    %v8448 = vadd.f32 %v8405, %v8447
    %v8449 = vpop.f32.mrf.mxu0
    %v8450 = vadd.f32 %v8407, %v8449
    %8451 = vdwg.mxu0
    %8452 = vmatprep.subr.bf16.mxu0 %v6460
    %8453 = vmatpush1.bf16.msra.mxu0 %v6459
    %8454 = vmatprep.subr.bf16.mxu0 %v6452
    %8455 = vmatpush1.bf16.msra.mxu0 %v6451
    %8456 = vmatprep.subr.bf16.mxu0 %v6444
    %8457 = vmatpush1.bf16.msra.mxu0 %v6443
    %8458 = vmatprep.subr.bf16.mxu0 %v6436
    %8459 = vmatpush1.bf16.msra.mxu0 %v6435
    %8460 = vmatprep.subr.bf16.mxu0 %v6428
    %8461 = vmatpush1.bf16.msra.mxu0 %v6427
    %8462 = vmatprep.subr.bf16.mxu0 %v6420
    %8463 = vmatpush1.bf16.msra.mxu0 %v6419
    %8464 = vmatprep.subr.bf16.mxu0 %v6412
    %8465 = vmatpush1.bf16.msra.mxu0 %v6411
    %8466 = vmatprep.subr.bf16.mxu0 %v6404
    %8467 = vmatpush1.bf16.msra.mxu0 %v6403
    %8468 = vmatprep.subr.bf16.mxu0 %v6524
    %8469 = vmatpush2.bf16.msra.mxu0 %v6523
    %8470 = vmatprep.subr.bf16.mxu0 %v6516
    %8471 = vmatpush2.bf16.msra.mxu0 %v6515
    %8472 = vmatprep.subr.bf16.mxu0 %v6508
    %8473 = vmatpush2.bf16.msra.mxu0 %v6507
    %8474 = vmatprep.subr.bf16.mxu0 %v6500
    %8475 = vmatpush2.bf16.msra.mxu0 %v6499
    %8476 = vmatprep.subr.bf16.mxu0 %v6492
    %8477 = vmatpush2.bf16.msra.mxu0 %v6491
    %8478 = vmatprep.subr.bf16.mxu0 %v6484
    %8479 = vmatpush2.bf16.msra.mxu0 %v6483
    %8480 = vmatprep.subr.bf16.mxu0 %v6476
    %8481 = vmatpush2.bf16.msra.mxu0 %v6475
    %8482 = vmatprep.subr.bf16.mxu0 %v6468
    %8483 = vmatpush2.bf16.msra.mxu0 %v6467
    %8484 = vmatprep.mubr.bf16.mxu0 %v179
    %8485 = vmatmul.mubr.bf16.gmra.mxu0 %v178
    %v8486 = vpop.f32.mrf.mxu0
    %v8487 = vadd.f32 %v8444, %v8486
    %v8488 = vpop.f32.mrf.mxu0
    %v8489 = vadd.f32 %v8446, %v8488
    %v8490 = vpop.f32.mrf.mxu0
    %v8491 = vadd.f32 %v8448, %v8490
    %v8492 = vpop.f32.mrf.mxu0
    %v8493 = vadd.f32 %v8450, %v8492
    %8494 = vdwg.mxu0
    %8495 = vmatprep.subr.bf16.mxu0 %v6588
    %8496 = vmatpush1.bf16.msra.mxu0 %v6587
    %8497 = vmatprep.subr.bf16.mxu0 %v6580
    %8498 = vmatpush1.bf16.msra.mxu0 %v6579
    %8499 = vmatprep.subr.bf16.mxu0 %v6572
    %8500 = vmatpush1.bf16.msra.mxu0 %v6571
    %8501 = vmatprep.subr.bf16.mxu0 %v6564
    %8502 = vmatpush1.bf16.msra.mxu0 %v6563
    %8503 = vmatprep.subr.bf16.mxu0 %v6556
    %8504 = vmatpush1.bf16.msra.mxu0 %v6555
    %8505 = vmatprep.subr.bf16.mxu0 %v6548
    %8506 = vmatpush1.bf16.msra.mxu0 %v6547
    %8507 = vmatprep.subr.bf16.mxu0 %v6540
    %8508 = vmatpush1.bf16.msra.mxu0 %v6539
    %8509 = vmatprep.subr.bf16.mxu0 %v6532
    %8510 = vmatpush1.bf16.msra.mxu0 %v6531
    %8511 = vmatprep.subr.bf16.mxu0 %v6652
    %8512 = vmatpush2.bf16.msra.mxu0 %v6651
    %8513 = vmatprep.subr.bf16.mxu0 %v6644
    %8514 = vmatpush2.bf16.msra.mxu0 %v6643
    %8515 = vmatprep.subr.bf16.mxu0 %v6636
    %8516 = vmatpush2.bf16.msra.mxu0 %v6635
    %8517 = vmatprep.subr.bf16.mxu0 %v6628
    %8518 = vmatpush2.bf16.msra.mxu0 %v6627
    %8519 = vmatprep.subr.bf16.mxu0 %v6620
    %8520 = vmatpush2.bf16.msra.mxu0 %v6619
    %8521 = vmatprep.subr.bf16.mxu0 %v6612
    %8522 = vmatpush2.bf16.msra.mxu0 %v6611
    %8523 = vmatprep.subr.bf16.mxu0 %v6604
    %8524 = vmatpush2.bf16.msra.mxu0 %v6603
    %8525 = vmatprep.subr.bf16.mxu0 %v6596
    %8526 = vmatpush2.bf16.msra.mxu0 %v6595
    %8527 = vmatprep.mubr.bf16.mxu0 %v181
    %8528 = vmatmul.mubr.bf16.gmra.mxu0 %v180
    %v8529 = vpop.f32.mrf.mxu0
    %v8530 = vadd.f32 %v8487, %v8529
    %v8531 = vpop.f32.mrf.mxu0
    %v8532 = vadd.f32 %v8489, %v8531
    %v8533 = vpop.f32.mrf.mxu0
    %v8534 = vadd.f32 %v8491, %v8533
    %v8535 = vpop.f32.mrf.mxu0
    %v8536 = vadd.f32 %v8493, %v8535
    %8537 = vdwg.mxu0
    %8538 = vmatprep.subr.bf16.mxu0 %v6716
    %8539 = vmatpush1.bf16.msra.mxu0 %v6715
    %8540 = vmatprep.subr.bf16.mxu0 %v6708
    %8541 = vmatpush1.bf16.msra.mxu0 %v6707
    %8542 = vmatprep.subr.bf16.mxu0 %v6700
    %8543 = vmatpush1.bf16.msra.mxu0 %v6699
    %8544 = vmatprep.subr.bf16.mxu0 %v6692
    %8545 = vmatpush1.bf16.msra.mxu0 %v6691
    %8546 = vmatprep.subr.bf16.mxu0 %v6684
    %8547 = vmatpush1.bf16.msra.mxu0 %v6683
    %8548 = vmatprep.subr.bf16.mxu0 %v6676
    %8549 = vmatpush1.bf16.msra.mxu0 %v6675
    %8550 = vmatprep.subr.bf16.mxu0 %v6668
    %8551 = vmatpush1.bf16.msra.mxu0 %v6667
    %8552 = vmatprep.subr.bf16.mxu0 %v6660
    %8553 = vmatpush1.bf16.msra.mxu0 %v6659
    %8554 = vmatprep.subr.bf16.mxu0 %v6780
    %8555 = vmatpush2.bf16.msra.mxu0 %v6779
    %8556 = vmatprep.subr.bf16.mxu0 %v6772
    %8557 = vmatpush2.bf16.msra.mxu0 %v6771
    %8558 = vmatprep.subr.bf16.mxu0 %v6764
    %8559 = vmatpush2.bf16.msra.mxu0 %v6763
    %8560 = vmatprep.subr.bf16.mxu0 %v6756
    %8561 = vmatpush2.bf16.msra.mxu0 %v6755
    %8562 = vmatprep.subr.bf16.mxu0 %v6748
    %8563 = vmatpush2.bf16.msra.mxu0 %v6747
    %8564 = vmatprep.subr.bf16.mxu0 %v6740
    %8565 = vmatpush2.bf16.msra.mxu0 %v6739
    %8566 = vmatprep.subr.bf16.mxu0 %v6732
    %8567 = vmatpush2.bf16.msra.mxu0 %v6731
    %8568 = vmatprep.subr.bf16.mxu0 %v6724
    %8569 = vmatpush2.bf16.msra.mxu0 %v6723
    %8570 = vmatprep.mubr.bf16.mxu0 %v183
    %8571 = vmatmul.mubr.bf16.gmra.mxu0 %v182
    %v8572 = vpop.f32.mrf.mxu0
    %v8573 = vadd.f32 %v8530, %v8572
    %v8574 = vpop.f32.mrf.mxu0
    %v8575 = vadd.f32 %v8532, %v8574
    %v8576 = vpop.f32.mrf.mxu0
    %v8577 = vadd.f32 %v8534, %v8576
    %v8578 = vpop.f32.mrf.mxu0
    %v8579 = vadd.f32 %v8536, %v8578
    %8580 = vdwg.mxu0
    %8581 = vmatprep.subr.bf16.mxu0 0
    %8582 = vmatpush1.bf16.msra.mxu0 0
    %8583 = vmatprep.subr.bf16.mxu0 0
    %8584 = vmatpush1.bf16.msra.mxu0 0
    %8585 = vmatprep.subr.bf16.mxu0 0
    %8586 = vmatpush1.bf16.msra.mxu0 0
    %8587 = vmatprep.subr.bf16.mxu0 %v6820
    %8588 = vmatpush1.bf16.msra.mxu0 %v6819
    %8589 = vmatprep.subr.bf16.mxu0 %v6812
    %8590 = vmatpush1.bf16.msra.mxu0 %v6811
    %8591 = vmatprep.subr.bf16.mxu0 %v6804
    %8592 = vmatpush1.bf16.msra.mxu0 %v6803
    %8593 = vmatprep.subr.bf16.mxu0 %v6796
    %8594 = vmatpush1.bf16.msra.mxu0 %v6795
    %8595 = vmatprep.subr.bf16.mxu0 %v6788
    %8596 = vmatpush1.bf16.msra.mxu0 %v6787
    %8597 = vmatprep.subr.bf16.mxu0 0
    %8598 = vmatpush2.bf16.msra.mxu0 0
    %8599 = vmatprep.subr.bf16.mxu0 0
    %8600 = vmatpush2.bf16.msra.mxu0 0
    %8601 = vmatprep.subr.bf16.mxu0 0
    %8602 = vmatpush2.bf16.msra.mxu0 0
    %8603 = vmatprep.subr.bf16.mxu0 0
    %8604 = vmatpush2.bf16.msra.mxu0 0
    %8605 = vmatprep.subr.bf16.mxu0 0
    %8606 = vmatpush2.bf16.msra.mxu0 0
    %8607 = vmatprep.subr.bf16.mxu0 0
    %8608 = vmatpush2.bf16.msra.mxu0 0
    %8609 = vmatprep.subr.bf16.mxu0 0
    %8610 = vmatpush2.bf16.msra.mxu0 0
    %8611 = vmatprep.subr.bf16.mxu0 0
    %8612 = vmatpush2.bf16.msra.mxu0 0
    %8613 = vmatprep.mubr.bf16.mxu0 0
    %8614 = vmatmul.mubr.bf16.gmra.mxu0 %v8149
    %v8615 = vpop.f32.mrf.mxu0
    %v8616 = vadd.f32 %v8573, %v8615
    %v8617 = vpop.f32.mrf.mxu0
    %v8618 = vadd.f32 %v8575, %v8617
    %v8619 = vpop.f32.mrf.mxu0
    %v8620 = vadd.f32 %v8577, %v8619
    %v8621 = vpop.f32.mrf.mxu0
    %v8622 = vadd.f32 %v8579, %v8621
    %8623 = vdwg.mxu0
    %8624 = vmatprep.subr.bf16.mxu0 %v5566
    %8625 = vmatpush1.bf16.msra.mxu0 %v5565
    %8626 = vmatprep.subr.bf16.mxu0 %v5558
    %8627 = vmatpush1.bf16.msra.mxu0 %v5557
    %8628 = vmatprep.subr.bf16.mxu0 %v5550
    %8629 = vmatpush1.bf16.msra.mxu0 %v5549
    %8630 = vmatprep.subr.bf16.mxu0 %v5542
    %8631 = vmatpush1.bf16.msra.mxu0 %v5541
    %8632 = vmatprep.subr.bf16.mxu0 %v5534
    %8633 = vmatpush1.bf16.msra.mxu0 %v5533
    %8634 = vmatprep.subr.bf16.mxu0 %v5526
    %8635 = vmatpush1.bf16.msra.mxu0 %v5525
    %8636 = vmatprep.subr.bf16.mxu0 %v5518
    %8637 = vmatpush1.bf16.msra.mxu0 %v5517
    %8638 = vmatprep.subr.bf16.mxu0 %v5510
    %8639 = vmatpush1.bf16.msra.mxu0 %v5509
    %8640 = vmatprep.subr.bf16.mxu0 %v5630
    %8641 = vmatpush2.bf16.msra.mxu0 %v5629
    %8642 = vmatprep.subr.bf16.mxu0 %v5622
    %8643 = vmatpush2.bf16.msra.mxu0 %v5621
    %8644 = vmatprep.subr.bf16.mxu0 %v5614
    %8645 = vmatpush2.bf16.msra.mxu0 %v5613
    %8646 = vmatprep.subr.bf16.mxu0 %v5606
    %8647 = vmatpush2.bf16.msra.mxu0 %v5605
    %8648 = vmatprep.subr.bf16.mxu0 %v5598
    %8649 = vmatpush2.bf16.msra.mxu0 %v5597
    %8650 = vmatprep.subr.bf16.mxu0 %v5590
    %8651 = vmatpush2.bf16.msra.mxu0 %v5589
    %8652 = vmatprep.subr.bf16.mxu0 %v5582
    %8653 = vmatpush2.bf16.msra.mxu0 %v5581
    %8654 = vmatprep.subr.bf16.mxu0 %v5574
    %8655 = vmatpush2.bf16.msra.mxu0 %v5573
    %8656 = vmatprep.mubr.bf16.mxu0 %v165
    %8657 = vmatmul.mubr.bf16.gmra.mxu0 %v164
    %v8658 = vpop.f32.mrf.mxu0
    %v8659 = vadd.f32 %v1518, %v8658
    %v8660 = vpop.f32.mrf.mxu0
    %v8661 = vadd.f32 %v1522, %v8660
    %v8662 = vpop.f32.mrf.mxu0
    %v8663 = vadd.f32 %v1518, %v8662
    %v8664 = vpop.f32.mrf.mxu0
    %v8665 = vadd.f32 %v1522, %v8664
    %8666 = vdwg.mxu0
    %8667 = vmatprep.subr.bf16.mxu0 %v5694
    %8668 = vmatpush1.bf16.msra.mxu0 %v5693
    %8669 = vmatprep.subr.bf16.mxu0 %v5686
    %8670 = vmatpush1.bf16.msra.mxu0 %v5685
    %8671 = vmatprep.subr.bf16.mxu0 %v5678
    %8672 = vmatpush1.bf16.msra.mxu0 %v5677
    %8673 = vmatprep.subr.bf16.mxu0 %v5670
    %8674 = vmatpush1.bf16.msra.mxu0 %v5669
    %8675 = vmatprep.subr.bf16.mxu0 %v5662
    %8676 = vmatpush1.bf16.msra.mxu0 %v5661
    %8677 = vmatprep.subr.bf16.mxu0 %v5654
    %8678 = vmatpush1.bf16.msra.mxu0 %v5653
    %8679 = vmatprep.subr.bf16.mxu0 %v5646
    %8680 = vmatpush1.bf16.msra.mxu0 %v5645
    %8681 = vmatprep.subr.bf16.mxu0 %v5638
    %8682 = vmatpush1.bf16.msra.mxu0 %v5637
    %8683 = vmatprep.subr.bf16.mxu0 %v5758
    %8684 = vmatpush2.bf16.msra.mxu0 %v5757
    %8685 = vmatprep.subr.bf16.mxu0 %v5750
    %8686 = vmatpush2.bf16.msra.mxu0 %v5749
    %8687 = vmatprep.subr.bf16.mxu0 %v5742
    %8688 = vmatpush2.bf16.msra.mxu0 %v5741
    %8689 = vmatprep.subr.bf16.mxu0 %v5734
    %8690 = vmatpush2.bf16.msra.mxu0 %v5733
    %8691 = vmatprep.subr.bf16.mxu0 %v5726
    %8692 = vmatpush2.bf16.msra.mxu0 %v5725
    %8693 = vmatprep.subr.bf16.mxu0 %v5718
    %8694 = vmatpush2.bf16.msra.mxu0 %v5717
    %8695 = vmatprep.subr.bf16.mxu0 %v5710
    %8696 = vmatpush2.bf16.msra.mxu0 %v5709
    %8697 = vmatprep.subr.bf16.mxu0 %v5702
    %8698 = vmatpush2.bf16.msra.mxu0 %v5701
    %8699 = vmatprep.mubr.bf16.mxu0 %v167
    %8700 = vmatmul.mubr.bf16.gmra.mxu0 %v166
    %v8701 = vpop.f32.mrf.mxu0
    %v8702 = vadd.f32 %v8659, %v8701
    %v8703 = vpop.f32.mrf.mxu0
    %v8704 = vadd.f32 %v8661, %v8703
    %v8705 = vpop.f32.mrf.mxu0
    %v8706 = vadd.f32 %v8663, %v8705
    %v8707 = vpop.f32.mrf.mxu0
    %v8708 = vadd.f32 %v8665, %v8707
    %8709 = vdwg.mxu0
    %8710 = vmatprep.subr.bf16.mxu0 %v5822
    %8711 = vmatpush1.bf16.msra.mxu0 %v5821
    %8712 = vmatprep.subr.bf16.mxu0 %v5814
    %8713 = vmatpush1.bf16.msra.mxu0 %v5813
    %8714 = vmatprep.subr.bf16.mxu0 %v5806
    %8715 = vmatpush1.bf16.msra.mxu0 %v5805
    %8716 = vmatprep.subr.bf16.mxu0 %v5798
    %8717 = vmatpush1.bf16.msra.mxu0 %v5797
    %8718 = vmatprep.subr.bf16.mxu0 %v5790
    %8719 = vmatpush1.bf16.msra.mxu0 %v5789
    %8720 = vmatprep.subr.bf16.mxu0 %v5782
    %8721 = vmatpush1.bf16.msra.mxu0 %v5781
    %8722 = vmatprep.subr.bf16.mxu0 %v5774
    %8723 = vmatpush1.bf16.msra.mxu0 %v5773
    %8724 = vmatprep.subr.bf16.mxu0 %v5766
    %8725 = vmatpush1.bf16.msra.mxu0 %v5765
    %8726 = vmatprep.subr.bf16.mxu0 %v5886
    %8727 = vmatpush2.bf16.msra.mxu0 %v5885
    %8728 = vmatprep.subr.bf16.mxu0 %v5878
    %8729 = vmatpush2.bf16.msra.mxu0 %v5877
    %8730 = vmatprep.subr.bf16.mxu0 %v5870
    %8731 = vmatpush2.bf16.msra.mxu0 %v5869
    %8732 = vmatprep.subr.bf16.mxu0 %v5862
    %8733 = vmatpush2.bf16.msra.mxu0 %v5861
    %8734 = vmatprep.subr.bf16.mxu0 %v5854
    %8735 = vmatpush2.bf16.msra.mxu0 %v5853
    %8736 = vmatprep.subr.bf16.mxu0 %v5846
    %8737 = vmatpush2.bf16.msra.mxu0 %v5845
    %8738 = vmatprep.subr.bf16.mxu0 %v5838
    %8739 = vmatpush2.bf16.msra.mxu0 %v5837
    %8740 = vmatprep.subr.bf16.mxu0 %v5830
    %8741 = vmatpush2.bf16.msra.mxu0 %v5829
    %8742 = vmatprep.mubr.bf16.mxu0 %v169
    %8743 = vmatmul.mubr.bf16.gmra.mxu0 %v168
    %v8744 = vpop.f32.mrf.mxu0
    %v8745 = vadd.f32 %v8702, %v8744
    %v8746 = vpop.f32.mrf.mxu0
    %v8747 = vadd.f32 %v8704, %v8746
    %v8748 = vpop.f32.mrf.mxu0
    %v8749 = vadd.f32 %v8706, %v8748
    %v8750 = vpop.f32.mrf.mxu0
    %v8751 = vadd.f32 %v8708, %v8750
    %8752 = vdwg.mxu0
    %8753 = vmatprep.subr.bf16.mxu0 %v5950
    %8754 = vmatpush1.bf16.msra.mxu0 %v5949
    %8755 = vmatprep.subr.bf16.mxu0 %v5942
    %8756 = vmatpush1.bf16.msra.mxu0 %v5941
    %8757 = vmatprep.subr.bf16.mxu0 %v5934
    %8758 = vmatpush1.bf16.msra.mxu0 %v5933
    %8759 = vmatprep.subr.bf16.mxu0 %v5926
    %8760 = vmatpush1.bf16.msra.mxu0 %v5925
    %8761 = vmatprep.subr.bf16.mxu0 %v5918
    %8762 = vmatpush1.bf16.msra.mxu0 %v5917
    %8763 = vmatprep.subr.bf16.mxu0 %v5910
    %8764 = vmatpush1.bf16.msra.mxu0 %v5909
    %8765 = vmatprep.subr.bf16.mxu0 %v5902
    %8766 = vmatpush1.bf16.msra.mxu0 %v5901
    %8767 = vmatprep.subr.bf16.mxu0 %v5894
    %8768 = vmatpush1.bf16.msra.mxu0 %v5893
    %8769 = vmatprep.subr.bf16.mxu0 %v6014
    %8770 = vmatpush2.bf16.msra.mxu0 %v6013
    %8771 = vmatprep.subr.bf16.mxu0 %v6006
    %8772 = vmatpush2.bf16.msra.mxu0 %v6005
    %8773 = vmatprep.subr.bf16.mxu0 %v5998
    %8774 = vmatpush2.bf16.msra.mxu0 %v5997
    %8775 = vmatprep.subr.bf16.mxu0 %v5990
    %8776 = vmatpush2.bf16.msra.mxu0 %v5989
    %8777 = vmatprep.subr.bf16.mxu0 %v5982
    %8778 = vmatpush2.bf16.msra.mxu0 %v5981
    %8779 = vmatprep.subr.bf16.mxu0 %v5974
    %8780 = vmatpush2.bf16.msra.mxu0 %v5973
    %8781 = vmatprep.subr.bf16.mxu0 %v5966
    %8782 = vmatpush2.bf16.msra.mxu0 %v5965
    %8783 = vmatprep.subr.bf16.mxu0 %v5958
    %8784 = vmatpush2.bf16.msra.mxu0 %v5957
    %8785 = vmatprep.mubr.bf16.mxu0 %v171
    %8786 = vmatmul.mubr.bf16.gmra.mxu0 %v170
    %v8787 = vpop.f32.mrf.mxu0
    %v8788 = vadd.f32 %v8745, %v8787
    %v8789 = vpop.f32.mrf.mxu0
    %v8790 = vadd.f32 %v8747, %v8789
    %v8791 = vpop.f32.mrf.mxu0
    %v8792 = vadd.f32 %v8749, %v8791
    %v8793 = vpop.f32.mrf.mxu0
    %v8794 = vadd.f32 %v8751, %v8793
    %8795 = vdwg.mxu0
    %8796 = vmatprep.subr.bf16.mxu0 %v6078
    %8797 = vmatpush1.bf16.msra.mxu0 %v6077
    %8798 = vmatprep.subr.bf16.mxu0 %v6070
    %8799 = vmatpush1.bf16.msra.mxu0 %v6069
    %8800 = vmatprep.subr.bf16.mxu0 %v6062
    %8801 = vmatpush1.bf16.msra.mxu0 %v6061
    %8802 = vmatprep.subr.bf16.mxu0 %v6054
    %8803 = vmatpush1.bf16.msra.mxu0 %v6053
    %8804 = vmatprep.subr.bf16.mxu0 %v6046
    %8805 = vmatpush1.bf16.msra.mxu0 %v6045
    %8806 = vmatprep.subr.bf16.mxu0 %v6038
    %8807 = vmatpush1.bf16.msra.mxu0 %v6037
    %8808 = vmatprep.subr.bf16.mxu0 %v6030
    %8809 = vmatpush1.bf16.msra.mxu0 %v6029
    %8810 = vmatprep.subr.bf16.mxu0 %v6022
    %8811 = vmatpush1.bf16.msra.mxu0 %v6021
    %8812 = vmatprep.subr.bf16.mxu0 %v6142
    %8813 = vmatpush2.bf16.msra.mxu0 %v6141
    %8814 = vmatprep.subr.bf16.mxu0 %v6134
    %8815 = vmatpush2.bf16.msra.mxu0 %v6133
    %8816 = vmatprep.subr.bf16.mxu0 %v6126
    %8817 = vmatpush2.bf16.msra.mxu0 %v6125
    %8818 = vmatprep.subr.bf16.mxu0 %v6118
    %8819 = vmatpush2.bf16.msra.mxu0 %v6117
    %8820 = vmatprep.subr.bf16.mxu0 %v6110
    %8821 = vmatpush2.bf16.msra.mxu0 %v6109
    %8822 = vmatprep.subr.bf16.mxu0 %v6102
    %8823 = vmatpush2.bf16.msra.mxu0 %v6101
    %8824 = vmatprep.subr.bf16.mxu0 %v6094
    %8825 = vmatpush2.bf16.msra.mxu0 %v6093
    %8826 = vmatprep.subr.bf16.mxu0 %v6086
    %8827 = vmatpush2.bf16.msra.mxu0 %v6085
    %8828 = vmatprep.mubr.bf16.mxu0 %v173
    %8829 = vmatmul.mubr.bf16.gmra.mxu0 %v172
    %v8830 = vpop.f32.mrf.mxu0
    %v8831 = vadd.f32 %v8788, %v8830
    %v8832 = vpop.f32.mrf.mxu0
    %v8833 = vadd.f32 %v8790, %v8832
    %v8834 = vpop.f32.mrf.mxu0
    %v8835 = vadd.f32 %v8792, %v8834
    %v8836 = vpop.f32.mrf.mxu0
    %v8837 = vadd.f32 %v8794, %v8836
    %8838 = vdwg.mxu0
    %8839 = vmatprep.subr.bf16.mxu0 %v6206
    %8840 = vmatpush1.bf16.msra.mxu0 %v6205
    %8841 = vmatprep.subr.bf16.mxu0 %v6198
    %8842 = vmatpush1.bf16.msra.mxu0 %v6197
    %8843 = vmatprep.subr.bf16.mxu0 %v6190
    %8844 = vmatpush1.bf16.msra.mxu0 %v6189
    %8845 = vmatprep.subr.bf16.mxu0 %v6182
    %8846 = vmatpush1.bf16.msra.mxu0 %v6181
    %8847 = vmatprep.subr.bf16.mxu0 %v6174
    %8848 = vmatpush1.bf16.msra.mxu0 %v6173
    %8849 = vmatprep.subr.bf16.mxu0 %v6166
    %8850 = vmatpush1.bf16.msra.mxu0 %v6165
    %8851 = vmatprep.subr.bf16.mxu0 %v6158
    %8852 = vmatpush1.bf16.msra.mxu0 %v6157
    %8853 = vmatprep.subr.bf16.mxu0 %v6150
    %8854 = vmatpush1.bf16.msra.mxu0 %v6149
    %8855 = vmatprep.subr.bf16.mxu0 %v6270
    %8856 = vmatpush2.bf16.msra.mxu0 %v6269
    %8857 = vmatprep.subr.bf16.mxu0 %v6262
    %8858 = vmatpush2.bf16.msra.mxu0 %v6261
    %8859 = vmatprep.subr.bf16.mxu0 %v6254
    %8860 = vmatpush2.bf16.msra.mxu0 %v6253
    %8861 = vmatprep.subr.bf16.mxu0 %v6246
    %8862 = vmatpush2.bf16.msra.mxu0 %v6245
    %8863 = vmatprep.subr.bf16.mxu0 %v6238
    %8864 = vmatpush2.bf16.msra.mxu0 %v6237
    %8865 = vmatprep.subr.bf16.mxu0 %v6230
    %8866 = vmatpush2.bf16.msra.mxu0 %v6229
    %8867 = vmatprep.subr.bf16.mxu0 %v6222
    %8868 = vmatpush2.bf16.msra.mxu0 %v6221
    %8869 = vmatprep.subr.bf16.mxu0 %v6214
    %8870 = vmatpush2.bf16.msra.mxu0 %v6213
    %8871 = vmatprep.mubr.bf16.mxu0 %v175
    %8872 = vmatmul.mubr.bf16.gmra.mxu0 %v174
    %v8873 = vpop.f32.mrf.mxu0
    %v8874 = vadd.f32 %v8831, %v8873
    %v8875 = vpop.f32.mrf.mxu0
    %v8876 = vadd.f32 %v8833, %v8875
    %v8877 = vpop.f32.mrf.mxu0
    %v8878 = vadd.f32 %v8835, %v8877
    %v8879 = vpop.f32.mrf.mxu0
    %v8880 = vadd.f32 %v8837, %v8879
    %8881 = vdwg.mxu0
    %8882 = vmatprep.subr.bf16.mxu0 %v6334
    %8883 = vmatpush1.bf16.msra.mxu0 %v6333
    %8884 = vmatprep.subr.bf16.mxu0 %v6326
    %8885 = vmatpush1.bf16.msra.mxu0 %v6325
    %8886 = vmatprep.subr.bf16.mxu0 %v6318
    %8887 = vmatpush1.bf16.msra.mxu0 %v6317
    %8888 = vmatprep.subr.bf16.mxu0 %v6310
    %8889 = vmatpush1.bf16.msra.mxu0 %v6309
    %8890 = vmatprep.subr.bf16.mxu0 %v6302
    %8891 = vmatpush1.bf16.msra.mxu0 %v6301
    %8892 = vmatprep.subr.bf16.mxu0 %v6294
    %8893 = vmatpush1.bf16.msra.mxu0 %v6293
    %8894 = vmatprep.subr.bf16.mxu0 %v6286
    %8895 = vmatpush1.bf16.msra.mxu0 %v6285
    %8896 = vmatprep.subr.bf16.mxu0 %v6278
    %8897 = vmatpush1.bf16.msra.mxu0 %v6277
    %8898 = vmatprep.subr.bf16.mxu0 %v6398
    %8899 = vmatpush2.bf16.msra.mxu0 %v6397
    %8900 = vmatprep.subr.bf16.mxu0 %v6390
    %8901 = vmatpush2.bf16.msra.mxu0 %v6389
    %8902 = vmatprep.subr.bf16.mxu0 %v6382
    %8903 = vmatpush2.bf16.msra.mxu0 %v6381
    %8904 = vmatprep.subr.bf16.mxu0 %v6374
    %8905 = vmatpush2.bf16.msra.mxu0 %v6373
    %8906 = vmatprep.subr.bf16.mxu0 %v6366
    %8907 = vmatpush2.bf16.msra.mxu0 %v6365
    %8908 = vmatprep.subr.bf16.mxu0 %v6358
    %8909 = vmatpush2.bf16.msra.mxu0 %v6357
    %8910 = vmatprep.subr.bf16.mxu0 %v6350
    %8911 = vmatpush2.bf16.msra.mxu0 %v6349
    %8912 = vmatprep.subr.bf16.mxu0 %v6342
    %8913 = vmatpush2.bf16.msra.mxu0 %v6341
    %8914 = vmatprep.mubr.bf16.mxu0 %v177
    %8915 = vmatmul.mubr.bf16.gmra.mxu0 %v176
    %v8916 = vpop.f32.mrf.mxu0
    %v8917 = vadd.f32 %v8874, %v8916
    %v8918 = vpop.f32.mrf.mxu0
    %v8919 = vadd.f32 %v8876, %v8918
    %v8920 = vpop.f32.mrf.mxu0
    %v8921 = vadd.f32 %v8878, %v8920
    %v8922 = vpop.f32.mrf.mxu0
    %v8923 = vadd.f32 %v8880, %v8922
    %8924 = vdwg.mxu0
    %8925 = vmatprep.subr.bf16.mxu0 %v6462
    %8926 = vmatpush1.bf16.msra.mxu0 %v6461
    %8927 = vmatprep.subr.bf16.mxu0 %v6454
    %8928 = vmatpush1.bf16.msra.mxu0 %v6453
    %8929 = vmatprep.subr.bf16.mxu0 %v6446
    %8930 = vmatpush1.bf16.msra.mxu0 %v6445
    %8931 = vmatprep.subr.bf16.mxu0 %v6438
    %8932 = vmatpush1.bf16.msra.mxu0 %v6437
    %8933 = vmatprep.subr.bf16.mxu0 %v6430
    %8934 = vmatpush1.bf16.msra.mxu0 %v6429
    %8935 = vmatprep.subr.bf16.mxu0 %v6422
    %8936 = vmatpush1.bf16.msra.mxu0 %v6421
    %8937 = vmatprep.subr.bf16.mxu0 %v6414
    %8938 = vmatpush1.bf16.msra.mxu0 %v6413
    %8939 = vmatprep.subr.bf16.mxu0 %v6406
    %8940 = vmatpush1.bf16.msra.mxu0 %v6405
    %8941 = vmatprep.subr.bf16.mxu0 %v6526
    %8942 = vmatpush2.bf16.msra.mxu0 %v6525
    %8943 = vmatprep.subr.bf16.mxu0 %v6518
    %8944 = vmatpush2.bf16.msra.mxu0 %v6517
    %8945 = vmatprep.subr.bf16.mxu0 %v6510
    %8946 = vmatpush2.bf16.msra.mxu0 %v6509
    %8947 = vmatprep.subr.bf16.mxu0 %v6502
    %8948 = vmatpush2.bf16.msra.mxu0 %v6501
    %8949 = vmatprep.subr.bf16.mxu0 %v6494
    %8950 = vmatpush2.bf16.msra.mxu0 %v6493
    %8951 = vmatprep.subr.bf16.mxu0 %v6486
    %8952 = vmatpush2.bf16.msra.mxu0 %v6485
    %8953 = vmatprep.subr.bf16.mxu0 %v6478
    %8954 = vmatpush2.bf16.msra.mxu0 %v6477
    %8955 = vmatprep.subr.bf16.mxu0 %v6470
    %8956 = vmatpush2.bf16.msra.mxu0 %v6469
    %8957 = vmatprep.mubr.bf16.mxu0 %v179
    %8958 = vmatmul.mubr.bf16.gmra.mxu0 %v178
    %v8959 = vpop.f32.mrf.mxu0
    %v8960 = vadd.f32 %v8917, %v8959
    %v8961 = vpop.f32.mrf.mxu0
    %v8962 = vadd.f32 %v8919, %v8961
    %v8963 = vpop.f32.mrf.mxu0
    %v8964 = vadd.f32 %v8921, %v8963
    %v8965 = vpop.f32.mrf.mxu0
    %v8966 = vadd.f32 %v8923, %v8965
    %8967 = vdwg.mxu0
    %8968 = vmatprep.subr.bf16.mxu0 %v6590
    %8969 = vmatpush1.bf16.msra.mxu0 %v6589
    %8970 = vmatprep.subr.bf16.mxu0 %v6582
    %8971 = vmatpush1.bf16.msra.mxu0 %v6581
    %8972 = vmatprep.subr.bf16.mxu0 %v6574
    %8973 = vmatpush1.bf16.msra.mxu0 %v6573
    %8974 = vmatprep.subr.bf16.mxu0 %v6566
    %8975 = vmatpush1.bf16.msra.mxu0 %v6565
    %8976 = vmatprep.subr.bf16.mxu0 %v6558
    %8977 = vmatpush1.bf16.msra.mxu0 %v6557
    %8978 = vmatprep.subr.bf16.mxu0 %v6550
    %8979 = vmatpush1.bf16.msra.mxu0 %v6549
    %8980 = vmatprep.subr.bf16.mxu0 %v6542
    %8981 = vmatpush1.bf16.msra.mxu0 %v6541
    %8982 = vmatprep.subr.bf16.mxu0 %v6534
    %8983 = vmatpush1.bf16.msra.mxu0 %v6533
    %8984 = vmatprep.subr.bf16.mxu0 %v6654
    %8985 = vmatpush2.bf16.msra.mxu0 %v6653
    %8986 = vmatprep.subr.bf16.mxu0 %v6646
    %8987 = vmatpush2.bf16.msra.mxu0 %v6645
    %8988 = vmatprep.subr.bf16.mxu0 %v6638
    %8989 = vmatpush2.bf16.msra.mxu0 %v6637
    %8990 = vmatprep.subr.bf16.mxu0 %v6630
    %8991 = vmatpush2.bf16.msra.mxu0 %v6629
    %8992 = vmatprep.subr.bf16.mxu0 %v6622
    %8993 = vmatpush2.bf16.msra.mxu0 %v6621
    %8994 = vmatprep.subr.bf16.mxu0 %v6614
    %8995 = vmatpush2.bf16.msra.mxu0 %v6613
    %8996 = vmatprep.subr.bf16.mxu0 %v6606
    %8997 = vmatpush2.bf16.msra.mxu0 %v6605
    %8998 = vmatprep.subr.bf16.mxu0 %v6598
    %8999 = vmatpush2.bf16.msra.mxu0 %v6597
    %9000 = vmatprep.mubr.bf16.mxu0 %v181
    %9001 = vmatmul.mubr.bf16.gmra.mxu0 %v180
    %v9002 = vpop.f32.mrf.mxu0
    %v9003 = vadd.f32 %v8960, %v9002
    %v9004 = vpop.f32.mrf.mxu0
    %v9005 = vadd.f32 %v8962, %v9004
    %v9006 = vpop.f32.mrf.mxu0
    %v9007 = vadd.f32 %v8964, %v9006
    %v9008 = vpop.f32.mrf.mxu0
    %v9009 = vadd.f32 %v8966, %v9008
    %9010 = vdwg.mxu0
    %9011 = vmatprep.subr.bf16.mxu0 %v6718
    %9012 = vmatpush1.bf16.msra.mxu0 %v6717
    %9013 = vmatprep.subr.bf16.mxu0 %v6710
    %9014 = vmatpush1.bf16.msra.mxu0 %v6709
    %9015 = vmatprep.subr.bf16.mxu0 %v6702
    %9016 = vmatpush1.bf16.msra.mxu0 %v6701
    %9017 = vmatprep.subr.bf16.mxu0 %v6694
    %9018 = vmatpush1.bf16.msra.mxu0 %v6693
    %9019 = vmatprep.subr.bf16.mxu0 %v6686
    %9020 = vmatpush1.bf16.msra.mxu0 %v6685
    %9021 = vmatprep.subr.bf16.mxu0 %v6678
    %9022 = vmatpush1.bf16.msra.mxu0 %v6677
    %9023 = vmatprep.subr.bf16.mxu0 %v6670
    %9024 = vmatpush1.bf16.msra.mxu0 %v6669
    %9025 = vmatprep.subr.bf16.mxu0 %v6662
    %9026 = vmatpush1.bf16.msra.mxu0 %v6661
    %9027 = vmatprep.subr.bf16.mxu0 %v6782
    %9028 = vmatpush2.bf16.msra.mxu0 %v6781
    %9029 = vmatprep.subr.bf16.mxu0 %v6774
    %9030 = vmatpush2.bf16.msra.mxu0 %v6773
    %9031 = vmatprep.subr.bf16.mxu0 %v6766
    %9032 = vmatpush2.bf16.msra.mxu0 %v6765
    %9033 = vmatprep.subr.bf16.mxu0 %v6758
    %9034 = vmatpush2.bf16.msra.mxu0 %v6757
    %9035 = vmatprep.subr.bf16.mxu0 %v6750
    %9036 = vmatpush2.bf16.msra.mxu0 %v6749
    %9037 = vmatprep.subr.bf16.mxu0 %v6742
    %9038 = vmatpush2.bf16.msra.mxu0 %v6741
    %9039 = vmatprep.subr.bf16.mxu0 %v6734
    %9040 = vmatpush2.bf16.msra.mxu0 %v6733
    %9041 = vmatprep.subr.bf16.mxu0 %v6726
    %9042 = vmatpush2.bf16.msra.mxu0 %v6725
    %9043 = vmatprep.mubr.bf16.mxu0 %v183
    %9044 = vmatmul.mubr.bf16.gmra.mxu0 %v182
    %v9045 = vpop.f32.mrf.mxu0
    %v9046 = vadd.f32 %v9003, %v9045
    %v9047 = vpop.f32.mrf.mxu0
    %v9048 = vadd.f32 %v9005, %v9047
    %v9049 = vpop.f32.mrf.mxu0
    %v9050 = vadd.f32 %v9007, %v9049
    %v9051 = vpop.f32.mrf.mxu0
    %v9052 = vadd.f32 %v9009, %v9051
    %9053 = vdwg.mxu0
    %9054 = vmatprep.subr.bf16.mxu0 0
    %9055 = vmatpush1.bf16.msra.mxu0 0
    %9056 = vmatprep.subr.bf16.mxu0 0
    %9057 = vmatpush1.bf16.msra.mxu0 0
    %9058 = vmatprep.subr.bf16.mxu0 0
    %9059 = vmatpush1.bf16.msra.mxu0 0
    %9060 = vmatprep.subr.bf16.mxu0 %v6822
    %9061 = vmatpush1.bf16.msra.mxu0 %v6821
    %9062 = vmatprep.subr.bf16.mxu0 %v6814
    %9063 = vmatpush1.bf16.msra.mxu0 %v6813
    %9064 = vmatprep.subr.bf16.mxu0 %v6806
    %9065 = vmatpush1.bf16.msra.mxu0 %v6805
    %9066 = vmatprep.subr.bf16.mxu0 %v6798
    %9067 = vmatpush1.bf16.msra.mxu0 %v6797
    %9068 = vmatprep.subr.bf16.mxu0 %v6790
    %9069 = vmatpush1.bf16.msra.mxu0 %v6789
    %9070 = vmatprep.subr.bf16.mxu0 0
    %9071 = vmatpush2.bf16.msra.mxu0 0
    %9072 = vmatprep.subr.bf16.mxu0 0
    %9073 = vmatpush2.bf16.msra.mxu0 0
    %9074 = vmatprep.subr.bf16.mxu0 0
    %9075 = vmatpush2.bf16.msra.mxu0 0
    %9076 = vmatprep.subr.bf16.mxu0 0
    %9077 = vmatpush2.bf16.msra.mxu0 0
    %9078 = vmatprep.subr.bf16.mxu0 0
    %9079 = vmatpush2.bf16.msra.mxu0 0
    %9080 = vmatprep.subr.bf16.mxu0 0
    %9081 = vmatpush2.bf16.msra.mxu0 0
    %9082 = vmatprep.subr.bf16.mxu0 0
    %9083 = vmatpush2.bf16.msra.mxu0 0
    %9084 = vmatprep.subr.bf16.mxu0 0
    %9085 = vmatpush2.bf16.msra.mxu0 0
    %9086 = vmatprep.mubr.bf16.mxu0 0
    %9087 = vmatmul.mubr.bf16.gmra.mxu0 %v8149
    %v9088 = vpop.f32.mrf.mxu0
    %v9089 = vadd.f32 %v9046, %v9088
    %v9090 = vpop.f32.mrf.mxu0
    %v9091 = vadd.f32 %v9048, %v9090
    %v9092 = vpop.f32.mrf.mxu0
    %v9093 = vadd.f32 %v9050, %v9092
    %v9094 = vpop.f32.mrf.mxu0
    %v9095 = vadd.f32 %v9052, %v9094
    %9096 = vdwg.mxu0
    %9097 = vmatprep.subr.bf16.mxu0 %v5568
    %9098 = vmatpush1.bf16.msra.mxu0 %v5567
    %9099 = vmatprep.subr.bf16.mxu0 %v5560
    %9100 = vmatpush1.bf16.msra.mxu0 %v5559
    %9101 = vmatprep.subr.bf16.mxu0 %v5552
    %9102 = vmatpush1.bf16.msra.mxu0 %v5551
    %9103 = vmatprep.subr.bf16.mxu0 %v5544
    %9104 = vmatpush1.bf16.msra.mxu0 %v5543
    %9105 = vmatprep.subr.bf16.mxu0 %v5536
    %9106 = vmatpush1.bf16.msra.mxu0 %v5535
    %9107 = vmatprep.subr.bf16.mxu0 %v5528
    %9108 = vmatpush1.bf16.msra.mxu0 %v5527
    %9109 = vmatprep.subr.bf16.mxu0 %v5520
    %9110 = vmatpush1.bf16.msra.mxu0 %v5519
    %9111 = vmatprep.subr.bf16.mxu0 %v5512
    %9112 = vmatpush1.bf16.msra.mxu0 %v5511
    %9113 = vmatprep.subr.bf16.mxu0 %v5632
    %9114 = vmatpush2.bf16.msra.mxu0 %v5631
    %9115 = vmatprep.subr.bf16.mxu0 %v5624
    %9116 = vmatpush2.bf16.msra.mxu0 %v5623
    %9117 = vmatprep.subr.bf16.mxu0 %v5616
    %9118 = vmatpush2.bf16.msra.mxu0 %v5615
    %9119 = vmatprep.subr.bf16.mxu0 %v5608
    %9120 = vmatpush2.bf16.msra.mxu0 %v5607
    %9121 = vmatprep.subr.bf16.mxu0 %v5600
    %9122 = vmatpush2.bf16.msra.mxu0 %v5599
    %9123 = vmatprep.subr.bf16.mxu0 %v5592
    %9124 = vmatpush2.bf16.msra.mxu0 %v5591
    %9125 = vmatprep.subr.bf16.mxu0 %v5584
    %9126 = vmatpush2.bf16.msra.mxu0 %v5583
    %9127 = vmatprep.subr.bf16.mxu0 %v5576
    %9128 = vmatpush2.bf16.msra.mxu0 %v5575
    %9129 = vmatprep.mubr.bf16.mxu0 %v165
    %9130 = vmatmul.mubr.bf16.gmra.mxu0 %v164
    %v9131 = vpop.f32.mrf.mxu0
    %v9132 = vadd.f32 %v1526, %v9131
    %v9133 = vpop.f32.mrf.mxu0
    %v9134 = vadd.f32 %v1530, %v9133
    %v9135 = vpop.f32.mrf.mxu0
    %v9136 = vadd.f32 %v1526, %v9135
    %v9137 = vpop.f32.mrf.mxu0
    %v9138 = vadd.f32 %v1530, %v9137
    %9139 = vdwg.mxu0
    %9140 = vmatprep.subr.bf16.mxu0 %v5696
    %9141 = vmatpush1.bf16.msra.mxu0 %v5695
    %9142 = vmatprep.subr.bf16.mxu0 %v5688
    %9143 = vmatpush1.bf16.msra.mxu0 %v5687
    %9144 = vmatprep.subr.bf16.mxu0 %v5680
    %9145 = vmatpush1.bf16.msra.mxu0 %v5679
    %9146 = vmatprep.subr.bf16.mxu0 %v5672
    %9147 = vmatpush1.bf16.msra.mxu0 %v5671
    %9148 = vmatprep.subr.bf16.mxu0 %v5664
    %9149 = vmatpush1.bf16.msra.mxu0 %v5663
    %9150 = vmatprep.subr.bf16.mxu0 %v5656
    %9151 = vmatpush1.bf16.msra.mxu0 %v5655
    %9152 = vmatprep.subr.bf16.mxu0 %v5648
    %9153 = vmatpush1.bf16.msra.mxu0 %v5647
    %9154 = vmatprep.subr.bf16.mxu0 %v5640
    %9155 = vmatpush1.bf16.msra.mxu0 %v5639
    %9156 = vmatprep.subr.bf16.mxu0 %v5760
    %9157 = vmatpush2.bf16.msra.mxu0 %v5759
    %9158 = vmatprep.subr.bf16.mxu0 %v5752
    %9159 = vmatpush2.bf16.msra.mxu0 %v5751
    %9160 = vmatprep.subr.bf16.mxu0 %v5744
    %9161 = vmatpush2.bf16.msra.mxu0 %v5743
    %9162 = vmatprep.subr.bf16.mxu0 %v5736
    %9163 = vmatpush2.bf16.msra.mxu0 %v5735
    %9164 = vmatprep.subr.bf16.mxu0 %v5728
    %9165 = vmatpush2.bf16.msra.mxu0 %v5727
    %9166 = vmatprep.subr.bf16.mxu0 %v5720
    %9167 = vmatpush2.bf16.msra.mxu0 %v5719
    %9168 = vmatprep.subr.bf16.mxu0 %v5712
    %9169 = vmatpush2.bf16.msra.mxu0 %v5711
    %9170 = vmatprep.subr.bf16.mxu0 %v5704
    %9171 = vmatpush2.bf16.msra.mxu0 %v5703
    %9172 = vmatprep.mubr.bf16.mxu0 %v167
    %9173 = vmatmul.mubr.bf16.gmra.mxu0 %v166
    %v9174 = vpop.f32.mrf.mxu0
    %v9175 = vadd.f32 %v9132, %v9174
    %v9176 = vpop.f32.mrf.mxu0
    %v9177 = vadd.f32 %v9134, %v9176
    %v9178 = vpop.f32.mrf.mxu0
    %v9179 = vadd.f32 %v9136, %v9178
    %v9180 = vpop.f32.mrf.mxu0
    %v9181 = vadd.f32 %v9138, %v9180
    %9182 = vdwg.mxu0
    %9183 = vmatprep.subr.bf16.mxu0 %v5824
    %9184 = vmatpush1.bf16.msra.mxu0 %v5823
    %9185 = vmatprep.subr.bf16.mxu0 %v5816
    %9186 = vmatpush1.bf16.msra.mxu0 %v5815
    %9187 = vmatprep.subr.bf16.mxu0 %v5808
    %9188 = vmatpush1.bf16.msra.mxu0 %v5807
    %9189 = vmatprep.subr.bf16.mxu0 %v5800
    %9190 = vmatpush1.bf16.msra.mxu0 %v5799
    %9191 = vmatprep.subr.bf16.mxu0 %v5792
    %9192 = vmatpush1.bf16.msra.mxu0 %v5791
    %9193 = vmatprep.subr.bf16.mxu0 %v5784
    %9194 = vmatpush1.bf16.msra.mxu0 %v5783
    %9195 = vmatprep.subr.bf16.mxu0 %v5776
    %9196 = vmatpush1.bf16.msra.mxu0 %v5775
    %9197 = vmatprep.subr.bf16.mxu0 %v5768
    %9198 = vmatpush1.bf16.msra.mxu0 %v5767
    %9199 = vmatprep.subr.bf16.mxu0 %v5888
    %9200 = vmatpush2.bf16.msra.mxu0 %v5887
    %9201 = vmatprep.subr.bf16.mxu0 %v5880
    %9202 = vmatpush2.bf16.msra.mxu0 %v5879
    %9203 = vmatprep.subr.bf16.mxu0 %v5872
    %9204 = vmatpush2.bf16.msra.mxu0 %v5871
    %9205 = vmatprep.subr.bf16.mxu0 %v5864
    %9206 = vmatpush2.bf16.msra.mxu0 %v5863
    %9207 = vmatprep.subr.bf16.mxu0 %v5856
    %9208 = vmatpush2.bf16.msra.mxu0 %v5855
    %9209 = vmatprep.subr.bf16.mxu0 %v5848
    %9210 = vmatpush2.bf16.msra.mxu0 %v5847
    %9211 = vmatprep.subr.bf16.mxu0 %v5840
    %9212 = vmatpush2.bf16.msra.mxu0 %v5839
    %9213 = vmatprep.subr.bf16.mxu0 %v5832
    %9214 = vmatpush2.bf16.msra.mxu0 %v5831
    %9215 = vmatprep.mubr.bf16.mxu0 %v169
    %9216 = vmatmul.mubr.bf16.gmra.mxu0 %v168
    %v9217 = vpop.f32.mrf.mxu0
    %v9218 = vadd.f32 %v9175, %v9217
    %v9219 = vpop.f32.mrf.mxu0
    %v9220 = vadd.f32 %v9177, %v9219
    %v9221 = vpop.f32.mrf.mxu0
    %v9222 = vadd.f32 %v9179, %v9221
    %v9223 = vpop.f32.mrf.mxu0
    %v9224 = vadd.f32 %v9181, %v9223
    %9225 = vdwg.mxu0
    %9226 = vmatprep.subr.bf16.mxu0 %v5952
    %9227 = vmatpush1.bf16.msra.mxu0 %v5951
    %9228 = vmatprep.subr.bf16.mxu0 %v5944
    %9229 = vmatpush1.bf16.msra.mxu0 %v5943
    %9230 = vmatprep.subr.bf16.mxu0 %v5936
    %9231 = vmatpush1.bf16.msra.mxu0 %v5935
    %9232 = vmatprep.subr.bf16.mxu0 %v5928
    %9233 = vmatpush1.bf16.msra.mxu0 %v5927
    %9234 = vmatprep.subr.bf16.mxu0 %v5920
    %9235 = vmatpush1.bf16.msra.mxu0 %v5919
    %9236 = vmatprep.subr.bf16.mxu0 %v5912
    %9237 = vmatpush1.bf16.msra.mxu0 %v5911
    %9238 = vmatprep.subr.bf16.mxu0 %v5904
    %9239 = vmatpush1.bf16.msra.mxu0 %v5903
    %9240 = vmatprep.subr.bf16.mxu0 %v5896
    %9241 = vmatpush1.bf16.msra.mxu0 %v5895
    %9242 = vmatprep.subr.bf16.mxu0 %v6016
    %9243 = vmatpush2.bf16.msra.mxu0 %v6015
    %9244 = vmatprep.subr.bf16.mxu0 %v6008
    %9245 = vmatpush2.bf16.msra.mxu0 %v6007
    %9246 = vmatprep.subr.bf16.mxu0 %v6000
    %9247 = vmatpush2.bf16.msra.mxu0 %v5999
    %9248 = vmatprep.subr.bf16.mxu0 %v5992
    %9249 = vmatpush2.bf16.msra.mxu0 %v5991
    %9250 = vmatprep.subr.bf16.mxu0 %v5984
    %9251 = vmatpush2.bf16.msra.mxu0 %v5983
    %9252 = vmatprep.subr.bf16.mxu0 %v5976
    %9253 = vmatpush2.bf16.msra.mxu0 %v5975
    %9254 = vmatprep.subr.bf16.mxu0 %v5968
    %9255 = vmatpush2.bf16.msra.mxu0 %v5967
    %9256 = vmatprep.subr.bf16.mxu0 %v5960
    %9257 = vmatpush2.bf16.msra.mxu0 %v5959
    %9258 = vmatprep.mubr.bf16.mxu0 %v171
    %9259 = vmatmul.mubr.bf16.gmra.mxu0 %v170
    %v9260 = vpop.f32.mrf.mxu0
    %v9261 = vadd.f32 %v9218, %v9260
    %v9262 = vpop.f32.mrf.mxu0
    %v9263 = vadd.f32 %v9220, %v9262
    %v9264 = vpop.f32.mrf.mxu0
    %v9265 = vadd.f32 %v9222, %v9264
    %v9266 = vpop.f32.mrf.mxu0
    %v9267 = vadd.f32 %v9224, %v9266
    %9268 = vdwg.mxu0
    %9269 = vmatprep.subr.bf16.mxu0 %v6080
    %9270 = vmatpush1.bf16.msra.mxu0 %v6079
    %9271 = vmatprep.subr.bf16.mxu0 %v6072
    %9272 = vmatpush1.bf16.msra.mxu0 %v6071
    %9273 = vmatprep.subr.bf16.mxu0 %v6064
    %9274 = vmatpush1.bf16.msra.mxu0 %v6063
    %9275 = vmatprep.subr.bf16.mxu0 %v6056
    %9276 = vmatpush1.bf16.msra.mxu0 %v6055
    %9277 = vmatprep.subr.bf16.mxu0 %v6048
    %9278 = vmatpush1.bf16.msra.mxu0 %v6047
    %9279 = vmatprep.subr.bf16.mxu0 %v6040
    %9280 = vmatpush1.bf16.msra.mxu0 %v6039
    %9281 = vmatprep.subr.bf16.mxu0 %v6032
    %9282 = vmatpush1.bf16.msra.mxu0 %v6031
    %9283 = vmatprep.subr.bf16.mxu0 %v6024
    %9284 = vmatpush1.bf16.msra.mxu0 %v6023
    %9285 = vmatprep.subr.bf16.mxu0 %v6144
    %9286 = vmatpush2.bf16.msra.mxu0 %v6143
    %9287 = vmatprep.subr.bf16.mxu0 %v6136
    %9288 = vmatpush2.bf16.msra.mxu0 %v6135
    %9289 = vmatprep.subr.bf16.mxu0 %v6128
    %9290 = vmatpush2.bf16.msra.mxu0 %v6127
    %9291 = vmatprep.subr.bf16.mxu0 %v6120
    %9292 = vmatpush2.bf16.msra.mxu0 %v6119
    %9293 = vmatprep.subr.bf16.mxu0 %v6112
    %9294 = vmatpush2.bf16.msra.mxu0 %v6111
    %9295 = vmatprep.subr.bf16.mxu0 %v6104
    %9296 = vmatpush2.bf16.msra.mxu0 %v6103
    %9297 = vmatprep.subr.bf16.mxu0 %v6096
    %9298 = vmatpush2.bf16.msra.mxu0 %v6095
    %9299 = vmatprep.subr.bf16.mxu0 %v6088
    %9300 = vmatpush2.bf16.msra.mxu0 %v6087
    %9301 = vmatprep.mubr.bf16.mxu0 %v173
    %9302 = vmatmul.mubr.bf16.gmra.mxu0 %v172
    %v9303 = vpop.f32.mrf.mxu0
    %v9304 = vadd.f32 %v9261, %v9303
    %v9305 = vpop.f32.mrf.mxu0
    %v9306 = vadd.f32 %v9263, %v9305
    %v9307 = vpop.f32.mrf.mxu0
    %v9308 = vadd.f32 %v9265, %v9307
    %v9309 = vpop.f32.mrf.mxu0
    %v9310 = vadd.f32 %v9267, %v9309
    %9311 = vdwg.mxu0
    %9312 = vmatprep.subr.bf16.mxu0 %v6208
    %9313 = vmatpush1.bf16.msra.mxu0 %v6207
    %9314 = vmatprep.subr.bf16.mxu0 %v6200
    %9315 = vmatpush1.bf16.msra.mxu0 %v6199
    %9316 = vmatprep.subr.bf16.mxu0 %v6192
    %9317 = vmatpush1.bf16.msra.mxu0 %v6191
    %9318 = vmatprep.subr.bf16.mxu0 %v6184
    %9319 = vmatpush1.bf16.msra.mxu0 %v6183
    %9320 = vmatprep.subr.bf16.mxu0 %v6176
    %9321 = vmatpush1.bf16.msra.mxu0 %v6175
    %9322 = vmatprep.subr.bf16.mxu0 %v6168
    %9323 = vmatpush1.bf16.msra.mxu0 %v6167
    %9324 = vmatprep.subr.bf16.mxu0 %v6160
    %9325 = vmatpush1.bf16.msra.mxu0 %v6159
    %9326 = vmatprep.subr.bf16.mxu0 %v6152
    %9327 = vmatpush1.bf16.msra.mxu0 %v6151
    %9328 = vmatprep.subr.bf16.mxu0 %v6272
    %9329 = vmatpush2.bf16.msra.mxu0 %v6271
    %9330 = vmatprep.subr.bf16.mxu0 %v6264
    %9331 = vmatpush2.bf16.msra.mxu0 %v6263
    %9332 = vmatprep.subr.bf16.mxu0 %v6256
    %9333 = vmatpush2.bf16.msra.mxu0 %v6255
    %9334 = vmatprep.subr.bf16.mxu0 %v6248
    %9335 = vmatpush2.bf16.msra.mxu0 %v6247
    %9336 = vmatprep.subr.bf16.mxu0 %v6240
    %9337 = vmatpush2.bf16.msra.mxu0 %v6239
    %9338 = vmatprep.subr.bf16.mxu0 %v6232
    %9339 = vmatpush2.bf16.msra.mxu0 %v6231
    %9340 = vmatprep.subr.bf16.mxu0 %v6224
    %9341 = vmatpush2.bf16.msra.mxu0 %v6223
    %9342 = vmatprep.subr.bf16.mxu0 %v6216
    %9343 = vmatpush2.bf16.msra.mxu0 %v6215
    %9344 = vmatprep.mubr.bf16.mxu0 %v175
    %9345 = vmatmul.mubr.bf16.gmra.mxu0 %v174
    %v9346 = vpop.f32.mrf.mxu0
    %v9347 = vadd.f32 %v9304, %v9346
    %v9348 = vpop.f32.mrf.mxu0
    %v9349 = vadd.f32 %v9306, %v9348
    %v9350 = vpop.f32.mrf.mxu0
    %v9351 = vadd.f32 %v9308, %v9350
    %v9352 = vpop.f32.mrf.mxu0
    %v9353 = vadd.f32 %v9310, %v9352
    %9354 = vdwg.mxu0
    %9355 = vmatprep.subr.bf16.mxu0 %v6336
    %9356 = vmatpush1.bf16.msra.mxu0 %v6335
    %9357 = vmatprep.subr.bf16.mxu0 %v6328
    %9358 = vmatpush1.bf16.msra.mxu0 %v6327
    %9359 = vmatprep.subr.bf16.mxu0 %v6320
    %9360 = vmatpush1.bf16.msra.mxu0 %v6319
    %9361 = vmatprep.subr.bf16.mxu0 %v6312
    %9362 = vmatpush1.bf16.msra.mxu0 %v6311
    %9363 = vmatprep.subr.bf16.mxu0 %v6304
    %9364 = vmatpush1.bf16.msra.mxu0 %v6303
    %9365 = vmatprep.subr.bf16.mxu0 %v6296
    %9366 = vmatpush1.bf16.msra.mxu0 %v6295
    %9367 = vmatprep.subr.bf16.mxu0 %v6288
    %9368 = vmatpush1.bf16.msra.mxu0 %v6287
    %9369 = vmatprep.subr.bf16.mxu0 %v6280
    %9370 = vmatpush1.bf16.msra.mxu0 %v6279
    %9371 = vmatprep.subr.bf16.mxu0 %v6400
    %9372 = vmatpush2.bf16.msra.mxu0 %v6399
    %9373 = vmatprep.subr.bf16.mxu0 %v6392
    %9374 = vmatpush2.bf16.msra.mxu0 %v6391
    %9375 = vmatprep.subr.bf16.mxu0 %v6384
    %9376 = vmatpush2.bf16.msra.mxu0 %v6383
    %9377 = vmatprep.subr.bf16.mxu0 %v6376
    %9378 = vmatpush2.bf16.msra.mxu0 %v6375
    %9379 = vmatprep.subr.bf16.mxu0 %v6368
    %9380 = vmatpush2.bf16.msra.mxu0 %v6367
    %9381 = vmatprep.subr.bf16.mxu0 %v6360
    %9382 = vmatpush2.bf16.msra.mxu0 %v6359
    %9383 = vmatprep.subr.bf16.mxu0 %v6352
    %9384 = vmatpush2.bf16.msra.mxu0 %v6351
    %9385 = vmatprep.subr.bf16.mxu0 %v6344
    %9386 = vmatpush2.bf16.msra.mxu0 %v6343
    %9387 = vmatprep.mubr.bf16.mxu0 %v177
    %9388 = vmatmul.mubr.bf16.gmra.mxu0 %v176
    %v9389 = vpop.f32.mrf.mxu0
    %v9390 = vadd.f32 %v9347, %v9389
    %v9391 = vpop.f32.mrf.mxu0
    %v9392 = vadd.f32 %v9349, %v9391
    %v9393 = vpop.f32.mrf.mxu0
    %v9394 = vadd.f32 %v9351, %v9393
    %v9395 = vpop.f32.mrf.mxu0
    %v9396 = vadd.f32 %v9353, %v9395
    %9397 = vdwg.mxu0
    %9398 = vmatprep.subr.bf16.mxu0 %v6464
    %9399 = vmatpush1.bf16.msra.mxu0 %v6463
    %9400 = vmatprep.subr.bf16.mxu0 %v6456
    %9401 = vmatpush1.bf16.msra.mxu0 %v6455
    %9402 = vmatprep.subr.bf16.mxu0 %v6448
    %9403 = vmatpush1.bf16.msra.mxu0 %v6447
    %9404 = vmatprep.subr.bf16.mxu0 %v6440
    %9405 = vmatpush1.bf16.msra.mxu0 %v6439
    %9406 = vmatprep.subr.bf16.mxu0 %v6432
    %9407 = vmatpush1.bf16.msra.mxu0 %v6431
    %9408 = vmatprep.subr.bf16.mxu0 %v6424
    %9409 = vmatpush1.bf16.msra.mxu0 %v6423
    %9410 = vmatprep.subr.bf16.mxu0 %v6416
    %9411 = vmatpush1.bf16.msra.mxu0 %v6415
    %9412 = vmatprep.subr.bf16.mxu0 %v6408
    %9413 = vmatpush1.bf16.msra.mxu0 %v6407
    %9414 = vmatprep.subr.bf16.mxu0 %v6528
    %9415 = vmatpush2.bf16.msra.mxu0 %v6527
    %9416 = vmatprep.subr.bf16.mxu0 %v6520
    %9417 = vmatpush2.bf16.msra.mxu0 %v6519
    %9418 = vmatprep.subr.bf16.mxu0 %v6512
    %9419 = vmatpush2.bf16.msra.mxu0 %v6511
    %9420 = vmatprep.subr.bf16.mxu0 %v6504
    %9421 = vmatpush2.bf16.msra.mxu0 %v6503
    %9422 = vmatprep.subr.bf16.mxu0 %v6496
    %9423 = vmatpush2.bf16.msra.mxu0 %v6495
    %9424 = vmatprep.subr.bf16.mxu0 %v6488
    %9425 = vmatpush2.bf16.msra.mxu0 %v6487
    %9426 = vmatprep.subr.bf16.mxu0 %v6480
    %9427 = vmatpush2.bf16.msra.mxu0 %v6479
    %9428 = vmatprep.subr.bf16.mxu0 %v6472
    %9429 = vmatpush2.bf16.msra.mxu0 %v6471
    %9430 = vmatprep.mubr.bf16.mxu0 %v179
    %9431 = vmatmul.mubr.bf16.gmra.mxu0 %v178
    %v9432 = vpop.f32.mrf.mxu0
    %v9433 = vadd.f32 %v9390, %v9432
    %v9434 = vpop.f32.mrf.mxu0
    %v9435 = vadd.f32 %v9392, %v9434
    %v9436 = vpop.f32.mrf.mxu0
    %v9437 = vadd.f32 %v9394, %v9436
    %v9438 = vpop.f32.mrf.mxu0
    %v9439 = vadd.f32 %v9396, %v9438
    %9440 = vdwg.mxu0
    %9441 = vmatprep.subr.bf16.mxu0 %v6592
    %9442 = vmatpush1.bf16.msra.mxu0 %v6591
    %9443 = vmatprep.subr.bf16.mxu0 %v6584
    %9444 = vmatpush1.bf16.msra.mxu0 %v6583
    %9445 = vmatprep.subr.bf16.mxu0 %v6576
    %9446 = vmatpush1.bf16.msra.mxu0 %v6575
    %9447 = vmatprep.subr.bf16.mxu0 %v6568
    %9448 = vmatpush1.bf16.msra.mxu0 %v6567
    %9449 = vmatprep.subr.bf16.mxu0 %v6560
    %9450 = vmatpush1.bf16.msra.mxu0 %v6559
    %9451 = vmatprep.subr.bf16.mxu0 %v6552
    %9452 = vmatpush1.bf16.msra.mxu0 %v6551
    %9453 = vmatprep.subr.bf16.mxu0 %v6544
    %9454 = vmatpush1.bf16.msra.mxu0 %v6543
    %9455 = vmatprep.subr.bf16.mxu0 %v6536
    %9456 = vmatpush1.bf16.msra.mxu0 %v6535
    %9457 = vmatprep.subr.bf16.mxu0 %v6656
    %9458 = vmatpush2.bf16.msra.mxu0 %v6655
    %9459 = vmatprep.subr.bf16.mxu0 %v6648
    %9460 = vmatpush2.bf16.msra.mxu0 %v6647
    %9461 = vmatprep.subr.bf16.mxu0 %v6640
    %9462 = vmatpush2.bf16.msra.mxu0 %v6639
    %9463 = vmatprep.subr.bf16.mxu0 %v6632
    %9464 = vmatpush2.bf16.msra.mxu0 %v6631
    %9465 = vmatprep.subr.bf16.mxu0 %v6624
    %9466 = vmatpush2.bf16.msra.mxu0 %v6623
    %9467 = vmatprep.subr.bf16.mxu0 %v6616
    %9468 = vmatpush2.bf16.msra.mxu0 %v6615
    %9469 = vmatprep.subr.bf16.mxu0 %v6608
    %9470 = vmatpush2.bf16.msra.mxu0 %v6607
    %9471 = vmatprep.subr.bf16.mxu0 %v6600
    %9472 = vmatpush2.bf16.msra.mxu0 %v6599
    %9473 = vmatprep.mubr.bf16.mxu0 %v181
    %9474 = vmatmul.mubr.bf16.gmra.mxu0 %v180
    %v9475 = vpop.f32.mrf.mxu0
    %v9476 = vadd.f32 %v9433, %v9475
    %v9477 = vpop.f32.mrf.mxu0
    %v9478 = vadd.f32 %v9435, %v9477
    %v9479 = vpop.f32.mrf.mxu0
    %v9480 = vadd.f32 %v9437, %v9479
    %v9481 = vpop.f32.mrf.mxu0
    %v9482 = vadd.f32 %v9439, %v9481
    %9483 = vdwg.mxu0
    %9484 = vmatprep.subr.bf16.mxu0 %v6720
    %9485 = vmatpush1.bf16.msra.mxu0 %v6719
    %9486 = vmatprep.subr.bf16.mxu0 %v6712
    %9487 = vmatpush1.bf16.msra.mxu0 %v6711
    %9488 = vmatprep.subr.bf16.mxu0 %v6704
    %9489 = vmatpush1.bf16.msra.mxu0 %v6703
    %9490 = vmatprep.subr.bf16.mxu0 %v6696
    %9491 = vmatpush1.bf16.msra.mxu0 %v6695
    %9492 = vmatprep.subr.bf16.mxu0 %v6688
    %9493 = vmatpush1.bf16.msra.mxu0 %v6687
    %9494 = vmatprep.subr.bf16.mxu0 %v6680
    %9495 = vmatpush1.bf16.msra.mxu0 %v6679
    %9496 = vmatprep.subr.bf16.mxu0 %v6672
    %9497 = vmatpush1.bf16.msra.mxu0 %v6671
    %9498 = vmatprep.subr.bf16.mxu0 %v6664
    %9499 = vmatpush1.bf16.msra.mxu0 %v6663
    %9500 = vmatprep.subr.bf16.mxu0 %v6784
    %9501 = vmatpush2.bf16.msra.mxu0 %v6783
    %9502 = vmatprep.subr.bf16.mxu0 %v6776
    %9503 = vmatpush2.bf16.msra.mxu0 %v6775
    %9504 = vmatprep.subr.bf16.mxu0 %v6768
    %9505 = vmatpush2.bf16.msra.mxu0 %v6767
    %9506 = vmatprep.subr.bf16.mxu0 %v6760
    %9507 = vmatpush2.bf16.msra.mxu0 %v6759
    %9508 = vmatprep.subr.bf16.mxu0 %v6752
    %9509 = vmatpush2.bf16.msra.mxu0 %v6751
    %9510 = vmatprep.subr.bf16.mxu0 %v6744
    %9511 = vmatpush2.bf16.msra.mxu0 %v6743
    %9512 = vmatprep.subr.bf16.mxu0 %v6736
    %9513 = vmatpush2.bf16.msra.mxu0 %v6735
    %9514 = vmatprep.subr.bf16.mxu0 %v6728
    %9515 = vmatpush2.bf16.msra.mxu0 %v6727
    %9516 = vmatprep.mubr.bf16.mxu0 %v183
    %9517 = vmatmul.mubr.bf16.gmra.mxu0 %v182
    %v9518 = vpop.f32.mrf.mxu0
    %v9519 = vadd.f32 %v9476, %v9518
    %v9520 = vpop.f32.mrf.mxu0
    %v9521 = vadd.f32 %v9478, %v9520
    %v9522 = vpop.f32.mrf.mxu0
    %v9523 = vadd.f32 %v9480, %v9522
    %v9524 = vpop.f32.mrf.mxu0
    %v9525 = vadd.f32 %v9482, %v9524
    %9526 = vdwg.mxu0
    %9527 = vmatprep.subr.bf16.mxu0 0
    %9528 = vmatpush1.bf16.msra.mxu0 0
    %9529 = vmatprep.subr.bf16.mxu0 0
    %9530 = vmatpush1.bf16.msra.mxu0 0
    %9531 = vmatprep.subr.bf16.mxu0 0
    %9532 = vmatpush1.bf16.msra.mxu0 0
    %9533 = vmatprep.subr.bf16.mxu0 %v6824
    %9534 = vmatpush1.bf16.msra.mxu0 %v6823
    %9535 = vmatprep.subr.bf16.mxu0 %v6816
    %9536 = vmatpush1.bf16.msra.mxu0 %v6815
    %9537 = vmatprep.subr.bf16.mxu0 %v6808
    %9538 = vmatpush1.bf16.msra.mxu0 %v6807
    %9539 = vmatprep.subr.bf16.mxu0 %v6800
    %9540 = vmatpush1.bf16.msra.mxu0 %v6799
    %9541 = vmatprep.subr.bf16.mxu0 %v6792
    %9542 = vmatpush1.bf16.msra.mxu0 %v6791
    %9543 = vmatprep.subr.bf16.mxu0 0
    %9544 = vmatpush2.bf16.msra.mxu0 0
    %9545 = vmatprep.subr.bf16.mxu0 0
    %9546 = vmatpush2.bf16.msra.mxu0 0
    %9547 = vmatprep.subr.bf16.mxu0 0
    %9548 = vmatpush2.bf16.msra.mxu0 0
    %9549 = vmatprep.subr.bf16.mxu0 0
    %9550 = vmatpush2.bf16.msra.mxu0 0
    %9551 = vmatprep.subr.bf16.mxu0 0
    %9552 = vmatpush2.bf16.msra.mxu0 0
    %9553 = vmatprep.subr.bf16.mxu0 0
    %9554 = vmatpush2.bf16.msra.mxu0 0
    %9555 = vmatprep.subr.bf16.mxu0 0
    %9556 = vmatpush2.bf16.msra.mxu0 0
    %9557 = vmatprep.subr.bf16.mxu0 0
    %9558 = vmatpush2.bf16.msra.mxu0 0
    %9559 = vmatprep.mubr.bf16.mxu0 0
    %9560 = vmatmul.mubr.bf16.gmra.mxu0 %v8149
    %v9561 = vpop.f32.mrf.mxu0
    %v9562 = vadd.f32 %v9519, %v9561
    %v9563 = vpop.f32.mrf.mxu0
    %v9564 = vadd.f32 %v9521, %v9563
    %v9565 = vpop.f32.mrf.mxu0
    %v9566 = vadd.f32 %v9523, %v9565
    %v9567 = vpop.f32.mrf.mxu0
    %v9568 = vadd.f32 %v9525, %v9567
    %9569 = vdwg.mxu0
    %9570 = vmatprep.subr.bf16.mxu0 %v5570
    %9571 = vmatpush1.bf16.msra.mxu0 %v5569
    %9572 = vmatprep.subr.bf16.mxu0 %v5562
    %9573 = vmatpush1.bf16.msra.mxu0 %v5561
    %9574 = vmatprep.subr.bf16.mxu0 %v5554
    %9575 = vmatpush1.bf16.msra.mxu0 %v5553
    %9576 = vmatprep.subr.bf16.mxu0 %v5546
    %9577 = vmatpush1.bf16.msra.mxu0 %v5545
    %9578 = vmatprep.subr.bf16.mxu0 %v5538
    %9579 = vmatpush1.bf16.msra.mxu0 %v5537
    %9580 = vmatprep.subr.bf16.mxu0 %v5530
    %9581 = vmatpush1.bf16.msra.mxu0 %v5529
    %9582 = vmatprep.subr.bf16.mxu0 %v5522
    %9583 = vmatpush1.bf16.msra.mxu0 %v5521
    %9584 = vmatprep.subr.bf16.mxu0 %v5514
    %9585 = vmatpush1.bf16.msra.mxu0 %v5513
    %9586 = vmatprep.subr.bf16.mxu0 %v5634
    %9587 = vmatpush2.bf16.msra.mxu0 %v5633
    %9588 = vmatprep.subr.bf16.mxu0 %v5626
    %9589 = vmatpush2.bf16.msra.mxu0 %v5625
    %9590 = vmatprep.subr.bf16.mxu0 %v5618
    %9591 = vmatpush2.bf16.msra.mxu0 %v5617
    %9592 = vmatprep.subr.bf16.mxu0 %v5610
    %9593 = vmatpush2.bf16.msra.mxu0 %v5609
    %9594 = vmatprep.subr.bf16.mxu0 %v5602
    %9595 = vmatpush2.bf16.msra.mxu0 %v5601
    %9596 = vmatprep.subr.bf16.mxu0 %v5594
    %9597 = vmatpush2.bf16.msra.mxu0 %v5593
    %9598 = vmatprep.subr.bf16.mxu0 %v5586
    %9599 = vmatpush2.bf16.msra.mxu0 %v5585
    %9600 = vmatprep.subr.bf16.mxu0 %v5578
    %9601 = vmatpush2.bf16.msra.mxu0 %v5577
    %9602 = vmatprep.mubr.bf16.mxu0 %v165
    %9603 = vmatmul.mubr.bf16.gmra.mxu0 %v164
    %v9604 = vpop.f32.mrf.mxu0
    %v9605 = vadd.f32 %v1534, %v9604
    %v9606 = vpop.f32.mrf.mxu0
    %v9607 = vadd.f32 %v1538, %v9606
    %v9608 = vpop.f32.mrf.mxu0
    %v9609 = vadd.f32 %v1534, %v9608
    %v9610 = vpop.f32.mrf.mxu0
    %v9611 = vadd.f32 %v1538, %v9610
    %9612 = vdwg.mxu0
    %9613 = vmatprep.subr.bf16.mxu0 %v5698
    %9614 = vmatpush1.bf16.msra.mxu0 %v5697
    %9615 = vmatprep.subr.bf16.mxu0 %v5690
    %9616 = vmatpush1.bf16.msra.mxu0 %v5689
    %9617 = vmatprep.subr.bf16.mxu0 %v5682
    %9618 = vmatpush1.bf16.msra.mxu0 %v5681
    %9619 = vmatprep.subr.bf16.mxu0 %v5674
    %9620 = vmatpush1.bf16.msra.mxu0 %v5673
    %9621 = vmatprep.subr.bf16.mxu0 %v5666
    %9622 = vmatpush1.bf16.msra.mxu0 %v5665
    %9623 = vmatprep.subr.bf16.mxu0 %v5658
    %9624 = vmatpush1.bf16.msra.mxu0 %v5657
    %9625 = vmatprep.subr.bf16.mxu0 %v5650
    %9626 = vmatpush1.bf16.msra.mxu0 %v5649
    %9627 = vmatprep.subr.bf16.mxu0 %v5642
    %9628 = vmatpush1.bf16.msra.mxu0 %v5641
    %9629 = vmatprep.subr.bf16.mxu0 %v5762
    %9630 = vmatpush2.bf16.msra.mxu0 %v5761
    %9631 = vmatprep.subr.bf16.mxu0 %v5754
    %9632 = vmatpush2.bf16.msra.mxu0 %v5753
    %9633 = vmatprep.subr.bf16.mxu0 %v5746
    %9634 = vmatpush2.bf16.msra.mxu0 %v5745
    %9635 = vmatprep.subr.bf16.mxu0 %v5738
    %9636 = vmatpush2.bf16.msra.mxu0 %v5737
    %9637 = vmatprep.subr.bf16.mxu0 %v5730
    %9638 = vmatpush2.bf16.msra.mxu0 %v5729
    %9639 = vmatprep.subr.bf16.mxu0 %v5722
    %9640 = vmatpush2.bf16.msra.mxu0 %v5721
    %9641 = vmatprep.subr.bf16.mxu0 %v5714
    %9642 = vmatpush2.bf16.msra.mxu0 %v5713
    %9643 = vmatprep.subr.bf16.mxu0 %v5706
    %9644 = vmatpush2.bf16.msra.mxu0 %v5705
    %9645 = vmatprep.mubr.bf16.mxu0 %v167
    %9646 = vmatmul.mubr.bf16.gmra.mxu0 %v166
    %v9647 = vpop.f32.mrf.mxu0
    %v9648 = vadd.f32 %v9605, %v9647
    %v9649 = vpop.f32.mrf.mxu0
    %v9650 = vadd.f32 %v9607, %v9649
    %v9651 = vpop.f32.mrf.mxu0
    %v9652 = vadd.f32 %v9609, %v9651
    %v9653 = vpop.f32.mrf.mxu0
    %v9654 = vadd.f32 %v9611, %v9653
    %9655 = vdwg.mxu0
    %9656 = vmatprep.subr.bf16.mxu0 %v5826
    %9657 = vmatpush1.bf16.msra.mxu0 %v5825
    %9658 = vmatprep.subr.bf16.mxu0 %v5818
    %9659 = vmatpush1.bf16.msra.mxu0 %v5817
    %9660 = vmatprep.subr.bf16.mxu0 %v5810
    %9661 = vmatpush1.bf16.msra.mxu0 %v5809
    %9662 = vmatprep.subr.bf16.mxu0 %v5802
    %9663 = vmatpush1.bf16.msra.mxu0 %v5801
    %9664 = vmatprep.subr.bf16.mxu0 %v5794
    %9665 = vmatpush1.bf16.msra.mxu0 %v5793
    %9666 = vmatprep.subr.bf16.mxu0 %v5786
    %9667 = vmatpush1.bf16.msra.mxu0 %v5785
    %9668 = vmatprep.subr.bf16.mxu0 %v5778
    %9669 = vmatpush1.bf16.msra.mxu0 %v5777
    %9670 = vmatprep.subr.bf16.mxu0 %v5770
    %9671 = vmatpush1.bf16.msra.mxu0 %v5769
    %9672 = vmatprep.subr.bf16.mxu0 %v5890
    %9673 = vmatpush2.bf16.msra.mxu0 %v5889
    %9674 = vmatprep.subr.bf16.mxu0 %v5882
    %9675 = vmatpush2.bf16.msra.mxu0 %v5881
    %9676 = vmatprep.subr.bf16.mxu0 %v5874
    %9677 = vmatpush2.bf16.msra.mxu0 %v5873
    %9678 = vmatprep.subr.bf16.mxu0 %v5866
    %9679 = vmatpush2.bf16.msra.mxu0 %v5865
    %9680 = vmatprep.subr.bf16.mxu0 %v5858
    %9681 = vmatpush2.bf16.msra.mxu0 %v5857
    %9682 = vmatprep.subr.bf16.mxu0 %v5850
    %9683 = vmatpush2.bf16.msra.mxu0 %v5849
    %9684 = vmatprep.subr.bf16.mxu0 %v5842
    %9685 = vmatpush2.bf16.msra.mxu0 %v5841
    %9686 = vmatprep.subr.bf16.mxu0 %v5834
    %9687 = vmatpush2.bf16.msra.mxu0 %v5833
    %9688 = vmatprep.mubr.bf16.mxu0 %v169
    %9689 = vmatmul.mubr.bf16.gmra.mxu0 %v168
    %v9690 = vpop.f32.mrf.mxu0
    %v9691 = vadd.f32 %v9648, %v9690
    %v9692 = vpop.f32.mrf.mxu0
    %v9693 = vadd.f32 %v9650, %v9692
    %v9694 = vpop.f32.mrf.mxu0
    %v9695 = vadd.f32 %v9652, %v9694
    %v9696 = vpop.f32.mrf.mxu0
    %v9697 = vadd.f32 %v9654, %v9696
    %9698 = vdwg.mxu0
    %9699 = vmatprep.subr.bf16.mxu0 %v5954
    %9700 = vmatpush1.bf16.msra.mxu0 %v5953
    %9701 = vmatprep.subr.bf16.mxu0 %v5946
    %9702 = vmatpush1.bf16.msra.mxu0 %v5945
    %9703 = vmatprep.subr.bf16.mxu0 %v5938
    %9704 = vmatpush1.bf16.msra.mxu0 %v5937
    %9705 = vmatprep.subr.bf16.mxu0 %v5930
    %9706 = vmatpush1.bf16.msra.mxu0 %v5929
    %9707 = vmatprep.subr.bf16.mxu0 %v5922
    %9708 = vmatpush1.bf16.msra.mxu0 %v5921
    %9709 = vmatprep.subr.bf16.mxu0 %v5914
    %9710 = vmatpush1.bf16.msra.mxu0 %v5913
    %9711 = vmatprep.subr.bf16.mxu0 %v5906
    %9712 = vmatpush1.bf16.msra.mxu0 %v5905
    %9713 = vmatprep.subr.bf16.mxu0 %v5898
    %9714 = vmatpush1.bf16.msra.mxu0 %v5897
    %9715 = vmatprep.subr.bf16.mxu0 %v6018
    %9716 = vmatpush2.bf16.msra.mxu0 %v6017
    %9717 = vmatprep.subr.bf16.mxu0 %v6010
    %9718 = vmatpush2.bf16.msra.mxu0 %v6009
    %9719 = vmatprep.subr.bf16.mxu0 %v6002
    %9720 = vmatpush2.bf16.msra.mxu0 %v6001
    %9721 = vmatprep.subr.bf16.mxu0 %v5994
    %9722 = vmatpush2.bf16.msra.mxu0 %v5993
    %9723 = vmatprep.subr.bf16.mxu0 %v5986
    %9724 = vmatpush2.bf16.msra.mxu0 %v5985
    %9725 = vmatprep.subr.bf16.mxu0 %v5978
    %9726 = vmatpush2.bf16.msra.mxu0 %v5977
    %9727 = vmatprep.subr.bf16.mxu0 %v5970
    %9728 = vmatpush2.bf16.msra.mxu0 %v5969
    %9729 = vmatprep.subr.bf16.mxu0 %v5962
    %9730 = vmatpush2.bf16.msra.mxu0 %v5961
    %9731 = vmatprep.mubr.bf16.mxu0 %v171
    %9732 = vmatmul.mubr.bf16.gmra.mxu0 %v170
    %v9733 = vpop.f32.mrf.mxu0
    %v9734 = vadd.f32 %v9691, %v9733
    %v9735 = vpop.f32.mrf.mxu0
    %v9736 = vadd.f32 %v9693, %v9735
    %v9737 = vpop.f32.mrf.mxu0
    %v9738 = vadd.f32 %v9695, %v9737
    %v9739 = vpop.f32.mrf.mxu0
    %v9740 = vadd.f32 %v9697, %v9739
    %9741 = vdwg.mxu0
    %9742 = vmatprep.subr.bf16.mxu0 %v6082
    %9743 = vmatpush1.bf16.msra.mxu0 %v6081
    %9744 = vmatprep.subr.bf16.mxu0 %v6074
    %9745 = vmatpush1.bf16.msra.mxu0 %v6073
    %9746 = vmatprep.subr.bf16.mxu0 %v6066
    %9747 = vmatpush1.bf16.msra.mxu0 %v6065
    %9748 = vmatprep.subr.bf16.mxu0 %v6058
    %9749 = vmatpush1.bf16.msra.mxu0 %v6057
    %9750 = vmatprep.subr.bf16.mxu0 %v6050
    %9751 = vmatpush1.bf16.msra.mxu0 %v6049
    %9752 = vmatprep.subr.bf16.mxu0 %v6042
    %9753 = vmatpush1.bf16.msra.mxu0 %v6041
    %9754 = vmatprep.subr.bf16.mxu0 %v6034
    %9755 = vmatpush1.bf16.msra.mxu0 %v6033
    %9756 = vmatprep.subr.bf16.mxu0 %v6026
    %9757 = vmatpush1.bf16.msra.mxu0 %v6025
    %9758 = vmatprep.subr.bf16.mxu0 %v6146
    %9759 = vmatpush2.bf16.msra.mxu0 %v6145
    %9760 = vmatprep.subr.bf16.mxu0 %v6138
    %9761 = vmatpush2.bf16.msra.mxu0 %v6137
    %9762 = vmatprep.subr.bf16.mxu0 %v6130
    %9763 = vmatpush2.bf16.msra.mxu0 %v6129
    %9764 = vmatprep.subr.bf16.mxu0 %v6122
    %9765 = vmatpush2.bf16.msra.mxu0 %v6121
    %9766 = vmatprep.subr.bf16.mxu0 %v6114
    %9767 = vmatpush2.bf16.msra.mxu0 %v6113
    %9768 = vmatprep.subr.bf16.mxu0 %v6106
    %9769 = vmatpush2.bf16.msra.mxu0 %v6105
    %9770 = vmatprep.subr.bf16.mxu0 %v6098
    %9771 = vmatpush2.bf16.msra.mxu0 %v6097
    %9772 = vmatprep.subr.bf16.mxu0 %v6090
    %9773 = vmatpush2.bf16.msra.mxu0 %v6089
    %9774 = vmatprep.mubr.bf16.mxu0 %v173
    %9775 = vmatmul.mubr.bf16.gmra.mxu0 %v172
    %v9776 = vpop.f32.mrf.mxu0
    %v9777 = vadd.f32 %v9734, %v9776
    %v9778 = vpop.f32.mrf.mxu0
    %v9779 = vadd.f32 %v9736, %v9778
    %v9780 = vpop.f32.mrf.mxu0
    %v9781 = vadd.f32 %v9738, %v9780
    %v9782 = vpop.f32.mrf.mxu0
    %v9783 = vadd.f32 %v9740, %v9782
    %9784 = vdwg.mxu0
    %9785 = vmatprep.subr.bf16.mxu0 %v6210
    %9786 = vmatpush1.bf16.msra.mxu0 %v6209
    %9787 = vmatprep.subr.bf16.mxu0 %v6202
    %9788 = vmatpush1.bf16.msra.mxu0 %v6201
    %9789 = vmatprep.subr.bf16.mxu0 %v6194
    %9790 = vmatpush1.bf16.msra.mxu0 %v6193
    %9791 = vmatprep.subr.bf16.mxu0 %v6186
    %9792 = vmatpush1.bf16.msra.mxu0 %v6185
    %9793 = vmatprep.subr.bf16.mxu0 %v6178
    %9794 = vmatpush1.bf16.msra.mxu0 %v6177
    %9795 = vmatprep.subr.bf16.mxu0 %v6170
    %9796 = vmatpush1.bf16.msra.mxu0 %v6169
    %9797 = vmatprep.subr.bf16.mxu0 %v6162
    %9798 = vmatpush1.bf16.msra.mxu0 %v6161
    %9799 = vmatprep.subr.bf16.mxu0 %v6154
    %9800 = vmatpush1.bf16.msra.mxu0 %v6153
    %9801 = vmatprep.subr.bf16.mxu0 %v6274
    %9802 = vmatpush2.bf16.msra.mxu0 %v6273
    %9803 = vmatprep.subr.bf16.mxu0 %v6266
    %9804 = vmatpush2.bf16.msra.mxu0 %v6265
    %9805 = vmatprep.subr.bf16.mxu0 %v6258
    %9806 = vmatpush2.bf16.msra.mxu0 %v6257
    %9807 = vmatprep.subr.bf16.mxu0 %v6250
    %9808 = vmatpush2.bf16.msra.mxu0 %v6249
    %9809 = vmatprep.subr.bf16.mxu0 %v6242
    %9810 = vmatpush2.bf16.msra.mxu0 %v6241
    %9811 = vmatprep.subr.bf16.mxu0 %v6234
    %9812 = vmatpush2.bf16.msra.mxu0 %v6233
    %9813 = vmatprep.subr.bf16.mxu0 %v6226
    %9814 = vmatpush2.bf16.msra.mxu0 %v6225
    %9815 = vmatprep.subr.bf16.mxu0 %v6218
    %9816 = vmatpush2.bf16.msra.mxu0 %v6217
    %9817 = vmatprep.mubr.bf16.mxu0 %v175
    %9818 = vmatmul.mubr.bf16.gmra.mxu0 %v174
    %v9819 = vpop.f32.mrf.mxu0
    %v9820 = vadd.f32 %v9777, %v9819
    %v9821 = vpop.f32.mrf.mxu0
    %v9822 = vadd.f32 %v9779, %v9821
    %v9823 = vpop.f32.mrf.mxu0
    %v9824 = vadd.f32 %v9781, %v9823
    %v9825 = vpop.f32.mrf.mxu0
    %v9826 = vadd.f32 %v9783, %v9825
    %9827 = vdwg.mxu0
    %9828 = vmatprep.subr.bf16.mxu0 %v6338
    %9829 = vmatpush1.bf16.msra.mxu0 %v6337
    %9830 = vmatprep.subr.bf16.mxu0 %v6330
    %9831 = vmatpush1.bf16.msra.mxu0 %v6329
    %9832 = vmatprep.subr.bf16.mxu0 %v6322
    %9833 = vmatpush1.bf16.msra.mxu0 %v6321
    %9834 = vmatprep.subr.bf16.mxu0 %v6314
    %9835 = vmatpush1.bf16.msra.mxu0 %v6313
    %9836 = vmatprep.subr.bf16.mxu0 %v6306
    %9837 = vmatpush1.bf16.msra.mxu0 %v6305
    %9838 = vmatprep.subr.bf16.mxu0 %v6298
    %9839 = vmatpush1.bf16.msra.mxu0 %v6297
    %9840 = vmatprep.subr.bf16.mxu0 %v6290
    %9841 = vmatpush1.bf16.msra.mxu0 %v6289
    %9842 = vmatprep.subr.bf16.mxu0 %v6282
    %9843 = vmatpush1.bf16.msra.mxu0 %v6281
    %9844 = vmatprep.subr.bf16.mxu0 %v6402
    %9845 = vmatpush2.bf16.msra.mxu0 %v6401
    %9846 = vmatprep.subr.bf16.mxu0 %v6394
    %9847 = vmatpush2.bf16.msra.mxu0 %v6393
    %9848 = vmatprep.subr.bf16.mxu0 %v6386
    %9849 = vmatpush2.bf16.msra.mxu0 %v6385
    %9850 = vmatprep.subr.bf16.mxu0 %v6378
    %9851 = vmatpush2.bf16.msra.mxu0 %v6377
    %9852 = vmatprep.subr.bf16.mxu0 %v6370
    %9853 = vmatpush2.bf16.msra.mxu0 %v6369
    %9854 = vmatprep.subr.bf16.mxu0 %v6362
    %9855 = vmatpush2.bf16.msra.mxu0 %v6361
    %9856 = vmatprep.subr.bf16.mxu0 %v6354
    %9857 = vmatpush2.bf16.msra.mxu0 %v6353
    %9858 = vmatprep.subr.bf16.mxu0 %v6346
    %9859 = vmatpush2.bf16.msra.mxu0 %v6345
    %9860 = vmatprep.mubr.bf16.mxu0 %v177
    %9861 = vmatmul.mubr.bf16.gmra.mxu0 %v176
    %v9862 = vpop.f32.mrf.mxu0
    %v9863 = vadd.f32 %v9820, %v9862
    %v9864 = vpop.f32.mrf.mxu0
    %v9865 = vadd.f32 %v9822, %v9864
    %v9866 = vpop.f32.mrf.mxu0
    %v9867 = vadd.f32 %v9824, %v9866
    %v9868 = vpop.f32.mrf.mxu0
    %v9869 = vadd.f32 %v9826, %v9868
    %9870 = vdwg.mxu0
    %9871 = vmatprep.subr.bf16.mxu0 %v6466
    %9872 = vmatpush1.bf16.msra.mxu0 %v6465
    %9873 = vmatprep.subr.bf16.mxu0 %v6458
    %9874 = vmatpush1.bf16.msra.mxu0 %v6457
    %9875 = vmatprep.subr.bf16.mxu0 %v6450
    %9876 = vmatpush1.bf16.msra.mxu0 %v6449
    %9877 = vmatprep.subr.bf16.mxu0 %v6442
    %9878 = vmatpush1.bf16.msra.mxu0 %v6441
    %9879 = vmatprep.subr.bf16.mxu0 %v6434
    %9880 = vmatpush1.bf16.msra.mxu0 %v6433
    %9881 = vmatprep.subr.bf16.mxu0 %v6426
    %9882 = vmatpush1.bf16.msra.mxu0 %v6425
    %9883 = vmatprep.subr.bf16.mxu0 %v6418
    %9884 = vmatpush1.bf16.msra.mxu0 %v6417
    %9885 = vmatprep.subr.bf16.mxu0 %v6410
    %9886 = vmatpush1.bf16.msra.mxu0 %v6409
    %9887 = vmatprep.subr.bf16.mxu0 %v6530
    %9888 = vmatpush2.bf16.msra.mxu0 %v6529
    %9889 = vmatprep.subr.bf16.mxu0 %v6522
    %9890 = vmatpush2.bf16.msra.mxu0 %v6521
    %9891 = vmatprep.subr.bf16.mxu0 %v6514
    %9892 = vmatpush2.bf16.msra.mxu0 %v6513
    %9893 = vmatprep.subr.bf16.mxu0 %v6506
    %9894 = vmatpush2.bf16.msra.mxu0 %v6505
    %9895 = vmatprep.subr.bf16.mxu0 %v6498
    %9896 = vmatpush2.bf16.msra.mxu0 %v6497
    %9897 = vmatprep.subr.bf16.mxu0 %v6490
    %9898 = vmatpush2.bf16.msra.mxu0 %v6489
    %9899 = vmatprep.subr.bf16.mxu0 %v6482
    %9900 = vmatpush2.bf16.msra.mxu0 %v6481
    %9901 = vmatprep.subr.bf16.mxu0 %v6474
    %9902 = vmatpush2.bf16.msra.mxu0 %v6473
    %9903 = vmatprep.mubr.bf16.mxu0 %v179
    %9904 = vmatmul.mubr.bf16.gmra.mxu0 %v178
    %v9905 = vpop.f32.mrf.mxu0
    %v9906 = vadd.f32 %v9863, %v9905
    %v9907 = vpop.f32.mrf.mxu0
    %v9908 = vadd.f32 %v9865, %v9907
    %v9909 = vpop.f32.mrf.mxu0
    %v9910 = vadd.f32 %v9867, %v9909
    %v9911 = vpop.f32.mrf.mxu0
    %v9912 = vadd.f32 %v9869, %v9911
    %9913 = vdwg.mxu0
    %9914 = vmatprep.subr.bf16.mxu0 %v6594
    %9915 = vmatpush1.bf16.msra.mxu0 %v6593
    %9916 = vmatprep.subr.bf16.mxu0 %v6586
    %9917 = vmatpush1.bf16.msra.mxu0 %v6585
    %9918 = vmatprep.subr.bf16.mxu0 %v6578
    %9919 = vmatpush1.bf16.msra.mxu0 %v6577
    %9920 = vmatprep.subr.bf16.mxu0 %v6570
    %9921 = vmatpush1.bf16.msra.mxu0 %v6569
    %9922 = vmatprep.subr.bf16.mxu0 %v6562
    %9923 = vmatpush1.bf16.msra.mxu0 %v6561
    %9924 = vmatprep.subr.bf16.mxu0 %v6554
    %9925 = vmatpush1.bf16.msra.mxu0 %v6553
    %9926 = vmatprep.subr.bf16.mxu0 %v6546
    %9927 = vmatpush1.bf16.msra.mxu0 %v6545
    %9928 = vmatprep.subr.bf16.mxu0 %v6538
    %9929 = vmatpush1.bf16.msra.mxu0 %v6537
    %9930 = vmatprep.subr.bf16.mxu0 %v6658
    %9931 = vmatpush2.bf16.msra.mxu0 %v6657
    %9932 = vmatprep.subr.bf16.mxu0 %v6650
    %9933 = vmatpush2.bf16.msra.mxu0 %v6649
    %9934 = vmatprep.subr.bf16.mxu0 %v6642
    %9935 = vmatpush2.bf16.msra.mxu0 %v6641
    %9936 = vmatprep.subr.bf16.mxu0 %v6634
    %9937 = vmatpush2.bf16.msra.mxu0 %v6633
    %9938 = vmatprep.subr.bf16.mxu0 %v6626
    %9939 = vmatpush2.bf16.msra.mxu0 %v6625
    %9940 = vmatprep.subr.bf16.mxu0 %v6618
    %9941 = vmatpush2.bf16.msra.mxu0 %v6617
    %9942 = vmatprep.subr.bf16.mxu0 %v6610
    %9943 = vmatpush2.bf16.msra.mxu0 %v6609
    %9944 = vmatprep.subr.bf16.mxu0 %v6602
    %9945 = vmatpush2.bf16.msra.mxu0 %v6601
    %9946 = vmatprep.mubr.bf16.mxu0 %v181
    %9947 = vmatmul.mubr.bf16.gmra.mxu0 %v180
    %v9948 = vpop.f32.mrf.mxu0
    %v9949 = vadd.f32 %v9906, %v9948
    %v9950 = vpop.f32.mrf.mxu0
    %v9951 = vadd.f32 %v9908, %v9950
    %v9952 = vpop.f32.mrf.mxu0
    %v9953 = vadd.f32 %v9910, %v9952
    %v9954 = vpop.f32.mrf.mxu0
    %v9955 = vadd.f32 %v9912, %v9954
    %9956 = vdwg.mxu0
    %9957 = vmatprep.subr.bf16.mxu0 %v6722
    %9958 = vmatpush1.bf16.msra.mxu0 %v6721
    %9959 = vmatprep.subr.bf16.mxu0 %v6714
    %9960 = vmatpush1.bf16.msra.mxu0 %v6713
    %9961 = vmatprep.subr.bf16.mxu0 %v6706
    %9962 = vmatpush1.bf16.msra.mxu0 %v6705
    %9963 = vmatprep.subr.bf16.mxu0 %v6698
    %9964 = vmatpush1.bf16.msra.mxu0 %v6697
    %9965 = vmatprep.subr.bf16.mxu0 %v6690
    %9966 = vmatpush1.bf16.msra.mxu0 %v6689
    %9967 = vmatprep.subr.bf16.mxu0 %v6682
    %9968 = vmatpush1.bf16.msra.mxu0 %v6681
    %9969 = vmatprep.subr.bf16.mxu0 %v6674
    %9970 = vmatpush1.bf16.msra.mxu0 %v6673
    %9971 = vmatprep.subr.bf16.mxu0 %v6666
    %9972 = vmatpush1.bf16.msra.mxu0 %v6665
    %9973 = vmatprep.subr.bf16.mxu0 %v6786
    %9974 = vmatpush2.bf16.msra.mxu0 %v6785
    %9975 = vmatprep.subr.bf16.mxu0 %v6778
    %9976 = vmatpush2.bf16.msra.mxu0 %v6777
    %9977 = vmatprep.subr.bf16.mxu0 %v6770
    %9978 = vmatpush2.bf16.msra.mxu0 %v6769
    %9979 = vmatprep.subr.bf16.mxu0 %v6762
    %9980 = vmatpush2.bf16.msra.mxu0 %v6761
    %9981 = vmatprep.subr.bf16.mxu0 %v6754
    %9982 = vmatpush2.bf16.msra.mxu0 %v6753
    %9983 = vmatprep.subr.bf16.mxu0 %v6746
    %9984 = vmatpush2.bf16.msra.mxu0 %v6745
    %9985 = vmatprep.subr.bf16.mxu0 %v6738
    %9986 = vmatpush2.bf16.msra.mxu0 %v6737
    %9987 = vmatprep.subr.bf16.mxu0 %v6730
    %9988 = vmatpush2.bf16.msra.mxu0 %v6729
    %9989 = vmatprep.mubr.bf16.mxu0 %v183
    %9990 = vmatmul.mubr.bf16.gmra.mxu0 %v182
    %v9991 = vpop.f32.mrf.mxu0
    %v9992 = vadd.f32 %v9949, %v9991
    %v9993 = vpop.f32.mrf.mxu0
    %v9994 = vadd.f32 %v9951, %v9993
    %v9995 = vpop.f32.mrf.mxu0
    %v9996 = vadd.f32 %v9953, %v9995
    %v9997 = vpop.f32.mrf.mxu0
    %v9998 = vadd.f32 %v9955, %v9997
    %9999 = vdwg.mxu0
    %10000 = vmatprep.subr.bf16.mxu0 0
    %10001 = vmatpush1.bf16.msra.mxu0 0
    %10002 = vmatprep.subr.bf16.mxu0 0
    %10003 = vmatpush1.bf16.msra.mxu0 0
    %10004 = vmatprep.subr.bf16.mxu0 0
    %10005 = vmatpush1.bf16.msra.mxu0 0
    %10006 = vmatprep.subr.bf16.mxu0 %v6826
    %10007 = vmatpush1.bf16.msra.mxu0 %v6825
    %10008 = vmatprep.subr.bf16.mxu0 %v6818
    %10009 = vmatpush1.bf16.msra.mxu0 %v6817
    %10010 = vmatprep.subr.bf16.mxu0 %v6810
    %10011 = vmatpush1.bf16.msra.mxu0 %v6809
    %10012 = vmatprep.subr.bf16.mxu0 %v6802
    %10013 = vmatpush1.bf16.msra.mxu0 %v6801
    %10014 = vmatprep.subr.bf16.mxu0 %v6794
    %10015 = vmatpush1.bf16.msra.mxu0 %v6793
    %10016 = vmatprep.subr.bf16.mxu0 0
    %10017 = vmatpush2.bf16.msra.mxu0 0
    %10018 = vmatprep.subr.bf16.mxu0 0
    %10019 = vmatpush2.bf16.msra.mxu0 0
    %10020 = vmatprep.subr.bf16.mxu0 0
    %10021 = vmatpush2.bf16.msra.mxu0 0
    %10022 = vmatprep.subr.bf16.mxu0 0
    %10023 = vmatpush2.bf16.msra.mxu0 0
    %10024 = vmatprep.subr.bf16.mxu0 0
    %10025 = vmatpush2.bf16.msra.mxu0 0
    %10026 = vmatprep.subr.bf16.mxu0 0
    %10027 = vmatpush2.bf16.msra.mxu0 0
    %10028 = vmatprep.subr.bf16.mxu0 0
    %10029 = vmatpush2.bf16.msra.mxu0 0
    %10030 = vmatprep.subr.bf16.mxu0 0
    %10031 = vmatpush2.bf16.msra.mxu0 0
    %10032 = vmatprep.mubr.bf16.mxu0 0
    %10033 = vmatmul.mubr.bf16.gmra.mxu0 %v8149
    %v10034 = vpop.f32.mrf.mxu0
    %v10035 = vadd.f32 %v9992, %v10034
    %v10036 = vpop.f32.mrf.mxu0
    %v10037 = vadd.f32 %v9994, %v10036
    %v10038 = vpop.f32.mrf.mxu0
    %v10039 = vadd.f32 %v9996, %v10038
    %v10040 = vpop.f32.mrf.mxu0
    %v10041 = vadd.f32 %v9998, %v10040
    %10042 = vdwg.mxu0
    %v10043 = vmax.f32 %v8616, 0.0
    %v10044 = vmax.f32 %v8618, 0.0
    %v10045 = vmax.f32 %v9089, 0.0
    %v10046 = vmax.f32 %v9091, 0.0
    %v10047 = vmax.f32 %v9562, 0.0
    %v10048 = vmax.f32 %v9564, 0.0
    %v10049 = vmax.f32 %v10035, 0.0
    %v10050 = vmax.f32 %v10037, 0.0
    %v10051 = vmax.f32 %v8620, 0.0
    %v10052 = vmax.f32 %v8622, 0.0
    %v10053 = vmax.f32 %v9093, 0.0
    %v10054 = vmax.f32 %v9095, 0.0
    %v10055 = vmax.f32 %v9566, 0.0
    %v10056 = vmax.f32 %v9568, 0.0
    %v10057 = vmax.f32 %v10039, 0.0
    %v10058 = vmax.f32 %v10041, 0.0
    %v10059 = vpack.c.bf16 %v10051, %v10043
    %v10060 = vpack.c.bf16 %v10052, %v10044
    %v10061 = vpack.c.bf16 %v10053, %v10045
    %v10062 = vpack.c.bf16 %v10054, %v10046
    %v10063 = vpack.c.bf16 %v10055, %v10047
    %v10064 = vpack.c.bf16 %v10056, %v10048
    %v10065 = vpack.c.bf16 %v10057, %v10049
    %v10066 = vpack.c.bf16 %v10058, %v10050
    %v10067 = vld [vmem:[#allocation8] sm:$0xff]
    %v10068 = vld [vmem:[#allocation8 + $0x8] sm:$0xff]
    %v10069 = vld [vmem:[#allocation8 + $0x10] sm:$0xff]
    %v10070 = vld [vmem:[#allocation8 + $0x18] sm:$0xff]
    %v10071 = vld [vmem:[#allocation8 + $0x20] sm:$0xff]
    %v10072 = vld [vmem:[#allocation8 + $0x28] sm:$0xff]
    %v10073 = vld [vmem:[#allocation8 + $0x30] sm:$0xff]
    %v10074 = vld [vmem:[#allocation8 + $0x38] sm:$0xff]
    %v10075 = vld [vmem:[#allocation8 + $0x40] sm:$0xff]
    %v10076 = vld [vmem:[#allocation8 + $0x48] sm:$0xff]
    %v10077 = vld [vmem:[#allocation8 + $0x50] sm:$0xff]
    %v10078 = vld [vmem:[#allocation8 + $0x58] sm:$0xff]
    %v10079 = vld [vmem:[#allocation8 + $0x60] sm:$0xff]
    %v10080 = vld [vmem:[#allocation8 + $0x68] sm:$0xff]
    %v10081 = vld [vmem:[#allocation8 + $0x70] sm:$0xff]
    %v10082 = vld [vmem:[#allocation8 + $0x78] sm:$0xff]
    %v10083 = vld [vmem:[#allocation8 + $0x80] sm:$0xff]
    %v10084 = vld [vmem:[#allocation8 + $0x88] sm:$0xff]
    %v10085 = vld [vmem:[#allocation8 + $0x90] sm:$0xff]
    %v10086 = vld [vmem:[#allocation8 + $0x98] sm:$0xff]
    %v10087 = vld [vmem:[#allocation8 + $0xa0] sm:$0xff]
    %v10088 = vld [vmem:[#allocation8 + $0xa8] sm:$0xff]
    %v10089 = vld [vmem:[#allocation8 + $0xb0] sm:$0xff]
    %v10090 = vld [vmem:[#allocation8 + $0xb8] sm:$0xff]
    %v10091 = vld [vmem:[#allocation8 + $0xc0] sm:$0xff]
    %v10092 = vld [vmem:[#allocation8 + $0xc8] sm:$0xff]
    %v10093 = vld [vmem:[#allocation8 + $0xd0] sm:$0xff]
    %v10094 = vld [vmem:[#allocation8 + $0xd8] sm:$0xff]
    %v10095 = vld [vmem:[#allocation8 + $0xe0] sm:$0xff]
    %v10096 = vld [vmem:[#allocation8 + $0xe8] sm:$0xff]
    %v10097 = vld [vmem:[#allocation8 + $0xf0] sm:$0xff]
    %v10098 = vld [vmem:[#allocation8 + $0xf8] sm:$0xff]
    %v10099 = vld [vmem:[#allocation8 + $0x100] sm:$0xff]
    %v10100 = vld [vmem:[#allocation8 + $0x108] sm:$0xff]
    %v10101 = vld [vmem:[#allocation8 + $0x110] sm:$0xff]
    %v10102 = vld [vmem:[#allocation8 + $0x118] sm:$0xff]
    %v10103 = vld [vmem:[#allocation8 + $0x120] sm:$0xff]
    %v10104 = vld [vmem:[#allocation8 + $0x128] sm:$0xff]
    %v10105 = vld [vmem:[#allocation8 + $0x130] sm:$0xff]
    %v10106 = vld [vmem:[#allocation8 + $0x138] sm:$0xff]
    %v10107 = vld [vmem:[#allocation8 + $0x140] sm:$0xff]
    %v10108 = vld [vmem:[#allocation8 + $0x148] sm:$0xff]
    %v10109 = vld [vmem:[#allocation8 + $0x150] sm:$0xff]
    %v10110 = vld [vmem:[#allocation8 + $0x158] sm:$0xff]
    %v10111 = vld [vmem:[#allocation8 + $0x160] sm:$0xff]
    %v10112 = vld [vmem:[#allocation8 + $0x168] sm:$0xff]
    %v10113 = vld [vmem:[#allocation8 + $0x170] sm:$0xff]
    %v10114 = vld [vmem:[#allocation8 + $0x178] sm:$0xff]
    %v10115 = vld [vmem:[#allocation8 + $0x180] sm:$0xff]
    %v10116 = vld [vmem:[#allocation8 + $0x188] sm:$0xff]
    %v10117 = vld [vmem:[#allocation8 + $0x190] sm:$0xff]
    %v10118 = vld [vmem:[#allocation8 + $0x198] sm:$0xff]
    %v10119 = vld [vmem:[#allocation8 + $0x1a0] sm:$0xff]
    %v10120 = vld [vmem:[#allocation8 + $0x1a8] sm:$0xff]
    %v10121 = vld [vmem:[#allocation8 + $0x1b0] sm:$0xff]
    %v10122 = vld [vmem:[#allocation8 + $0x1b8] sm:$0xff]
    %v10123 = vld [vmem:[#allocation8 + $0x1c0] sm:$0xff]
    %v10124 = vld [vmem:[#allocation8 + $0x1c8] sm:$0xff]
    %v10125 = vld [vmem:[#allocation8 + $0x1d0] sm:$0xff]
    %v10126 = vld [vmem:[#allocation8 + $0x1d8] sm:$0xff]
    %v10127 = vld [vmem:[#allocation8 + $0x1e0] sm:$0xff]
    %v10128 = vld [vmem:[#allocation8 + $0x1e8] sm:$0xff]
    %v10129 = vld [vmem:[#allocation8 + $0x1f0] sm:$0xff]
    %v10130 = vld [vmem:[#allocation8 + $0x1f8] sm:$0xff]
    %v10131 = vld [vmem:[#allocation8 + $0x200] sm:$0xff]
    %v10132 = vld [vmem:[#allocation8 + $0x208] sm:$0xff]
    %v10133 = vld [vmem:[#allocation8 + $0x210] sm:$0xff]
    %v10134 = vld [vmem:[#allocation8 + $0x218] sm:$0xff]
    %v10135 = vld [vmem:[#allocation8 + $0x220] sm:$0xff]
    %v10136 = vld [vmem:[#allocation8 + $0x228] sm:$0xff]
    %v10137 = vld [vmem:[#allocation8 + $0x230] sm:$0xff]
    %v10138 = vld [vmem:[#allocation8 + $0x238] sm:$0xff]
    %v10139 = vld [vmem:[#allocation8 + $0x240] sm:$0xff]
    %v10140 = vld [vmem:[#allocation8 + $0x248] sm:$0xff]
    %v10141 = vld [vmem:[#allocation8 + $0x250] sm:$0xff]
    %v10142 = vld [vmem:[#allocation8 + $0x258] sm:$0xff]
    %v10143 = vld [vmem:[#allocation8 + $0x260] sm:$0xff]
    %v10144 = vld [vmem:[#allocation8 + $0x268] sm:$0xff]
    %v10145 = vld [vmem:[#allocation8 + $0x270] sm:$0xff]
    %v10146 = vld [vmem:[#allocation8 + $0x278] sm:$0xff]
    %v10147 = vld [vmem:[#allocation8 + $0x280] sm:$0xff]
    %v10148 = vld [vmem:[#allocation8 + $0x288] sm:$0xff]
    %v10149 = vld [vmem:[#allocation8 + $0x290] sm:$0xff]
    %v10150 = vld [vmem:[#allocation8 + $0x298] sm:$0xff]
    %v10151 = vld [vmem:[#allocation8 + $0x2a0] sm:$0xff]
    %v10152 = vld [vmem:[#allocation8 + $0x2a8] sm:$0xff]
    %v10153 = vld [vmem:[#allocation8 + $0x2b0] sm:$0xff]
    %v10154 = vld [vmem:[#allocation8 + $0x2b8] sm:$0xff]
    %v10155 = vld [vmem:[#allocation8 + $0x2c0] sm:$0xff]
    %v10156 = vld [vmem:[#allocation8 + $0x2c8] sm:$0xff]
    %v10157 = vld [vmem:[#allocation8 + $0x2d0] sm:$0xff]
    %v10158 = vld [vmem:[#allocation8 + $0x2d8] sm:$0xff]
    %v10159 = vld [vmem:[#allocation8 + $0x2e0] sm:$0xff]
    %v10160 = vld [vmem:[#allocation8 + $0x2e8] sm:$0xff]
    %v10161 = vld [vmem:[#allocation8 + $0x2f0] sm:$0xff]
    %v10162 = vld [vmem:[#allocation8 + $0x2f8] sm:$0xff]
    %v10163 = vld [vmem:[#allocation8 + $0x300] sm:$0xff]
    %v10164 = vld [vmem:[#allocation8 + $0x308] sm:$0xff]
    %v10165 = vld [vmem:[#allocation8 + $0x310] sm:$0xff]
    %v10166 = vld [vmem:[#allocation8 + $0x318] sm:$0xff]
    %v10167 = vld [vmem:[#allocation8 + $0x320] sm:$0xff]
    %v10168 = vld [vmem:[#allocation8 + $0x328] sm:$0xff]
    %v10169 = vld [vmem:[#allocation8 + $0x330] sm:$0xff]
    %v10170 = vld [vmem:[#allocation8 + $0x338] sm:$0xff]
    %v10171 = vld [vmem:[#allocation8 + $0x340] sm:$0xff]
    %v10172 = vld [vmem:[#allocation8 + $0x348] sm:$0xff]
    %v10173 = vld [vmem:[#allocation8 + $0x350] sm:$0xff]
    %v10174 = vld [vmem:[#allocation8 + $0x358] sm:$0xff]
    %v10175 = vld [vmem:[#allocation8 + $0x360] sm:$0xff]
    %v10176 = vld [vmem:[#allocation8 + $0x368] sm:$0xff]
    %v10177 = vld [vmem:[#allocation8 + $0x370] sm:$0xff]
    %v10178 = vld [vmem:[#allocation8 + $0x378] sm:$0xff]
    %v10179 = vld [vmem:[#allocation8 + $0x380] sm:$0xff]
    %v10180 = vld [vmem:[#allocation8 + $0x388] sm:$0xff]
    %v10181 = vld [vmem:[#allocation8 + $0x390] sm:$0xff]
    %v10182 = vld [vmem:[#allocation8 + $0x398] sm:$0xff]
    %v10183 = vld [vmem:[#allocation8 + $0x3a0] sm:$0xff]
    %v10184 = vld [vmem:[#allocation8 + $0x3a8] sm:$0xff]
    %v10185 = vld [vmem:[#allocation8 + $0x3b0] sm:$0xff]
    %v10186 = vld [vmem:[#allocation8 + $0x3b8] sm:$0xff]
    %v10187 = vld [vmem:[#allocation8 + $0x3c0] sm:$0xff]
    %v10188 = vld [vmem:[#allocation8 + $0x3c8] sm:$0xff]
    %v10189 = vld [vmem:[#allocation8 + $0x3d0] sm:$0xff]
    %v10190 = vld [vmem:[#allocation8 + $0x3d8] sm:$0xff]
    %v10191 = vld [vmem:[#allocation8 + $0x3e0] sm:$0xff]
    %v10192 = vld [vmem:[#allocation8 + $0x3e8] sm:$0xff]
    %v10193 = vld [vmem:[#allocation8 + $0x3f0] sm:$0xff]
    %v10194 = vld [vmem:[#allocation8 + $0x3f8] sm:$0xff]
    %v10195 = vld [vmem:[#allocation10] sm:$0x3]
    %v10197 = vlaneseq
    %v10198 = vshrl.u32 %v10197, 7
    %v10199 = vsub.s32 0, %v10198
    %v10200 = vrot.slane %v10195, %v10199
    %v10201 = vlaneseq
    %v10202 = vshrl.u32 %v10201, 7
    %v10203 = vsub.s32 1, %v10202
    %v10204 = vrot.slane %v10195, %v10203
    %v10335 = vunpack.c.l.b16 %v10067
    %v10336 = vunpack.c.h.b16 %v10067
    %v10337 = vunpack.c.l.b16 %v10068
    %v10338 = vunpack.c.h.b16 %v10068
    %v10339 = vunpack.c.l.b16 %v10069
    %v10340 = vunpack.c.h.b16 %v10069
    %v10341 = vunpack.c.l.b16 %v10070
    %v10342 = vunpack.c.h.b16 %v10070
    %v10343 = vunpack.c.l.b16 %v10071
    %v10344 = vunpack.c.h.b16 %v10071
    %v10345 = vunpack.c.l.b16 %v10072
    %v10346 = vunpack.c.h.b16 %v10072
    %v10347 = vunpack.c.l.b16 %v10073
    %v10348 = vunpack.c.h.b16 %v10073
    %v10349 = vunpack.c.l.b16 %v10074
    %v10350 = vunpack.c.h.b16 %v10074
    %v10351 = vunpack.c.l.b16 %v10075
    %v10352 = vunpack.c.h.b16 %v10075
    %v10353 = vunpack.c.l.b16 %v10076
    %v10354 = vunpack.c.h.b16 %v10076
    %v10355 = vunpack.c.l.b16 %v10077
    %v10356 = vunpack.c.h.b16 %v10077
    %v10357 = vunpack.c.l.b16 %v10078
    %v10358 = vunpack.c.h.b16 %v10078
    %v10359 = vunpack.c.l.b16 %v10079
    %v10360 = vunpack.c.h.b16 %v10079
    %v10361 = vunpack.c.l.b16 %v10080
    %v10362 = vunpack.c.h.b16 %v10080
    %v10363 = vunpack.c.l.b16 %v10081
    %v10364 = vunpack.c.h.b16 %v10081
    %v10365 = vunpack.c.l.b16 %v10082
    %v10366 = vunpack.c.h.b16 %v10082
    %v10367 = vunpack.c.l.b16 %v10083
    %v10368 = vunpack.c.h.b16 %v10083
    %v10369 = vunpack.c.l.b16 %v10084
    %v10370 = vunpack.c.h.b16 %v10084
    %v10371 = vunpack.c.l.b16 %v10085
    %v10372 = vunpack.c.h.b16 %v10085
    %v10373 = vunpack.c.l.b16 %v10086
    %v10374 = vunpack.c.h.b16 %v10086
    %v10375 = vunpack.c.l.b16 %v10087
    %v10376 = vunpack.c.h.b16 %v10087
    %v10377 = vunpack.c.l.b16 %v10088
    %v10378 = vunpack.c.h.b16 %v10088
    %v10379 = vunpack.c.l.b16 %v10089
    %v10380 = vunpack.c.h.b16 %v10089
    %v10381 = vunpack.c.l.b16 %v10090
    %v10382 = vunpack.c.h.b16 %v10090
    %v10383 = vunpack.c.l.b16 %v10091
    %v10384 = vunpack.c.h.b16 %v10091
    %v10385 = vunpack.c.l.b16 %v10092
    %v10386 = vunpack.c.h.b16 %v10092
    %v10387 = vunpack.c.l.b16 %v10093
    %v10388 = vunpack.c.h.b16 %v10093
    %v10389 = vunpack.c.l.b16 %v10094
    %v10390 = vunpack.c.h.b16 %v10094
    %v10391 = vunpack.c.l.b16 %v10095
    %v10392 = vunpack.c.h.b16 %v10095
    %v10393 = vunpack.c.l.b16 %v10096
    %v10394 = vunpack.c.h.b16 %v10096
    %v10395 = vunpack.c.l.b16 %v10097
    %v10396 = vunpack.c.h.b16 %v10097
    %v10397 = vunpack.c.l.b16 %v10098
    %v10398 = vunpack.c.h.b16 %v10098
    %v10399 = vunpack.c.l.b16 %v10099
    %v10400 = vunpack.c.h.b16 %v10099
    %v10401 = vunpack.c.l.b16 %v10100
    %v10402 = vunpack.c.h.b16 %v10100
    %v10403 = vunpack.c.l.b16 %v10101
    %v10404 = vunpack.c.h.b16 %v10101
    %v10405 = vunpack.c.l.b16 %v10102
    %v10406 = vunpack.c.h.b16 %v10102
    %v10407 = vunpack.c.l.b16 %v10103
    %v10408 = vunpack.c.h.b16 %v10103
    %v10409 = vunpack.c.l.b16 %v10104
    %v10410 = vunpack.c.h.b16 %v10104
    %v10411 = vunpack.c.l.b16 %v10105
    %v10412 = vunpack.c.h.b16 %v10105
    %v10413 = vunpack.c.l.b16 %v10106
    %v10414 = vunpack.c.h.b16 %v10106
    %v10415 = vunpack.c.l.b16 %v10107
    %v10416 = vunpack.c.h.b16 %v10107
    %v10417 = vunpack.c.l.b16 %v10108
    %v10418 = vunpack.c.h.b16 %v10108
    %v10419 = vunpack.c.l.b16 %v10109
    %v10420 = vunpack.c.h.b16 %v10109
    %v10421 = vunpack.c.l.b16 %v10110
    %v10422 = vunpack.c.h.b16 %v10110
    %v10423 = vunpack.c.l.b16 %v10111
    %v10424 = vunpack.c.h.b16 %v10111
    %v10425 = vunpack.c.l.b16 %v10112
    %v10426 = vunpack.c.h.b16 %v10112
    %v10427 = vunpack.c.l.b16 %v10113
    %v10428 = vunpack.c.h.b16 %v10113
    %v10429 = vunpack.c.l.b16 %v10114
    %v10430 = vunpack.c.h.b16 %v10114
    %v10431 = vunpack.c.l.b16 %v10115
    %v10432 = vunpack.c.h.b16 %v10115
    %v10433 = vunpack.c.l.b16 %v10116
    %v10434 = vunpack.c.h.b16 %v10116
    %v10435 = vunpack.c.l.b16 %v10117
    %v10436 = vunpack.c.h.b16 %v10117
    %v10437 = vunpack.c.l.b16 %v10118
    %v10438 = vunpack.c.h.b16 %v10118
    %v10439 = vunpack.c.l.b16 %v10119
    %v10440 = vunpack.c.h.b16 %v10119
    %v10441 = vunpack.c.l.b16 %v10120
    %v10442 = vunpack.c.h.b16 %v10120
    %v10443 = vunpack.c.l.b16 %v10121
    %v10444 = vunpack.c.h.b16 %v10121
    %v10445 = vunpack.c.l.b16 %v10122
    %v10446 = vunpack.c.h.b16 %v10122
    %v10447 = vunpack.c.l.b16 %v10123
    %v10448 = vunpack.c.h.b16 %v10123
    %v10449 = vunpack.c.l.b16 %v10124
    %v10450 = vunpack.c.h.b16 %v10124
    %v10451 = vunpack.c.l.b16 %v10125
    %v10452 = vunpack.c.h.b16 %v10125
    %v10453 = vunpack.c.l.b16 %v10126
    %v10454 = vunpack.c.h.b16 %v10126
    %v10455 = vunpack.c.l.b16 %v10127
    %v10456 = vunpack.c.h.b16 %v10127
    %v10457 = vunpack.c.l.b16 %v10128
    %v10458 = vunpack.c.h.b16 %v10128
    %v10459 = vunpack.c.l.b16 %v10129
    %v10460 = vunpack.c.h.b16 %v10129
    %v10461 = vunpack.c.l.b16 %v10130
    %v10462 = vunpack.c.h.b16 %v10130
    %v10463 = vunpack.c.l.b16 %v10131
    %v10464 = vunpack.c.h.b16 %v10131
    %v10465 = vunpack.c.l.b16 %v10132
    %v10466 = vunpack.c.h.b16 %v10132
    %v10467 = vunpack.c.l.b16 %v10133
    %v10468 = vunpack.c.h.b16 %v10133
    %v10469 = vunpack.c.l.b16 %v10134
    %v10470 = vunpack.c.h.b16 %v10134
    %v10471 = vunpack.c.l.b16 %v10135
    %v10472 = vunpack.c.h.b16 %v10135
    %v10473 = vunpack.c.l.b16 %v10136
    %v10474 = vunpack.c.h.b16 %v10136
    %v10475 = vunpack.c.l.b16 %v10137
    %v10476 = vunpack.c.h.b16 %v10137
    %v10477 = vunpack.c.l.b16 %v10138
    %v10478 = vunpack.c.h.b16 %v10138
    %v10479 = vunpack.c.l.b16 %v10139
    %v10480 = vunpack.c.h.b16 %v10139
    %v10481 = vunpack.c.l.b16 %v10140
    %v10482 = vunpack.c.h.b16 %v10140
    %v10483 = vunpack.c.l.b16 %v10141
    %v10484 = vunpack.c.h.b16 %v10141
    %v10485 = vunpack.c.l.b16 %v10142
    %v10486 = vunpack.c.h.b16 %v10142
    %v10487 = vunpack.c.l.b16 %v10143
    %v10488 = vunpack.c.h.b16 %v10143
    %v10489 = vunpack.c.l.b16 %v10144
    %v10490 = vunpack.c.h.b16 %v10144
    %v10491 = vunpack.c.l.b16 %v10145
    %v10492 = vunpack.c.h.b16 %v10145
    %v10493 = vunpack.c.l.b16 %v10146
    %v10494 = vunpack.c.h.b16 %v10146
    %v10495 = vunpack.c.l.b16 %v10147
    %v10496 = vunpack.c.h.b16 %v10147
    %v10497 = vunpack.c.l.b16 %v10148
    %v10498 = vunpack.c.h.b16 %v10148
    %v10499 = vunpack.c.l.b16 %v10149
    %v10500 = vunpack.c.h.b16 %v10149
    %v10501 = vunpack.c.l.b16 %v10150
    %v10502 = vunpack.c.h.b16 %v10150
    %v10503 = vunpack.c.l.b16 %v10151
    %v10504 = vunpack.c.h.b16 %v10151
    %v10505 = vunpack.c.l.b16 %v10152
    %v10506 = vunpack.c.h.b16 %v10152
    %v10507 = vunpack.c.l.b16 %v10153
    %v10508 = vunpack.c.h.b16 %v10153
    %v10509 = vunpack.c.l.b16 %v10154
    %v10510 = vunpack.c.h.b16 %v10154
    %v10511 = vunpack.c.l.b16 %v10155
    %v10512 = vunpack.c.h.b16 %v10155
    %v10513 = vunpack.c.l.b16 %v10156
    %v10514 = vunpack.c.h.b16 %v10156
    %v10515 = vunpack.c.l.b16 %v10157
    %v10516 = vunpack.c.h.b16 %v10157
    %v10517 = vunpack.c.l.b16 %v10158
    %v10518 = vunpack.c.h.b16 %v10158
    %v10519 = vunpack.c.l.b16 %v10159
    %v10520 = vunpack.c.h.b16 %v10159
    %v10521 = vunpack.c.l.b16 %v10160
    %v10522 = vunpack.c.h.b16 %v10160
    %v10523 = vunpack.c.l.b16 %v10161
    %v10524 = vunpack.c.h.b16 %v10161
    %v10525 = vunpack.c.l.b16 %v10162
    %v10526 = vunpack.c.h.b16 %v10162
    %v10527 = vunpack.c.l.b16 %v10163
    %v10528 = vunpack.c.h.b16 %v10163
    %v10529 = vunpack.c.l.b16 %v10164
    %v10530 = vunpack.c.h.b16 %v10164
    %v10531 = vunpack.c.l.b16 %v10165
    %v10532 = vunpack.c.h.b16 %v10165
    %v10533 = vunpack.c.l.b16 %v10166
    %v10534 = vunpack.c.h.b16 %v10166
    %v10535 = vunpack.c.l.b16 %v10167
    %v10536 = vunpack.c.h.b16 %v10167
    %v10537 = vunpack.c.l.b16 %v10168
    %v10538 = vunpack.c.h.b16 %v10168
    %v10539 = vunpack.c.l.b16 %v10169
    %v10540 = vunpack.c.h.b16 %v10169
    %v10541 = vunpack.c.l.b16 %v10170
    %v10542 = vunpack.c.h.b16 %v10170
    %v10543 = vunpack.c.l.b16 %v10171
    %v10544 = vunpack.c.h.b16 %v10171
    %v10545 = vunpack.c.l.b16 %v10172
    %v10546 = vunpack.c.h.b16 %v10172
    %v10547 = vunpack.c.l.b16 %v10173
    %v10548 = vunpack.c.h.b16 %v10173
    %v10549 = vunpack.c.l.b16 %v10174
    %v10550 = vunpack.c.h.b16 %v10174
    %v10551 = vunpack.c.l.b16 %v10175
    %v10552 = vunpack.c.h.b16 %v10175
    %v10553 = vunpack.c.l.b16 %v10176
    %v10554 = vunpack.c.h.b16 %v10176
    %v10555 = vunpack.c.l.b16 %v10177
    %v10556 = vunpack.c.h.b16 %v10177
    %v10557 = vunpack.c.l.b16 %v10178
    %v10558 = vunpack.c.h.b16 %v10178
    %v10559 = vunpack.c.l.b16 %v10179
    %v10560 = vunpack.c.h.b16 %v10179
    %v10561 = vunpack.c.l.b16 %v10180
    %v10562 = vunpack.c.h.b16 %v10180
    %v10563 = vunpack.c.l.b16 %v10181
    %v10564 = vunpack.c.h.b16 %v10181
    %v10565 = vunpack.c.l.b16 %v10182
    %v10566 = vunpack.c.h.b16 %v10182
    %v10567 = vunpack.c.l.b16 %v10183
    %v10568 = vunpack.c.h.b16 %v10183
    %v10569 = vunpack.c.l.b16 %v10184
    %v10570 = vunpack.c.h.b16 %v10184
    %v10571 = vunpack.c.l.b16 %v10185
    %v10572 = vunpack.c.h.b16 %v10185
    %v10573 = vunpack.c.l.b16 %v10186
    %v10574 = vunpack.c.h.b16 %v10186
    %v10575 = vunpack.c.l.b16 %v10187
    %v10576 = vunpack.c.h.b16 %v10187
    %v10577 = vunpack.c.l.b16 %v10188
    %v10578 = vunpack.c.h.b16 %v10188
    %v10579 = vunpack.c.l.b16 %v10189
    %v10580 = vunpack.c.h.b16 %v10189
    %v10581 = vunpack.c.l.b16 %v10190
    %v10582 = vunpack.c.h.b16 %v10190
    %v10583 = vunpack.c.l.b16 %v10191
    %v10584 = vunpack.c.h.b16 %v10191
    %v10585 = vunpack.c.l.b16 %v10192
    %v10586 = vunpack.c.h.b16 %v10192
    %v10587 = vunpack.c.l.b16 %v10193
    %v10588 = vunpack.c.h.b16 %v10193
    %v10589 = vunpack.c.l.b16 %v10194
    %v10590 = vunpack.c.h.b16 %v10194
    %v10591 = vpack.c.b16 %v10337, %v10335
    %v10592 = vpack.c.b16 %v10338, %v10336
    %v10593 = vpack.c.b16 %v10341, %v10339
    %v10594 = vpack.c.b16 %v10342, %v10340
    %v10595 = vpack.c.b16 %v10345, %v10343
    %v10596 = vpack.c.b16 %v10346, %v10344
    %v10597 = vpack.c.b16 %v10349, %v10347
    %v10598 = vpack.c.b16 %v10350, %v10348
    %v10599 = vpack.c.b16 %v10353, %v10351
    %v10600 = vpack.c.b16 %v10354, %v10352
    %v10601 = vpack.c.b16 %v10357, %v10355
    %v10602 = vpack.c.b16 %v10358, %v10356
    %v10603 = vpack.c.b16 %v10361, %v10359
    %v10604 = vpack.c.b16 %v10362, %v10360
    %v10605 = vpack.c.b16 %v10365, %v10363
    %v10606 = vpack.c.b16 %v10366, %v10364
    %v10607 = vpack.c.b16 %v10369, %v10367
    %v10608 = vpack.c.b16 %v10370, %v10368
    %v10609 = vpack.c.b16 %v10373, %v10371
    %v10610 = vpack.c.b16 %v10374, %v10372
    %v10611 = vpack.c.b16 %v10377, %v10375
    %v10612 = vpack.c.b16 %v10378, %v10376
    %v10613 = vpack.c.b16 %v10381, %v10379
    %v10614 = vpack.c.b16 %v10382, %v10380
    %v10615 = vpack.c.b16 %v10385, %v10383
    %v10616 = vpack.c.b16 %v10386, %v10384
    %v10617 = vpack.c.b16 %v10389, %v10387
    %v10618 = vpack.c.b16 %v10390, %v10388
    %v10619 = vpack.c.b16 %v10393, %v10391
    %v10620 = vpack.c.b16 %v10394, %v10392
    %v10621 = vpack.c.b16 %v10397, %v10395
    %v10622 = vpack.c.b16 %v10398, %v10396
    %v10623 = vpack.c.b16 %v10401, %v10399
    %v10624 = vpack.c.b16 %v10402, %v10400
    %v10625 = vpack.c.b16 %v10405, %v10403
    %v10626 = vpack.c.b16 %v10406, %v10404
    %v10627 = vpack.c.b16 %v10409, %v10407
    %v10628 = vpack.c.b16 %v10410, %v10408
    %v10629 = vpack.c.b16 %v10413, %v10411
    %v10630 = vpack.c.b16 %v10414, %v10412
    %v10631 = vpack.c.b16 %v10417, %v10415
    %v10632 = vpack.c.b16 %v10418, %v10416
    %v10633 = vpack.c.b16 %v10421, %v10419
    %v10634 = vpack.c.b16 %v10422, %v10420
    %v10635 = vpack.c.b16 %v10425, %v10423
    %v10636 = vpack.c.b16 %v10426, %v10424
    %v10637 = vpack.c.b16 %v10429, %v10427
    %v10638 = vpack.c.b16 %v10430, %v10428
    %v10639 = vpack.c.b16 %v10433, %v10431
    %v10640 = vpack.c.b16 %v10434, %v10432
    %v10641 = vpack.c.b16 %v10437, %v10435
    %v10642 = vpack.c.b16 %v10438, %v10436
    %v10643 = vpack.c.b16 %v10441, %v10439
    %v10644 = vpack.c.b16 %v10442, %v10440
    %v10645 = vpack.c.b16 %v10445, %v10443
    %v10646 = vpack.c.b16 %v10446, %v10444
    %v10647 = vpack.c.b16 %v10449, %v10447
    %v10648 = vpack.c.b16 %v10450, %v10448
    %v10649 = vpack.c.b16 %v10453, %v10451
    %v10650 = vpack.c.b16 %v10454, %v10452
    %v10651 = vpack.c.b16 %v10457, %v10455
    %v10652 = vpack.c.b16 %v10458, %v10456
    %v10653 = vpack.c.b16 %v10461, %v10459
    %v10654 = vpack.c.b16 %v10462, %v10460
    %v10655 = vpack.c.b16 %v10465, %v10463
    %v10656 = vpack.c.b16 %v10466, %v10464
    %v10657 = vpack.c.b16 %v10469, %v10467
    %v10658 = vpack.c.b16 %v10470, %v10468
    %v10659 = vpack.c.b16 %v10473, %v10471
    %v10660 = vpack.c.b16 %v10474, %v10472
    %v10661 = vpack.c.b16 %v10477, %v10475
    %v10662 = vpack.c.b16 %v10478, %v10476
    %v10663 = vpack.c.b16 %v10481, %v10479
    %v10664 = vpack.c.b16 %v10482, %v10480
    %v10665 = vpack.c.b16 %v10485, %v10483
    %v10666 = vpack.c.b16 %v10486, %v10484
    %v10667 = vpack.c.b16 %v10489, %v10487
    %v10668 = vpack.c.b16 %v10490, %v10488
    %v10669 = vpack.c.b16 %v10493, %v10491
    %v10670 = vpack.c.b16 %v10494, %v10492
    %v10671 = vpack.c.b16 %v10497, %v10495
    %v10672 = vpack.c.b16 %v10498, %v10496
    %v10673 = vpack.c.b16 %v10501, %v10499
    %v10674 = vpack.c.b16 %v10502, %v10500
    %v10675 = vpack.c.b16 %v10505, %v10503
    %v10676 = vpack.c.b16 %v10506, %v10504
    %v10677 = vpack.c.b16 %v10509, %v10507
    %v10678 = vpack.c.b16 %v10510, %v10508
    %v10679 = vpack.c.b16 %v10513, %v10511
    %v10680 = vpack.c.b16 %v10514, %v10512
    %v10681 = vpack.c.b16 %v10517, %v10515
    %v10682 = vpack.c.b16 %v10518, %v10516
    %v10683 = vpack.c.b16 %v10521, %v10519
    %v10684 = vpack.c.b16 %v10522, %v10520
    %v10685 = vpack.c.b16 %v10525, %v10523
    %v10686 = vpack.c.b16 %v10526, %v10524
    %v10687 = vpack.c.b16 %v10529, %v10527
    %v10688 = vpack.c.b16 %v10530, %v10528
    %v10689 = vpack.c.b16 %v10533, %v10531
    %v10690 = vpack.c.b16 %v10534, %v10532
    %v10691 = vpack.c.b16 %v10537, %v10535
    %v10692 = vpack.c.b16 %v10538, %v10536
    %v10693 = vpack.c.b16 %v10541, %v10539
    %v10694 = vpack.c.b16 %v10542, %v10540
    %v10695 = vpack.c.b16 %v10545, %v10543
    %v10696 = vpack.c.b16 %v10546, %v10544
    %v10697 = vpack.c.b16 %v10549, %v10547
    %v10698 = vpack.c.b16 %v10550, %v10548
    %v10699 = vpack.c.b16 %v10553, %v10551
    %v10700 = vpack.c.b16 %v10554, %v10552
    %v10701 = vpack.c.b16 %v10557, %v10555
    %v10702 = vpack.c.b16 %v10558, %v10556
    %v10703 = vpack.c.b16 %v10561, %v10559
    %v10704 = vpack.c.b16 %v10562, %v10560
    %v10705 = vpack.c.b16 %v10565, %v10563
    %v10706 = vpack.c.b16 %v10566, %v10564
    %v10707 = vpack.c.b16 %v10569, %v10567
    %v10708 = vpack.c.b16 %v10570, %v10568
    %v10709 = vpack.c.b16 %v10573, %v10571
    %v10710 = vpack.c.b16 %v10574, %v10572
    %v10711 = vpack.c.b16 %v10577, %v10575
    %v10712 = vpack.c.b16 %v10578, %v10576
    %v10713 = vpack.c.b16 %v10581, %v10579
    %v10714 = vpack.c.b16 %v10582, %v10580
    %v10715 = vpack.c.b16 %v10585, %v10583
    %v10716 = vpack.c.b16 %v10586, %v10584
    %v10717 = vpack.c.b16 %v10589, %v10587
    %v10718 = vpack.c.b16 %v10590, %v10588
    %10847 = vmatprep.subr.bf16.mxu0 %v10606
    %10848 = vmatpush1.bf16.msra.mxu0 %v10605
    %10849 = vmatprep.subr.bf16.mxu0 %v10604
    %10850 = vmatpush1.bf16.msra.mxu0 %v10603
    %10851 = vmatprep.subr.bf16.mxu0 %v10602
    %10852 = vmatpush1.bf16.msra.mxu0 %v10601
    %10853 = vmatprep.subr.bf16.mxu0 %v10600
    %10854 = vmatpush1.bf16.msra.mxu0 %v10599
    %10855 = vmatprep.subr.bf16.mxu0 %v10598
    %10856 = vmatpush1.bf16.msra.mxu0 %v10597
    %10857 = vmatprep.subr.bf16.mxu0 %v10596
    %10858 = vmatpush1.bf16.msra.mxu0 %v10595
    %10859 = vmatprep.subr.bf16.mxu0 %v10594
    %10860 = vmatpush1.bf16.msra.mxu0 %v10593
    %10861 = vmatprep.subr.bf16.mxu0 %v10592
    %10862 = vmatpush1.bf16.msra.mxu0 %v10591
    %10863 = vmatprep.subr.bf16.mxu0 %v10622
    %10864 = vmatpush2.bf16.msra.mxu0 %v10621
    %10865 = vmatprep.subr.bf16.mxu0 %v10620
    %10866 = vmatpush2.bf16.msra.mxu0 %v10619
    %10867 = vmatprep.subr.bf16.mxu0 %v10618
    %10868 = vmatpush2.bf16.msra.mxu0 %v10617
    %10869 = vmatprep.subr.bf16.mxu0 %v10616
    %10870 = vmatpush2.bf16.msra.mxu0 %v10615
    %10871 = vmatprep.subr.bf16.mxu0 %v10614
    %10872 = vmatpush2.bf16.msra.mxu0 %v10613
    %10873 = vmatprep.subr.bf16.mxu0 %v10612
    %10874 = vmatpush2.bf16.msra.mxu0 %v10611
    %10875 = vmatprep.subr.bf16.mxu0 %v10610
    %10876 = vmatpush2.bf16.msra.mxu0 %v10609
    %10877 = vmatprep.subr.bf16.mxu0 %v10608
    %10878 = vmatpush2.bf16.msra.mxu0 %v10607
    %10879 = vmatprep.mubr.bf16.mxu0 %v10060
    %10880 = vmatmul.mubr.bf16.gmra.mxu0 %v10059
    %v10881 = vpop.f32.mrf.mxu0
    %v10882 = vadd.f32 %v10200, %v10881
    %v10883 = vpop.f32.mrf.mxu0
    %v10884 = vadd.f32 %v10204, %v10883
    %v10885 = vpop.f32.mrf.mxu0
    %v10886 = vadd.f32 %v10200, %v10885
    %v10887 = vpop.f32.mrf.mxu0
    %v10888 = vadd.f32 %v10204, %v10887
    %10889 = vdwg.mxu0
    %10890 = vmatprep.subr.bf16.mxu0 %v10638
    %10891 = vmatpush1.bf16.msra.mxu0 %v10637
    %10892 = vmatprep.subr.bf16.mxu0 %v10636
    %10893 = vmatpush1.bf16.msra.mxu0 %v10635
    %10894 = vmatprep.subr.bf16.mxu0 %v10634
    %10895 = vmatpush1.bf16.msra.mxu0 %v10633
    %10896 = vmatprep.subr.bf16.mxu0 %v10632
    %10897 = vmatpush1.bf16.msra.mxu0 %v10631
    %10898 = vmatprep.subr.bf16.mxu0 %v10630
    %10899 = vmatpush1.bf16.msra.mxu0 %v10629
    %10900 = vmatprep.subr.bf16.mxu0 %v10628
    %10901 = vmatpush1.bf16.msra.mxu0 %v10627
    %10902 = vmatprep.subr.bf16.mxu0 %v10626
    %10903 = vmatpush1.bf16.msra.mxu0 %v10625
    %10904 = vmatprep.subr.bf16.mxu0 %v10624
    %10905 = vmatpush1.bf16.msra.mxu0 %v10623
    %10906 = vmatprep.subr.bf16.mxu0 %v10654
    %10907 = vmatpush2.bf16.msra.mxu0 %v10653
    %10908 = vmatprep.subr.bf16.mxu0 %v10652
    %10909 = vmatpush2.bf16.msra.mxu0 %v10651
    %10910 = vmatprep.subr.bf16.mxu0 %v10650
    %10911 = vmatpush2.bf16.msra.mxu0 %v10649
    %10912 = vmatprep.subr.bf16.mxu0 %v10648
    %10913 = vmatpush2.bf16.msra.mxu0 %v10647
    %10914 = vmatprep.subr.bf16.mxu0 %v10646
    %10915 = vmatpush2.bf16.msra.mxu0 %v10645
    %10916 = vmatprep.subr.bf16.mxu0 %v10644
    %10917 = vmatpush2.bf16.msra.mxu0 %v10643
    %10918 = vmatprep.subr.bf16.mxu0 %v10642
    %10919 = vmatpush2.bf16.msra.mxu0 %v10641
    %10920 = vmatprep.subr.bf16.mxu0 %v10640
    %10921 = vmatpush2.bf16.msra.mxu0 %v10639
    %10922 = vmatprep.mubr.bf16.mxu0 %v10062
    %10923 = vmatmul.mubr.bf16.gmra.mxu0 %v10061
    %v10924 = vpop.f32.mrf.mxu0
    %v10925 = vadd.f32 %v10882, %v10924
    %v10926 = vpop.f32.mrf.mxu0
    %v10927 = vadd.f32 %v10884, %v10926
    %v10928 = vpop.f32.mrf.mxu0
    %v10929 = vadd.f32 %v10886, %v10928
    %v10930 = vpop.f32.mrf.mxu0
    %v10931 = vadd.f32 %v10888, %v10930
    %10932 = vdwg.mxu0
    %10933 = vmatprep.subr.bf16.mxu0 %v10670
    %10934 = vmatpush1.bf16.msra.mxu0 %v10669
    %10935 = vmatprep.subr.bf16.mxu0 %v10668
    %10936 = vmatpush1.bf16.msra.mxu0 %v10667
    %10937 = vmatprep.subr.bf16.mxu0 %v10666
    %10938 = vmatpush1.bf16.msra.mxu0 %v10665
    %10939 = vmatprep.subr.bf16.mxu0 %v10664
    %10940 = vmatpush1.bf16.msra.mxu0 %v10663
    %10941 = vmatprep.subr.bf16.mxu0 %v10662
    %10942 = vmatpush1.bf16.msra.mxu0 %v10661
    %10943 = vmatprep.subr.bf16.mxu0 %v10660
    %10944 = vmatpush1.bf16.msra.mxu0 %v10659
    %10945 = vmatprep.subr.bf16.mxu0 %v10658
    %10946 = vmatpush1.bf16.msra.mxu0 %v10657
    %10947 = vmatprep.subr.bf16.mxu0 %v10656
    %10948 = vmatpush1.bf16.msra.mxu0 %v10655
    %10949 = vmatprep.subr.bf16.mxu0 %v10686
    %10950 = vmatpush2.bf16.msra.mxu0 %v10685
    %10951 = vmatprep.subr.bf16.mxu0 %v10684
    %10952 = vmatpush2.bf16.msra.mxu0 %v10683
    %10953 = vmatprep.subr.bf16.mxu0 %v10682
    %10954 = vmatpush2.bf16.msra.mxu0 %v10681
    %10955 = vmatprep.subr.bf16.mxu0 %v10680
    %10956 = vmatpush2.bf16.msra.mxu0 %v10679
    %10957 = vmatprep.subr.bf16.mxu0 %v10678
    %10958 = vmatpush2.bf16.msra.mxu0 %v10677
    %10959 = vmatprep.subr.bf16.mxu0 %v10676
    %10960 = vmatpush2.bf16.msra.mxu0 %v10675
    %10961 = vmatprep.subr.bf16.mxu0 %v10674
    %10962 = vmatpush2.bf16.msra.mxu0 %v10673
    %10963 = vmatprep.subr.bf16.mxu0 %v10672
    %10964 = vmatpush2.bf16.msra.mxu0 %v10671
    %10965 = vmatprep.mubr.bf16.mxu0 %v10064
    %10966 = vmatmul.mubr.bf16.gmra.mxu0 %v10063
    %v10967 = vpop.f32.mrf.mxu0
    %v10968 = vadd.f32 %v10925, %v10967
    %v10969 = vpop.f32.mrf.mxu0
    %v10970 = vadd.f32 %v10927, %v10969
    %v10971 = vpop.f32.mrf.mxu0
    %v10972 = vadd.f32 %v10929, %v10971
    %v10973 = vpop.f32.mrf.mxu0
    %v10974 = vadd.f32 %v10931, %v10973
    %10975 = vdwg.mxu0
    %10976 = vmatprep.subr.bf16.mxu0 %v10702
    %10977 = vmatpush1.bf16.msra.mxu0 %v10701
    %10978 = vmatprep.subr.bf16.mxu0 %v10700
    %10979 = vmatpush1.bf16.msra.mxu0 %v10699
    %10980 = vmatprep.subr.bf16.mxu0 %v10698
    %10981 = vmatpush1.bf16.msra.mxu0 %v10697
    %10982 = vmatprep.subr.bf16.mxu0 %v10696
    %10983 = vmatpush1.bf16.msra.mxu0 %v10695
    %10984 = vmatprep.subr.bf16.mxu0 %v10694
    %10985 = vmatpush1.bf16.msra.mxu0 %v10693
    %10986 = vmatprep.subr.bf16.mxu0 %v10692
    %10987 = vmatpush1.bf16.msra.mxu0 %v10691
    %10988 = vmatprep.subr.bf16.mxu0 %v10690
    %10989 = vmatpush1.bf16.msra.mxu0 %v10689
    %10990 = vmatprep.subr.bf16.mxu0 %v10688
    %10991 = vmatpush1.bf16.msra.mxu0 %v10687
    %10992 = vmatprep.subr.bf16.mxu0 %v10718
    %10993 = vmatpush2.bf16.msra.mxu0 %v10717
    %10994 = vmatprep.subr.bf16.mxu0 %v10716
    %10995 = vmatpush2.bf16.msra.mxu0 %v10715
    %10996 = vmatprep.subr.bf16.mxu0 %v10714
    %10997 = vmatpush2.bf16.msra.mxu0 %v10713
    %10998 = vmatprep.subr.bf16.mxu0 %v10712
    %10999 = vmatpush2.bf16.msra.mxu0 %v10711
    %11000 = vmatprep.subr.bf16.mxu0 %v10710
    %11001 = vmatpush2.bf16.msra.mxu0 %v10709
    %11002 = vmatprep.subr.bf16.mxu0 %v10708
    %11003 = vmatpush2.bf16.msra.mxu0 %v10707
    %11004 = vmatprep.subr.bf16.mxu0 %v10706
    %11005 = vmatpush2.bf16.msra.mxu0 %v10705
    %11006 = vmatprep.subr.bf16.mxu0 %v10704
    %11007 = vmatpush2.bf16.msra.mxu0 %v10703
    %11008 = vmatprep.mubr.bf16.mxu0 %v10066
    %11009 = vmatmul.mubr.bf16.gmra.mxu0 %v10065
    %v11010 = vpop.f32.mrf.mxu0
    %v11011 = vadd.f32 %v10968, %v11010
    %v11012 = vpop.f32.mrf.mxu0
    %v11013 = vadd.f32 %v10970, %v11012
    %v11014 = vpop.f32.mrf.mxu0
    %v11015 = vadd.f32 %v10972, %v11014
    %v11016 = vpop.f32.mrf.mxu0
    %v11017 = vadd.f32 %v10974, %v11016
    %11018 = vdwg.mxu0
    %v11019 = vmax.f32 %v11011, 0.0
    %v11020 = vmax.f32 %v11013, 0.0
    %v11021 = vmax.f32 %v11015, 0.0
    %v11022 = vmax.f32 %v11017, 0.0
    %v11023 = vpack.c.bf16 %v11021, %v11019
    %v11024 = vpack.c.bf16 %v11022, %v11020
    %v11025 = vld [vmem:[%s5] sm:$0xf]
    %v11026 = vld [vmem:[%s5 + $0x4] sm:$0xf]
    %v11027 = vld [vmem:[%s5 + $0x8] sm:$0xf]
    %v11028 = vld [vmem:[%s5 + $0xc] sm:$0xf]
    %v11029 = vld [vmem:[%s5 + $0x10] sm:$0xf]
    %v11030 = vld [vmem:[%s5 + $0x14] sm:$0xf]
    %v11031 = vld [vmem:[%s5 + $0x18] sm:$0xf]
    %v11032 = vld [vmem:[%s5 + $0x1c] sm:$0xf]
    %v11033 = vld [vmem:[%s5 + $0x20] sm:$0xf]
    %v11034 = vld [vmem:[%s5 + $0x24] sm:$0xf]
    %v11035 = vld [vmem:[%s5 + $0x28] sm:$0xf]
    %v11036 = vld [vmem:[%s5 + $0x2c] sm:$0xf]
    %v11037 = vld [vmem:[%s5 + $0x30] sm:$0xf]
    %v11038 = vld [vmem:[%s5 + $0x34] sm:$0xf]
    %v11039 = vld [vmem:[%s5 + $0x38] sm:$0xf]
    %v11040 = vld [vmem:[%s5 + $0x3c] sm:$0xf]
    %v11041 = vld [vmem:[%s5 + $0x40] sm:$0xf]
    %v11042 = vld [vmem:[%s5 + $0x44] sm:$0xf]
    %v11043 = vld [vmem:[%s5 + $0x48] sm:$0xf]
    %v11044 = vld [vmem:[%s5 + $0x4c] sm:$0xf]
    %v11045 = vld [vmem:[%s5 + $0x50] sm:$0xf]
    %v11046 = vld [vmem:[%s5 + $0x54] sm:$0xf]
    %v11047 = vld [vmem:[%s5 + $0x58] sm:$0xf]
    %v11048 = vld [vmem:[%s5 + $0x5c] sm:$0xf]
    %v11049 = vld [vmem:[%s5 + $0x60] sm:$0xf]
    %v11050 = vld [vmem:[%s5 + $0x64] sm:$0xf]
    %v11051 = vld [vmem:[%s5 + $0x68] sm:$0xf]
    %v11052 = vld [vmem:[%s5 + $0x6c] sm:$0xf]
    %v11053 = vld [vmem:[%s5 + $0x70] sm:$0xf]
    %v11054 = vld [vmem:[%s5 + $0x74] sm:$0xf]
    %v11055 = vld [vmem:[%s5 + $0x78] sm:$0xf]
    %v11056 = vld [vmem:[%s5 + $0x7c] sm:$0xf]
    %v11057 = vld [vmem:[#allocation11] sm:$0x1]
    %v11059 = vlaneseq
    %v11060 = vshrl.u32 %v11059, 7
    %v11061 = vsub.s32 0, %v11060
    %v11062 = vrot.slane %v11057, %v11061
    %v11096 = vunpack.c.l.b16 %v11025
    %v11097 = vunpack.c.l.b16 %v11026
    %v11098 = vunpack.c.l.b16 %v11027
    %v11099 = vunpack.c.l.b16 %v11028
    %v11100 = vunpack.c.l.b16 %v11029
    %v11101 = vunpack.c.l.b16 %v11030
    %v11102 = vunpack.c.l.b16 %v11031
    %v11103 = vunpack.c.l.b16 %v11032
    %v11104 = vunpack.c.l.b16 %v11033
    %v11105 = vunpack.c.l.b16 %v11034
    %v11106 = vunpack.c.l.b16 %v11035
    %v11107 = vunpack.c.l.b16 %v11036
    %v11108 = vunpack.c.l.b16 %v11037
    %v11109 = vunpack.c.l.b16 %v11038
    %v11110 = vunpack.c.l.b16 %v11039
    %v11111 = vunpack.c.l.b16 %v11040
    %v11112 = vunpack.c.l.b16 %v11041
    %v11113 = vunpack.c.l.b16 %v11042
    %v11114 = vunpack.c.l.b16 %v11043
    %v11115 = vunpack.c.l.b16 %v11044
    %v11116 = vunpack.c.l.b16 %v11045
    %v11117 = vunpack.c.l.b16 %v11046
    %v11118 = vunpack.c.l.b16 %v11047
    %v11119 = vunpack.c.l.b16 %v11048
    %v11120 = vunpack.c.l.b16 %v11049
    %v11121 = vunpack.c.l.b16 %v11050
    %v11122 = vunpack.c.l.b16 %v11051
    %v11123 = vunpack.c.l.b16 %v11052
    %v11124 = vunpack.c.l.b16 %v11053
    %v11125 = vunpack.c.l.b16 %v11054
    %v11126 = vunpack.c.l.b16 %v11055
    %v11127 = vunpack.c.l.b16 %v11056
    %v11128 = vpack.c.b16 %v11097, %v11096
    %v11129 = vpack.c.b16 %v11099, %v11098
    %v11130 = vpack.c.b16 %v11101, %v11100
    %v11131 = vpack.c.b16 %v11103, %v11102
    %v11132 = vpack.c.b16 %v11105, %v11104
    %v11133 = vpack.c.b16 %v11107, %v11106
    %v11134 = vpack.c.b16 %v11109, %v11108
    %v11135 = vpack.c.b16 %v11111, %v11110
    %v11136 = vpack.c.b16 %v11113, %v11112
    %v11137 = vpack.c.b16 %v11115, %v11114
    %v11138 = vpack.c.b16 %v11117, %v11116
    %v11139 = vpack.c.b16 %v11119, %v11118
    %v11140 = vpack.c.b16 %v11121, %v11120
    %v11141 = vpack.c.b16 %v11123, %v11122
    %v11142 = vpack.c.b16 %v11125, %v11124
    %v11143 = vpack.c.b16 %v11127, %v11126
    %11160 = vmatprep.subr.bf16.mxu0 0
    %11161 = vmatpush1.bf16.msra.mxu0 %v11135
    %11162 = vmatprep.subr.bf16.mxu0 0
    %11163 = vmatpush1.bf16.msra.mxu0 %v11134
    %11164 = vmatprep.subr.bf16.mxu0 0
    %11165 = vmatpush1.bf16.msra.mxu0 %v11133
    %11166 = vmatprep.subr.bf16.mxu0 0
    %11167 = vmatpush1.bf16.msra.mxu0 %v11132
    %11168 = vmatprep.subr.bf16.mxu0 0
    %11169 = vmatpush1.bf16.msra.mxu0 %v11131
    %11170 = vmatprep.subr.bf16.mxu0 0
    %11171 = vmatpush1.bf16.msra.mxu0 %v11130
    %11172 = vmatprep.subr.bf16.mxu0 0
    %11173 = vmatpush1.bf16.msra.mxu0 %v11129
    %11174 = vmatprep.subr.bf16.mxu0 0
    %11175 = vmatpush1.bf16.msra.mxu0 %v11128
    %11176 = vmatprep.subr.bf16.mxu0 0
    %11177 = vmatpush2.bf16.msra.mxu0 %v11143
    %11178 = vmatprep.subr.bf16.mxu0 0
    %11179 = vmatpush2.bf16.msra.mxu0 %v11142
    %11180 = vmatprep.subr.bf16.mxu0 0
    %11181 = vmatpush2.bf16.msra.mxu0 %v11141
    %11182 = vmatprep.subr.bf16.mxu0 0
    %11183 = vmatpush2.bf16.msra.mxu0 %v11140
    %11184 = vmatprep.subr.bf16.mxu0 0
    %11185 = vmatpush2.bf16.msra.mxu0 %v11139
    %11186 = vmatprep.subr.bf16.mxu0 0
    %11187 = vmatpush2.bf16.msra.mxu0 %v11138
    %11188 = vmatprep.subr.bf16.mxu0 0
    %11189 = vmatpush2.bf16.msra.mxu0 %v11137
    %11190 = vmatprep.subr.bf16.mxu0 0
    %11191 = vmatpush2.bf16.msra.mxu0 %v11136
    %11192 = vmatprep.mubr.bf16.mxu0 %v11024
    %11193 = vmatmul.mubr.bf16.gmra.mxu0 %v11023
    %v11194 = vpop.f32.mrf.mxu0
    %v11195 = vadd.f32 %v11062, %v11194
    %v11196 = vpop.f32.mrf.mxu0
    %v11197 = vpop.f32.mrf.mxu0
    %v11198 = vadd.f32 %v11062, %v11197
    %v11199 = vpop.f32.mrf.mxu0
    %11200 = vdwg.mxu0
    %v11201 = vmax.f32 %v11195, 0.0
    %v11202 = vmax.f32 %v11198, 0.0
    %v11203 = vld [vmem:[#allocation13] sm:$0x1]
    %v11205 = vlaneseq
    %v11206 = vshrl.u32 %v11205, 7
    %v11207 = vsub.s32 0, %v11206
    %v11208 = vrot.slane %v11203, %v11207
    %v11210 = vmul.f32 %v11201, %v11208
    %v11211 = vmul.f32 %v11202, %v11208
    %vm11212 = vcmask 523264
    %v11213 = vsel %vm11212, %v11210, 0.0
    %11214 = vadd.xlane.f32.xlu0 %v11213
    %v11215 = vpop.xlane.xlu0 %11214
    %v11216 = vsel %vm11212, %v11211, 0.0
    %11217 = vadd.xlane.f32.xlu0 %v11216
    %v11218 = vpop.xlane.xlu0 %11217
    %v11219 = vld [vmem:[#allocation2] sm:$0x1]
    %v11221 = vlaneseq
    %v11222 = vshrl.u32 %v11221, 7
    %v11223 = vsub.s32 0, %v11222
    %v11224 = vrot.slane %v11219, %v11223
    %v11226 = vadd.f32 %v11215, %v11224
    %v11227 = vadd.f32 %v11218, %v11224
    %vm11228 = vcmask 7168
    %11229 = vst.msk [vmem:[%s9] sm:$0xff] %vm11228, %v11226
    %11230 = vst.msk [vmem:[%s9 + $0x8] sm:$0xff] %vm11228, %v11227
    // Predicated region
    $region66: #{tpu_custom_call.1} parent=1 // pred_check
      _
    $region67: #{tpu_custom_call.1} parent=1 // pred_check_branch
      %11232 = sbr.rel (0) target = $region69
    $region68: #{tpu_custom_call.1} parent=1 // pred_region
      _
    $region69: #{tpu_custom_call.1} parent=1 // pred_fallthru
      _
    // Predicated region
    $region70: #{tpu_custom_call.1} parent=1 // pred_check
      _
    $region71: #{tpu_custom_call.1} parent=1 // pred_check_branch
      %11234 = sbr.rel (0) target = $region73
    $region72: #{tpu_custom_call.1} parent=1 // pred_region
      _
    $region73: #{tpu_custom_call.1} parent=1 // pred_fallthru
      _
    %11235 = vsyncpa [#allocation4], 1
    %11236 = vsyncpa [#allocation6], 1
    %11237 = vsyncpa [#allocation9], 1
    %11238 = vsyncpa [#allocation12], 1

</llo_original>
